<compile_context>
chip_gen: v5e
topology: v5e:2x2
jax: 0.10.0
libtpu: 0.0.40
codegen_flags: <defaults>
</compile_context>

<pallas_src>
import jax
import jax.numpy as jnp
import numpy as np
from jax import lax
from jax.experimental import pallas as pl
from jax.experimental.pallas import tpu as pltpu

_LANES = 128


def _round_up(x, m):
    return ((x + m - 1) // m) * m


def _pick_batch_block(batch):
    for bt in (8, 4, 2, 1):
        if batch % bt == 0:
            return bt
    return 1


def conv_lstm_forward(x_nchw, weight_oihw, bias, prev_state=None):
    """ConvLSTM cell forward.

    Args:
      x_nchw:      (B, Cin, H, W) input, NCHW as in PyTorch.
      weight_oihw: (4*hidden, Cin+hidden, K, K) conv weight, PyTorch OIHW.
      bias:        (4*hidden,) conv bias.
      prev_state:  optional (hidden, cell), each (B, hidden, H, W) NCHW.

    Returns:
      (hidden, cell): hidden in x's dtype, cell in float32, both (B, hid, H, W).
    """
    B, Cin, H, W = x_nchw.shape
    four_hid, cin_total, K, _ = weight_oihw.shape
    hid = four_hid // 4
    pad = K // 2
    in_dtype = x_nchw.dtype
    HW = H * W
    Hp, Wp = H + 2 * pad, W + 2 * pad
    Cp = _round_up(cin_total, _LANES)      # lane-aligned channels per conv tap
    KKCp = K * K * Cp

    if prev_state is None:
        prev_h = jnp.zeros((B, hid, H, W), in_dtype)
        prev_c = jnp.zeros((B, hid, H, W), jnp.float32)
    else:
        prev_h, prev_c = prev_state

    # ---- wrapper glue (one small XLA fusion) -------------------------------
    # NCHW -> NHWC, concat along channels, zero-pad spatially (SAME conv) and
    # zero-pad channels up to the 128-lane boundary so every in-kernel im2col
    # store is a full, aligned lane block.
    x_nhwc = jnp.transpose(x_nchw, (0, 2, 3, 1)).astype(jnp.float32)
    h_nhwc = jnp.transpose(prev_h, (0, 2, 3, 1)).astype(jnp.float32)
    stacked = jnp.concatenate([x_nhwc, h_nhwc], axis=-1)          # (B,H,W,Ct)
    stacked = jnp.pad(
        stacked,
        ((0, 0), (pad, pad), (pad, pad), (0, Cp - cin_total)))    # (B,Hp,Wp,Cp)

    # OIHW -> HWIO, channel-padded, flattened so row (dy*K + dx)*Cp + c lines
    # up with the im2col lane layout built inside the kernel.  bf16 for MXU.
    w_hwio = jnp.transpose(weight_oihw, (2, 3, 1, 0))
    w_hwio = jnp.pad(w_hwio, ((0, 0), (0, 0), (0, Cp - cin_total), (0, 0)))
    w_flat = w_hwio.reshape(KKCp, four_hid).astype(jnp.bfloat16)

    b_2d = bias.reshape(1, four_hid).astype(jnp.float32)

    # Previous cell state as lane-dense flattened NCHW, carried in f32.
    c_prev = prev_c.reshape(B, hid, HW).astype(jnp.float32)

    Bt = _pick_batch_block(B)

    def kernel(x_ref, w_ref, b_ref, c_ref, h_out_ref, c_out_ref, col_ref):
        # x_ref:   (Bt, Hp, Wp, Cp)  f32  zero-padded stacked input
        # w_ref:   (KKCp, 4*hid)     bf16 flattened conv weight
        # b_ref:   (1, 4*hid)        f32  bias
        # c_ref:   (Bt, hid, HW)     f32  previous cell state (flat NCHW)
        # h_out:   (Bt, hid, HW)     in_dtype
        # c_out:   (Bt, hid, HW)     f32
        # col_ref: (HW, KKCp)        bf16 im2col scratch
        for b in range(Bt):
            # Build the im2col patch.  Each tap block is a full 128-lane slab
            # at a 128-aligned lane offset -> unmasked VMEM stores.
            for dy in range(K):
                for dx in range(K):
                    t = dy * K + dx
                    slab = x_ref[b, dy:dy + H, dx:dx + W, :]       # (H, W, Cp)
                    col_ref[:, t * Cp:(t + 1) * Cp] = (
                        slab.reshape(HW, Cp).astype(jnp.bfloat16))
            # One bf16 MXU matmul with f32 accumulation:
            #   (HW, K*K*Cp) @ (K*K*Cp, 4*hid) -> (HW, 4*hid)
            gates = jnp.dot(col_ref[...], w_ref[...],
                            preferred_element_type=jnp.float32)
            gates = gates + b_ref[...]
            # Transpose once so all gate math runs on full 128-lane rows and
            # the outputs store lane-dense into flattened-NCHW blocks.
            gates_t = jnp.transpose(gates)                          # (4h, HW)
            # Gate ordering matches torch.chunk(4, dim=1): in, remember, out, cell.
            in_gate = jax.nn.sigmoid(gates_t[0 * hid:1 * hid, :])
            remember_gate = jax.nn.sigmoid(gates_t[1 * hid:2 * hid, :])
            out_gate = jax.nn.sigmoid(gates_t[2 * hid:3 * hid, :])
            cell_gate = jnp.tanh(gates_t[3 * hid:4 * hid, :])

            cell = remember_gate * c_ref[b] + in_gate * cell_gate   # f32
            hidden = out_gate * jnp.tanh(cell)

            h_out_ref[b] = hidden.astype(h_out_ref.dtype)
            c_out_ref[b] = cell

    h_out, c_out = pl.pallas_call(
        kernel,
        out_shape=(jax.ShapeDtypeStruct((B, hid, HW), in_dtype),
                   jax.ShapeDtypeStruct((B, hid, HW), jnp.float32)),
        grid_spec=pltpu.PrefetchScalarGridSpec(
            num_scalar_prefetch=0,
            grid=(B // Bt,),
            in_specs=[
                pl.BlockSpec((Bt, Hp, Wp, Cp), lambda i: (i, 0, 0, 0)),
                pl.BlockSpec((KKCp, four_hid), lambda i: (0, 0)),
                pl.BlockSpec((1, four_hid), lambda i: (0, 0)),
                pl.BlockSpec((Bt, hid, HW), lambda i: (i, 0, 0)),
            ],
            out_specs=[
                pl.BlockSpec((Bt, hid, HW), lambda i: (i, 0, 0)),
                pl.BlockSpec((Bt, hid, HW), lambda i: (i, 0, 0)),
            ],
            scratch_shapes=[pltpu.VMEM((HW, KKCp), jnp.bfloat16)],
        ),
        compiler_params=pltpu.CompilerParams(
            dimension_semantics=("parallel",)),
    )(stacked, w_flat, b_2d, c_prev)

    # Free reshapes (bit-identical layout) back to NCHW; no transposes needed.
    hidden = h_out.reshape(B, hid, H, W)
    cell = c_out.reshape(B, hid, H, W)
    return hidden, cell
    # TODO(synk): for B=1 on v7x, add a spatially-tiled "parallel" grid axis so
    # both TensorCores are used; at these shapes a single core suffices.


def _reference_forward(x_nchw, weight_oihw, bias, prev_state=None):
    """Pure-JAX reference mirroring the PyTorch module (for validation)."""
    B, Cin, H, W = x_nchw.shape
    four_hid = weight_oihw.shape[0]
    hid = four_hid // 4
    if prev_state is None:
        prev_h = jnp.zeros((B, hid, H, W), jnp.float32)
        prev_c = jnp.zeros((B, hid, H, W), jnp.float32)
    else:
        prev_h, prev_c = prev_state
    stacked = jnp.concatenate([x_nchw.astype(jnp.float32),
                               prev_h.astype(jnp.float32)], axis=1)
    gates = lax.conv_general_dilated(
        stacked, weight_oihw.astype(jnp.float32), window_strides=(1, 1),
        padding="SAME", dimension_numbers=("NCHW", "OIHW", "NCHW"))
    gates = gates + bias.reshape(1, four_hid, 1, 1)
    i, f, o, g = jnp.split(gates, 4, axis=1)
    i, f, o = jax.nn.sigmoid(i), jax.nn.sigmoid(f), jax.nn.sigmoid(o)
    g = jnp.tanh(g)
    cell = f * prev_c.astype(jnp.float32) + i * g
    hidden = o * jnp.tanh(cell)
    return hidden, cell


if __name__ == "__main__":
    # Small shapes consistent with the module's forward.
    B, Cin, H, W = 2, 4, 16, 16
    hidden_size = 32
    kernel_size = 3
    cin_total = Cin + hidden_size

    key = jax.random.PRNGKey(0)
    kx, kw, kb = jax.random.split(key, 3)

    x = jax.random.normal(kx, (B, Cin, H, W), dtype=jnp.float32)
    fan_in = cin_total * kernel_size * kernel_size
    weight = jax.random.normal(
        kw, (4 * hidden_size, cin_total, kernel_size, kernel_size),
        dtype=jnp.float32) * (1.0 / jnp.sqrt(fan_in))
    bias = jax.random.normal(kb, (4 * hidden_size,), dtype=jnp.float32) * 0.01

    fwd = jax.jit(conv_lstm_forward)

    # Step 1 (zero previous state).
    h1, c1 = fwd(x, weight, bias)
    jax.block_until_ready((h1, c1))
    rh1, rc1 = _reference_forward(x, weight, bias)
    np.testing.assert_allclose(np.asarray(h1), np.asarray(rh1),
                               rtol=2e-2, atol=2e-2)
    np.testing.assert_allclose(np.asarray(c1), np.asarray(rc1),
                               rtol=2e-2, atol=2e-2)

    # Step 2 (carried recurrent state) exercises the c_prev / prev_h path.
    h2, c2 = fwd(x, weight, bias, (h1, c1))
    jax.block_until_ready((h2, c2))
    rh2, rc2 = _reference_forward(x, weight, bias, (rh1, rc1))
    np.testing.assert_allclose(np.asarray(h2), np.asarray(rh2),
                               rtol=3e-2, atol=3e-2)
    np.testing.assert_allclose(np.asarray(c2), np.asarray(rc2),
                               rtol=3e-2, atol=3e-2)

    print("KERNEL_OK")
</pallas_src>

<mosaic_0001>
module attributes {stable_mosaic.version = 11 : i64} {
  func.func @kernel(%arg0: i32, %arg1: memref<2x18x18x128xf32, #tpu.memory_space<vmem>>, %arg2: memref<1152x128xbf16, #tpu.memory_space<vmem>>, %arg3: memref<1x128xf32, #tpu.memory_space<vmem>>, %arg4: memref<2x32x256xf32, #tpu.memory_space<vmem>>, %arg5: memref<2x32x256xf32, #tpu.memory_space<vmem>>, %arg6: memref<2x32x256xf32, #tpu.memory_space<vmem>>, %arg7: memref<256x1152xbf16, #tpu.memory_space<vmem>>) attributes {dimension_semantics = [#tpu.dimension_semantics<parallel>], iteration_bounds = array<i64: 1>, scalar_prefetch = 0 : i64, scratch_operands = 1 : i64, tpu.core_type = #tpu.core_type<tc>, window_params = [{transform_indices = @transform_0, window_bounds = array<i64: 2, 18, 18, 128>}, {pipeline_mode = #tpu.pipeline_mode<synchronous>, transform_indices = @transform_1, window_bounds = array<i64: 1152, 128>}, {pipeline_mode = #tpu.pipeline_mode<synchronous>, transform_indices = @transform_2, window_bounds = array<i64: 1, 128>}, {transform_indices = @transform_3, window_bounds = array<i64: 2, 32, 256>}, {transform_indices = @transform_4, window_bounds = array<i64: 2, 32, 256>}, {transform_indices = @transform_5, window_bounds = array<i64: 2, 32, 256>}]} {
    %c0 = arith.constant 0 : index
    %c0_0 = arith.constant 0 : index
    %c0_1 = arith.constant 0 : index
    %c0_2 = arith.constant 0 : index
    %0 = vector.load %arg1[%c0, %c0_0, %c0_1, %c0_2] : memref<2x18x18x128xf32, #tpu.memory_space<vmem>>, vector<1x16x16x128xf32>
    %1 = vector.shape_cast %0 : vector<1x16x16x128xf32> to vector<16x16x128xf32>
    %2 = vector.shape_cast %1 : vector<16x16x128xf32> to vector<256x128xf32>
    %3 = arith.truncf %2 : vector<256x128xf32> to vector<256x128xbf16>
    %c0_3 = arith.constant 0 : index
    %c0_4 = arith.constant 0 : index
    %4 = vector.load %arg7[%c0_3, %c0_4] : memref<256x1152xbf16, #tpu.memory_space<vmem>>, vector<256x128xbf16>
    tpu.vector_store %arg7[%c0_3, %c0_4], %3 {strides = array<i32>} : memref<256x1152xbf16, #tpu.memory_space<vmem>>, vector<256x128xbf16>,
    %c0_5 = arith.constant 0 : index
    %c0_6 = arith.constant 0 : index
    %c1 = arith.constant 1 : index
    %c0_7 = arith.constant 0 : index
    %5 = vector.load %arg1[%c0_5, %c0_6, %c1, %c0_7] : memref<2x18x18x128xf32, #tpu.memory_space<vmem>>, vector<1x16x16x128xf32>
    %6 = vector.shape_cast %5 : vector<1x16x16x128xf32> to vector<16x16x128xf32>
    %7 = vector.shape_cast %6 : vector<16x16x128xf32> to vector<256x128xf32>
    %8 = arith.truncf %7 : vector<256x128xf32> to vector<256x128xbf16>
    %c0_8 = arith.constant 0 : index
    %c128 = arith.constant 128 : index
    %9 = vector.load %arg7[%c0_8, %c128] : memref<256x1152xbf16, #tpu.memory_space<vmem>>, vector<256x128xbf16>
    tpu.vector_store %arg7[%c0_8, %c128], %8 {strides = array<i32>} : memref<256x1152xbf16, #tpu.memory_space<vmem>>, vector<256x128xbf16>,
    %c0_9 = arith.constant 0 : index
    %c0_10 = arith.constant 0 : index
    %c2 = arith.constant 2 : index
    %c0_11 = arith.constant 0 : index
    %10 = vector.load %arg1[%c0_9, %c0_10, %c2, %c0_11] : memref<2x18x18x128xf32, #tpu.memory_space<vmem>>, vector<1x16x16x128xf32>
    %11 = vector.shape_cast %10 : vector<1x16x16x128xf32> to vector<16x16x128xf32>
    %12 = vector.shape_cast %11 : vector<16x16x128xf32> to vector<256x128xf32>
    %13 = arith.truncf %12 : vector<256x128xf32> to vector<256x128xbf16>
    %c0_12 = arith.constant 0 : index
    %c256 = arith.constant 256 : index
    %14 = vector.load %arg7[%c0_12, %c256] : memref<256x1152xbf16, #tpu.memory_space<vmem>>, vector<256x128xbf16>
    tpu.vector_store %arg7[%c0_12, %c256], %13 {strides = array<i32>} : memref<256x1152xbf16, #tpu.memory_space<vmem>>, vector<256x128xbf16>,
    %c0_13 = arith.constant 0 : index
    %c1_14 = arith.constant 1 : index
    %c0_15 = arith.constant 0 : index
    %c0_16 = arith.constant 0 : index
    %15 = vector.load %arg1[%c0_13, %c1_14, %c0_15, %c0_16] : memref<2x18x18x128xf32, #tpu.memory_space<vmem>>, vector<1x16x16x128xf32>
    %16 = vector.shape_cast %15 : vector<1x16x16x128xf32> to vector<16x16x128xf32>
    %17 = vector.shape_cast %16 : vector<16x16x128xf32> to vector<256x128xf32>
    %18 = arith.truncf %17 : vector<256x128xf32> to vector<256x128xbf16>
    %c0_17 = arith.constant 0 : index
    %c384 = arith.constant 384 : index
    %19 = vector.load %arg7[%c0_17, %c384] : memref<256x1152xbf16, #tpu.memory_space<vmem>>, vector<256x128xbf16>
    tpu.vector_store %arg7[%c0_17, %c384], %18 {strides = array<i32>} : memref<256x1152xbf16, #tpu.memory_space<vmem>>, vector<256x128xbf16>,
    %c0_18 = arith.constant 0 : index
    %c1_19 = arith.constant 1 : index
    %c1_20 = arith.constant 1 : index
    %c0_21 = arith.constant 0 : index
    %20 = vector.load %arg1[%c0_18, %c1_19, %c1_20, %c0_21] : memref<2x18x18x128xf32, #tpu.memory_space<vmem>>, vector<1x16x16x128xf32>
    %21 = vector.shape_cast %20 : vector<1x16x16x128xf32> to vector<16x16x128xf32>
    %22 = vector.shape_cast %21 : vector<16x16x128xf32> to vector<256x128xf32>
    %23 = arith.truncf %22 : vector<256x128xf32> to vector<256x128xbf16>
    %c0_22 = arith.constant 0 : index
    %c512 = arith.constant 512 : index
    %24 = vector.load %arg7[%c0_22, %c512] : memref<256x1152xbf16, #tpu.memory_space<vmem>>, vector<256x128xbf16>
    tpu.vector_store %arg7[%c0_22, %c512], %23 {strides = array<i32>} : memref<256x1152xbf16, #tpu.memory_space<vmem>>, vector<256x128xbf16>,
    %c0_23 = arith.constant 0 : index
    %c1_24 = arith.constant 1 : index
    %c2_25 = arith.constant 2 : index
    %c0_26 = arith.constant 0 : index
    %25 = vector.load %arg1[%c0_23, %c1_24, %c2_25, %c0_26] : memref<2x18x18x128xf32, #tpu.memory_space<vmem>>, vector<1x16x16x128xf32>
    %26 = vector.shape_cast %25 : vector<1x16x16x128xf32> to vector<16x16x128xf32>
    %27 = vector.shape_cast %26 : vector<16x16x128xf32> to vector<256x128xf32>
    %28 = arith.truncf %27 : vector<256x128xf32> to vector<256x128xbf16>
    %c0_27 = arith.constant 0 : index
    %c640 = arith.constant 640 : index
    %29 = vector.load %arg7[%c0_27, %c640] : memref<256x1152xbf16, #tpu.memory_space<vmem>>, vector<256x128xbf16>
    tpu.vector_store %arg7[%c0_27, %c640], %28 {strides = array<i32>} : memref<256x1152xbf16, #tpu.memory_space<vmem>>, vector<256x128xbf16>,
    %c0_28 = arith.constant 0 : index
    %c2_29 = arith.constant 2 : index
    %c0_30 = arith.constant 0 : index
    %c0_31 = arith.constant 0 : index
    %30 = vector.load %arg1[%c0_28, %c2_29, %c0_30, %c0_31] : memref<2x18x18x128xf32, #tpu.memory_space<vmem>>, vector<1x16x16x128xf32>
    %31 = vector.shape_cast %30 : vector<1x16x16x128xf32> to vector<16x16x128xf32>
    %32 = vector.shape_cast %31 : vector<16x16x128xf32> to vector<256x128xf32>
    %33 = arith.truncf %32 : vector<256x128xf32> to vector<256x128xbf16>
    %c0_32 = arith.constant 0 : index
    %c768 = arith.constant 768 : index
    %34 = vector.load %arg7[%c0_32, %c768] : memref<256x1152xbf16, #tpu.memory_space<vmem>>, vector<256x128xbf16>
    tpu.vector_store %arg7[%c0_32, %c768], %33 {strides = array<i32>} : memref<256x1152xbf16, #tpu.memory_space<vmem>>, vector<256x128xbf16>,
    %c0_33 = arith.constant 0 : index
    %c2_34 = arith.constant 2 : index
    %c1_35 = arith.constant 1 : index
    %c0_36 = arith.constant 0 : index
    %35 = vector.load %arg1[%c0_33, %c2_34, %c1_35, %c0_36] : memref<2x18x18x128xf32, #tpu.memory_space<vmem>>, vector<1x16x16x128xf32>
    %36 = vector.shape_cast %35 : vector<1x16x16x128xf32> to vector<16x16x128xf32>
    %37 = vector.shape_cast %36 : vector<16x16x128xf32> to vector<256x128xf32>
    %38 = arith.truncf %37 : vector<256x128xf32> to vector<256x128xbf16>
    %c0_37 = arith.constant 0 : index
    %c896 = arith.constant 896 : index
    %39 = vector.load %arg7[%c0_37, %c896] : memref<256x1152xbf16, #tpu.memory_space<vmem>>, vector<256x128xbf16>
    tpu.vector_store %arg7[%c0_37, %c896], %38 {strides = array<i32>} : memref<256x1152xbf16, #tpu.memory_space<vmem>>, vector<256x128xbf16>,
    %c0_38 = arith.constant 0 : index
    %c2_39 = arith.constant 2 : index
    %c2_40 = arith.constant 2 : index
    %c0_41 = arith.constant 0 : index
    %40 = vector.load %arg1[%c0_38, %c2_39, %c2_40, %c0_41] : memref<2x18x18x128xf32, #tpu.memory_space<vmem>>, vector<1x16x16x128xf32>
    %41 = vector.shape_cast %40 : vector<1x16x16x128xf32> to vector<16x16x128xf32>
    %42 = vector.shape_cast %41 : vector<16x16x128xf32> to vector<256x128xf32>
    %43 = arith.truncf %42 : vector<256x128xf32> to vector<256x128xbf16>
    %c0_42 = arith.constant 0 : index
    %c1024 = arith.constant 1024 : index
    %44 = vector.load %arg7[%c0_42, %c1024] : memref<256x1152xbf16, #tpu.memory_space<vmem>>, vector<256x128xbf16>
    tpu.vector_store %arg7[%c0_42, %c1024], %43 {strides = array<i32>} : memref<256x1152xbf16, #tpu.memory_space<vmem>>, vector<256x128xbf16>,
    %c0_43 = arith.constant 0 : index
    %c0_44 = arith.constant 0 : index
    %45 = vector.load %arg7[%c0_43, %c0_44] : memref<256x1152xbf16, #tpu.memory_space<vmem>>, vector<256x1152xbf16>
    %c0_45 = arith.constant 0 : index
    %c0_46 = arith.constant 0 : index
    %46 = vector.load %arg2[%c0_45, %c0_46] : memref<1152x128xbf16, #tpu.memory_space<vmem>>, vector<1152x128xbf16>
    %cst = arith.constant dense<0.000000e+00> : vector<256x128xf32>
    %47 = tpu.matmul %45, %46, %cst {dimension_numbers = #tpu.dot_dimension_numbers<[1], [0], [0], [1], [0, 0, 1, 1], [], []>} : vector<256x1152xbf16>, vector<1152x128xbf16>, vector<256x128xf32> -> vector<256x128xf32>
    %c0_47 = arith.constant 0 : index
    %c0_48 = arith.constant 0 : index
    %48 = vector.load %arg3[%c0_47, %c0_48] : memref<1x128xf32, #tpu.memory_space<vmem>>, vector<1x128xf32>
    %49 = vector.broadcast %48 : vector<1x128xf32> to vector<256x128xf32>
    %50 = arith.addf %47, %49 : vector<256x128xf32>
    %51 = tpu.transpose %50, [1, 0] : vector<256x128xf32> -> vector<128x256xf32>
    %52 = vector.extract_strided_slice %51 {offsets = [0, 0], sizes = [32, 256], strides = [1, 1]} : vector<128x256xf32> to vector<32x256xf32>
    %53 = arith.negf %52 : vector<32x256xf32>
    %54 = math.exp %53 : vector<32x256xf32>
    %cst_49 = arith.constant 1.000000e+00 : f32
    %55 = vector.broadcast %cst_49 : f32 to vector<32x256xf32>
    %56 = arith.addf %55, %54 : vector<32x256xf32>
    %57 = arith.divf %55, %56 : vector<32x256xf32>
    %58 = vector.extract_strided_slice %51 {offsets = [32, 0], sizes = [32, 256], strides = [1, 1]} : vector<128x256xf32> to vector<32x256xf32>
    %59 = arith.negf %58 : vector<32x256xf32>
    %60 = math.exp %59 : vector<32x256xf32>
    %cst_50 = arith.constant 1.000000e+00 : f32
    %61 = vector.broadcast %cst_50 : f32 to vector<32x256xf32>
    %62 = arith.addf %61, %60 : vector<32x256xf32>
    %63 = arith.divf %61, %62 : vector<32x256xf32>
    %64 = vector.extract_strided_slice %51 {offsets = [64, 0], sizes = [32, 256], strides = [1, 1]} : vector<128x256xf32> to vector<32x256xf32>
    %65 = arith.negf %64 : vector<32x256xf32>
    %66 = math.exp %65 : vector<32x256xf32>
    %cst_51 = arith.constant 1.000000e+00 : f32
    %67 = vector.broadcast %cst_51 : f32 to vector<32x256xf32>
    %68 = arith.addf %67, %66 : vector<32x256xf32>
    %69 = arith.divf %67, %68 : vector<32x256xf32>
    %70 = vector.extract_strided_slice %51 {offsets = [96, 0], sizes = [32, 256], strides = [1, 1]} : vector<128x256xf32> to vector<32x256xf32>
    %71 = math.tanh %70 : vector<32x256xf32>
    %c0_52 = arith.constant 0 : index
    %c0_53 = arith.constant 0 : index
    %c0_54 = arith.constant 0 : index
    %72 = vector.load %arg4[%c0_52, %c0_53, %c0_54] : memref<2x32x256xf32, #tpu.memory_space<vmem>>, vector<1x32x256xf32>
    %73 = vector.shape_cast %72 : vector<1x32x256xf32> to vector<32x256xf32>
    %74 = arith.mulf %63, %73 : vector<32x256xf32>
    %75 = arith.mulf %57, %71 : vector<32x256xf32>
    %76 = arith.addf %74, %75 : vector<32x256xf32>
    %77 = math.tanh %76 : vector<32x256xf32>
    %78 = arith.mulf %69, %77 : vector<32x256xf32>
    %c0_55 = arith.constant 0 : index
    %c0_56 = arith.constant 0 : index
    %c0_57 = arith.constant 0 : index
    %79 = vector.load %arg5[%c0_55, %c0_56, %c0_57] : memref<2x32x256xf32, #tpu.memory_space<vmem>>, vector<1x32x256xf32>
    %80 = vector.shape_cast %79 : vector<1x32x256xf32> to vector<32x256xf32>
    %81 = vector.shape_cast %78 : vector<32x256xf32> to vector<1x32x256xf32>
    tpu.vector_store %arg5[%c0_55, %c0_56, %c0_57], %81 {strides = array<i32>} : memref<2x32x256xf32, #tpu.memory_space<vmem>>, vector<1x32x256xf32>,
    %c0_58 = arith.constant 0 : index
    %c0_59 = arith.constant 0 : index
    %c0_60 = arith.constant 0 : index
    %82 = vector.load %arg6[%c0_58, %c0_59, %c0_60] : memref<2x32x256xf32, #tpu.memory_space<vmem>>, vector<1x32x256xf32>
    %83 = vector.shape_cast %82 : vector<1x32x256xf32> to vector<32x256xf32>
    %84 = vector.shape_cast %76 : vector<32x256xf32> to vector<1x32x256xf32>
    tpu.vector_store %arg6[%c0_58, %c0_59, %c0_60], %84 {strides = array<i32>} : memref<2x32x256xf32, #tpu.memory_space<vmem>>, vector<1x32x256xf32>,
    %c1_61 = arith.constant 1 : index
    %c0_62 = arith.constant 0 : index
    %c0_63 = arith.constant 0 : index
    %c0_64 = arith.constant 0 : index
    %85 = vector.load %arg1[%c1_61, %c0_62, %c0_63, %c0_64] : memref<2x18x18x128xf32, #tpu.memory_space<vmem>>, vector<1x16x16x128xf32>
    %86 = vector.shape_cast %85 : vector<1x16x16x128xf32> to vector<16x16x128xf32>
    %87 = vector.shape_cast %86 : vector<16x16x128xf32> to vector<256x128xf32>
    %88 = arith.truncf %87 : vector<256x128xf32> to vector<256x128xbf16>
    %c0_65 = arith.constant 0 : index
    %c0_66 = arith.constant 0 : index
    %89 = vector.load %arg7[%c0_65, %c0_66] : memref<256x1152xbf16, #tpu.memory_space<vmem>>, vector<256x128xbf16>
    tpu.vector_store %arg7[%c0_65, %c0_66], %88 {strides = array<i32>} : memref<256x1152xbf16, #tpu.memory_space<vmem>>, vector<256x128xbf16>,
    %c1_67 = arith.constant 1 : index
    %c0_68 = arith.constant 0 : index
    %c1_69 = arith.constant 1 : index
    %c0_70 = arith.constant 0 : index
    %90 = vector.load %arg1[%c1_67, %c0_68, %c1_69, %c0_70] : memref<2x18x18x128xf32, #tpu.memory_space<vmem>>, vector<1x16x16x128xf32>
    %91 = vector.shape_cast %90 : vector<1x16x16x128xf32> to vector<16x16x128xf32>
    %92 = vector.shape_cast %91 : vector<16x16x128xf32> to vector<256x128xf32>
    %93 = arith.truncf %92 : vector<256x128xf32> to vector<256x128xbf16>
    %c0_71 = arith.constant 0 : index
    %c128_72 = arith.constant 128 : index
    %94 = vector.load %arg7[%c0_71, %c128_72] : memref<256x1152xbf16, #tpu.memory_space<vmem>>, vector<256x128xbf16>
    tpu.vector_store %arg7[%c0_71, %c128_72], %93 {strides = array<i32>} : memref<256x1152xbf16, #tpu.memory_space<vmem>>, vector<256x128xbf16>,
    %c1_73 = arith.constant 1 : index
    %c0_74 = arith.constant 0 : index
    %c2_75 = arith.constant 2 : index
    %c0_76 = arith.constant 0 : index
    %95 = vector.load %arg1[%c1_73, %c0_74, %c2_75, %c0_76] : memref<2x18x18x128xf32, #tpu.memory_space<vmem>>, vector<1x16x16x128xf32>
    %96 = vector.shape_cast %95 : vector<1x16x16x128xf32> to vector<16x16x128xf32>
    %97 = vector.shape_cast %96 : vector<16x16x128xf32> to vector<256x128xf32>
    %98 = arith.truncf %97 : vector<256x128xf32> to vector<256x128xbf16>
    %c0_77 = arith.constant 0 : index
    %c256_78 = arith.constant 256 : index
    %99 = vector.load %arg7[%c0_77, %c256_78] : memref<256x1152xbf16, #tpu.memory_space<vmem>>, vector<256x128xbf16>
    tpu.vector_store %arg7[%c0_77, %c256_78], %98 {strides = array<i32>} : memref<256x1152xbf16, #tpu.memory_space<vmem>>, vector<256x128xbf16>,
    %c1_79 = arith.constant 1 : index
    %c1_80 = arith.constant 1 : index
    %c0_81 = arith.constant 0 : index
    %c0_82 = arith.constant 0 : index
    %100 = vector.load %arg1[%c1_79, %c1_80, %c0_81, %c0_82] : memref<2x18x18x128xf32, #tpu.memory_space<vmem>>, vector<1x16x16x128xf32>
    %101 = vector.shape_cast %100 : vector<1x16x16x128xf32> to vector<16x16x128xf32>
    %102 = vector.shape_cast %101 : vector<16x16x128xf32> to vector<256x128xf32>
    %103 = arith.truncf %102 : vector<256x128xf32> to vector<256x128xbf16>
    %c0_83 = arith.constant 0 : index
    %c384_84 = arith.constant 384 : index
    %104 = vector.load %arg7[%c0_83, %c384_84] : memref<256x1152xbf16, #tpu.memory_space<vmem>>, vector<256x128xbf16>
    tpu.vector_store %arg7[%c0_83, %c384_84], %103 {strides = array<i32>} : memref<256x1152xbf16, #tpu.memory_space<vmem>>, vector<256x128xbf16>,
    %c1_85 = arith.constant 1 : index
    %c1_86 = arith.constant 1 : index
    %c1_87 = arith.constant 1 : index
    %c0_88 = arith.constant 0 : index
    %105 = vector.load %arg1[%c1_85, %c1_86, %c1_87, %c0_88] : memref<2x18x18x128xf32, #tpu.memory_space<vmem>>, vector<1x16x16x128xf32>
    %106 = vector.shape_cast %105 : vector<1x16x16x128xf32> to vector<16x16x128xf32>
    %107 = vector.shape_cast %106 : vector<16x16x128xf32> to vector<256x128xf32>
    %108 = arith.truncf %107 : vector<256x128xf32> to vector<256x128xbf16>
    %c0_89 = arith.constant 0 : index
    %c512_90 = arith.constant 512 : index
    %109 = vector.load %arg7[%c0_89, %c512_90] : memref<256x1152xbf16, #tpu.memory_space<vmem>>, vector<256x128xbf16>
    tpu.vector_store %arg7[%c0_89, %c512_90], %108 {strides = array<i32>} : memref<256x1152xbf16, #tpu.memory_space<vmem>>, vector<256x128xbf16>,
    %c1_91 = arith.constant 1 : index
    %c1_92 = arith.constant 1 : index
    %c2_93 = arith.constant 2 : index
    %c0_94 = arith.constant 0 : index
    %110 = vector.load %arg1[%c1_91, %c1_92, %c2_93, %c0_94] : memref<2x18x18x128xf32, #tpu.memory_space<vmem>>, vector<1x16x16x128xf32>
    %111 = vector.shape_cast %110 : vector<1x16x16x128xf32> to vector<16x16x128xf32>
    %112 = vector.shape_cast %111 : vector<16x16x128xf32> to vector<256x128xf32>
    %113 = arith.truncf %112 : vector<256x128xf32> to vector<256x128xbf16>
    %c0_95 = arith.constant 0 : index
    %c640_96 = arith.constant 640 : index
    %114 = vector.load %arg7[%c0_95, %c640_96] : memref<256x1152xbf16, #tpu.memory_space<vmem>>, vector<256x128xbf16>
    tpu.vector_store %arg7[%c0_95, %c640_96], %113 {strides = array<i32>} : memref<256x1152xbf16, #tpu.memory_space<vmem>>, vector<256x128xbf16>,
    %c1_97 = arith.constant 1 : index
    %c2_98 = arith.constant 2 : index
    %c0_99 = arith.constant 0 : index
    %c0_100 = arith.constant 0 : index
    %115 = vector.load %arg1[%c1_97, %c2_98, %c0_99, %c0_100] : memref<2x18x18x128xf32, #tpu.memory_space<vmem>>, vector<1x16x16x128xf32>
    %116 = vector.shape_cast %115 : vector<1x16x16x128xf32> to vector<16x16x128xf32>
    %117 = vector.shape_cast %116 : vector<16x16x128xf32> to vector<256x128xf32>
    %118 = arith.truncf %117 : vector<256x128xf32> to vector<256x128xbf16>
    %c0_101 = arith.constant 0 : index
    %c768_102 = arith.constant 768 : index
    %119 = vector.load %arg7[%c0_101, %c768_102] : memref<256x1152xbf16, #tpu.memory_space<vmem>>, vector<256x128xbf16>
    tpu.vector_store %arg7[%c0_101, %c768_102], %118 {strides = array<i32>} : memref<256x1152xbf16, #tpu.memory_space<vmem>>, vector<256x128xbf16>,
    %c1_103 = arith.constant 1 : index
    %c2_104 = arith.constant 2 : index
    %c1_105 = arith.constant 1 : index
    %c0_106 = arith.constant 0 : index
    %120 = vector.load %arg1[%c1_103, %c2_104, %c1_105, %c0_106] : memref<2x18x18x128xf32, #tpu.memory_space<vmem>>, vector<1x16x16x128xf32>
    %121 = vector.shape_cast %120 : vector<1x16x16x128xf32> to vector<16x16x128xf32>
    %122 = vector.shape_cast %121 : vector<16x16x128xf32> to vector<256x128xf32>
    %123 = arith.truncf %122 : vector<256x128xf32> to vector<256x128xbf16>
    %c0_107 = arith.constant 0 : index
    %c896_108 = arith.constant 896 : index
    %124 = vector.load %arg7[%c0_107, %c896_108] : memref<256x1152xbf16, #tpu.memory_space<vmem>>, vector<256x128xbf16>
    tpu.vector_store %arg7[%c0_107, %c896_108], %123 {strides = array<i32>} : memref<256x1152xbf16, #tpu.memory_space<vmem>>, vector<256x128xbf16>,
    %c1_109 = arith.constant 1 : index
    %c2_110 = arith.constant 2 : index
    %c2_111 = arith.constant 2 : index
    %c0_112 = arith.constant 0 : index
    %125 = vector.load %arg1[%c1_109, %c2_110, %c2_111, %c0_112] : memref<2x18x18x128xf32, #tpu.memory_space<vmem>>, vector<1x16x16x128xf32>
    %126 = vector.shape_cast %125 : vector<1x16x16x128xf32> to vector<16x16x128xf32>
    %127 = vector.shape_cast %126 : vector<16x16x128xf32> to vector<256x128xf32>
    %128 = arith.truncf %127 : vector<256x128xf32> to vector<256x128xbf16>
    %c0_113 = arith.constant 0 : index
    %c1024_114 = arith.constant 1024 : index
    %129 = vector.load %arg7[%c0_113, %c1024_114] : memref<256x1152xbf16, #tpu.memory_space<vmem>>, vector<256x128xbf16>
    tpu.vector_store %arg7[%c0_113, %c1024_114], %128 {strides = array<i32>} : memref<256x1152xbf16, #tpu.memory_space<vmem>>, vector<256x128xbf16>,
    %c0_115 = arith.constant 0 : index
    %c0_116 = arith.constant 0 : index
    %130 = vector.load %arg7[%c0_115, %c0_116] : memref<256x1152xbf16, #tpu.memory_space<vmem>>, vector<256x1152xbf16>
    %c0_117 = arith.constant 0 : index
    %c0_118 = arith.constant 0 : index
    %131 = vector.load %arg2[%c0_117, %c0_118] : memref<1152x128xbf16, #tpu.memory_space<vmem>>, vector<1152x128xbf16>
    %cst_119 = arith.constant dense<0.000000e+00> : vector<256x128xf32>
    %132 = tpu.matmul %130, %131, %cst_119 {dimension_numbers = #tpu.dot_dimension_numbers<[1], [0], [0], [1], [0, 0, 1, 1], [], []>} : vector<256x1152xbf16>, vector<1152x128xbf16>, vector<256x128xf32> -> vector<256x128xf32>
    %c0_120 = arith.constant 0 : index
    %c0_121 = arith.constant 0 : index
    %133 = vector.load %arg3[%c0_120, %c0_121] : memref<1x128xf32, #tpu.memory_space<vmem>>, vector<1x128xf32>
    %134 = vector.broadcast %133 : vector<1x128xf32> to vector<256x128xf32>
    %135 = arith.addf %132, %134 : vector<256x128xf32>
    %136 = tpu.transpose %135, [1, 0] : vector<256x128xf32> -> vector<128x256xf32>
    %137 = vector.extract_strided_slice %136 {offsets = [0, 0], sizes = [32, 256], strides = [1, 1]} : vector<128x256xf32> to vector<32x256xf32>
    %138 = arith.negf %137 : vector<32x256xf32>
    %139 = math.exp %138 : vector<32x256xf32>
    %cst_122 = arith.constant 1.000000e+00 : f32
    %140 = vector.broadcast %cst_122 : f32 to vector<32x256xf32>
    %141 = arith.addf %140, %139 : vector<32x256xf32>
    %142 = arith.divf %140, %141 : vector<32x256xf32>
    %143 = vector.extract_strided_slice %136 {offsets = [32, 0], sizes = [32, 256], strides = [1, 1]} : vector<128x256xf32> to vector<32x256xf32>
    %144 = arith.negf %143 : vector<32x256xf32>
    %145 = math.exp %144 : vector<32x256xf32>
    %cst_123 = arith.constant 1.000000e+00 : f32
    %146 = vector.broadcast %cst_123 : f32 to vector<32x256xf32>
    %147 = arith.addf %146, %145 : vector<32x256xf32>
    %148 = arith.divf %146, %147 : vector<32x256xf32>
    %149 = vector.extract_strided_slice %136 {offsets = [64, 0], sizes = [32, 256], strides = [1, 1]} : vector<128x256xf32> to vector<32x256xf32>
    %150 = arith.negf %149 : vector<32x256xf32>
    %151 = math.exp %150 : vector<32x256xf32>
    %cst_124 = arith.constant 1.000000e+00 : f32
    %152 = vector.broadcast %cst_124 : f32 to vector<32x256xf32>
    %153 = arith.addf %152, %151 : vector<32x256xf32>
    %154 = arith.divf %152, %153 : vector<32x256xf32>
    %155 = vector.extract_strided_slice %136 {offsets = [96, 0], sizes = [32, 256], strides = [1, 1]} : vector<128x256xf32> to vector<32x256xf32>
    %156 = math.tanh %155 : vector<32x256xf32>
    %c1_125 = arith.constant 1 : index
    %c0_126 = arith.constant 0 : index
    %c0_127 = arith.constant 0 : index
    %157 = vector.load %arg4[%c1_125, %c0_126, %c0_127] : memref<2x32x256xf32, #tpu.memory_space<vmem>>, vector<1x32x256xf32>
    %158 = vector.shape_cast %157 : vector<1x32x256xf32> to vector<32x256xf32>
    %159 = arith.mulf %148, %158 : vector<32x256xf32>
    %160 = arith.mulf %142, %156 : vector<32x256xf32>
    %161 = arith.addf %159, %160 : vector<32x256xf32>
    %162 = math.tanh %161 : vector<32x256xf32>
    %163 = arith.mulf %154, %162 : vector<32x256xf32>
    %c1_128 = arith.constant 1 : index
    %c0_129 = arith.constant 0 : index
    %c0_130 = arith.constant 0 : index
    %164 = vector.load %arg5[%c1_128, %c0_129, %c0_130] : memref<2x32x256xf32, #tpu.memory_space<vmem>>, vector<1x32x256xf32>
    %165 = vector.shape_cast %164 : vector<1x32x256xf32> to vector<32x256xf32>
    %166 = vector.shape_cast %163 : vector<32x256xf32> to vector<1x32x256xf32>
    tpu.vector_store %arg5[%c1_128, %c0_129, %c0_130], %166 {strides = array<i32>} : memref<2x32x256xf32, #tpu.memory_space<vmem>>, vector<1x32x256xf32>,
    %c1_131 = arith.constant 1 : index
    %c0_132 = arith.constant 0 : index
    %c0_133 = arith.constant 0 : index
    %167 = vector.load %arg6[%c1_131, %c0_132, %c0_133] : memref<2x32x256xf32, #tpu.memory_space<vmem>>, vector<1x32x256xf32>
    %168 = vector.shape_cast %167 : vector<1x32x256xf32> to vector<32x256xf32>
    %169 = vector.shape_cast %161 : vector<32x256xf32> to vector<1x32x256xf32>
    tpu.vector_store %arg6[%c1_131, %c0_132, %c0_133], %169 {strides = array<i32>} : memref<2x32x256xf32, #tpu.memory_space<vmem>>, vector<1x32x256xf32>,
    return
  }
  func.func @transform_0(%arg0: i32) -> (i32, i32, i32, i32) {
    %c0_i32 = arith.constant 0 : i32
    %c0_i32_0 = arith.constant 0 : i32
    %c0_i32_1 = arith.constant 0 : i32
    %c0_i32_2 = arith.constant 0 : i32
    return %arg0, %c0_i32, %c0_i32_0, %c0_i32_1 : i32, i32, i32, i32
  }
  func.func @transform_1(%arg0: i32) -> (i32, i32) {
    %c0_i32 = arith.constant 0 : i32
    %c0_i32_0 = arith.constant 0 : i32
    %c0_i32_1 = arith.constant 0 : i32
    return %c0_i32, %c0_i32_0 : i32, i32
  }
  func.func @transform_2(%arg0: i32) -> (i32, i32) {
    %c0_i32 = arith.constant 0 : i32
    %c0_i32_0 = arith.constant 0 : i32
    %c0_i32_1 = arith.constant 0 : i32
    return %c0_i32, %c0_i32_0 : i32, i32
  }
  func.func @transform_3(%arg0: i32) -> (i32, i32, i32) {
    %c0_i32 = arith.constant 0 : i32
    %c0_i32_0 = arith.constant 0 : i32
    %c0_i32_1 = arith.constant 0 : i32
    return %arg0, %c0_i32, %c0_i32_0 : i32, i32, i32
  }
  func.func @transform_4(%arg0: i32) -> (i32, i32, i32) {
    %c0_i32 = arith.constant 0 : i32
    %c0_i32_0 = arith.constant 0 : i32
    %c0_i32_1 = arith.constant 0 : i32
    return %arg0, %c0_i32, %c0_i32_0 : i32, i32, i32
  }
  func.func @transform_5(%arg0: i32) -> (i32, i32, i32) {
    %c0_i32 = arith.constant 0 : i32
    %c0_i32_0 = arith.constant 0 : i32
    %c0_i32_1 = arith.constant 0 : i32
    return %arg0, %c0_i32, %c0_i32_0 : i32, i32, i32
  }
}

</mosaic_0001>

<llo_original>
// kernel: conv_lstm_forward.1
$region0: #{conv_lstm_forward.1}
  #allocation0 [shape = 'u32[]', space=smem, size = 0x4, offset = 0x4, fixed_abs, tag = 'smem constant byte address 0x4 - core index']
  #allocation1 [shape = 'u32[72,128]{1,0:T(1,128)}', space=vmem, size = 0x9000, scoped, tag = 'internal scratch']
  #allocation2 [shape = 'bf16[256,1152]{1,0:T(8,128)(2,1)}', space=vmem, size = 0x90000, scoped, tag = 'scratch operand']
  %s0 = inlined_call_operand.vmem [shape: f32[2,18,18,128], index: 0, kind: input, shape index: {}]
  %s1 = inlined_call_operand.vmem [shape: bf16[1152,128], index: 1, kind: input, shape index: {}]
  %s2 = inlined_call_operand.vmem [shape: f32[1,128], index: 2, kind: input, shape index: {}]
  %s3 = inlined_call_operand.vmem [shape: f32[2,32,256], index: 3, kind: input, shape index: {}]
  %s4 = inlined_call_operand.vmem [shape: f32[2,32,256], index: 4, kind: output, shape index: {0}]
  %s5 = inlined_call_operand.vmem [shape: f32[2,32,256], index: 5, kind: output, shape index: {1}]
  %6 = xla_tuple %s4, %s5
  %s7 = sld [smem:[#allocation0]]
  $region34: #{conv_lstm_forward.1} parent=0
    _
  %s9 = ssub.s32 1, %s7
  %s10 = scalar_select 0, %s9, %s7
  // Predicated region
  $region2: #{conv_lstm_forward.1} parent=0 // pred_check
    _
  $region3: #{conv_lstm_forward.1} parent=0 // pred_check_branch
    %12 = sbr.rel (0) target = $region5
  $region4: #{conv_lstm_forward.1} parent=0 // pred_region
    _
  $region5: #{conv_lstm_forward.1} parent=0 // pred_fallthru
    _
  // Predicated region
  $region6: #{conv_lstm_forward.1} parent=0 // pred_check
    _
  $region7: #{conv_lstm_forward.1} parent=0 // pred_check_branch
    %14 = sbr.rel (0) target = $region9
  $region8: #{conv_lstm_forward.1} parent=0 // pred_region
    _
  $region9: #{conv_lstm_forward.1} parent=0 // pred_fallthru
    _
  // Predicated region
  $region10: #{conv_lstm_forward.1} parent=0 // pred_check
    _
  $region11: #{conv_lstm_forward.1} parent=0 // pred_check_branch
    %16 = sbr.rel (0) target = $region13
  $region12: #{conv_lstm_forward.1} parent=0 // pred_region
    _
  $region13: #{conv_lstm_forward.1} parent=0 // pred_fallthru
    _
  // Predicated region
  $region14: #{conv_lstm_forward.1} parent=0 // pred_check
    _
  $region15: #{conv_lstm_forward.1} parent=0 // pred_check_branch
    %18 = sbr.rel (0) target = $region17
  $region16: #{conv_lstm_forward.1} parent=0 // pred_region
    _
  $region17: #{conv_lstm_forward.1} parent=0 // pred_fallthru
    _
  %v19 = vld [vmem:[%s0] sm:$0xff]
  %v20 = vld [vmem:[%s0 + $0x8] sm:$0xff]
  %v21 = vld [vmem:[%s0 + $0x18] sm:$0xff]
  %v22 = vld [vmem:[%s0 + $0x20] sm:$0xff]
  %v23 = vld [vmem:[%s0 + $0x30] sm:$0xff]
  %v24 = vld [vmem:[%s0 + $0x38] sm:$0xff]
  %v25 = vld [vmem:[%s0 + $0x48] sm:$0xff]
  %v26 = vld [vmem:[%s0 + $0x50] sm:$0xff]
  %v27 = vld [vmem:[%s0 + $0x60] sm:$0xff]
  %v28 = vld [vmem:[%s0 + $0x68] sm:$0xff]
  %v29 = vld [vmem:[%s0 + $0x78] sm:$0xff]
  %v30 = vld [vmem:[%s0 + $0x80] sm:$0xff]
  %v31 = vld [vmem:[%s0 + $0x90] sm:$0xff]
  %v32 = vld [vmem:[%s0 + $0x98] sm:$0xff]
  %v33 = vld [vmem:[%s0 + $0xa8] sm:$0xff]
  %v34 = vld [vmem:[%s0 + $0xb0] sm:$0xff]
  %v35 = vld [vmem:[%s0 + $0xc0] sm:$0xff]
  %v36 = vld [vmem:[%s0 + $0xc8] sm:$0xff]
  %v37 = vld [vmem:[%s0 + $0xd8] sm:$0xff]
  %v38 = vld [vmem:[%s0 + $0xe0] sm:$0xff]
  %v39 = vld [vmem:[%s0 + $0xf0] sm:$0xff]
  %v40 = vld [vmem:[%s0 + $0xf8] sm:$0xff]
  %v41 = vld [vmem:[%s0 + $0x108] sm:$0xff]
  %v42 = vld [vmem:[%s0 + $0x110] sm:$0xff]
  %v43 = vld [vmem:[%s0 + $0x120] sm:$0xff]
  %v44 = vld [vmem:[%s0 + $0x128] sm:$0xff]
  %v45 = vld [vmem:[%s0 + $0x138] sm:$0xff]
  %v46 = vld [vmem:[%s0 + $0x140] sm:$0xff]
  %v47 = vld [vmem:[%s0 + $0x150] sm:$0xff]
  %v48 = vld [vmem:[%s0 + $0x158] sm:$0xff]
  %v49 = vld [vmem:[%s0 + $0x168] sm:$0xff]
  %v50 = vld [vmem:[%s0 + $0x170] sm:$0xff]
  %v51 = vpack.c.bf16 %v19, %v19
  %v52 = vpack.c.bf16 %v20, %v20
  %v53 = vpack.c.bf16 %v21, %v21
  %v54 = vpack.c.bf16 %v22, %v22
  %v55 = vpack.c.bf16 %v23, %v23
  %v56 = vpack.c.bf16 %v24, %v24
  %v57 = vpack.c.bf16 %v25, %v25
  %v58 = vpack.c.bf16 %v26, %v26
  %v59 = vpack.c.bf16 %v27, %v27
  %v60 = vpack.c.bf16 %v28, %v28
  %v61 = vpack.c.bf16 %v29, %v29
  %v62 = vpack.c.bf16 %v30, %v30
  %v63 = vpack.c.bf16 %v31, %v31
  %v64 = vpack.c.bf16 %v32, %v32
  %v65 = vpack.c.bf16 %v33, %v33
  %v66 = vpack.c.bf16 %v34, %v34
  %v67 = vpack.c.bf16 %v35, %v35
  %v68 = vpack.c.bf16 %v36, %v36
  %v69 = vpack.c.bf16 %v37, %v37
  %v70 = vpack.c.bf16 %v38, %v38
  %v71 = vpack.c.bf16 %v39, %v39
  %v72 = vpack.c.bf16 %v40, %v40
  %v73 = vpack.c.bf16 %v41, %v41
  %v74 = vpack.c.bf16 %v42, %v42
  %v75 = vpack.c.bf16 %v43, %v43
  %v76 = vpack.c.bf16 %v44, %v44
  %v77 = vpack.c.bf16 %v45, %v45
  %v78 = vpack.c.bf16 %v46, %v46
  %v79 = vpack.c.bf16 %v47, %v47
  %v80 = vpack.c.bf16 %v48, %v48
  %v81 = vpack.c.bf16 %v49, %v49
  %v82 = vpack.c.bf16 %v50, %v50
  %83 = vst [vmem:[#allocation2] sm:$0xf] %v51
  %84 = vst [vmem:[#allocation2 + $0x24] sm:$0xf] %v52
  %85 = vst [vmem:[#allocation2 + $0x48] sm:$0xf] %v53
  %86 = vst [vmem:[#allocation2 + $0x6c] sm:$0xf] %v54
  %87 = vst [vmem:[#allocation2 + $0x90] sm:$0xf] %v55
  %88 = vst [vmem:[#allocation2 + $0xb4] sm:$0xf] %v56
  %89 = vst [vmem:[#allocation2 + $0xd8] sm:$0xf] %v57
  %90 = vst [vmem:[#allocation2 + $0xfc] sm:$0xf] %v58
  %91 = vst [vmem:[#allocation2 + $0x120] sm:$0xf] %v59
  %92 = vst [vmem:[#allocation2 + $0x144] sm:$0xf] %v60
  %93 = vst [vmem:[#allocation2 + $0x168] sm:$0xf] %v61
  %94 = vst [vmem:[#allocation2 + $0x18c] sm:$0xf] %v62
  %95 = vst [vmem:[#allocation2 + $0x1b0] sm:$0xf] %v63
  %96 = vst [vmem:[#allocation2 + $0x1d4] sm:$0xf] %v64
  %97 = vst [vmem:[#allocation2 + $0x1f8] sm:$0xf] %v65
  %98 = vst [vmem:[#allocation2 + $0x21c] sm:$0xf] %v66
  %99 = vst [vmem:[#allocation2 + $0x240] sm:$0xf] %v67
  %100 = vst [vmem:[#allocation2 + $0x264] sm:$0xf] %v68
  %101 = vst [vmem:[#allocation2 + $0x288] sm:$0xf] %v69
  %102 = vst [vmem:[#allocation2 + $0x2ac] sm:$0xf] %v70
  %103 = vst [vmem:[#allocation2 + $0x2d0] sm:$0xf] %v71
  %104 = vst [vmem:[#allocation2 + $0x2f4] sm:$0xf] %v72
  %105 = vst [vmem:[#allocation2 + $0x318] sm:$0xf] %v73
  %106 = vst [vmem:[#allocation2 + $0x33c] sm:$0xf] %v74
  %107 = vst [vmem:[#allocation2 + $0x360] sm:$0xf] %v75
  %108 = vst [vmem:[#allocation2 + $0x384] sm:$0xf] %v76
  %109 = vst [vmem:[#allocation2 + $0x3a8] sm:$0xf] %v77
  %110 = vst [vmem:[#allocation2 + $0x3cc] sm:$0xf] %v78
  %111 = vst [vmem:[#allocation2 + $0x3f0] sm:$0xf] %v79
  %112 = vst [vmem:[#allocation2 + $0x414] sm:$0xf] %v80
  %113 = vst [vmem:[#allocation2 + $0x438] sm:$0xf] %v81
  %114 = vst [vmem:[#allocation2 + $0x45c] sm:$0xf] %v82
  %v115 = vld [vmem:[%s0 + $0x1] sm:$0xff]
  %v116 = vld [vmem:[%s0 + $0x9] sm:$0xff]
  %v117 = vld [vmem:[%s0 + $0x19] sm:$0xff]
  %v118 = vld [vmem:[%s0 + $0x21] sm:$0xff]
  %v119 = vld [vmem:[%s0 + $0x31] sm:$0xff]
  %v120 = vld [vmem:[%s0 + $0x39] sm:$0xff]
  %v121 = vld [vmem:[%s0 + $0x49] sm:$0xff]
  %v122 = vld [vmem:[%s0 + $0x51] sm:$0xff]
  %v123 = vld [vmem:[%s0 + $0x61] sm:$0xff]
  %v124 = vld [vmem:[%s0 + $0x69] sm:$0xff]
  %v125 = vld [vmem:[%s0 + $0x79] sm:$0xff]
  %v126 = vld [vmem:[%s0 + $0x81] sm:$0xff]
  %v127 = vld [vmem:[%s0 + $0x91] sm:$0xff]
  %v128 = vld [vmem:[%s0 + $0x99] sm:$0xff]
  %v129 = vld [vmem:[%s0 + $0xa9] sm:$0xff]
  %v130 = vld [vmem:[%s0 + $0xb1] sm:$0xff]
  %v131 = vld [vmem:[%s0 + $0xc1] sm:$0xff]
  %v132 = vld [vmem:[%s0 + $0xc9] sm:$0xff]
  %v133 = vld [vmem:[%s0 + $0xd9] sm:$0xff]
  %v134 = vld [vmem:[%s0 + $0xe1] sm:$0xff]
  %v135 = vld [vmem:[%s0 + $0xf1] sm:$0xff]
  %v136 = vld [vmem:[%s0 + $0xf9] sm:$0xff]
  %v137 = vld [vmem:[%s0 + $0x109] sm:$0xff]
  %v138 = vld [vmem:[%s0 + $0x111] sm:$0xff]
  %v139 = vld [vmem:[%s0 + $0x121] sm:$0xff]
  %v140 = vld [vmem:[%s0 + $0x129] sm:$0xff]
  %v141 = vld [vmem:[%s0 + $0x139] sm:$0xff]
  %v142 = vld [vmem:[%s0 + $0x141] sm:$0xff]
  %v143 = vld [vmem:[%s0 + $0x151] sm:$0xff]
  %v144 = vld [vmem:[%s0 + $0x159] sm:$0xff]
  %v145 = vld [vmem:[%s0 + $0x169] sm:$0xff]
  %v146 = vld [vmem:[%s0 + $0x171] sm:$0xff]
  %v147 = vpack.c.bf16 %v115, %v115
  %v148 = vpack.c.bf16 %v116, %v116
  %v149 = vpack.c.bf16 %v117, %v117
  %v150 = vpack.c.bf16 %v118, %v118
  %v151 = vpack.c.bf16 %v119, %v119
  %v152 = vpack.c.bf16 %v120, %v120
  %v153 = vpack.c.bf16 %v121, %v121
  %v154 = vpack.c.bf16 %v122, %v122
  %v155 = vpack.c.bf16 %v123, %v123
  %v156 = vpack.c.bf16 %v124, %v124
  %v157 = vpack.c.bf16 %v125, %v125
  %v158 = vpack.c.bf16 %v126, %v126
  %v159 = vpack.c.bf16 %v127, %v127
  %v160 = vpack.c.bf16 %v128, %v128
  %v161 = vpack.c.bf16 %v129, %v129
  %v162 = vpack.c.bf16 %v130, %v130
  %v163 = vpack.c.bf16 %v131, %v131
  %v164 = vpack.c.bf16 %v132, %v132
  %v165 = vpack.c.bf16 %v133, %v133
  %v166 = vpack.c.bf16 %v134, %v134
  %v167 = vpack.c.bf16 %v135, %v135
  %v168 = vpack.c.bf16 %v136, %v136
  %v169 = vpack.c.bf16 %v137, %v137
  %v170 = vpack.c.bf16 %v138, %v138
  %v171 = vpack.c.bf16 %v139, %v139
  %v172 = vpack.c.bf16 %v140, %v140
  %v173 = vpack.c.bf16 %v141, %v141
  %v174 = vpack.c.bf16 %v142, %v142
  %v175 = vpack.c.bf16 %v143, %v143
  %v176 = vpack.c.bf16 %v144, %v144
  %v177 = vpack.c.bf16 %v145, %v145
  %v178 = vpack.c.bf16 %v146, %v146
  %179 = vst [vmem:[#allocation2 + $0x4] sm:$0xf] %v147
  %180 = vst [vmem:[#allocation2 + $0x28] sm:$0xf] %v148
  %181 = vst [vmem:[#allocation2 + $0x4c] sm:$0xf] %v149
  %182 = vst [vmem:[#allocation2 + $0x70] sm:$0xf] %v150
  %183 = vst [vmem:[#allocation2 + $0x94] sm:$0xf] %v151
  %184 = vst [vmem:[#allocation2 + $0xb8] sm:$0xf] %v152
  %185 = vst [vmem:[#allocation2 + $0xdc] sm:$0xf] %v153
  %186 = vst [vmem:[#allocation2 + $0x100] sm:$0xf] %v154
  %187 = vst [vmem:[#allocation2 + $0x124] sm:$0xf] %v155
  %188 = vst [vmem:[#allocation2 + $0x148] sm:$0xf] %v156
  %189 = vst [vmem:[#allocation2 + $0x16c] sm:$0xf] %v157
  %190 = vst [vmem:[#allocation2 + $0x190] sm:$0xf] %v158
  %191 = vst [vmem:[#allocation2 + $0x1b4] sm:$0xf] %v159
  %192 = vst [vmem:[#allocation2 + $0x1d8] sm:$0xf] %v160
  %193 = vst [vmem:[#allocation2 + $0x1fc] sm:$0xf] %v161
  %194 = vst [vmem:[#allocation2 + $0x220] sm:$0xf] %v162
  %195 = vst [vmem:[#allocation2 + $0x244] sm:$0xf] %v163
  %196 = vst [vmem:[#allocation2 + $0x268] sm:$0xf] %v164
  %197 = vst [vmem:[#allocation2 + $0x28c] sm:$0xf] %v165
  %198 = vst [vmem:[#allocation2 + $0x2b0] sm:$0xf] %v166
  %199 = vst [vmem:[#allocation2 + $0x2d4] sm:$0xf] %v167
  %200 = vst [vmem:[#allocation2 + $0x2f8] sm:$0xf] %v168
  %201 = vst [vmem:[#allocation2 + $0x31c] sm:$0xf] %v169
  %202 = vst [vmem:[#allocation2 + $0x340] sm:$0xf] %v170
  %203 = vst [vmem:[#allocation2 + $0x364] sm:$0xf] %v171
  %204 = vst [vmem:[#allocation2 + $0x388] sm:$0xf] %v172
  %205 = vst [vmem:[#allocation2 + $0x3ac] sm:$0xf] %v173
  %206 = vst [vmem:[#allocation2 + $0x3d0] sm:$0xf] %v174
  %207 = vst [vmem:[#allocation2 + $0x3f4] sm:$0xf] %v175
  %208 = vst [vmem:[#allocation2 + $0x418] sm:$0xf] %v176
  %209 = vst [vmem:[#allocation2 + $0x43c] sm:$0xf] %v177
  %210 = vst [vmem:[#allocation2 + $0x460] sm:$0xf] %v178
  %v211 = vld [vmem:[%s0 + $0x2] sm:$0xff]
  %v212 = vld [vmem:[%s0 + $0xa] sm:$0xff]
  %v213 = vld [vmem:[%s0 + $0x1a] sm:$0xff]
  %v214 = vld [vmem:[%s0 + $0x22] sm:$0xff]
  %v215 = vld [vmem:[%s0 + $0x32] sm:$0xff]
  %v216 = vld [vmem:[%s0 + $0x3a] sm:$0xff]
  %v217 = vld [vmem:[%s0 + $0x4a] sm:$0xff]
  %v218 = vld [vmem:[%s0 + $0x52] sm:$0xff]
  %v219 = vld [vmem:[%s0 + $0x62] sm:$0xff]
  %v220 = vld [vmem:[%s0 + $0x6a] sm:$0xff]
  %v221 = vld [vmem:[%s0 + $0x7a] sm:$0xff]
  %v222 = vld [vmem:[%s0 + $0x82] sm:$0xff]
  %v223 = vld [vmem:[%s0 + $0x92] sm:$0xff]
  %v224 = vld [vmem:[%s0 + $0x9a] sm:$0xff]
  %v225 = vld [vmem:[%s0 + $0xaa] sm:$0xff]
  %v226 = vld [vmem:[%s0 + $0xb2] sm:$0xff]
  %v227 = vld [vmem:[%s0 + $0xc2] sm:$0xff]
  %v228 = vld [vmem:[%s0 + $0xca] sm:$0xff]
  %v229 = vld [vmem:[%s0 + $0xda] sm:$0xff]
  %v230 = vld [vmem:[%s0 + $0xe2] sm:$0xff]
  %v231 = vld [vmem:[%s0 + $0xf2] sm:$0xff]
  %v232 = vld [vmem:[%s0 + $0xfa] sm:$0xff]
  %v233 = vld [vmem:[%s0 + $0x10a] sm:$0xff]
  %v234 = vld [vmem:[%s0 + $0x112] sm:$0xff]
  %v235 = vld [vmem:[%s0 + $0x122] sm:$0xff]
  %v236 = vld [vmem:[%s0 + $0x12a] sm:$0xff]
  %v237 = vld [vmem:[%s0 + $0x13a] sm:$0xff]
  %v238 = vld [vmem:[%s0 + $0x142] sm:$0xff]
  %v239 = vld [vmem:[%s0 + $0x152] sm:$0xff]
  %v240 = vld [vmem:[%s0 + $0x15a] sm:$0xff]
  %v241 = vld [vmem:[%s0 + $0x16a] sm:$0xff]
  %v242 = vld [vmem:[%s0 + $0x172] sm:$0xff]
  %v243 = vpack.c.bf16 %v211, %v211
  %v244 = vpack.c.bf16 %v212, %v212
  %v245 = vpack.c.bf16 %v213, %v213
  %v246 = vpack.c.bf16 %v214, %v214
  %v247 = vpack.c.bf16 %v215, %v215
  %v248 = vpack.c.bf16 %v216, %v216
  %v249 = vpack.c.bf16 %v217, %v217
  %v250 = vpack.c.bf16 %v218, %v218
  %v251 = vpack.c.bf16 %v219, %v219
  %v252 = vpack.c.bf16 %v220, %v220
  %v253 = vpack.c.bf16 %v221, %v221
  %v254 = vpack.c.bf16 %v222, %v222
  %v255 = vpack.c.bf16 %v223, %v223
  %v256 = vpack.c.bf16 %v224, %v224
  %v257 = vpack.c.bf16 %v225, %v225
  %v258 = vpack.c.bf16 %v226, %v226
  %v259 = vpack.c.bf16 %v227, %v227
  %v260 = vpack.c.bf16 %v228, %v228
  %v261 = vpack.c.bf16 %v229, %v229
  %v262 = vpack.c.bf16 %v230, %v230
  %v263 = vpack.c.bf16 %v231, %v231
  %v264 = vpack.c.bf16 %v232, %v232
  %v265 = vpack.c.bf16 %v233, %v233
  %v266 = vpack.c.bf16 %v234, %v234
  %v267 = vpack.c.bf16 %v235, %v235
  %v268 = vpack.c.bf16 %v236, %v236
  %v269 = vpack.c.bf16 %v237, %v237
  %v270 = vpack.c.bf16 %v238, %v238
  %v271 = vpack.c.bf16 %v239, %v239
  %v272 = vpack.c.bf16 %v240, %v240
  %v273 = vpack.c.bf16 %v241, %v241
  %v274 = vpack.c.bf16 %v242, %v242
  %275 = vst [vmem:[#allocation2 + $0x8] sm:$0xf] %v243
  %276 = vst [vmem:[#allocation2 + $0x2c] sm:$0xf] %v244
  %277 = vst [vmem:[#allocation2 + $0x50] sm:$0xf] %v245
  %278 = vst [vmem:[#allocation2 + $0x74] sm:$0xf] %v246
  %279 = vst [vmem:[#allocation2 + $0x98] sm:$0xf] %v247
  %280 = vst [vmem:[#allocation2 + $0xbc] sm:$0xf] %v248
  %281 = vst [vmem:[#allocation2 + $0xe0] sm:$0xf] %v249
  %282 = vst [vmem:[#allocation2 + $0x104] sm:$0xf] %v250
  %283 = vst [vmem:[#allocation2 + $0x128] sm:$0xf] %v251
  %284 = vst [vmem:[#allocation2 + $0x14c] sm:$0xf] %v252
  %285 = vst [vmem:[#allocation2 + $0x170] sm:$0xf] %v253
  %286 = vst [vmem:[#allocation2 + $0x194] sm:$0xf] %v254
  %287 = vst [vmem:[#allocation2 + $0x1b8] sm:$0xf] %v255
  %288 = vst [vmem:[#allocation2 + $0x1dc] sm:$0xf] %v256
  %289 = vst [vmem:[#allocation2 + $0x200] sm:$0xf] %v257
  %290 = vst [vmem:[#allocation2 + $0x224] sm:$0xf] %v258
  %291 = vst [vmem:[#allocation2 + $0x248] sm:$0xf] %v259
  %292 = vst [vmem:[#allocation2 + $0x26c] sm:$0xf] %v260
  %293 = vst [vmem:[#allocation2 + $0x290] sm:$0xf] %v261
  %294 = vst [vmem:[#allocation2 + $0x2b4] sm:$0xf] %v262
  %295 = vst [vmem:[#allocation2 + $0x2d8] sm:$0xf] %v263
  %296 = vst [vmem:[#allocation2 + $0x2fc] sm:$0xf] %v264
  %297 = vst [vmem:[#allocation2 + $0x320] sm:$0xf] %v265
  %298 = vst [vmem:[#allocation2 + $0x344] sm:$0xf] %v266
  %299 = vst [vmem:[#allocation2 + $0x368] sm:$0xf] %v267
  %300 = vst [vmem:[#allocation2 + $0x38c] sm:$0xf] %v268
  %301 = vst [vmem:[#allocation2 + $0x3b0] sm:$0xf] %v269
  %302 = vst [vmem:[#allocation2 + $0x3d4] sm:$0xf] %v270
  %303 = vst [vmem:[#allocation2 + $0x3f8] sm:$0xf] %v271
  %304 = vst [vmem:[#allocation2 + $0x41c] sm:$0xf] %v272
  %305 = vst [vmem:[#allocation2 + $0x440] sm:$0xf] %v273
  %306 = vst [vmem:[#allocation2 + $0x464] sm:$0xf] %v274
  %s307 = scalar_lea.vmem %s0, 24
  %v308 = vld [vmem:[%s307] sm:$0xff]
  %v309 = vld [vmem:[%s307 + $0x8] sm:$0xff]
  %v310 = vld [vmem:[%s307 + $0x18] sm:$0xff]
  %v311 = vld [vmem:[%s307 + $0x20] sm:$0xff]
  %v312 = vld [vmem:[%s307 + $0x30] sm:$0xff]
  %v313 = vld [vmem:[%s307 + $0x38] sm:$0xff]
  %v314 = vld [vmem:[%s307 + $0x48] sm:$0xff]
  %v315 = vld [vmem:[%s307 + $0x50] sm:$0xff]
  %v316 = vld [vmem:[%s307 + $0x60] sm:$0xff]
  %v317 = vld [vmem:[%s307 + $0x68] sm:$0xff]
  %v318 = vld [vmem:[%s307 + $0x78] sm:$0xff]
  %v319 = vld [vmem:[%s307 + $0x80] sm:$0xff]
  %v320 = vld [vmem:[%s307 + $0x90] sm:$0xff]
  %v321 = vld [vmem:[%s307 + $0x98] sm:$0xff]
  %v322 = vld [vmem:[%s307 + $0xa8] sm:$0xff]
  %v323 = vld [vmem:[%s307 + $0xb0] sm:$0xff]
  %v324 = vld [vmem:[%s307 + $0xc0] sm:$0xff]
  %v325 = vld [vmem:[%s307 + $0xc8] sm:$0xff]
  %v326 = vld [vmem:[%s307 + $0xd8] sm:$0xff]
  %v327 = vld [vmem:[%s307 + $0xe0] sm:$0xff]
  %v328 = vld [vmem:[%s307 + $0xf0] sm:$0xff]
  %v329 = vld [vmem:[%s307 + $0xf8] sm:$0xff]
  %v330 = vld [vmem:[%s307 + $0x108] sm:$0xff]
  %v331 = vld [vmem:[%s307 + $0x110] sm:$0xff]
  %v332 = vld [vmem:[%s307 + $0x120] sm:$0xff]
  %v333 = vld [vmem:[%s307 + $0x128] sm:$0xff]
  %v334 = vld [vmem:[%s307 + $0x138] sm:$0xff]
  %v335 = vld [vmem:[%s307 + $0x140] sm:$0xff]
  %v336 = vld [vmem:[%s307 + $0x150] sm:$0xff]
  %v337 = vld [vmem:[%s307 + $0x158] sm:$0xff]
  %v338 = vld [vmem:[%s307 + $0x168] sm:$0xff]
  %v339 = vld [vmem:[%s307 + $0x170] sm:$0xff]
  %v340 = vpack.c.bf16 %v308, %v308
  %v341 = vpack.c.bf16 %v309, %v309
  %v342 = vpack.c.bf16 %v310, %v310
  %v343 = vpack.c.bf16 %v311, %v311
  %v344 = vpack.c.bf16 %v312, %v312
  %v345 = vpack.c.bf16 %v313, %v313
  %v346 = vpack.c.bf16 %v314, %v314
  %v347 = vpack.c.bf16 %v315, %v315
  %v348 = vpack.c.bf16 %v316, %v316
  %v349 = vpack.c.bf16 %v317, %v317
  %v350 = vpack.c.bf16 %v318, %v318
  %v351 = vpack.c.bf16 %v319, %v319
  %v352 = vpack.c.bf16 %v320, %v320
  %v353 = vpack.c.bf16 %v321, %v321
  %v354 = vpack.c.bf16 %v322, %v322
  %v355 = vpack.c.bf16 %v323, %v323
  %v356 = vpack.c.bf16 %v324, %v324
  %v357 = vpack.c.bf16 %v325, %v325
  %v358 = vpack.c.bf16 %v326, %v326
  %v359 = vpack.c.bf16 %v327, %v327
  %v360 = vpack.c.bf16 %v328, %v328
  %v361 = vpack.c.bf16 %v329, %v329
  %v362 = vpack.c.bf16 %v330, %v330
  %v363 = vpack.c.bf16 %v331, %v331
  %v364 = vpack.c.bf16 %v332, %v332
  %v365 = vpack.c.bf16 %v333, %v333
  %v366 = vpack.c.bf16 %v334, %v334
  %v367 = vpack.c.bf16 %v335, %v335
  %v368 = vpack.c.bf16 %v336, %v336
  %v369 = vpack.c.bf16 %v337, %v337
  %v370 = vpack.c.bf16 %v338, %v338
  %v371 = vpack.c.bf16 %v339, %v339
  %372 = vst [vmem:[#allocation2 + $0xc] sm:$0xf] %v340
  %373 = vst [vmem:[#allocation2 + $0x30] sm:$0xf] %v341
  %374 = vst [vmem:[#allocation2 + $0x54] sm:$0xf] %v342
  %375 = vst [vmem:[#allocation2 + $0x78] sm:$0xf] %v343
  %376 = vst [vmem:[#allocation2 + $0x9c] sm:$0xf] %v344
  %377 = vst [vmem:[#allocation2 + $0xc0] sm:$0xf] %v345
  %378 = vst [vmem:[#allocation2 + $0xe4] sm:$0xf] %v346
  %379 = vst [vmem:[#allocation2 + $0x108] sm:$0xf] %v347
  %380 = vst [vmem:[#allocation2 + $0x12c] sm:$0xf] %v348
  %381 = vst [vmem:[#allocation2 + $0x150] sm:$0xf] %v349
  %382 = vst [vmem:[#allocation2 + $0x174] sm:$0xf] %v350
  %383 = vst [vmem:[#allocation2 + $0x198] sm:$0xf] %v351
  %384 = vst [vmem:[#allocation2 + $0x1bc] sm:$0xf] %v352
  %385 = vst [vmem:[#allocation2 + $0x1e0] sm:$0xf] %v353
  %386 = vst [vmem:[#allocation2 + $0x204] sm:$0xf] %v354
  %387 = vst [vmem:[#allocation2 + $0x228] sm:$0xf] %v355
  %388 = vst [vmem:[#allocation2 + $0x24c] sm:$0xf] %v356
  %389 = vst [vmem:[#allocation2 + $0x270] sm:$0xf] %v357
  %390 = vst [vmem:[#allocation2 + $0x294] sm:$0xf] %v358
  %391 = vst [vmem:[#allocation2 + $0x2b8] sm:$0xf] %v359
  %392 = vst [vmem:[#allocation2 + $0x2dc] sm:$0xf] %v360
  %393 = vst [vmem:[#allocation2 + $0x300] sm:$0xf] %v361
  %394 = vst [vmem:[#allocation2 + $0x324] sm:$0xf] %v362
  %395 = vst [vmem:[#allocation2 + $0x348] sm:$0xf] %v363
  %396 = vst [vmem:[#allocation2 + $0x36c] sm:$0xf] %v364
  %397 = vst [vmem:[#allocation2 + $0x390] sm:$0xf] %v365
  %398 = vst [vmem:[#allocation2 + $0x3b4] sm:$0xf] %v366
  %399 = vst [vmem:[#allocation2 + $0x3d8] sm:$0xf] %v367
  %400 = vst [vmem:[#allocation2 + $0x3fc] sm:$0xf] %v368
  %401 = vst [vmem:[#allocation2 + $0x420] sm:$0xf] %v369
  %402 = vst [vmem:[#allocation2 + $0x444] sm:$0xf] %v370
  %403 = vst [vmem:[#allocation2 + $0x468] sm:$0xf] %v371
  %v404 = vld [vmem:[%s307 + $0x1] sm:$0xff]
  %v405 = vld [vmem:[%s307 + $0x9] sm:$0xff]
  %v406 = vld [vmem:[%s307 + $0x19] sm:$0xff]
  %v407 = vld [vmem:[%s307 + $0x21] sm:$0xff]
  %v408 = vld [vmem:[%s307 + $0x31] sm:$0xff]
  %v409 = vld [vmem:[%s307 + $0x39] sm:$0xff]
  %v410 = vld [vmem:[%s307 + $0x49] sm:$0xff]
  %v411 = vld [vmem:[%s307 + $0x51] sm:$0xff]
  %v412 = vld [vmem:[%s307 + $0x61] sm:$0xff]
  %v413 = vld [vmem:[%s307 + $0x69] sm:$0xff]
  %v414 = vld [vmem:[%s307 + $0x79] sm:$0xff]
  %v415 = vld [vmem:[%s307 + $0x81] sm:$0xff]
  %v416 = vld [vmem:[%s307 + $0x91] sm:$0xff]
  %v417 = vld [vmem:[%s307 + $0x99] sm:$0xff]
  %v418 = vld [vmem:[%s307 + $0xa9] sm:$0xff]
  %v419 = vld [vmem:[%s307 + $0xb1] sm:$0xff]
  %v420 = vld [vmem:[%s307 + $0xc1] sm:$0xff]
  %v421 = vld [vmem:[%s307 + $0xc9] sm:$0xff]
  %v422 = vld [vmem:[%s307 + $0xd9] sm:$0xff]
  %v423 = vld [vmem:[%s307 + $0xe1] sm:$0xff]
  %v424 = vld [vmem:[%s307 + $0xf1] sm:$0xff]
  %v425 = vld [vmem:[%s307 + $0xf9] sm:$0xff]
  %v426 = vld [vmem:[%s307 + $0x109] sm:$0xff]
  %v427 = vld [vmem:[%s307 + $0x111] sm:$0xff]
  %v428 = vld [vmem:[%s307 + $0x121] sm:$0xff]
  %v429 = vld [vmem:[%s307 + $0x129] sm:$0xff]
  %v430 = vld [vmem:[%s307 + $0x139] sm:$0xff]
  %v431 = vld [vmem:[%s307 + $0x141] sm:$0xff]
  %v432 = vld [vmem:[%s307 + $0x151] sm:$0xff]
  %v433 = vld [vmem:[%s307 + $0x159] sm:$0xff]
  %v434 = vld [vmem:[%s307 + $0x169] sm:$0xff]
  %v435 = vld [vmem:[%s307 + $0x171] sm:$0xff]
  %v436 = vpack.c.bf16 %v404, %v404
  %v437 = vpack.c.bf16 %v405, %v405
  %v438 = vpack.c.bf16 %v406, %v406
  %v439 = vpack.c.bf16 %v407, %v407
  %v440 = vpack.c.bf16 %v408, %v408
  %v441 = vpack.c.bf16 %v409, %v409
  %v442 = vpack.c.bf16 %v410, %v410
  %v443 = vpack.c.bf16 %v411, %v411
  %v444 = vpack.c.bf16 %v412, %v412
  %v445 = vpack.c.bf16 %v413, %v413
  %v446 = vpack.c.bf16 %v414, %v414
  %v447 = vpack.c.bf16 %v415, %v415
  %v448 = vpack.c.bf16 %v416, %v416
  %v449 = vpack.c.bf16 %v417, %v417
  %v450 = vpack.c.bf16 %v418, %v418
  %v451 = vpack.c.bf16 %v419, %v419
  %v452 = vpack.c.bf16 %v420, %v420
  %v453 = vpack.c.bf16 %v421, %v421
  %v454 = vpack.c.bf16 %v422, %v422
  %v455 = vpack.c.bf16 %v423, %v423
  %v456 = vpack.c.bf16 %v424, %v424
  %v457 = vpack.c.bf16 %v425, %v425
  %v458 = vpack.c.bf16 %v426, %v426
  %v459 = vpack.c.bf16 %v427, %v427
  %v460 = vpack.c.bf16 %v428, %v428
  %v461 = vpack.c.bf16 %v429, %v429
  %v462 = vpack.c.bf16 %v430, %v430
  %v463 = vpack.c.bf16 %v431, %v431
  %v464 = vpack.c.bf16 %v432, %v432
  %v465 = vpack.c.bf16 %v433, %v433
  %v466 = vpack.c.bf16 %v434, %v434
  %v467 = vpack.c.bf16 %v435, %v435
  %468 = vst [vmem:[#allocation2 + $0x10] sm:$0xf] %v436
  %469 = vst [vmem:[#allocation2 + $0x34] sm:$0xf] %v437
  %470 = vst [vmem:[#allocation2 + $0x58] sm:$0xf] %v438
  %471 = vst [vmem:[#allocation2 + $0x7c] sm:$0xf] %v439
  %472 = vst [vmem:[#allocation2 + $0xa0] sm:$0xf] %v440
  %473 = vst [vmem:[#allocation2 + $0xc4] sm:$0xf] %v441
  %474 = vst [vmem:[#allocation2 + $0xe8] sm:$0xf] %v442
  %475 = vst [vmem:[#allocation2 + $0x10c] sm:$0xf] %v443
  %476 = vst [vmem:[#allocation2 + $0x130] sm:$0xf] %v444
  %477 = vst [vmem:[#allocation2 + $0x154] sm:$0xf] %v445
  %478 = vst [vmem:[#allocation2 + $0x178] sm:$0xf] %v446
  %479 = vst [vmem:[#allocation2 + $0x19c] sm:$0xf] %v447
  %480 = vst [vmem:[#allocation2 + $0x1c0] sm:$0xf] %v448
  %481 = vst [vmem:[#allocation2 + $0x1e4] sm:$0xf] %v449
  %482 = vst [vmem:[#allocation2 + $0x208] sm:$0xf] %v450
  %483 = vst [vmem:[#allocation2 + $0x22c] sm:$0xf] %v451
  %484 = vst [vmem:[#allocation2 + $0x250] sm:$0xf] %v452
  %485 = vst [vmem:[#allocation2 + $0x274] sm:$0xf] %v453
  %486 = vst [vmem:[#allocation2 + $0x298] sm:$0xf] %v454
  %487 = vst [vmem:[#allocation2 + $0x2bc] sm:$0xf] %v455
  %488 = vst [vmem:[#allocation2 + $0x2e0] sm:$0xf] %v456
  %489 = vst [vmem:[#allocation2 + $0x304] sm:$0xf] %v457
  %490 = vst [vmem:[#allocation2 + $0x328] sm:$0xf] %v458
  %491 = vst [vmem:[#allocation2 + $0x34c] sm:$0xf] %v459
  %492 = vst [vmem:[#allocation2 + $0x370] sm:$0xf] %v460
  %493 = vst [vmem:[#allocation2 + $0x394] sm:$0xf] %v461
  %494 = vst [vmem:[#allocation2 + $0x3b8] sm:$0xf] %v462
  %495 = vst [vmem:[#allocation2 + $0x3dc] sm:$0xf] %v463
  %496 = vst [vmem:[#allocation2 + $0x400] sm:$0xf] %v464
  %497 = vst [vmem:[#allocation2 + $0x424] sm:$0xf] %v465
  %498 = vst [vmem:[#allocation2 + $0x448] sm:$0xf] %v466
  %499 = vst [vmem:[#allocation2 + $0x46c] sm:$0xf] %v467
  %v500 = vld [vmem:[%s307 + $0x2] sm:$0xff]
  %v501 = vld [vmem:[%s307 + $0xa] sm:$0xff]
  %v502 = vld [vmem:[%s307 + $0x1a] sm:$0xff]
  %v503 = vld [vmem:[%s307 + $0x22] sm:$0xff]
  %v504 = vld [vmem:[%s307 + $0x32] sm:$0xff]
  %v505 = vld [vmem:[%s307 + $0x3a] sm:$0xff]
  %v506 = vld [vmem:[%s307 + $0x4a] sm:$0xff]
  %v507 = vld [vmem:[%s307 + $0x52] sm:$0xff]
  %v508 = vld [vmem:[%s307 + $0x62] sm:$0xff]
  %v509 = vld [vmem:[%s307 + $0x6a] sm:$0xff]
  %v510 = vld [vmem:[%s307 + $0x7a] sm:$0xff]
  %v511 = vld [vmem:[%s307 + $0x82] sm:$0xff]
  %v512 = vld [vmem:[%s307 + $0x92] sm:$0xff]
  %v513 = vld [vmem:[%s307 + $0x9a] sm:$0xff]
  %v514 = vld [vmem:[%s307 + $0xaa] sm:$0xff]
  %v515 = vld [vmem:[%s307 + $0xb2] sm:$0xff]
  %v516 = vld [vmem:[%s307 + $0xc2] sm:$0xff]
  %v517 = vld [vmem:[%s307 + $0xca] sm:$0xff]
  %v518 = vld [vmem:[%s307 + $0xda] sm:$0xff]
  %v519 = vld [vmem:[%s307 + $0xe2] sm:$0xff]
  %v520 = vld [vmem:[%s307 + $0xf2] sm:$0xff]
  %v521 = vld [vmem:[%s307 + $0xfa] sm:$0xff]
  %v522 = vld [vmem:[%s307 + $0x10a] sm:$0xff]
  %v523 = vld [vmem:[%s307 + $0x112] sm:$0xff]
  %v524 = vld [vmem:[%s307 + $0x122] sm:$0xff]
  %v525 = vld [vmem:[%s307 + $0x12a] sm:$0xff]
  %v526 = vld [vmem:[%s307 + $0x13a] sm:$0xff]
  %v527 = vld [vmem:[%s307 + $0x142] sm:$0xff]
  %v528 = vld [vmem:[%s307 + $0x152] sm:$0xff]
  %v529 = vld [vmem:[%s307 + $0x15a] sm:$0xff]
  %v530 = vld [vmem:[%s307 + $0x16a] sm:$0xff]
  %v531 = vld [vmem:[%s307 + $0x172] sm:$0xff]
  %v532 = vpack.c.bf16 %v500, %v500
  %v533 = vpack.c.bf16 %v501, %v501
  %v534 = vpack.c.bf16 %v502, %v502
  %v535 = vpack.c.bf16 %v503, %v503
  %v536 = vpack.c.bf16 %v504, %v504
  %v537 = vpack.c.bf16 %v505, %v505
  %v538 = vpack.c.bf16 %v506, %v506
  %v539 = vpack.c.bf16 %v507, %v507
  %v540 = vpack.c.bf16 %v508, %v508
  %v541 = vpack.c.bf16 %v509, %v509
  %v542 = vpack.c.bf16 %v510, %v510
  %v543 = vpack.c.bf16 %v511, %v511
  %v544 = vpack.c.bf16 %v512, %v512
  %v545 = vpack.c.bf16 %v513, %v513
  %v546 = vpack.c.bf16 %v514, %v514
  %v547 = vpack.c.bf16 %v515, %v515
  %v548 = vpack.c.bf16 %v516, %v516
  %v549 = vpack.c.bf16 %v517, %v517
  %v550 = vpack.c.bf16 %v518, %v518
  %v551 = vpack.c.bf16 %v519, %v519
  %v552 = vpack.c.bf16 %v520, %v520
  %v553 = vpack.c.bf16 %v521, %v521
  %v554 = vpack.c.bf16 %v522, %v522
  %v555 = vpack.c.bf16 %v523, %v523
  %v556 = vpack.c.bf16 %v524, %v524
  %v557 = vpack.c.bf16 %v525, %v525
  %v558 = vpack.c.bf16 %v526, %v526
  %v559 = vpack.c.bf16 %v527, %v527
  %v560 = vpack.c.bf16 %v528, %v528
  %v561 = vpack.c.bf16 %v529, %v529
  %v562 = vpack.c.bf16 %v530, %v530
  %v563 = vpack.c.bf16 %v531, %v531
  %564 = vst [vmem:[#allocation2 + $0x14] sm:$0xf] %v532
  %565 = vst [vmem:[#allocation2 + $0x38] sm:$0xf] %v533
  %566 = vst [vmem:[#allocation2 + $0x5c] sm:$0xf] %v534
  %567 = vst [vmem:[#allocation2 + $0x80] sm:$0xf] %v535
  %568 = vst [vmem:[#allocation2 + $0xa4] sm:$0xf] %v536
  %569 = vst [vmem:[#allocation2 + $0xc8] sm:$0xf] %v537
  %570 = vst [vmem:[#allocation2 + $0xec] sm:$0xf] %v538
  %571 = vst [vmem:[#allocation2 + $0x110] sm:$0xf] %v539
  %572 = vst [vmem:[#allocation2 + $0x134] sm:$0xf] %v540
  %573 = vst [vmem:[#allocation2 + $0x158] sm:$0xf] %v541
  %574 = vst [vmem:[#allocation2 + $0x17c] sm:$0xf] %v542
  %575 = vst [vmem:[#allocation2 + $0x1a0] sm:$0xf] %v543
  %576 = vst [vmem:[#allocation2 + $0x1c4] sm:$0xf] %v544
  %577 = vst [vmem:[#allocation2 + $0x1e8] sm:$0xf] %v545
  %578 = vst [vmem:[#allocation2 + $0x20c] sm:$0xf] %v546
  %579 = vst [vmem:[#allocation2 + $0x230] sm:$0xf] %v547
  %580 = vst [vmem:[#allocation2 + $0x254] sm:$0xf] %v548
  %581 = vst [vmem:[#allocation2 + $0x278] sm:$0xf] %v549
  %582 = vst [vmem:[#allocation2 + $0x29c] sm:$0xf] %v550
  %583 = vst [vmem:[#allocation2 + $0x2c0] sm:$0xf] %v551
  %584 = vst [vmem:[#allocation2 + $0x2e4] sm:$0xf] %v552
  %585 = vst [vmem:[#allocation2 + $0x308] sm:$0xf] %v553
  %586 = vst [vmem:[#allocation2 + $0x32c] sm:$0xf] %v554
  %587 = vst [vmem:[#allocation2 + $0x350] sm:$0xf] %v555
  %588 = vst [vmem:[#allocation2 + $0x374] sm:$0xf] %v556
  %589 = vst [vmem:[#allocation2 + $0x398] sm:$0xf] %v557
  %590 = vst [vmem:[#allocation2 + $0x3bc] sm:$0xf] %v558
  %591 = vst [vmem:[#allocation2 + $0x3e0] sm:$0xf] %v559
  %592 = vst [vmem:[#allocation2 + $0x404] sm:$0xf] %v560
  %593 = vst [vmem:[#allocation2 + $0x428] sm:$0xf] %v561
  %594 = vst [vmem:[#allocation2 + $0x44c] sm:$0xf] %v562
  %595 = vst [vmem:[#allocation2 + $0x470] sm:$0xf] %v563
  %s596 = scalar_lea.vmem %s0, 48
  %v597 = vld [vmem:[%s596] sm:$0xff]
  %v598 = vld [vmem:[%s596 + $0x8] sm:$0xff]
  %v599 = vld [vmem:[%s596 + $0x18] sm:$0xff]
  %v600 = vld [vmem:[%s596 + $0x20] sm:$0xff]
  %v601 = vld [vmem:[%s596 + $0x30] sm:$0xff]
  %v602 = vld [vmem:[%s596 + $0x38] sm:$0xff]
  %v603 = vld [vmem:[%s596 + $0x48] sm:$0xff]
  %v604 = vld [vmem:[%s596 + $0x50] sm:$0xff]
  %v605 = vld [vmem:[%s596 + $0x60] sm:$0xff]
  %v606 = vld [vmem:[%s596 + $0x68] sm:$0xff]
  %v607 = vld [vmem:[%s596 + $0x78] sm:$0xff]
  %v608 = vld [vmem:[%s596 + $0x80] sm:$0xff]
  %v609 = vld [vmem:[%s596 + $0x90] sm:$0xff]
  %v610 = vld [vmem:[%s596 + $0x98] sm:$0xff]
  %v611 = vld [vmem:[%s596 + $0xa8] sm:$0xff]
  %v612 = vld [vmem:[%s596 + $0xb0] sm:$0xff]
  %v613 = vld [vmem:[%s596 + $0xc0] sm:$0xff]
  %v614 = vld [vmem:[%s596 + $0xc8] sm:$0xff]
  %v615 = vld [vmem:[%s596 + $0xd8] sm:$0xff]
  %v616 = vld [vmem:[%s596 + $0xe0] sm:$0xff]
  %v617 = vld [vmem:[%s596 + $0xf0] sm:$0xff]
  %v618 = vld [vmem:[%s596 + $0xf8] sm:$0xff]
  %v619 = vld [vmem:[%s596 + $0x108] sm:$0xff]
  %v620 = vld [vmem:[%s596 + $0x110] sm:$0xff]
  %v621 = vld [vmem:[%s596 + $0x120] sm:$0xff]
  %v622 = vld [vmem:[%s596 + $0x128] sm:$0xff]
  %v623 = vld [vmem:[%s596 + $0x138] sm:$0xff]
  %v624 = vld [vmem:[%s596 + $0x140] sm:$0xff]
  %v625 = vld [vmem:[%s596 + $0x150] sm:$0xff]
  %v626 = vld [vmem:[%s596 + $0x158] sm:$0xff]
  %v627 = vld [vmem:[%s596 + $0x168] sm:$0xff]
  %v628 = vld [vmem:[%s596 + $0x170] sm:$0xff]
  %v629 = vpack.c.bf16 %v597, %v597
  %v630 = vpack.c.bf16 %v598, %v598
  %v631 = vpack.c.bf16 %v599, %v599
  %v632 = vpack.c.bf16 %v600, %v600
  %v633 = vpack.c.bf16 %v601, %v601
  %v634 = vpack.c.bf16 %v602, %v602
  %v635 = vpack.c.bf16 %v603, %v603
  %v636 = vpack.c.bf16 %v604, %v604
  %v637 = vpack.c.bf16 %v605, %v605
  %v638 = vpack.c.bf16 %v606, %v606
  %v639 = vpack.c.bf16 %v607, %v607
  %v640 = vpack.c.bf16 %v608, %v608
  %v641 = vpack.c.bf16 %v609, %v609
  %v642 = vpack.c.bf16 %v610, %v610
  %v643 = vpack.c.bf16 %v611, %v611
  %v644 = vpack.c.bf16 %v612, %v612
  %v645 = vpack.c.bf16 %v613, %v613
  %v646 = vpack.c.bf16 %v614, %v614
  %v647 = vpack.c.bf16 %v615, %v615
  %v648 = vpack.c.bf16 %v616, %v616
  %v649 = vpack.c.bf16 %v617, %v617
  %v650 = vpack.c.bf16 %v618, %v618
  %v651 = vpack.c.bf16 %v619, %v619
  %v652 = vpack.c.bf16 %v620, %v620
  %v653 = vpack.c.bf16 %v621, %v621
  %v654 = vpack.c.bf16 %v622, %v622
  %v655 = vpack.c.bf16 %v623, %v623
  %v656 = vpack.c.bf16 %v624, %v624
  %v657 = vpack.c.bf16 %v625, %v625
  %v658 = vpack.c.bf16 %v626, %v626
  %v659 = vpack.c.bf16 %v627, %v627
  %v660 = vpack.c.bf16 %v628, %v628
  %661 = vst [vmem:[#allocation2 + $0x18] sm:$0xf] %v629
  %662 = vst [vmem:[#allocation2 + $0x3c] sm:$0xf] %v630
  %663 = vst [vmem:[#allocation2 + $0x60] sm:$0xf] %v631
  %664 = vst [vmem:[#allocation2 + $0x84] sm:$0xf] %v632
  %665 = vst [vmem:[#allocation2 + $0xa8] sm:$0xf] %v633
  %666 = vst [vmem:[#allocation2 + $0xcc] sm:$0xf] %v634
  %667 = vst [vmem:[#allocation2 + $0xf0] sm:$0xf] %v635
  %668 = vst [vmem:[#allocation2 + $0x114] sm:$0xf] %v636
  %669 = vst [vmem:[#allocation2 + $0x138] sm:$0xf] %v637
  %670 = vst [vmem:[#allocation2 + $0x15c] sm:$0xf] %v638
  %671 = vst [vmem:[#allocation2 + $0x180] sm:$0xf] %v639
  %672 = vst [vmem:[#allocation2 + $0x1a4] sm:$0xf] %v640
  %673 = vst [vmem:[#allocation2 + $0x1c8] sm:$0xf] %v641
  %674 = vst [vmem:[#allocation2 + $0x1ec] sm:$0xf] %v642
  %675 = vst [vmem:[#allocation2 + $0x210] sm:$0xf] %v643
  %676 = vst [vmem:[#allocation2 + $0x234] sm:$0xf] %v644
  %677 = vst [vmem:[#allocation2 + $0x258] sm:$0xf] %v645
  %678 = vst [vmem:[#allocation2 + $0x27c] sm:$0xf] %v646
  %679 = vst [vmem:[#allocation2 + $0x2a0] sm:$0xf] %v647
  %680 = vst [vmem:[#allocation2 + $0x2c4] sm:$0xf] %v648
  %681 = vst [vmem:[#allocation2 + $0x2e8] sm:$0xf] %v649
  %682 = vst [vmem:[#allocation2 + $0x30c] sm:$0xf] %v650
  %683 = vst [vmem:[#allocation2 + $0x330] sm:$0xf] %v651
  %684 = vst [vmem:[#allocation2 + $0x354] sm:$0xf] %v652
  %685 = vst [vmem:[#allocation2 + $0x378] sm:$0xf] %v653
  %686 = vst [vmem:[#allocation2 + $0x39c] sm:$0xf] %v654
  %687 = vst [vmem:[#allocation2 + $0x3c0] sm:$0xf] %v655
  %688 = vst [vmem:[#allocation2 + $0x3e4] sm:$0xf] %v656
  %689 = vst [vmem:[#allocation2 + $0x408] sm:$0xf] %v657
  %690 = vst [vmem:[#allocation2 + $0x42c] sm:$0xf] %v658
  %691 = vst [vmem:[#allocation2 + $0x450] sm:$0xf] %v659
  %692 = vst [vmem:[#allocation2 + $0x474] sm:$0xf] %v660
  %v693 = vld [vmem:[%s596 + $0x1] sm:$0xff]
  %v694 = vld [vmem:[%s596 + $0x9] sm:$0xff]
  %v695 = vld [vmem:[%s596 + $0x19] sm:$0xff]
  %v696 = vld [vmem:[%s596 + $0x21] sm:$0xff]
  %v697 = vld [vmem:[%s596 + $0x31] sm:$0xff]
  %v698 = vld [vmem:[%s596 + $0x39] sm:$0xff]
  %v699 = vld [vmem:[%s596 + $0x49] sm:$0xff]
  %v700 = vld [vmem:[%s596 + $0x51] sm:$0xff]
  %v701 = vld [vmem:[%s596 + $0x61] sm:$0xff]
  %v702 = vld [vmem:[%s596 + $0x69] sm:$0xff]
  %v703 = vld [vmem:[%s596 + $0x79] sm:$0xff]
  %v704 = vld [vmem:[%s596 + $0x81] sm:$0xff]
  %v705 = vld [vmem:[%s596 + $0x91] sm:$0xff]
  %v706 = vld [vmem:[%s596 + $0x99] sm:$0xff]
  %v707 = vld [vmem:[%s596 + $0xa9] sm:$0xff]
  %v708 = vld [vmem:[%s596 + $0xb1] sm:$0xff]
  %v709 = vld [vmem:[%s596 + $0xc1] sm:$0xff]
  %v710 = vld [vmem:[%s596 + $0xc9] sm:$0xff]
  %v711 = vld [vmem:[%s596 + $0xd9] sm:$0xff]
  %v712 = vld [vmem:[%s596 + $0xe1] sm:$0xff]
  %v713 = vld [vmem:[%s596 + $0xf1] sm:$0xff]
  %v714 = vld [vmem:[%s596 + $0xf9] sm:$0xff]
  %v715 = vld [vmem:[%s596 + $0x109] sm:$0xff]
  %v716 = vld [vmem:[%s596 + $0x111] sm:$0xff]
  %v717 = vld [vmem:[%s596 + $0x121] sm:$0xff]
  %v718 = vld [vmem:[%s596 + $0x129] sm:$0xff]
  %v719 = vld [vmem:[%s596 + $0x139] sm:$0xff]
  %v720 = vld [vmem:[%s596 + $0x141] sm:$0xff]
  %v721 = vld [vmem:[%s596 + $0x151] sm:$0xff]
  %v722 = vld [vmem:[%s596 + $0x159] sm:$0xff]
  %v723 = vld [vmem:[%s596 + $0x169] sm:$0xff]
  %v724 = vld [vmem:[%s596 + $0x171] sm:$0xff]
  %v725 = vpack.c.bf16 %v693, %v693
  %v726 = vpack.c.bf16 %v694, %v694
  %v727 = vpack.c.bf16 %v695, %v695
  %v728 = vpack.c.bf16 %v696, %v696
  %v729 = vpack.c.bf16 %v697, %v697
  %v730 = vpack.c.bf16 %v698, %v698
  %v731 = vpack.c.bf16 %v699, %v699
  %v732 = vpack.c.bf16 %v700, %v700
  %v733 = vpack.c.bf16 %v701, %v701
  %v734 = vpack.c.bf16 %v702, %v702
  %v735 = vpack.c.bf16 %v703, %v703
  %v736 = vpack.c.bf16 %v704, %v704
  %v737 = vpack.c.bf16 %v705, %v705
  %v738 = vpack.c.bf16 %v706, %v706
  %v739 = vpack.c.bf16 %v707, %v707
  %v740 = vpack.c.bf16 %v708, %v708
  %v741 = vpack.c.bf16 %v709, %v709
  %v742 = vpack.c.bf16 %v710, %v710
  %v743 = vpack.c.bf16 %v711, %v711
  %v744 = vpack.c.bf16 %v712, %v712
  %v745 = vpack.c.bf16 %v713, %v713
  %v746 = vpack.c.bf16 %v714, %v714
  %v747 = vpack.c.bf16 %v715, %v715
  %v748 = vpack.c.bf16 %v716, %v716
  %v749 = vpack.c.bf16 %v717, %v717
  %v750 = vpack.c.bf16 %v718, %v718
  %v751 = vpack.c.bf16 %v719, %v719
  %v752 = vpack.c.bf16 %v720, %v720
  %v753 = vpack.c.bf16 %v721, %v721
  %v754 = vpack.c.bf16 %v722, %v722
  %v755 = vpack.c.bf16 %v723, %v723
  %v756 = vpack.c.bf16 %v724, %v724
  %757 = vst [vmem:[#allocation2 + $0x1c] sm:$0xf] %v725
  %758 = vst [vmem:[#allocation2 + $0x40] sm:$0xf] %v726
  %759 = vst [vmem:[#allocation2 + $0x64] sm:$0xf] %v727
  %760 = vst [vmem:[#allocation2 + $0x88] sm:$0xf] %v728
  %761 = vst [vmem:[#allocation2 + $0xac] sm:$0xf] %v729
  %762 = vst [vmem:[#allocation2 + $0xd0] sm:$0xf] %v730
  %763 = vst [vmem:[#allocation2 + $0xf4] sm:$0xf] %v731
  %764 = vst [vmem:[#allocation2 + $0x118] sm:$0xf] %v732
  %765 = vst [vmem:[#allocation2 + $0x13c] sm:$0xf] %v733
  %766 = vst [vmem:[#allocation2 + $0x160] sm:$0xf] %v734
  %767 = vst [vmem:[#allocation2 + $0x184] sm:$0xf] %v735
  %768 = vst [vmem:[#allocation2 + $0x1a8] sm:$0xf] %v736
  %769 = vst [vmem:[#allocation2 + $0x1cc] sm:$0xf] %v737
  %770 = vst [vmem:[#allocation2 + $0x1f0] sm:$0xf] %v738
  %771 = vst [vmem:[#allocation2 + $0x214] sm:$0xf] %v739
  %772 = vst [vmem:[#allocation2 + $0x238] sm:$0xf] %v740
  %773 = vst [vmem:[#allocation2 + $0x25c] sm:$0xf] %v741
  %774 = vst [vmem:[#allocation2 + $0x280] sm:$0xf] %v742
  %775 = vst [vmem:[#allocation2 + $0x2a4] sm:$0xf] %v743
  %776 = vst [vmem:[#allocation2 + $0x2c8] sm:$0xf] %v744
  %777 = vst [vmem:[#allocation2 + $0x2ec] sm:$0xf] %v745
  %778 = vst [vmem:[#allocation2 + $0x310] sm:$0xf] %v746
  %779 = vst [vmem:[#allocation2 + $0x334] sm:$0xf] %v747
  %780 = vst [vmem:[#allocation2 + $0x358] sm:$0xf] %v748
  %781 = vst [vmem:[#allocation2 + $0x37c] sm:$0xf] %v749
  %782 = vst [vmem:[#allocation2 + $0x3a0] sm:$0xf] %v750
  %783 = vst [vmem:[#allocation2 + $0x3c4] sm:$0xf] %v751
  %784 = vst [vmem:[#allocation2 + $0x3e8] sm:$0xf] %v752
  %785 = vst [vmem:[#allocation2 + $0x40c] sm:$0xf] %v753
  %786 = vst [vmem:[#allocation2 + $0x430] sm:$0xf] %v754
  %787 = vst [vmem:[#allocation2 + $0x454] sm:$0xf] %v755
  %788 = vst [vmem:[#allocation2 + $0x478] sm:$0xf] %v756
  %v789 = vld [vmem:[%s596 + $0x2] sm:$0xff]
  %v790 = vld [vmem:[%s596 + $0xa] sm:$0xff]
  %v791 = vld [vmem:[%s596 + $0x1a] sm:$0xff]
  %v792 = vld [vmem:[%s596 + $0x22] sm:$0xff]
  %v793 = vld [vmem:[%s596 + $0x32] sm:$0xff]
  %v794 = vld [vmem:[%s596 + $0x3a] sm:$0xff]
  %v795 = vld [vmem:[%s596 + $0x4a] sm:$0xff]
  %v796 = vld [vmem:[%s596 + $0x52] sm:$0xff]
  %v797 = vld [vmem:[%s596 + $0x62] sm:$0xff]
  %v798 = vld [vmem:[%s596 + $0x6a] sm:$0xff]
  %v799 = vld [vmem:[%s596 + $0x7a] sm:$0xff]
  %v800 = vld [vmem:[%s596 + $0x82] sm:$0xff]
  %v801 = vld [vmem:[%s596 + $0x92] sm:$0xff]
  %v802 = vld [vmem:[%s596 + $0x9a] sm:$0xff]
  %v803 = vld [vmem:[%s596 + $0xaa] sm:$0xff]
  %v804 = vld [vmem:[%s596 + $0xb2] sm:$0xff]
  %v805 = vld [vmem:[%s596 + $0xc2] sm:$0xff]
  %v806 = vld [vmem:[%s596 + $0xca] sm:$0xff]
  %v807 = vld [vmem:[%s596 + $0xda] sm:$0xff]
  %v808 = vld [vmem:[%s596 + $0xe2] sm:$0xff]
  %v809 = vld [vmem:[%s596 + $0xf2] sm:$0xff]
  %v810 = vld [vmem:[%s596 + $0xfa] sm:$0xff]
  %v811 = vld [vmem:[%s596 + $0x10a] sm:$0xff]
  %v812 = vld [vmem:[%s596 + $0x112] sm:$0xff]
  %v813 = vld [vmem:[%s596 + $0x122] sm:$0xff]
  %v814 = vld [vmem:[%s596 + $0x12a] sm:$0xff]
  %v815 = vld [vmem:[%s596 + $0x13a] sm:$0xff]
  %v816 = vld [vmem:[%s596 + $0x142] sm:$0xff]
  %v817 = vld [vmem:[%s596 + $0x152] sm:$0xff]
  %v818 = vld [vmem:[%s596 + $0x15a] sm:$0xff]
  %v819 = vld [vmem:[%s596 + $0x16a] sm:$0xff]
  %v820 = vld [vmem:[%s596 + $0x172] sm:$0xff]
  %v821 = vpack.c.bf16 %v789, %v789
  %v822 = vpack.c.bf16 %v790, %v790
  %v823 = vpack.c.bf16 %v791, %v791
  %v824 = vpack.c.bf16 %v792, %v792
  %v825 = vpack.c.bf16 %v793, %v793
  %v826 = vpack.c.bf16 %v794, %v794
  %v827 = vpack.c.bf16 %v795, %v795
  %v828 = vpack.c.bf16 %v796, %v796
  %v829 = vpack.c.bf16 %v797, %v797
  %v830 = vpack.c.bf16 %v798, %v798
  %v831 = vpack.c.bf16 %v799, %v799
  %v832 = vpack.c.bf16 %v800, %v800
  %v833 = vpack.c.bf16 %v801, %v801
  %v834 = vpack.c.bf16 %v802, %v802
  %v835 = vpack.c.bf16 %v803, %v803
  %v836 = vpack.c.bf16 %v804, %v804
  %v837 = vpack.c.bf16 %v805, %v805
  %v838 = vpack.c.bf16 %v806, %v806
  %v839 = vpack.c.bf16 %v807, %v807
  %v840 = vpack.c.bf16 %v808, %v808
  %v841 = vpack.c.bf16 %v809, %v809
  %v842 = vpack.c.bf16 %v810, %v810
  %v843 = vpack.c.bf16 %v811, %v811
  %v844 = vpack.c.bf16 %v812, %v812
  %v845 = vpack.c.bf16 %v813, %v813
  %v846 = vpack.c.bf16 %v814, %v814
  %v847 = vpack.c.bf16 %v815, %v815
  %v848 = vpack.c.bf16 %v816, %v816
  %v849 = vpack.c.bf16 %v817, %v817
  %v850 = vpack.c.bf16 %v818, %v818
  %v851 = vpack.c.bf16 %v819, %v819
  %v852 = vpack.c.bf16 %v820, %v820
  %853 = vst [vmem:[#allocation2 + $0x20] sm:$0xf] %v821
  %854 = vst [vmem:[#allocation2 + $0x44] sm:$0xf] %v822
  %855 = vst [vmem:[#allocation2 + $0x68] sm:$0xf] %v823
  %856 = vst [vmem:[#allocation2 + $0x8c] sm:$0xf] %v824
  %857 = vst [vmem:[#allocation2 + $0xb0] sm:$0xf] %v825
  %858 = vst [vmem:[#allocation2 + $0xd4] sm:$0xf] %v826
  %859 = vst [vmem:[#allocation2 + $0xf8] sm:$0xf] %v827
  %860 = vst [vmem:[#allocation2 + $0x11c] sm:$0xf] %v828
  %861 = vst [vmem:[#allocation2 + $0x140] sm:$0xf] %v829
  %862 = vst [vmem:[#allocation2 + $0x164] sm:$0xf] %v830
  %863 = vst [vmem:[#allocation2 + $0x188] sm:$0xf] %v831
  %864 = vst [vmem:[#allocation2 + $0x1ac] sm:$0xf] %v832
  %865 = vst [vmem:[#allocation2 + $0x1d0] sm:$0xf] %v833
  %866 = vst [vmem:[#allocation2 + $0x1f4] sm:$0xf] %v834
  %867 = vst [vmem:[#allocation2 + $0x218] sm:$0xf] %v835
  %868 = vst [vmem:[#allocation2 + $0x23c] sm:$0xf] %v836
  %869 = vst [vmem:[#allocation2 + $0x260] sm:$0xf] %v837
  %870 = vst [vmem:[#allocation2 + $0x284] sm:$0xf] %v838
  %871 = vst [vmem:[#allocation2 + $0x2a8] sm:$0xf] %v839
  %872 = vst [vmem:[#allocation2 + $0x2cc] sm:$0xf] %v840
  %873 = vst [vmem:[#allocation2 + $0x2f0] sm:$0xf] %v841
  %874 = vst [vmem:[#allocation2 + $0x314] sm:$0xf] %v842
  %875 = vst [vmem:[#allocation2 + $0x338] sm:$0xf] %v843
  %876 = vst [vmem:[#allocation2 + $0x35c] sm:$0xf] %v844
  %877 = vst [vmem:[#allocation2 + $0x380] sm:$0xf] %v845
  %878 = vst [vmem:[#allocation2 + $0x3a4] sm:$0xf] %v846
  %879 = vst [vmem:[#allocation2 + $0x3c8] sm:$0xf] %v847
  %880 = vst [vmem:[#allocation2 + $0x3ec] sm:$0xf] %v848
  %881 = vst [vmem:[#allocation2 + $0x410] sm:$0xf] %v849
  %882 = vst [vmem:[#allocation2 + $0x434] sm:$0xf] %v850
  %883 = vst [vmem:[#allocation2 + $0x458] sm:$0xf] %v851
  %884 = vst [vmem:[#allocation2 + $0x47c] sm:$0xf] %v852
  %v885 = vld [vmem:[#allocation2] sm:$0xff]
  %v886 = vld [vmem:[#allocation2 + $0x8] sm:$0xff]
  %v887 = vld [vmem:[#allocation2 + $0x10] sm:$0xff]
  %v888 = vld [vmem:[#allocation2 + $0x18] sm:$0xff]
  %v889 = vld [vmem:[#allocation2 + $0x20] sm:$0xf]
  %v890 = vld [vmem:[#allocation2 + $0x24] sm:$0xff]
  %v891 = vld [vmem:[#allocation2 + $0x2c] sm:$0xff]
  %v892 = vld [vmem:[#allocation2 + $0x34] sm:$0xff]
  %v893 = vld [vmem:[#allocation2 + $0x3c] sm:$0xff]
  %v894 = vld [vmem:[#allocation2 + $0x44] sm:$0xf]
  %v895 = vld [vmem:[#allocation2 + $0x48] sm:$0xff]
  %v896 = vld [vmem:[#allocation2 + $0x50] sm:$0xff]
  %v897 = vld [vmem:[#allocation2 + $0x58] sm:$0xff]
  %v898 = vld [vmem:[#allocation2 + $0x60] sm:$0xff]
  %v899 = vld [vmem:[#allocation2 + $0x68] sm:$0xf]
  %v900 = vld [vmem:[#allocation2 + $0x6c] sm:$0xff]
  %v901 = vld [vmem:[#allocation2 + $0x74] sm:$0xff]
  %v902 = vld [vmem:[#allocation2 + $0x7c] sm:$0xff]
  %v903 = vld [vmem:[#allocation2 + $0x84] sm:$0xff]
  %v904 = vld [vmem:[#allocation2 + $0x8c] sm:$0xf]
  %v905 = vld [vmem:[#allocation2 + $0x90] sm:$0xff]
  %v906 = vld [vmem:[#allocation2 + $0x98] sm:$0xff]
  %v907 = vld [vmem:[#allocation2 + $0xa0] sm:$0xff]
  %v908 = vld [vmem:[#allocation2 + $0xa8] sm:$0xff]
  %v909 = vld [vmem:[#allocation2 + $0xb0] sm:$0xf]
  %v910 = vld [vmem:[#allocation2 + $0xb4] sm:$0xff]
  %v911 = vld [vmem:[#allocation2 + $0xbc] sm:$0xff]
  %v912 = vld [vmem:[#allocation2 + $0xc4] sm:$0xff]
  %v913 = vld [vmem:[#allocation2 + $0xcc] sm:$0xff]
  %v914 = vld [vmem:[#allocation2 + $0xd4] sm:$0xf]
  %v915 = vld [vmem:[#allocation2 + $0xd8] sm:$0xff]
  %v916 = vld [vmem:[#allocation2 + $0xe0] sm:$0xff]
  %v917 = vld [vmem:[#allocation2 + $0xe8] sm:$0xff]
  %v918 = vld [vmem:[#allocation2 + $0xf0] sm:$0xff]
  %v919 = vld [vmem:[#allocation2 + $0xf8] sm:$0xf]
  %v920 = vld [vmem:[#allocation2 + $0xfc] sm:$0xff]
  %v921 = vld [vmem:[#allocation2 + $0x104] sm:$0xff]
  %v922 = vld [vmem:[#allocation2 + $0x10c] sm:$0xff]
  %v923 = vld [vmem:[#allocation2 + $0x114] sm:$0xff]
  %v924 = vld [vmem:[#allocation2 + $0x11c] sm:$0xf]
  %v925 = vld [vmem:[#allocation2 + $0x120] sm:$0xff]
  %v926 = vld [vmem:[#allocation2 + $0x128] sm:$0xff]
  %v927 = vld [vmem:[#allocation2 + $0x130] sm:$0xff]
  %v928 = vld [vmem:[#allocation2 + $0x138] sm:$0xff]
  %v929 = vld [vmem:[#allocation2 + $0x140] sm:$0xf]
  %v930 = vld [vmem:[#allocation2 + $0x144] sm:$0xff]
  %v931 = vld [vmem:[#allocation2 + $0x14c] sm:$0xff]
  %v932 = vld [vmem:[#allocation2 + $0x154] sm:$0xff]
  %v933 = vld [vmem:[#allocation2 + $0x15c] sm:$0xff]
  %v934 = vld [vmem:[#allocation2 + $0x164] sm:$0xf]
  %v935 = vld [vmem:[#allocation2 + $0x168] sm:$0xff]
  %v936 = vld [vmem:[#allocation2 + $0x170] sm:$0xff]
  %v937 = vld [vmem:[#allocation2 + $0x178] sm:$0xff]
  %v938 = vld [vmem:[#allocation2 + $0x180] sm:$0xff]
  %v939 = vld [vmem:[#allocation2 + $0x188] sm:$0xf]
  %v940 = vld [vmem:[#allocation2 + $0x18c] sm:$0xff]
  %v941 = vld [vmem:[#allocation2 + $0x194] sm:$0xff]
  %v942 = vld [vmem:[#allocation2 + $0x19c] sm:$0xff]
  %v943 = vld [vmem:[#allocation2 + $0x1a4] sm:$0xff]
  %v944 = vld [vmem:[#allocation2 + $0x1ac] sm:$0xf]
  %v945 = vld [vmem:[#allocation2 + $0x1b0] sm:$0xff]
  %v946 = vld [vmem:[#allocation2 + $0x1b8] sm:$0xff]
  %v947 = vld [vmem:[#allocation2 + $0x1c0] sm:$0xff]
  %v948 = vld [vmem:[#allocation2 + $0x1c8] sm:$0xff]
  %v949 = vld [vmem:[#allocation2 + $0x1d0] sm:$0xf]
  %v950 = vld [vmem:[#allocation2 + $0x1d4] sm:$0xff]
  %v951 = vld [vmem:[#allocation2 + $0x1dc] sm:$0xff]
  %v952 = vld [vmem:[#allocation2 + $0x1e4] sm:$0xff]
  %v953 = vld [vmem:[#allocation2 + $0x1ec] sm:$0xff]
  %v954 = vld [vmem:[#allocation2 + $0x1f4] sm:$0xf]
  %v955 = vld [vmem:[#allocation2 + $0x1f8] sm:$0xff]
  %v956 = vld [vmem:[#allocation2 + $0x200] sm:$0xff]
  %v957 = vld [vmem:[#allocation2 + $0x208] sm:$0xff]
  %v958 = vld [vmem:[#allocation2 + $0x210] sm:$0xff]
  %v959 = vld [vmem:[#allocation2 + $0x218] sm:$0xf]
  %v960 = vld [vmem:[#allocation2 + $0x21c] sm:$0xff]
  %v961 = vld [vmem:[#allocation2 + $0x224] sm:$0xff]
  %v962 = vld [vmem:[#allocation2 + $0x22c] sm:$0xff]
  %v963 = vld [vmem:[#allocation2 + $0x234] sm:$0xff]
  %v964 = vld [vmem:[#allocation2 + $0x23c] sm:$0xf]
  %v965 = vld [vmem:[#allocation2 + $0x240] sm:$0xff]
  %v966 = vld [vmem:[#allocation2 + $0x248] sm:$0xff]
  %v967 = vld [vmem:[#allocation2 + $0x250] sm:$0xff]
  %v968 = vld [vmem:[#allocation2 + $0x258] sm:$0xff]
  %v969 = vld [vmem:[#allocation2 + $0x260] sm:$0xf]
  %v970 = vld [vmem:[#allocation2 + $0x264] sm:$0xff]
  %v971 = vld [vmem:[#allocation2 + $0x26c] sm:$0xff]
  %v972 = vld [vmem:[#allocation2 + $0x274] sm:$0xff]
  %v973 = vld [vmem:[#allocation2 + $0x27c] sm:$0xff]
  %v974 = vld [vmem:[#allocation2 + $0x284] sm:$0xf]
  %v975 = vld [vmem:[#allocation2 + $0x288] sm:$0xff]
  %v976 = vld [vmem:[#allocation2 + $0x290] sm:$0xff]
  %v977 = vld [vmem:[#allocation2 + $0x298] sm:$0xff]
  %v978 = vld [vmem:[#allocation2 + $0x2a0] sm:$0xff]
  %v979 = vld [vmem:[#allocation2 + $0x2a8] sm:$0xf]
  %v980 = vld [vmem:[#allocation2 + $0x2ac] sm:$0xff]
  %v981 = vld [vmem:[#allocation2 + $0x2b4] sm:$0xff]
  %v982 = vld [vmem:[#allocation2 + $0x2bc] sm:$0xff]
  %v983 = vld [vmem:[#allocation2 + $0x2c4] sm:$0xff]
  %v984 = vld [vmem:[#allocation2 + $0x2cc] sm:$0xf]
  %v985 = vld [vmem:[#allocation2 + $0x2d0] sm:$0xff]
  %v986 = vld [vmem:[#allocation2 + $0x2d8] sm:$0xff]
  %v987 = vld [vmem:[#allocation2 + $0x2e0] sm:$0xff]
  %v988 = vld [vmem:[#allocation2 + $0x2e8] sm:$0xff]
  %v989 = vld [vmem:[#allocation2 + $0x2f0] sm:$0xf]
  %v990 = vld [vmem:[#allocation2 + $0x2f4] sm:$0xff]
  %v991 = vld [vmem:[#allocation2 + $0x2fc] sm:$0xff]
  %v992 = vld [vmem:[#allocation2 + $0x304] sm:$0xff]
  %v993 = vld [vmem:[#allocation2 + $0x30c] sm:$0xff]
  %v994 = vld [vmem:[#allocation2 + $0x314] sm:$0xf]
  %v995 = vld [vmem:[#allocation2 + $0x318] sm:$0xff]
  %v996 = vld [vmem:[#allocation2 + $0x320] sm:$0xff]
  %v997 = vld [vmem:[#allocation2 + $0x328] sm:$0xff]
  %v998 = vld [vmem:[#allocation2 + $0x330] sm:$0xff]
  %v999 = vld [vmem:[#allocation2 + $0x338] sm:$0xf]
  %v1000 = vld [vmem:[#allocation2 + $0x33c] sm:$0xff]
  %v1001 = vld [vmem:[#allocation2 + $0x344] sm:$0xff]
  %v1002 = vld [vmem:[#allocation2 + $0x34c] sm:$0xff]
  %v1003 = vld [vmem:[#allocation2 + $0x354] sm:$0xff]
  %v1004 = vld [vmem:[#allocation2 + $0x35c] sm:$0xf]
  %v1005 = vld [vmem:[#allocation2 + $0x360] sm:$0xff]
  %v1006 = vld [vmem:[#allocation2 + $0x368] sm:$0xff]
  %v1007 = vld [vmem:[#allocation2 + $0x370] sm:$0xff]
  %v1008 = vld [vmem:[#allocation2 + $0x378] sm:$0xff]
  %v1009 = vld [vmem:[#allocation2 + $0x380] sm:$0xf]
  %v1010 = vld [vmem:[#allocation2 + $0x384] sm:$0xff]
  %v1011 = vld [vmem:[#allocation2 + $0x38c] sm:$0xff]
  %v1012 = vld [vmem:[#allocation2 + $0x394] sm:$0xff]
  %v1013 = vld [vmem:[#allocation2 + $0x39c] sm:$0xff]
  %v1014 = vld [vmem:[#allocation2 + $0x3a4] sm:$0xf]
  %v1015 = vld [vmem:[#allocation2 + $0x3a8] sm:$0xff]
  %v1016 = vld [vmem:[#allocation2 + $0x3b0] sm:$0xff]
  %v1017 = vld [vmem:[#allocation2 + $0x3b8] sm:$0xff]
  %v1018 = vld [vmem:[#allocation2 + $0x3c0] sm:$0xff]
  %v1019 = vld [vmem:[#allocation2 + $0x3c8] sm:$0xf]
  %v1020 = vld [vmem:[#allocation2 + $0x3cc] sm:$0xff]
  %v1021 = vld [vmem:[#allocation2 + $0x3d4] sm:$0xff]
  %v1022 = vld [vmem:[#allocation2 + $0x3dc] sm:$0xff]
  %v1023 = vld [vmem:[#allocation2 + $0x3e4] sm:$0xff]
  %v1024 = vld [vmem:[#allocation2 + $0x3ec] sm:$0xf]
  %v1025 = vld [vmem:[#allocation2 + $0x3f0] sm:$0xff]
  %v1026 = vld [vmem:[#allocation2 + $0x3f8] sm:$0xff]
  %v1027 = vld [vmem:[#allocation2 + $0x400] sm:$0xff]
  %v1028 = vld [vmem:[#allocation2 + $0x408] sm:$0xff]
  %v1029 = vld [vmem:[#allocation2 + $0x410] sm:$0xf]
  %v1030 = vld [vmem:[#allocation2 + $0x414] sm:$0xff]
  %v1031 = vld [vmem:[#allocation2 + $0x41c] sm:$0xff]
  %v1032 = vld [vmem:[#allocation2 + $0x424] sm:$0xff]
  %v1033 = vld [vmem:[#allocation2 + $0x42c] sm:$0xff]
  %v1034 = vld [vmem:[#allocation2 + $0x434] sm:$0xf]
  %v1035 = vld [vmem:[#allocation2 + $0x438] sm:$0xff]
  %v1036 = vld [vmem:[#allocation2 + $0x440] sm:$0xff]
  %v1037 = vld [vmem:[#allocation2 + $0x448] sm:$0xff]
  %v1038 = vld [vmem:[#allocation2 + $0x450] sm:$0xff]
  %v1039 = vld [vmem:[#allocation2 + $0x458] sm:$0xf]
  %v1040 = vld [vmem:[#allocation2 + $0x45c] sm:$0xff]
  %v1041 = vld [vmem:[#allocation2 + $0x464] sm:$0xff]
  %v1042 = vld [vmem:[#allocation2 + $0x46c] sm:$0xff]
  %v1043 = vld [vmem:[#allocation2 + $0x474] sm:$0xff]
  %v1044 = vld [vmem:[#allocation2 + $0x47c] sm:$0xf]
  %v1045 = vld [vmem:[%s1] sm:$0xf]
  %v1046 = vld [vmem:[%s1 + $0x4] sm:$0xf]
  %v1047 = vld [vmem:[%s1 + $0x8] sm:$0xf]
  %v1048 = vld [vmem:[%s1 + $0xc] sm:$0xf]
  %v1049 = vld [vmem:[%s1 + $0x10] sm:$0xf]
  %v1050 = vld [vmem:[%s1 + $0x14] sm:$0xf]
  %v1051 = vld [vmem:[%s1 + $0x18] sm:$0xf]
  %v1052 = vld [vmem:[%s1 + $0x1c] sm:$0xf]
  %v1053 = vld [vmem:[%s1 + $0x20] sm:$0xf]
  %v1054 = vld [vmem:[%s1 + $0x24] sm:$0xf]
  %v1055 = vld [vmem:[%s1 + $0x28] sm:$0xf]
  %v1056 = vld [vmem:[%s1 + $0x2c] sm:$0xf]
  %v1057 = vld [vmem:[%s1 + $0x30] sm:$0xf]
  %v1058 = vld [vmem:[%s1 + $0x34] sm:$0xf]
  %v1059 = vld [vmem:[%s1 + $0x38] sm:$0xf]
  %v1060 = vld [vmem:[%s1 + $0x3c] sm:$0xf]
  %v1061 = vld [vmem:[%s1 + $0x40] sm:$0xf]
  %v1062 = vld [vmem:[%s1 + $0x44] sm:$0xf]
  %v1063 = vld [vmem:[%s1 + $0x48] sm:$0xf]
  %v1064 = vld [vmem:[%s1 + $0x4c] sm:$0xf]
  %v1065 = vld [vmem:[%s1 + $0x50] sm:$0xf]
  %v1066 = vld [vmem:[%s1 + $0x54] sm:$0xf]
  %v1067 = vld [vmem:[%s1 + $0x58] sm:$0xf]
  %v1068 = vld [vmem:[%s1 + $0x5c] sm:$0xf]
  %v1069 = vld [vmem:[%s1 + $0x60] sm:$0xf]
  %v1070 = vld [vmem:[%s1 + $0x64] sm:$0xf]
  %v1071 = vld [vmem:[%s1 + $0x68] sm:$0xf]
  %v1072 = vld [vmem:[%s1 + $0x6c] sm:$0xf]
  %v1073 = vld [vmem:[%s1 + $0x70] sm:$0xf]
  %v1074 = vld [vmem:[%s1 + $0x74] sm:$0xf]
  %v1075 = vld [vmem:[%s1 + $0x78] sm:$0xf]
  %v1076 = vld [vmem:[%s1 + $0x7c] sm:$0xf]
  %v1077 = vld [vmem:[%s1 + $0x80] sm:$0xf]
  %v1078 = vld [vmem:[%s1 + $0x84] sm:$0xf]
  %v1079 = vld [vmem:[%s1 + $0x88] sm:$0xf]
  %v1080 = vld [vmem:[%s1 + $0x8c] sm:$0xf]
  %v1081 = vld [vmem:[%s1 + $0x90] sm:$0xf]
  %v1082 = vld [vmem:[%s1 + $0x94] sm:$0xf]
  %v1083 = vld [vmem:[%s1 + $0x98] sm:$0xf]
  %v1084 = vld [vmem:[%s1 + $0x9c] sm:$0xf]
  %v1085 = vld [vmem:[%s1 + $0xa0] sm:$0xf]
  %v1086 = vld [vmem:[%s1 + $0xa4] sm:$0xf]
  %v1087 = vld [vmem:[%s1 + $0xa8] sm:$0xf]
  %v1088 = vld [vmem:[%s1 + $0xac] sm:$0xf]
  %v1089 = vld [vmem:[%s1 + $0xb0] sm:$0xf]
  %v1090 = vld [vmem:[%s1 + $0xb4] sm:$0xf]
  %v1091 = vld [vmem:[%s1 + $0xb8] sm:$0xf]
  %v1092 = vld [vmem:[%s1 + $0xbc] sm:$0xf]
  %v1093 = vld [vmem:[%s1 + $0xc0] sm:$0xf]
  %v1094 = vld [vmem:[%s1 + $0xc4] sm:$0xf]
  %v1095 = vld [vmem:[%s1 + $0xc8] sm:$0xf]
  %v1096 = vld [vmem:[%s1 + $0xcc] sm:$0xf]
  %v1097 = vld [vmem:[%s1 + $0xd0] sm:$0xf]
  %v1098 = vld [vmem:[%s1 + $0xd4] sm:$0xf]
  %v1099 = vld [vmem:[%s1 + $0xd8] sm:$0xf]
  %v1100 = vld [vmem:[%s1 + $0xdc] sm:$0xf]
  %v1101 = vld [vmem:[%s1 + $0xe0] sm:$0xf]
  %v1102 = vld [vmem:[%s1 + $0xe4] sm:$0xf]
  %v1103 = vld [vmem:[%s1 + $0xe8] sm:$0xf]
  %v1104 = vld [vmem:[%s1 + $0xec] sm:$0xf]
  %v1105 = vld [vmem:[%s1 + $0xf0] sm:$0xf]
  %v1106 = vld [vmem:[%s1 + $0xf4] sm:$0xf]
  %v1107 = vld [vmem:[%s1 + $0xf8] sm:$0xf]
  %v1108 = vld [vmem:[%s1 + $0xfc] sm:$0xf]
  %v1109 = vld [vmem:[%s1 + $0x100] sm:$0xf]
  %v1110 = vld [vmem:[%s1 + $0x104] sm:$0xf]
  %v1111 = vld [vmem:[%s1 + $0x108] sm:$0xf]
  %v1112 = vld [vmem:[%s1 + $0x10c] sm:$0xf]
  %v1113 = vld [vmem:[%s1 + $0x110] sm:$0xf]
  %v1114 = vld [vmem:[%s1 + $0x114] sm:$0xf]
  %v1115 = vld [vmem:[%s1 + $0x118] sm:$0xf]
  %v1116 = vld [vmem:[%s1 + $0x11c] sm:$0xf]
  %v1117 = vld [vmem:[%s1 + $0x120] sm:$0xf]
  %v1118 = vld [vmem:[%s1 + $0x124] sm:$0xf]
  %v1119 = vld [vmem:[%s1 + $0x128] sm:$0xf]
  %v1120 = vld [vmem:[%s1 + $0x12c] sm:$0xf]
  %v1121 = vld [vmem:[%s1 + $0x130] sm:$0xf]
  %v1122 = vld [vmem:[%s1 + $0x134] sm:$0xf]
  %v1123 = vld [vmem:[%s1 + $0x138] sm:$0xf]
  %v1124 = vld [vmem:[%s1 + $0x13c] sm:$0xf]
  %v1125 = vld [vmem:[%s1 + $0x140] sm:$0xf]
  %v1126 = vld [vmem:[%s1 + $0x144] sm:$0xf]
  %v1127 = vld [vmem:[%s1 + $0x148] sm:$0xf]
  %v1128 = vld [vmem:[%s1 + $0x14c] sm:$0xf]
  %v1129 = vld [vmem:[%s1 + $0x150] sm:$0xf]
  %v1130 = vld [vmem:[%s1 + $0x154] sm:$0xf]
  %v1131 = vld [vmem:[%s1 + $0x158] sm:$0xf]
  %v1132 = vld [vmem:[%s1 + $0x15c] sm:$0xf]
  %v1133 = vld [vmem:[%s1 + $0x160] sm:$0xf]
  %v1134 = vld [vmem:[%s1 + $0x164] sm:$0xf]
  %v1135 = vld [vmem:[%s1 + $0x168] sm:$0xf]
  %v1136 = vld [vmem:[%s1 + $0x16c] sm:$0xf]
  %v1137 = vld [vmem:[%s1 + $0x170] sm:$0xf]
  %v1138 = vld [vmem:[%s1 + $0x174] sm:$0xf]
  %v1139 = vld [vmem:[%s1 + $0x178] sm:$0xf]
  %v1140 = vld [vmem:[%s1 + $0x17c] sm:$0xf]
  %v1141 = vld [vmem:[%s1 + $0x180] sm:$0xf]
  %v1142 = vld [vmem:[%s1 + $0x184] sm:$0xf]
  %v1143 = vld [vmem:[%s1 + $0x188] sm:$0xf]
  %v1144 = vld [vmem:[%s1 + $0x18c] sm:$0xf]
  %v1145 = vld [vmem:[%s1 + $0x190] sm:$0xf]
  %v1146 = vld [vmem:[%s1 + $0x194] sm:$0xf]
  %v1147 = vld [vmem:[%s1 + $0x198] sm:$0xf]
  %v1148 = vld [vmem:[%s1 + $0x19c] sm:$0xf]
  %v1149 = vld [vmem:[%s1 + $0x1a0] sm:$0xf]
  %v1150 = vld [vmem:[%s1 + $0x1a4] sm:$0xf]
  %v1151 = vld [vmem:[%s1 + $0x1a8] sm:$0xf]
  %v1152 = vld [vmem:[%s1 + $0x1ac] sm:$0xf]
  %v1153 = vld [vmem:[%s1 + $0x1b0] sm:$0xf]
  %v1154 = vld [vmem:[%s1 + $0x1b4] sm:$0xf]
  %v1155 = vld [vmem:[%s1 + $0x1b8] sm:$0xf]
  %v1156 = vld [vmem:[%s1 + $0x1bc] sm:$0xf]
  %v1157 = vld [vmem:[%s1 + $0x1c0] sm:$0xf]
  %v1158 = vld [vmem:[%s1 + $0x1c4] sm:$0xf]
  %v1159 = vld [vmem:[%s1 + $0x1c8] sm:$0xf]
  %v1160 = vld [vmem:[%s1 + $0x1cc] sm:$0xf]
  %v1161 = vld [vmem:[%s1 + $0x1d0] sm:$0xf]
  %v1162 = vld [vmem:[%s1 + $0x1d4] sm:$0xf]
  %v1163 = vld [vmem:[%s1 + $0x1d8] sm:$0xf]
  %v1164 = vld [vmem:[%s1 + $0x1dc] sm:$0xf]
  %v1165 = vld [vmem:[%s1 + $0x1e0] sm:$0xf]
  %v1166 = vld [vmem:[%s1 + $0x1e4] sm:$0xf]
  %v1167 = vld [vmem:[%s1 + $0x1e8] sm:$0xf]
  %v1168 = vld [vmem:[%s1 + $0x1ec] sm:$0xf]
  %v1169 = vld [vmem:[%s1 + $0x1f0] sm:$0xf]
  %v1170 = vld [vmem:[%s1 + $0x1f4] sm:$0xf]
  %v1171 = vld [vmem:[%s1 + $0x1f8] sm:$0xf]
  %v1172 = vld [vmem:[%s1 + $0x1fc] sm:$0xf]
  %v1173 = vld [vmem:[%s1 + $0x200] sm:$0xf]
  %v1174 = vld [vmem:[%s1 + $0x204] sm:$0xf]
  %v1175 = vld [vmem:[%s1 + $0x208] sm:$0xf]
  %v1176 = vld [vmem:[%s1 + $0x20c] sm:$0xf]
  %v1177 = vld [vmem:[%s1 + $0x210] sm:$0xf]
  %v1178 = vld [vmem:[%s1 + $0x214] sm:$0xf]
  %v1179 = vld [vmem:[%s1 + $0x218] sm:$0xf]
  %v1180 = vld [vmem:[%s1 + $0x21c] sm:$0xf]
  %v1181 = vld [vmem:[%s1 + $0x220] sm:$0xf]
  %v1182 = vld [vmem:[%s1 + $0x224] sm:$0xf]
  %v1183 = vld [vmem:[%s1 + $0x228] sm:$0xf]
  %v1184 = vld [vmem:[%s1 + $0x22c] sm:$0xf]
  %v1185 = vld [vmem:[%s1 + $0x230] sm:$0xf]
  %v1186 = vld [vmem:[%s1 + $0x234] sm:$0xf]
  %v1187 = vld [vmem:[%s1 + $0x238] sm:$0xf]
  %v1188 = vld [vmem:[%s1 + $0x23c] sm:$0xf]
  %v1189 = vld [vmem:[%s2] sm:$0x1]
  %v1191 = vperm.slane %v1189, 0
  %v1353 = vunpack.c.l.b16 %v885
  %v1354 = vunpack.c.h.b16 %v885
  %v1355 = vunpack.c.l.b16 %v886
  %v1356 = vunpack.c.h.b16 %v886
  %v1357 = vunpack.c.l.b16 %v887
  %v1358 = vunpack.c.h.b16 %v887
  %v1359 = vunpack.c.l.b16 %v888
  %v1360 = vunpack.c.h.b16 %v888
  %v1361 = vunpack.c.l.b16 %v889
  %v1362 = vunpack.c.l.b16 %v890
  %v1363 = vunpack.c.h.b16 %v890
  %v1364 = vunpack.c.l.b16 %v891
  %v1365 = vunpack.c.h.b16 %v891
  %v1366 = vunpack.c.l.b16 %v892
  %v1367 = vunpack.c.h.b16 %v892
  %v1368 = vunpack.c.l.b16 %v893
  %v1369 = vunpack.c.h.b16 %v893
  %v1370 = vunpack.c.l.b16 %v894
  %v1371 = vunpack.c.l.b16 %v895
  %v1372 = vunpack.c.h.b16 %v895
  %v1373 = vunpack.c.l.b16 %v896
  %v1374 = vunpack.c.h.b16 %v896
  %v1375 = vunpack.c.l.b16 %v897
  %v1376 = vunpack.c.h.b16 %v897
  %v1377 = vunpack.c.l.b16 %v898
  %v1378 = vunpack.c.h.b16 %v898
  %v1379 = vunpack.c.l.b16 %v899
  %v1380 = vunpack.c.l.b16 %v900
  %v1381 = vunpack.c.h.b16 %v900
  %v1382 = vunpack.c.l.b16 %v901
  %v1383 = vunpack.c.h.b16 %v901
  %v1384 = vunpack.c.l.b16 %v902
  %v1385 = vunpack.c.h.b16 %v902
  %v1386 = vunpack.c.l.b16 %v903
  %v1387 = vunpack.c.h.b16 %v903
  %v1388 = vunpack.c.l.b16 %v904
  %v1389 = vunpack.c.l.b16 %v905
  %v1390 = vunpack.c.h.b16 %v905
  %v1391 = vunpack.c.l.b16 %v906
  %v1392 = vunpack.c.h.b16 %v906
  %v1393 = vunpack.c.l.b16 %v907
  %v1394 = vunpack.c.h.b16 %v907
  %v1395 = vunpack.c.l.b16 %v908
  %v1396 = vunpack.c.h.b16 %v908
  %v1397 = vunpack.c.l.b16 %v909
  %v1398 = vunpack.c.l.b16 %v910
  %v1399 = vunpack.c.h.b16 %v910
  %v1400 = vunpack.c.l.b16 %v911
  %v1401 = vunpack.c.h.b16 %v911
  %v1402 = vunpack.c.l.b16 %v912
  %v1403 = vunpack.c.h.b16 %v912
  %v1404 = vunpack.c.l.b16 %v913
  %v1405 = vunpack.c.h.b16 %v913
  %v1406 = vunpack.c.l.b16 %v914
  %v1407 = vunpack.c.l.b16 %v915
  %v1408 = vunpack.c.h.b16 %v915
  %v1409 = vunpack.c.l.b16 %v916
  %v1410 = vunpack.c.h.b16 %v916
  %v1411 = vunpack.c.l.b16 %v917
  %v1412 = vunpack.c.h.b16 %v917
  %v1413 = vunpack.c.l.b16 %v918
  %v1414 = vunpack.c.h.b16 %v918
  %v1415 = vunpack.c.l.b16 %v919
  %v1416 = vunpack.c.l.b16 %v920
  %v1417 = vunpack.c.h.b16 %v920
  %v1418 = vunpack.c.l.b16 %v921
  %v1419 = vunpack.c.h.b16 %v921
  %v1420 = vunpack.c.l.b16 %v922
  %v1421 = vunpack.c.h.b16 %v922
  %v1422 = vunpack.c.l.b16 %v923
  %v1423 = vunpack.c.h.b16 %v923
  %v1424 = vunpack.c.l.b16 %v924
  %v1425 = vunpack.c.l.b16 %v925
  %v1426 = vunpack.c.h.b16 %v925
  %v1427 = vunpack.c.l.b16 %v926
  %v1428 = vunpack.c.h.b16 %v926
  %v1429 = vunpack.c.l.b16 %v927
  %v1430 = vunpack.c.h.b16 %v927
  %v1431 = vunpack.c.l.b16 %v928
  %v1432 = vunpack.c.h.b16 %v928
  %v1433 = vunpack.c.l.b16 %v929
  %v1434 = vunpack.c.l.b16 %v930
  %v1435 = vunpack.c.h.b16 %v930
  %v1436 = vunpack.c.l.b16 %v931
  %v1437 = vunpack.c.h.b16 %v931
  %v1438 = vunpack.c.l.b16 %v932
  %v1439 = vunpack.c.h.b16 %v932
  %v1440 = vunpack.c.l.b16 %v933
  %v1441 = vunpack.c.h.b16 %v933
  %v1442 = vunpack.c.l.b16 %v934
  %v1443 = vunpack.c.l.b16 %v935
  %v1444 = vunpack.c.h.b16 %v935
  %v1445 = vunpack.c.l.b16 %v936
  %v1446 = vunpack.c.h.b16 %v936
  %v1447 = vunpack.c.l.b16 %v937
  %v1448 = vunpack.c.h.b16 %v937
  %v1449 = vunpack.c.l.b16 %v938
  %v1450 = vunpack.c.h.b16 %v938
  %v1451 = vunpack.c.l.b16 %v939
  %v1452 = vunpack.c.l.b16 %v940
  %v1453 = vunpack.c.h.b16 %v940
  %v1454 = vunpack.c.l.b16 %v941
  %v1455 = vunpack.c.h.b16 %v941
  %v1456 = vunpack.c.l.b16 %v942
  %v1457 = vunpack.c.h.b16 %v942
  %v1458 = vunpack.c.l.b16 %v943
  %v1459 = vunpack.c.h.b16 %v943
  %v1460 = vunpack.c.l.b16 %v944
  %v1461 = vunpack.c.l.b16 %v945
  %v1462 = vunpack.c.h.b16 %v945
  %v1463 = vunpack.c.l.b16 %v946
  %v1464 = vunpack.c.h.b16 %v946
  %v1465 = vunpack.c.l.b16 %v947
  %v1466 = vunpack.c.h.b16 %v947
  %v1467 = vunpack.c.l.b16 %v948
  %v1468 = vunpack.c.h.b16 %v948
  %v1469 = vunpack.c.l.b16 %v949
  %v1470 = vunpack.c.l.b16 %v950
  %v1471 = vunpack.c.h.b16 %v950
  %v1472 = vunpack.c.l.b16 %v951
  %v1473 = vunpack.c.h.b16 %v951
  %v1474 = vunpack.c.l.b16 %v952
  %v1475 = vunpack.c.h.b16 %v952
  %v1476 = vunpack.c.l.b16 %v953
  %v1477 = vunpack.c.h.b16 %v953
  %v1478 = vunpack.c.l.b16 %v954
  %v1479 = vunpack.c.l.b16 %v955
  %v1480 = vunpack.c.h.b16 %v955
  %v1481 = vunpack.c.l.b16 %v956
  %v1482 = vunpack.c.h.b16 %v956
  %v1483 = vunpack.c.l.b16 %v957
  %v1484 = vunpack.c.h.b16 %v957
  %v1485 = vunpack.c.l.b16 %v958
  %v1486 = vunpack.c.h.b16 %v958
  %v1487 = vunpack.c.l.b16 %v959
  %v1488 = vunpack.c.l.b16 %v960
  %v1489 = vunpack.c.h.b16 %v960
  %v1490 = vunpack.c.l.b16 %v961
  %v1491 = vunpack.c.h.b16 %v961
  %v1492 = vunpack.c.l.b16 %v962
  %v1493 = vunpack.c.h.b16 %v962
  %v1494 = vunpack.c.l.b16 %v963
  %v1495 = vunpack.c.h.b16 %v963
  %v1496 = vunpack.c.l.b16 %v964
  %v1497 = vunpack.c.l.b16 %v965
  %v1498 = vunpack.c.h.b16 %v965
  %v1499 = vunpack.c.l.b16 %v966
  %v1500 = vunpack.c.h.b16 %v966
  %v1501 = vunpack.c.l.b16 %v967
  %v1502 = vunpack.c.h.b16 %v967
  %v1503 = vunpack.c.l.b16 %v968
  %v1504 = vunpack.c.h.b16 %v968
  %v1505 = vunpack.c.l.b16 %v969
  %v1506 = vunpack.c.l.b16 %v970
  %v1507 = vunpack.c.h.b16 %v970
  %v1508 = vunpack.c.l.b16 %v971
  %v1509 = vunpack.c.h.b16 %v971
  %v1510 = vunpack.c.l.b16 %v972
  %v1511 = vunpack.c.h.b16 %v972
  %v1512 = vunpack.c.l.b16 %v973
  %v1513 = vunpack.c.h.b16 %v973
  %v1514 = vunpack.c.l.b16 %v974
  %v1515 = vunpack.c.l.b16 %v975
  %v1516 = vunpack.c.h.b16 %v975
  %v1517 = vunpack.c.l.b16 %v976
  %v1518 = vunpack.c.h.b16 %v976
  %v1519 = vunpack.c.l.b16 %v977
  %v1520 = vunpack.c.h.b16 %v977
  %v1521 = vunpack.c.l.b16 %v978
  %v1522 = vunpack.c.h.b16 %v978
  %v1523 = vunpack.c.l.b16 %v979
  %v1524 = vunpack.c.l.b16 %v980
  %v1525 = vunpack.c.h.b16 %v980
  %v1526 = vunpack.c.l.b16 %v981
  %v1527 = vunpack.c.h.b16 %v981
  %v1528 = vunpack.c.l.b16 %v982
  %v1529 = vunpack.c.h.b16 %v982
  %v1530 = vunpack.c.l.b16 %v983
  %v1531 = vunpack.c.h.b16 %v983
  %v1532 = vunpack.c.l.b16 %v984
  %v1533 = vunpack.c.l.b16 %v985
  %v1534 = vunpack.c.h.b16 %v985
  %v1535 = vunpack.c.l.b16 %v986
  %v1536 = vunpack.c.h.b16 %v986
  %v1537 = vunpack.c.l.b16 %v987
  %v1538 = vunpack.c.h.b16 %v987
  %v1539 = vunpack.c.l.b16 %v988
  %v1540 = vunpack.c.h.b16 %v988
  %v1541 = vunpack.c.l.b16 %v989
  %v1542 = vunpack.c.l.b16 %v990
  %v1543 = vunpack.c.h.b16 %v990
  %v1544 = vunpack.c.l.b16 %v991
  %v1545 = vunpack.c.h.b16 %v991
  %v1546 = vunpack.c.l.b16 %v992
  %v1547 = vunpack.c.h.b16 %v992
  %v1548 = vunpack.c.l.b16 %v993
  %v1549 = vunpack.c.h.b16 %v993
  %v1550 = vunpack.c.l.b16 %v994
  %v1551 = vunpack.c.l.b16 %v995
  %v1552 = vunpack.c.h.b16 %v995
  %v1553 = vunpack.c.l.b16 %v996
  %v1554 = vunpack.c.h.b16 %v996
  %v1555 = vunpack.c.l.b16 %v997
  %v1556 = vunpack.c.h.b16 %v997
  %v1557 = vunpack.c.l.b16 %v998
  %v1558 = vunpack.c.h.b16 %v998
  %v1559 = vunpack.c.l.b16 %v999
  %v1560 = vunpack.c.l.b16 %v1000
  %v1561 = vunpack.c.h.b16 %v1000
  %v1562 = vunpack.c.l.b16 %v1001
  %v1563 = vunpack.c.h.b16 %v1001
  %v1564 = vunpack.c.l.b16 %v1002
  %v1565 = vunpack.c.h.b16 %v1002
  %v1566 = vunpack.c.l.b16 %v1003
  %v1567 = vunpack.c.h.b16 %v1003
  %v1568 = vunpack.c.l.b16 %v1004
  %v1569 = vunpack.c.l.b16 %v1005
  %v1570 = vunpack.c.h.b16 %v1005
  %v1571 = vunpack.c.l.b16 %v1006
  %v1572 = vunpack.c.h.b16 %v1006
  %v1573 = vunpack.c.l.b16 %v1007
  %v1574 = vunpack.c.h.b16 %v1007
  %v1575 = vunpack.c.l.b16 %v1008
  %v1576 = vunpack.c.h.b16 %v1008
  %v1577 = vunpack.c.l.b16 %v1009
  %v1578 = vunpack.c.l.b16 %v1010
  %v1579 = vunpack.c.h.b16 %v1010
  %v1580 = vunpack.c.l.b16 %v1011
  %v1581 = vunpack.c.h.b16 %v1011
  %v1582 = vunpack.c.l.b16 %v1012
  %v1583 = vunpack.c.h.b16 %v1012
  %v1584 = vunpack.c.l.b16 %v1013
  %v1585 = vunpack.c.h.b16 %v1013
  %v1586 = vunpack.c.l.b16 %v1014
  %v1587 = vunpack.c.l.b16 %v1015
  %v1588 = vunpack.c.h.b16 %v1015
  %v1589 = vunpack.c.l.b16 %v1016
  %v1590 = vunpack.c.h.b16 %v1016
  %v1591 = vunpack.c.l.b16 %v1017
  %v1592 = vunpack.c.h.b16 %v1017
  %v1593 = vunpack.c.l.b16 %v1018
  %v1594 = vunpack.c.h.b16 %v1018
  %v1595 = vunpack.c.l.b16 %v1019
  %v1596 = vunpack.c.l.b16 %v1020
  %v1597 = vunpack.c.h.b16 %v1020
  %v1598 = vunpack.c.l.b16 %v1021
  %v1599 = vunpack.c.h.b16 %v1021
  %v1600 = vunpack.c.l.b16 %v1022
  %v1601 = vunpack.c.h.b16 %v1022
  %v1602 = vunpack.c.l.b16 %v1023
  %v1603 = vunpack.c.h.b16 %v1023
  %v1604 = vunpack.c.l.b16 %v1024
  %v1605 = vunpack.c.l.b16 %v1025
  %v1606 = vunpack.c.h.b16 %v1025
  %v1607 = vunpack.c.l.b16 %v1026
  %v1608 = vunpack.c.h.b16 %v1026
  %v1609 = vunpack.c.l.b16 %v1027
  %v1610 = vunpack.c.h.b16 %v1027
  %v1611 = vunpack.c.l.b16 %v1028
  %v1612 = vunpack.c.h.b16 %v1028
  %v1613 = vunpack.c.l.b16 %v1029
  %v1614 = vunpack.c.l.b16 %v1030
  %v1615 = vunpack.c.h.b16 %v1030
  %v1616 = vunpack.c.l.b16 %v1031
  %v1617 = vunpack.c.h.b16 %v1031
  %v1618 = vunpack.c.l.b16 %v1032
  %v1619 = vunpack.c.h.b16 %v1032
  %v1620 = vunpack.c.l.b16 %v1033
  %v1621 = vunpack.c.h.b16 %v1033
  %v1622 = vunpack.c.l.b16 %v1034
  %v1623 = vunpack.c.l.b16 %v1035
  %v1624 = vunpack.c.h.b16 %v1035
  %v1625 = vunpack.c.l.b16 %v1036
  %v1626 = vunpack.c.h.b16 %v1036
  %v1627 = vunpack.c.l.b16 %v1037
  %v1628 = vunpack.c.h.b16 %v1037
  %v1629 = vunpack.c.l.b16 %v1038
  %v1630 = vunpack.c.h.b16 %v1038
  %v1631 = vunpack.c.l.b16 %v1039
  %v1632 = vunpack.c.l.b16 %v1040
  %v1633 = vunpack.c.h.b16 %v1040
  %v1634 = vunpack.c.l.b16 %v1041
  %v1635 = vunpack.c.h.b16 %v1041
  %v1636 = vunpack.c.l.b16 %v1042
  %v1637 = vunpack.c.h.b16 %v1042
  %v1638 = vunpack.c.l.b16 %v1043
  %v1639 = vunpack.c.h.b16 %v1043
  %v1640 = vunpack.c.l.b16 %v1044
  %v1641 = vpack.c.b16 %v1362, %v1353
  %v1642 = vpack.c.b16 %v1363, %v1354
  %v1643 = vpack.c.b16 %v1364, %v1355
  %v1644 = vpack.c.b16 %v1365, %v1356
  %v1645 = vpack.c.b16 %v1366, %v1357
  %v1646 = vpack.c.b16 %v1367, %v1358
  %v1647 = vpack.c.b16 %v1368, %v1359
  %v1648 = vpack.c.b16 %v1369, %v1360
  %v1649 = vpack.c.b16 %v1370, %v1361
  %v1650 = vpack.c.b16 %v1380, %v1371
  %v1651 = vpack.c.b16 %v1381, %v1372
  %v1652 = vpack.c.b16 %v1382, %v1373
  %v1653 = vpack.c.b16 %v1383, %v1374
  %v1654 = vpack.c.b16 %v1384, %v1375
  %v1655 = vpack.c.b16 %v1385, %v1376
  %v1656 = vpack.c.b16 %v1386, %v1377
  %v1657 = vpack.c.b16 %v1387, %v1378
  %v1658 = vpack.c.b16 %v1388, %v1379
  %v1659 = vpack.c.b16 %v1398, %v1389
  %v1660 = vpack.c.b16 %v1399, %v1390
  %v1661 = vpack.c.b16 %v1400, %v1391
  %v1662 = vpack.c.b16 %v1401, %v1392
  %v1663 = vpack.c.b16 %v1402, %v1393
  %v1664 = vpack.c.b16 %v1403, %v1394
  %v1665 = vpack.c.b16 %v1404, %v1395
  %v1666 = vpack.c.b16 %v1405, %v1396
  %v1667 = vpack.c.b16 %v1406, %v1397
  %v1668 = vpack.c.b16 %v1416, %v1407
  %v1669 = vpack.c.b16 %v1417, %v1408
  %v1670 = vpack.c.b16 %v1418, %v1409
  %v1671 = vpack.c.b16 %v1419, %v1410
  %v1672 = vpack.c.b16 %v1420, %v1411
  %v1673 = vpack.c.b16 %v1421, %v1412
  %v1674 = vpack.c.b16 %v1422, %v1413
  %v1675 = vpack.c.b16 %v1423, %v1414
  %v1676 = vpack.c.b16 %v1424, %v1415
  %v1677 = vpack.c.b16 %v1434, %v1425
  %v1678 = vpack.c.b16 %v1435, %v1426
  %v1679 = vpack.c.b16 %v1436, %v1427
  %v1680 = vpack.c.b16 %v1437, %v1428
  %v1681 = vpack.c.b16 %v1438, %v1429
  %v1682 = vpack.c.b16 %v1439, %v1430
  %v1683 = vpack.c.b16 %v1440, %v1431
  %v1684 = vpack.c.b16 %v1441, %v1432
  %v1685 = vpack.c.b16 %v1442, %v1433
  %v1686 = vpack.c.b16 %v1452, %v1443
  %v1687 = vpack.c.b16 %v1453, %v1444
  %v1688 = vpack.c.b16 %v1454, %v1445
  %v1689 = vpack.c.b16 %v1455, %v1446
  %v1690 = vpack.c.b16 %v1456, %v1447
  %v1691 = vpack.c.b16 %v1457, %v1448
  %v1692 = vpack.c.b16 %v1458, %v1449
  %v1693 = vpack.c.b16 %v1459, %v1450
  %v1694 = vpack.c.b16 %v1460, %v1451
  %v1695 = vpack.c.b16 %v1470, %v1461
  %v1696 = vpack.c.b16 %v1471, %v1462
  %v1697 = vpack.c.b16 %v1472, %v1463
  %v1698 = vpack.c.b16 %v1473, %v1464
  %v1699 = vpack.c.b16 %v1474, %v1465
  %v1700 = vpack.c.b16 %v1475, %v1466
  %v1701 = vpack.c.b16 %v1476, %v1467
  %v1702 = vpack.c.b16 %v1477, %v1468
  %v1703 = vpack.c.b16 %v1478, %v1469
  %v1704 = vpack.c.b16 %v1488, %v1479
  %v1705 = vpack.c.b16 %v1489, %v1480
  %v1706 = vpack.c.b16 %v1490, %v1481
  %v1707 = vpack.c.b16 %v1491, %v1482
  %v1708 = vpack.c.b16 %v1492, %v1483
  %v1709 = vpack.c.b16 %v1493, %v1484
  %v1710 = vpack.c.b16 %v1494, %v1485
  %v1711 = vpack.c.b16 %v1495, %v1486
  %v1712 = vpack.c.b16 %v1496, %v1487
  %v1713 = vpack.c.b16 %v1506, %v1497
  %v1714 = vpack.c.b16 %v1507, %v1498
  %v1715 = vpack.c.b16 %v1508, %v1499
  %v1716 = vpack.c.b16 %v1509, %v1500
  %v1717 = vpack.c.b16 %v1510, %v1501
  %v1718 = vpack.c.b16 %v1511, %v1502
  %v1719 = vpack.c.b16 %v1512, %v1503
  %v1720 = vpack.c.b16 %v1513, %v1504
  %v1721 = vpack.c.b16 %v1514, %v1505
  %v1722 = vpack.c.b16 %v1524, %v1515
  %v1723 = vpack.c.b16 %v1525, %v1516
  %v1724 = vpack.c.b16 %v1526, %v1517
  %v1725 = vpack.c.b16 %v1527, %v1518
  %v1726 = vpack.c.b16 %v1528, %v1519
  %v1727 = vpack.c.b16 %v1529, %v1520
  %v1728 = vpack.c.b16 %v1530, %v1521
  %v1729 = vpack.c.b16 %v1531, %v1522
  %v1730 = vpack.c.b16 %v1532, %v1523
  %v1731 = vpack.c.b16 %v1542, %v1533
  %v1732 = vpack.c.b16 %v1543, %v1534
  %v1733 = vpack.c.b16 %v1544, %v1535
  %v1734 = vpack.c.b16 %v1545, %v1536
  %v1735 = vpack.c.b16 %v1546, %v1537
  %v1736 = vpack.c.b16 %v1547, %v1538
  %v1737 = vpack.c.b16 %v1548, %v1539
  %v1738 = vpack.c.b16 %v1549, %v1540
  %v1739 = vpack.c.b16 %v1550, %v1541
  %v1740 = vpack.c.b16 %v1560, %v1551
  %v1741 = vpack.c.b16 %v1561, %v1552
  %v1742 = vpack.c.b16 %v1562, %v1553
  %v1743 = vpack.c.b16 %v1563, %v1554
  %v1744 = vpack.c.b16 %v1564, %v1555
  %v1745 = vpack.c.b16 %v1565, %v1556
  %v1746 = vpack.c.b16 %v1566, %v1557
  %v1747 = vpack.c.b16 %v1567, %v1558
  %v1748 = vpack.c.b16 %v1568, %v1559
  %v1749 = vpack.c.b16 %v1578, %v1569
  %v1750 = vpack.c.b16 %v1579, %v1570
  %v1751 = vpack.c.b16 %v1580, %v1571
  %v1752 = vpack.c.b16 %v1581, %v1572
  %v1753 = vpack.c.b16 %v1582, %v1573
  %v1754 = vpack.c.b16 %v1583, %v1574
  %v1755 = vpack.c.b16 %v1584, %v1575
  %v1756 = vpack.c.b16 %v1585, %v1576
  %v1757 = vpack.c.b16 %v1586, %v1577
  %v1758 = vpack.c.b16 %v1596, %v1587
  %v1759 = vpack.c.b16 %v1597, %v1588
  %v1760 = vpack.c.b16 %v1598, %v1589
  %v1761 = vpack.c.b16 %v1599, %v1590
  %v1762 = vpack.c.b16 %v1600, %v1591
  %v1763 = vpack.c.b16 %v1601, %v1592
  %v1764 = vpack.c.b16 %v1602, %v1593
  %v1765 = vpack.c.b16 %v1603, %v1594
  %v1766 = vpack.c.b16 %v1604, %v1595
  %v1767 = vpack.c.b16 %v1614, %v1605
  %v1768 = vpack.c.b16 %v1615, %v1606
  %v1769 = vpack.c.b16 %v1616, %v1607
  %v1770 = vpack.c.b16 %v1617, %v1608
  %v1771 = vpack.c.b16 %v1618, %v1609
  %v1772 = vpack.c.b16 %v1619, %v1610
  %v1773 = vpack.c.b16 %v1620, %v1611
  %v1774 = vpack.c.b16 %v1621, %v1612
  %v1775 = vpack.c.b16 %v1622, %v1613
  %v1776 = vpack.c.b16 %v1632, %v1623
  %v1777 = vpack.c.b16 %v1633, %v1624
  %v1778 = vpack.c.b16 %v1634, %v1625
  %v1779 = vpack.c.b16 %v1635, %v1626
  %v1780 = vpack.c.b16 %v1636, %v1627
  %v1781 = vpack.c.b16 %v1637, %v1628
  %v1782 = vpack.c.b16 %v1638, %v1629
  %v1783 = vpack.c.b16 %v1639, %v1630
  %v1784 = vpack.c.b16 %v1640, %v1631
  %v2073 = vunpack.c.l.b16 %v1045
  %v2074 = vunpack.c.l.b16 %v1046
  %v2075 = vunpack.c.l.b16 %v1047
  %v2076 = vunpack.c.l.b16 %v1048
  %v2077 = vunpack.c.l.b16 %v1049
  %v2078 = vunpack.c.l.b16 %v1050
  %v2079 = vunpack.c.l.b16 %v1051
  %v2080 = vunpack.c.l.b16 %v1052
  %v2081 = vunpack.c.l.b16 %v1053
  %v2082 = vunpack.c.l.b16 %v1054
  %v2083 = vunpack.c.l.b16 %v1055
  %v2084 = vunpack.c.l.b16 %v1056
  %v2085 = vunpack.c.l.b16 %v1057
  %v2086 = vunpack.c.l.b16 %v1058
  %v2087 = vunpack.c.l.b16 %v1059
  %v2088 = vunpack.c.l.b16 %v1060
  %v2089 = vunpack.c.l.b16 %v1061
  %v2090 = vunpack.c.l.b16 %v1062
  %v2091 = vunpack.c.l.b16 %v1063
  %v2092 = vunpack.c.l.b16 %v1064
  %v2093 = vunpack.c.l.b16 %v1065
  %v2094 = vunpack.c.l.b16 %v1066
  %v2095 = vunpack.c.l.b16 %v1067
  %v2096 = vunpack.c.l.b16 %v1068
  %v2097 = vunpack.c.l.b16 %v1069
  %v2098 = vunpack.c.l.b16 %v1070
  %v2099 = vunpack.c.l.b16 %v1071
  %v2100 = vunpack.c.l.b16 %v1072
  %v2101 = vunpack.c.l.b16 %v1073
  %v2102 = vunpack.c.l.b16 %v1074
  %v2103 = vunpack.c.l.b16 %v1075
  %v2104 = vunpack.c.l.b16 %v1076
  %v2105 = vunpack.c.l.b16 %v1077
  %v2106 = vunpack.c.l.b16 %v1078
  %v2107 = vunpack.c.l.b16 %v1079
  %v2108 = vunpack.c.l.b16 %v1080
  %v2109 = vunpack.c.l.b16 %v1081
  %v2110 = vunpack.c.l.b16 %v1082
  %v2111 = vunpack.c.l.b16 %v1083
  %v2112 = vunpack.c.l.b16 %v1084
  %v2113 = vunpack.c.l.b16 %v1085
  %v2114 = vunpack.c.l.b16 %v1086
  %v2115 = vunpack.c.l.b16 %v1087
  %v2116 = vunpack.c.l.b16 %v1088
  %v2117 = vunpack.c.l.b16 %v1089
  %v2118 = vunpack.c.l.b16 %v1090
  %v2119 = vunpack.c.l.b16 %v1091
  %v2120 = vunpack.c.l.b16 %v1092
  %v2121 = vunpack.c.l.b16 %v1093
  %v2122 = vunpack.c.l.b16 %v1094
  %v2123 = vunpack.c.l.b16 %v1095
  %v2124 = vunpack.c.l.b16 %v1096
  %v2125 = vunpack.c.l.b16 %v1097
  %v2126 = vunpack.c.l.b16 %v1098
  %v2127 = vunpack.c.l.b16 %v1099
  %v2128 = vunpack.c.l.b16 %v1100
  %v2129 = vunpack.c.l.b16 %v1101
  %v2130 = vunpack.c.l.b16 %v1102
  %v2131 = vunpack.c.l.b16 %v1103
  %v2132 = vunpack.c.l.b16 %v1104
  %v2133 = vunpack.c.l.b16 %v1105
  %v2134 = vunpack.c.l.b16 %v1106
  %v2135 = vunpack.c.l.b16 %v1107
  %v2136 = vunpack.c.l.b16 %v1108
  %v2137 = vunpack.c.l.b16 %v1109
  %v2138 = vunpack.c.l.b16 %v1110
  %v2139 = vunpack.c.l.b16 %v1111
  %v2140 = vunpack.c.l.b16 %v1112
  %v2141 = vunpack.c.l.b16 %v1113
  %v2142 = vunpack.c.l.b16 %v1114
  %v2143 = vunpack.c.l.b16 %v1115
  %v2144 = vunpack.c.l.b16 %v1116
  %v2145 = vunpack.c.l.b16 %v1117
  %v2146 = vunpack.c.l.b16 %v1118
  %v2147 = vunpack.c.l.b16 %v1119
  %v2148 = vunpack.c.l.b16 %v1120
  %v2149 = vunpack.c.l.b16 %v1121
  %v2150 = vunpack.c.l.b16 %v1122
  %v2151 = vunpack.c.l.b16 %v1123
  %v2152 = vunpack.c.l.b16 %v1124
  %v2153 = vunpack.c.l.b16 %v1125
  %v2154 = vunpack.c.l.b16 %v1126
  %v2155 = vunpack.c.l.b16 %v1127
  %v2156 = vunpack.c.l.b16 %v1128
  %v2157 = vunpack.c.l.b16 %v1129
  %v2158 = vunpack.c.l.b16 %v1130
  %v2159 = vunpack.c.l.b16 %v1131
  %v2160 = vunpack.c.l.b16 %v1132
  %v2161 = vunpack.c.l.b16 %v1133
  %v2162 = vunpack.c.l.b16 %v1134
  %v2163 = vunpack.c.l.b16 %v1135
  %v2164 = vunpack.c.l.b16 %v1136
  %v2165 = vunpack.c.l.b16 %v1137
  %v2166 = vunpack.c.l.b16 %v1138
  %v2167 = vunpack.c.l.b16 %v1139
  %v2168 = vunpack.c.l.b16 %v1140
  %v2169 = vunpack.c.l.b16 %v1141
  %v2170 = vunpack.c.l.b16 %v1142
  %v2171 = vunpack.c.l.b16 %v1143
  %v2172 = vunpack.c.l.b16 %v1144
  %v2173 = vunpack.c.l.b16 %v1145
  %v2174 = vunpack.c.l.b16 %v1146
  %v2175 = vunpack.c.l.b16 %v1147
  %v2176 = vunpack.c.l.b16 %v1148
  %v2177 = vunpack.c.l.b16 %v1149
  %v2178 = vunpack.c.l.b16 %v1150
  %v2179 = vunpack.c.l.b16 %v1151
  %v2180 = vunpack.c.l.b16 %v1152
  %v2181 = vunpack.c.l.b16 %v1153
  %v2182 = vunpack.c.l.b16 %v1154
  %v2183 = vunpack.c.l.b16 %v1155
  %v2184 = vunpack.c.l.b16 %v1156
  %v2185 = vunpack.c.l.b16 %v1157
  %v2186 = vunpack.c.l.b16 %v1158
  %v2187 = vunpack.c.l.b16 %v1159
  %v2188 = vunpack.c.l.b16 %v1160
  %v2189 = vunpack.c.l.b16 %v1161
  %v2190 = vunpack.c.l.b16 %v1162
  %v2191 = vunpack.c.l.b16 %v1163
  %v2192 = vunpack.c.l.b16 %v1164
  %v2193 = vunpack.c.l.b16 %v1165
  %v2194 = vunpack.c.l.b16 %v1166
  %v2195 = vunpack.c.l.b16 %v1167
  %v2196 = vunpack.c.l.b16 %v1168
  %v2197 = vunpack.c.l.b16 %v1169
  %v2198 = vunpack.c.l.b16 %v1170
  %v2199 = vunpack.c.l.b16 %v1171
  %v2200 = vunpack.c.l.b16 %v1172
  %v2201 = vunpack.c.l.b16 %v1173
  %v2202 = vunpack.c.l.b16 %v1174
  %v2203 = vunpack.c.l.b16 %v1175
  %v2204 = vunpack.c.l.b16 %v1176
  %v2205 = vunpack.c.l.b16 %v1177
  %v2206 = vunpack.c.l.b16 %v1178
  %v2207 = vunpack.c.l.b16 %v1179
  %v2208 = vunpack.c.l.b16 %v1180
  %v2209 = vunpack.c.l.b16 %v1181
  %v2210 = vunpack.c.l.b16 %v1182
  %v2211 = vunpack.c.l.b16 %v1183
  %v2212 = vunpack.c.l.b16 %v1184
  %v2213 = vunpack.c.l.b16 %v1185
  %v2214 = vunpack.c.l.b16 %v1186
  %v2215 = vunpack.c.l.b16 %v1187
  %v2216 = vunpack.c.l.b16 %v1188
  %v2217 = vpack.c.b16 %v2074, %v2073
  %v2218 = vpack.c.b16 %v2076, %v2075
  %v2219 = vpack.c.b16 %v2078, %v2077
  %v2220 = vpack.c.b16 %v2080, %v2079
  %v2221 = vpack.c.b16 %v2082, %v2081
  %v2222 = vpack.c.b16 %v2084, %v2083
  %v2223 = vpack.c.b16 %v2086, %v2085
  %v2224 = vpack.c.b16 %v2088, %v2087
  %v2225 = vpack.c.b16 %v2090, %v2089
  %v2226 = vpack.c.b16 %v2092, %v2091
  %v2227 = vpack.c.b16 %v2094, %v2093
  %v2228 = vpack.c.b16 %v2096, %v2095
  %v2229 = vpack.c.b16 %v2098, %v2097
  %v2230 = vpack.c.b16 %v2100, %v2099
  %v2231 = vpack.c.b16 %v2102, %v2101
  %v2232 = vpack.c.b16 %v2104, %v2103
  %v2233 = vpack.c.b16 %v2106, %v2105
  %v2234 = vpack.c.b16 %v2108, %v2107
  %v2235 = vpack.c.b16 %v2110, %v2109
  %v2236 = vpack.c.b16 %v2112, %v2111
  %v2237 = vpack.c.b16 %v2114, %v2113
  %v2238 = vpack.c.b16 %v2116, %v2115
  %v2239 = vpack.c.b16 %v2118, %v2117
  %v2240 = vpack.c.b16 %v2120, %v2119
  %v2241 = vpack.c.b16 %v2122, %v2121
  %v2242 = vpack.c.b16 %v2124, %v2123
  %v2243 = vpack.c.b16 %v2126, %v2125
  %v2244 = vpack.c.b16 %v2128, %v2127
  %v2245 = vpack.c.b16 %v2130, %v2129
  %v2246 = vpack.c.b16 %v2132, %v2131
  %v2247 = vpack.c.b16 %v2134, %v2133
  %v2248 = vpack.c.b16 %v2136, %v2135
  %v2249 = vpack.c.b16 %v2138, %v2137
  %v2250 = vpack.c.b16 %v2140, %v2139
  %v2251 = vpack.c.b16 %v2142, %v2141
  %v2252 = vpack.c.b16 %v2144, %v2143
  %v2253 = vpack.c.b16 %v2146, %v2145
  %v2254 = vpack.c.b16 %v2148, %v2147
  %v2255 = vpack.c.b16 %v2150, %v2149
  %v2256 = vpack.c.b16 %v2152, %v2151
  %v2257 = vpack.c.b16 %v2154, %v2153
  %v2258 = vpack.c.b16 %v2156, %v2155
  %v2259 = vpack.c.b16 %v2158, %v2157
  %v2260 = vpack.c.b16 %v2160, %v2159
  %v2261 = vpack.c.b16 %v2162, %v2161
  %v2262 = vpack.c.b16 %v2164, %v2163
  %v2263 = vpack.c.b16 %v2166, %v2165
  %v2264 = vpack.c.b16 %v2168, %v2167
  %v2265 = vpack.c.b16 %v2170, %v2169
  %v2266 = vpack.c.b16 %v2172, %v2171
  %v2267 = vpack.c.b16 %v2174, %v2173
  %v2268 = vpack.c.b16 %v2176, %v2175
  %v2269 = vpack.c.b16 %v2178, %v2177
  %v2270 = vpack.c.b16 %v2180, %v2179
  %v2271 = vpack.c.b16 %v2182, %v2181
  %v2272 = vpack.c.b16 %v2184, %v2183
  %v2273 = vpack.c.b16 %v2186, %v2185
  %v2274 = vpack.c.b16 %v2188, %v2187
  %v2275 = vpack.c.b16 %v2190, %v2189
  %v2276 = vpack.c.b16 %v2192, %v2191
  %v2277 = vpack.c.b16 %v2194, %v2193
  %v2278 = vpack.c.b16 %v2196, %v2195
  %v2279 = vpack.c.b16 %v2198, %v2197
  %v2280 = vpack.c.b16 %v2200, %v2199
  %v2281 = vpack.c.b16 %v2202, %v2201
  %v2282 = vpack.c.b16 %v2204, %v2203
  %v2283 = vpack.c.b16 %v2206, %v2205
  %v2284 = vpack.c.b16 %v2208, %v2207
  %v2285 = vpack.c.b16 %v2210, %v2209
  %v2286 = vpack.c.b16 %v2212, %v2211
  %v2287 = vpack.c.b16 %v2214, %v2213
  %v2288 = vpack.c.b16 %v2216, %v2215
  %2361 = vmatpush.bf16.msra.mxu0 %v2224
  %2362 = vmatpush.bf16.msra.mxu0 %v2223
  %2363 = vmatpush.bf16.msra.mxu0 %v2222
  %2364 = vmatpush.bf16.msra.mxu0 %v2221
  %2365 = vmatpush.bf16.msra.mxu0 %v2220
  %2366 = vmatpush.bf16.msra.mxu0 %v2219
  %2367 = vmatpush.bf16.msra.mxu0 %v2218
  %2368 = vmatpush.bf16.msra.mxu0 %v2217
  %2369 = vmatmul.bf16.gmra.mxu0 %v1641
  %v2370 = vpop.f32.mrf.mxu0
  %v2371 = vadd.f32 %v1191, %v2370
  %v2372 = vpop.f32.mrf.mxu0
  %v2373 = vadd.f32 %v1191, %v2372
  %2374 = vmatmul.bf16.gmra.mxu0 %v1650
  %v2375 = vpop.f32.mrf.mxu0
  %v2376 = vadd.f32 %v1191, %v2375
  %v2377 = vpop.f32.mrf.mxu0
  %v2378 = vadd.f32 %v1191, %v2377
  %2379 = vmatmul.bf16.gmra.mxu0 %v1659
  %v2380 = vpop.f32.mrf.mxu0
  %v2381 = vadd.f32 %v1191, %v2380
  %v2382 = vpop.f32.mrf.mxu0
  %v2383 = vadd.f32 %v1191, %v2382
  %2384 = vmatmul.bf16.gmra.mxu0 %v1668
  %v2385 = vpop.f32.mrf.mxu0
  %v2386 = vadd.f32 %v1191, %v2385
  %v2387 = vpop.f32.mrf.mxu0
  %v2388 = vadd.f32 %v1191, %v2387
  %2389 = vmatmul.bf16.gmra.mxu0 %v1677
  %v2390 = vpop.f32.mrf.mxu0
  %v2391 = vadd.f32 %v1191, %v2390
  %v2392 = vpop.f32.mrf.mxu0
  %v2393 = vadd.f32 %v1191, %v2392
  %2394 = vmatmul.bf16.gmra.mxu0 %v1686
  %v2395 = vpop.f32.mrf.mxu0
  %v2396 = vadd.f32 %v1191, %v2395
  %v2397 = vpop.f32.mrf.mxu0
  %v2398 = vadd.f32 %v1191, %v2397
  %2399 = vmatmul.bf16.gmra.mxu0 %v1695
  %v2400 = vpop.f32.mrf.mxu0
  %v2401 = vadd.f32 %v1191, %v2400
  %v2402 = vpop.f32.mrf.mxu0
  %v2403 = vadd.f32 %v1191, %v2402
  %2404 = vmatmul.bf16.gmra.mxu0 %v1704
  %v2405 = vpop.f32.mrf.mxu0
  %v2406 = vadd.f32 %v1191, %v2405
  %v2407 = vpop.f32.mrf.mxu0
  %v2408 = vadd.f32 %v1191, %v2407
  %2409 = vmatmul.bf16.gmra.mxu0 %v1713
  %v2410 = vpop.f32.mrf.mxu0
  %v2411 = vadd.f32 %v1191, %v2410
  %v2412 = vpop.f32.mrf.mxu0
  %v2413 = vadd.f32 %v1191, %v2412
  %2414 = vmatmul.bf16.gmra.mxu0 %v1722
  %v2415 = vpop.f32.mrf.mxu0
  %v2416 = vadd.f32 %v1191, %v2415
  %v2417 = vpop.f32.mrf.mxu0
  %v2418 = vadd.f32 %v1191, %v2417
  %2419 = vmatmul.bf16.gmra.mxu0 %v1731
  %v2420 = vpop.f32.mrf.mxu0
  %v2421 = vadd.f32 %v1191, %v2420
  %v2422 = vpop.f32.mrf.mxu0
  %v2423 = vadd.f32 %v1191, %v2422
  %2424 = vmatmul.bf16.gmra.mxu0 %v1740
  %v2425 = vpop.f32.mrf.mxu0
  %v2426 = vadd.f32 %v1191, %v2425
  %v2427 = vpop.f32.mrf.mxu0
  %v2428 = vadd.f32 %v1191, %v2427
  %2429 = vmatmul.bf16.gmra.mxu0 %v1749
  %v2430 = vpop.f32.mrf.mxu0
  %v2431 = vadd.f32 %v1191, %v2430
  %v2432 = vpop.f32.mrf.mxu0
  %v2433 = vadd.f32 %v1191, %v2432
  %2434 = vmatmul.bf16.gmra.mxu0 %v1758
  %v2435 = vpop.f32.mrf.mxu0
  %v2436 = vadd.f32 %v1191, %v2435
  %v2437 = vpop.f32.mrf.mxu0
  %v2438 = vadd.f32 %v1191, %v2437
  %2439 = vmatmul.bf16.gmra.mxu0 %v1767
  %v2440 = vpop.f32.mrf.mxu0
  %v2441 = vadd.f32 %v1191, %v2440
  %v2442 = vpop.f32.mrf.mxu0
  %v2443 = vadd.f32 %v1191, %v2442
  %2444 = vmatmul.bf16.gmra.mxu0 %v1776
  %v2445 = vpop.f32.mrf.mxu0
  %v2446 = vadd.f32 %v1191, %v2445
  %v2447 = vpop.f32.mrf.mxu0
  %v2448 = vadd.f32 %v1191, %v2447
  %2449 = vdwg.mxu0
  %2450 = vmatpush.bf16.msra.mxu0 %v2232
  %2451 = vmatpush.bf16.msra.mxu0 %v2231
  %2452 = vmatpush.bf16.msra.mxu0 %v2230
  %2453 = vmatpush.bf16.msra.mxu0 %v2229
  %2454 = vmatpush.bf16.msra.mxu0 %v2228
  %2455 = vmatpush.bf16.msra.mxu0 %v2227
  %2456 = vmatpush.bf16.msra.mxu0 %v2226
  %2457 = vmatpush.bf16.msra.mxu0 %v2225
  %2458 = vmatmul.bf16.gmra.mxu0 %v1642
  %v2459 = vpop.f32.mrf.mxu0
  %v2460 = vadd.f32 %v2371, %v2459
  %v2461 = vpop.f32.mrf.mxu0
  %v2462 = vadd.f32 %v2373, %v2461
  %2463 = vmatmul.bf16.gmra.mxu0 %v1651
  %v2464 = vpop.f32.mrf.mxu0
  %v2465 = vadd.f32 %v2376, %v2464
  %v2466 = vpop.f32.mrf.mxu0
  %v2467 = vadd.f32 %v2378, %v2466
  %2468 = vmatmul.bf16.gmra.mxu0 %v1660
  %v2469 = vpop.f32.mrf.mxu0
  %v2470 = vadd.f32 %v2381, %v2469
  %v2471 = vpop.f32.mrf.mxu0
  %v2472 = vadd.f32 %v2383, %v2471
  %2473 = vmatmul.bf16.gmra.mxu0 %v1669
  %v2474 = vpop.f32.mrf.mxu0
  %v2475 = vadd.f32 %v2386, %v2474
  %v2476 = vpop.f32.mrf.mxu0
  %v2477 = vadd.f32 %v2388, %v2476
  %2478 = vmatmul.bf16.gmra.mxu0 %v1678
  %v2479 = vpop.f32.mrf.mxu0
  %v2480 = vadd.f32 %v2391, %v2479
  %v2481 = vpop.f32.mrf.mxu0
  %v2482 = vadd.f32 %v2393, %v2481
  %2483 = vmatmul.bf16.gmra.mxu0 %v1687
  %v2484 = vpop.f32.mrf.mxu0
  %v2485 = vadd.f32 %v2396, %v2484
  %v2486 = vpop.f32.mrf.mxu0
  %v2487 = vadd.f32 %v2398, %v2486
  %2488 = vmatmul.bf16.gmra.mxu0 %v1696
  %v2489 = vpop.f32.mrf.mxu0
  %v2490 = vadd.f32 %v2401, %v2489
  %v2491 = vpop.f32.mrf.mxu0
  %v2492 = vadd.f32 %v2403, %v2491
  %2493 = vmatmul.bf16.gmra.mxu0 %v1705
  %v2494 = vpop.f32.mrf.mxu0
  %v2495 = vadd.f32 %v2406, %v2494
  %v2496 = vpop.f32.mrf.mxu0
  %v2497 = vadd.f32 %v2408, %v2496
  %2498 = vmatmul.bf16.gmra.mxu0 %v1714
  %v2499 = vpop.f32.mrf.mxu0
  %v2500 = vadd.f32 %v2411, %v2499
  %v2501 = vpop.f32.mrf.mxu0
  %v2502 = vadd.f32 %v2413, %v2501
  %2503 = vmatmul.bf16.gmra.mxu0 %v1723
  %v2504 = vpop.f32.mrf.mxu0
  %v2505 = vadd.f32 %v2416, %v2504
  %v2506 = vpop.f32.mrf.mxu0
  %v2507 = vadd.f32 %v2418, %v2506
  %2508 = vmatmul.bf16.gmra.mxu0 %v1732
  %v2509 = vpop.f32.mrf.mxu0
  %v2510 = vadd.f32 %v2421, %v2509
  %v2511 = vpop.f32.mrf.mxu0
  %v2512 = vadd.f32 %v2423, %v2511
  %2513 = vmatmul.bf16.gmra.mxu0 %v1741
  %v2514 = vpop.f32.mrf.mxu0
  %v2515 = vadd.f32 %v2426, %v2514
  %v2516 = vpop.f32.mrf.mxu0
  %v2517 = vadd.f32 %v2428, %v2516
  %2518 = vmatmul.bf16.gmra.mxu0 %v1750
  %v2519 = vpop.f32.mrf.mxu0
  %v2520 = vadd.f32 %v2431, %v2519
  %v2521 = vpop.f32.mrf.mxu0
  %v2522 = vadd.f32 %v2433, %v2521
  %2523 = vmatmul.bf16.gmra.mxu0 %v1759
  %v2524 = vpop.f32.mrf.mxu0
  %v2525 = vadd.f32 %v2436, %v2524
  %v2526 = vpop.f32.mrf.mxu0
  %v2527 = vadd.f32 %v2438, %v2526
  %2528 = vmatmul.bf16.gmra.mxu0 %v1768
  %v2529 = vpop.f32.mrf.mxu0
  %v2530 = vadd.f32 %v2441, %v2529
  %v2531 = vpop.f32.mrf.mxu0
  %v2532 = vadd.f32 %v2443, %v2531
  %2533 = vmatmul.bf16.gmra.mxu0 %v1777
  %v2534 = vpop.f32.mrf.mxu0
  %v2535 = vadd.f32 %v2446, %v2534
  %v2536 = vpop.f32.mrf.mxu0
  %v2537 = vadd.f32 %v2448, %v2536
  %2538 = vdwg.mxu0
  %2539 = vmatpush.bf16.msra.mxu0 %v2240
  %2540 = vmatpush.bf16.msra.mxu0 %v2239
  %2541 = vmatpush.bf16.msra.mxu0 %v2238
  %2542 = vmatpush.bf16.msra.mxu0 %v2237
  %2543 = vmatpush.bf16.msra.mxu0 %v2236
  %2544 = vmatpush.bf16.msra.mxu0 %v2235
  %2545 = vmatpush.bf16.msra.mxu0 %v2234
  %2546 = vmatpush.bf16.msra.mxu0 %v2233
  %2547 = vmatmul.bf16.gmra.mxu0 %v1643
  %v2548 = vpop.f32.mrf.mxu0
  %v2549 = vadd.f32 %v2460, %v2548
  %v2550 = vpop.f32.mrf.mxu0
  %v2551 = vadd.f32 %v2462, %v2550
  %2552 = vmatmul.bf16.gmra.mxu0 %v1652
  %v2553 = vpop.f32.mrf.mxu0
  %v2554 = vadd.f32 %v2465, %v2553
  %v2555 = vpop.f32.mrf.mxu0
  %v2556 = vadd.f32 %v2467, %v2555
  %2557 = vmatmul.bf16.gmra.mxu0 %v1661
  %v2558 = vpop.f32.mrf.mxu0
  %v2559 = vadd.f32 %v2470, %v2558
  %v2560 = vpop.f32.mrf.mxu0
  %v2561 = vadd.f32 %v2472, %v2560
  %2562 = vmatmul.bf16.gmra.mxu0 %v1670
  %v2563 = vpop.f32.mrf.mxu0
  %v2564 = vadd.f32 %v2475, %v2563
  %v2565 = vpop.f32.mrf.mxu0
  %v2566 = vadd.f32 %v2477, %v2565
  %2567 = vmatmul.bf16.gmra.mxu0 %v1679
  %v2568 = vpop.f32.mrf.mxu0
  %v2569 = vadd.f32 %v2480, %v2568
  %v2570 = vpop.f32.mrf.mxu0
  %v2571 = vadd.f32 %v2482, %v2570
  %2572 = vmatmul.bf16.gmra.mxu0 %v1688
  %v2573 = vpop.f32.mrf.mxu0
  %v2574 = vadd.f32 %v2485, %v2573
  %v2575 = vpop.f32.mrf.mxu0
  %v2576 = vadd.f32 %v2487, %v2575
  %2577 = vmatmul.bf16.gmra.mxu0 %v1697
  %v2578 = vpop.f32.mrf.mxu0
  %v2579 = vadd.f32 %v2490, %v2578
  %v2580 = vpop.f32.mrf.mxu0
  %v2581 = vadd.f32 %v2492, %v2580
  %2582 = vmatmul.bf16.gmra.mxu0 %v1706
  %v2583 = vpop.f32.mrf.mxu0
  %v2584 = vadd.f32 %v2495, %v2583
  %v2585 = vpop.f32.mrf.mxu0
  %v2586 = vadd.f32 %v2497, %v2585
  %2587 = vmatmul.bf16.gmra.mxu0 %v1715
  %v2588 = vpop.f32.mrf.mxu0
  %v2589 = vadd.f32 %v2500, %v2588
  %v2590 = vpop.f32.mrf.mxu0
  %v2591 = vadd.f32 %v2502, %v2590
  %2592 = vmatmul.bf16.gmra.mxu0 %v1724
  %v2593 = vpop.f32.mrf.mxu0
  %v2594 = vadd.f32 %v2505, %v2593
  %v2595 = vpop.f32.mrf.mxu0
  %v2596 = vadd.f32 %v2507, %v2595
  %2597 = vmatmul.bf16.gmra.mxu0 %v1733
  %v2598 = vpop.f32.mrf.mxu0
  %v2599 = vadd.f32 %v2510, %v2598
  %v2600 = vpop.f32.mrf.mxu0
  %v2601 = vadd.f32 %v2512, %v2600
  %2602 = vmatmul.bf16.gmra.mxu0 %v1742
  %v2603 = vpop.f32.mrf.mxu0
  %v2604 = vadd.f32 %v2515, %v2603
  %v2605 = vpop.f32.mrf.mxu0
  %v2606 = vadd.f32 %v2517, %v2605
  %2607 = vmatmul.bf16.gmra.mxu0 %v1751
  %v2608 = vpop.f32.mrf.mxu0
  %v2609 = vadd.f32 %v2520, %v2608
  %v2610 = vpop.f32.mrf.mxu0
  %v2611 = vadd.f32 %v2522, %v2610
  %2612 = vmatmul.bf16.gmra.mxu0 %v1760
  %v2613 = vpop.f32.mrf.mxu0
  %v2614 = vadd.f32 %v2525, %v2613
  %v2615 = vpop.f32.mrf.mxu0
  %v2616 = vadd.f32 %v2527, %v2615
  %2617 = vmatmul.bf16.gmra.mxu0 %v1769
  %v2618 = vpop.f32.mrf.mxu0
  %v2619 = vadd.f32 %v2530, %v2618
  %v2620 = vpop.f32.mrf.mxu0
  %v2621 = vadd.f32 %v2532, %v2620
  %2622 = vmatmul.bf16.gmra.mxu0 %v1778
  %v2623 = vpop.f32.mrf.mxu0
  %v2624 = vadd.f32 %v2535, %v2623
  %v2625 = vpop.f32.mrf.mxu0
  %v2626 = vadd.f32 %v2537, %v2625
  %2627 = vdwg.mxu0
  %2628 = vmatpush.bf16.msra.mxu0 %v2248
  %2629 = vmatpush.bf16.msra.mxu0 %v2247
  %2630 = vmatpush.bf16.msra.mxu0 %v2246
  %2631 = vmatpush.bf16.msra.mxu0 %v2245
  %2632 = vmatpush.bf16.msra.mxu0 %v2244
  %2633 = vmatpush.bf16.msra.mxu0 %v2243
  %2634 = vmatpush.bf16.msra.mxu0 %v2242
  %2635 = vmatpush.bf16.msra.mxu0 %v2241
  %2636 = vmatmul.bf16.gmra.mxu0 %v1644
  %v2637 = vpop.f32.mrf.mxu0
  %v2638 = vadd.f32 %v2549, %v2637
  %v2639 = vpop.f32.mrf.mxu0
  %v2640 = vadd.f32 %v2551, %v2639
  %2641 = vmatmul.bf16.gmra.mxu0 %v1653
  %v2642 = vpop.f32.mrf.mxu0
  %v2643 = vadd.f32 %v2554, %v2642
  %v2644 = vpop.f32.mrf.mxu0
  %v2645 = vadd.f32 %v2556, %v2644
  %2646 = vmatmul.bf16.gmra.mxu0 %v1662
  %v2647 = vpop.f32.mrf.mxu0
  %v2648 = vadd.f32 %v2559, %v2647
  %v2649 = vpop.f32.mrf.mxu0
  %v2650 = vadd.f32 %v2561, %v2649
  %2651 = vmatmul.bf16.gmra.mxu0 %v1671
  %v2652 = vpop.f32.mrf.mxu0
  %v2653 = vadd.f32 %v2564, %v2652
  %v2654 = vpop.f32.mrf.mxu0
  %v2655 = vadd.f32 %v2566, %v2654
  %2656 = vmatmul.bf16.gmra.mxu0 %v1680
  %v2657 = vpop.f32.mrf.mxu0
  %v2658 = vadd.f32 %v2569, %v2657
  %v2659 = vpop.f32.mrf.mxu0
  %v2660 = vadd.f32 %v2571, %v2659
  %2661 = vmatmul.bf16.gmra.mxu0 %v1689
  %v2662 = vpop.f32.mrf.mxu0
  %v2663 = vadd.f32 %v2574, %v2662
  %v2664 = vpop.f32.mrf.mxu0
  %v2665 = vadd.f32 %v2576, %v2664
  %2666 = vmatmul.bf16.gmra.mxu0 %v1698
  %v2667 = vpop.f32.mrf.mxu0
  %v2668 = vadd.f32 %v2579, %v2667
  %v2669 = vpop.f32.mrf.mxu0
  %v2670 = vadd.f32 %v2581, %v2669
  %2671 = vmatmul.bf16.gmra.mxu0 %v1707
  %v2672 = vpop.f32.mrf.mxu0
  %v2673 = vadd.f32 %v2584, %v2672
  %v2674 = vpop.f32.mrf.mxu0
  %v2675 = vadd.f32 %v2586, %v2674
  %2676 = vmatmul.bf16.gmra.mxu0 %v1716
  %v2677 = vpop.f32.mrf.mxu0
  %v2678 = vadd.f32 %v2589, %v2677
  %v2679 = vpop.f32.mrf.mxu0
  %v2680 = vadd.f32 %v2591, %v2679
  %2681 = vmatmul.bf16.gmra.mxu0 %v1725
  %v2682 = vpop.f32.mrf.mxu0
  %v2683 = vadd.f32 %v2594, %v2682
  %v2684 = vpop.f32.mrf.mxu0
  %v2685 = vadd.f32 %v2596, %v2684
  %2686 = vmatmul.bf16.gmra.mxu0 %v1734
  %v2687 = vpop.f32.mrf.mxu0
  %v2688 = vadd.f32 %v2599, %v2687
  %v2689 = vpop.f32.mrf.mxu0
  %v2690 = vadd.f32 %v2601, %v2689
  %2691 = vmatmul.bf16.gmra.mxu0 %v1743
  %v2692 = vpop.f32.mrf.mxu0
  %v2693 = vadd.f32 %v2604, %v2692
  %v2694 = vpop.f32.mrf.mxu0
  %v2695 = vadd.f32 %v2606, %v2694
  %2696 = vmatmul.bf16.gmra.mxu0 %v1752
  %v2697 = vpop.f32.mrf.mxu0
  %v2698 = vadd.f32 %v2609, %v2697
  %v2699 = vpop.f32.mrf.mxu0
  %v2700 = vadd.f32 %v2611, %v2699
  %2701 = vmatmul.bf16.gmra.mxu0 %v1761
  %v2702 = vpop.f32.mrf.mxu0
  %v2703 = vadd.f32 %v2614, %v2702
  %v2704 = vpop.f32.mrf.mxu0
  %v2705 = vadd.f32 %v2616, %v2704
  %2706 = vmatmul.bf16.gmra.mxu0 %v1770
  %v2707 = vpop.f32.mrf.mxu0
  %v2708 = vadd.f32 %v2619, %v2707
  %v2709 = vpop.f32.mrf.mxu0
  %v2710 = vadd.f32 %v2621, %v2709
  %2711 = vmatmul.bf16.gmra.mxu0 %v1779
  %v2712 = vpop.f32.mrf.mxu0
  %v2713 = vadd.f32 %v2624, %v2712
  %v2714 = vpop.f32.mrf.mxu0
  %v2715 = vadd.f32 %v2626, %v2714
  %2716 = vdwg.mxu0
  %2717 = vmatpush.bf16.msra.mxu0 %v2256
  %2718 = vmatpush.bf16.msra.mxu0 %v2255
  %2719 = vmatpush.bf16.msra.mxu0 %v2254
  %2720 = vmatpush.bf16.msra.mxu0 %v2253
  %2721 = vmatpush.bf16.msra.mxu0 %v2252
  %2722 = vmatpush.bf16.msra.mxu0 %v2251
  %2723 = vmatpush.bf16.msra.mxu0 %v2250
  %2724 = vmatpush.bf16.msra.mxu0 %v2249
  %2725 = vmatmul.bf16.gmra.mxu0 %v1645
  %v2726 = vpop.f32.mrf.mxu0
  %v2727 = vadd.f32 %v2638, %v2726
  %v2728 = vpop.f32.mrf.mxu0
  %v2729 = vadd.f32 %v2640, %v2728
  %2730 = vmatmul.bf16.gmra.mxu0 %v1654
  %v2731 = vpop.f32.mrf.mxu0
  %v2732 = vadd.f32 %v2643, %v2731
  %v2733 = vpop.f32.mrf.mxu0
  %v2734 = vadd.f32 %v2645, %v2733
  %2735 = vmatmul.bf16.gmra.mxu0 %v1663
  %v2736 = vpop.f32.mrf.mxu0
  %v2737 = vadd.f32 %v2648, %v2736
  %v2738 = vpop.f32.mrf.mxu0
  %v2739 = vadd.f32 %v2650, %v2738
  %2740 = vmatmul.bf16.gmra.mxu0 %v1672
  %v2741 = vpop.f32.mrf.mxu0
  %v2742 = vadd.f32 %v2653, %v2741
  %v2743 = vpop.f32.mrf.mxu0
  %v2744 = vadd.f32 %v2655, %v2743
  %2745 = vmatmul.bf16.gmra.mxu0 %v1681
  %v2746 = vpop.f32.mrf.mxu0
  %v2747 = vadd.f32 %v2658, %v2746
  %v2748 = vpop.f32.mrf.mxu0
  %v2749 = vadd.f32 %v2660, %v2748
  %2750 = vmatmul.bf16.gmra.mxu0 %v1690
  %v2751 = vpop.f32.mrf.mxu0
  %v2752 = vadd.f32 %v2663, %v2751
  %v2753 = vpop.f32.mrf.mxu0
  %v2754 = vadd.f32 %v2665, %v2753
  %2755 = vmatmul.bf16.gmra.mxu0 %v1699
  %v2756 = vpop.f32.mrf.mxu0
  %v2757 = vadd.f32 %v2668, %v2756
  %v2758 = vpop.f32.mrf.mxu0
  %v2759 = vadd.f32 %v2670, %v2758
  %2760 = vmatmul.bf16.gmra.mxu0 %v1708
  %v2761 = vpop.f32.mrf.mxu0
  %v2762 = vadd.f32 %v2673, %v2761
  %v2763 = vpop.f32.mrf.mxu0
  %v2764 = vadd.f32 %v2675, %v2763
  %2765 = vmatmul.bf16.gmra.mxu0 %v1717
  %v2766 = vpop.f32.mrf.mxu0
  %v2767 = vadd.f32 %v2678, %v2766
  %v2768 = vpop.f32.mrf.mxu0
  %v2769 = vadd.f32 %v2680, %v2768
  %2770 = vmatmul.bf16.gmra.mxu0 %v1726
  %v2771 = vpop.f32.mrf.mxu0
  %v2772 = vadd.f32 %v2683, %v2771
  %v2773 = vpop.f32.mrf.mxu0
  %v2774 = vadd.f32 %v2685, %v2773
  %2775 = vmatmul.bf16.gmra.mxu0 %v1735
  %v2776 = vpop.f32.mrf.mxu0
  %v2777 = vadd.f32 %v2688, %v2776
  %v2778 = vpop.f32.mrf.mxu0
  %v2779 = vadd.f32 %v2690, %v2778
  %2780 = vmatmul.bf16.gmra.mxu0 %v1744
  %v2781 = vpop.f32.mrf.mxu0
  %v2782 = vadd.f32 %v2693, %v2781
  %v2783 = vpop.f32.mrf.mxu0
  %v2784 = vadd.f32 %v2695, %v2783
  %2785 = vmatmul.bf16.gmra.mxu0 %v1753
  %v2786 = vpop.f32.mrf.mxu0
  %v2787 = vadd.f32 %v2698, %v2786
  %v2788 = vpop.f32.mrf.mxu0
  %v2789 = vadd.f32 %v2700, %v2788
  %2790 = vmatmul.bf16.gmra.mxu0 %v1762
  %v2791 = vpop.f32.mrf.mxu0
  %v2792 = vadd.f32 %v2703, %v2791
  %v2793 = vpop.f32.mrf.mxu0
  %v2794 = vadd.f32 %v2705, %v2793
  %2795 = vmatmul.bf16.gmra.mxu0 %v1771
  %v2796 = vpop.f32.mrf.mxu0
  %v2797 = vadd.f32 %v2708, %v2796
  %v2798 = vpop.f32.mrf.mxu0
  %v2799 = vadd.f32 %v2710, %v2798
  %2800 = vmatmul.bf16.gmra.mxu0 %v1780
  %v2801 = vpop.f32.mrf.mxu0
  %v2802 = vadd.f32 %v2713, %v2801
  %v2803 = vpop.f32.mrf.mxu0
  %v2804 = vadd.f32 %v2715, %v2803
  %2805 = vdwg.mxu0
  %2806 = vmatpush.bf16.msra.mxu0 %v2264
  %2807 = vmatpush.bf16.msra.mxu0 %v2263
  %2808 = vmatpush.bf16.msra.mxu0 %v2262
  %2809 = vmatpush.bf16.msra.mxu0 %v2261
  %2810 = vmatpush.bf16.msra.mxu0 %v2260
  %2811 = vmatpush.bf16.msra.mxu0 %v2259
  %2812 = vmatpush.bf16.msra.mxu0 %v2258
  %2813 = vmatpush.bf16.msra.mxu0 %v2257
  %2814 = vmatmul.bf16.gmra.mxu0 %v1646
  %v2815 = vpop.f32.mrf.mxu0
  %v2816 = vadd.f32 %v2727, %v2815
  %v2817 = vpop.f32.mrf.mxu0
  %v2818 = vadd.f32 %v2729, %v2817
  %2819 = vmatmul.bf16.gmra.mxu0 %v1655
  %v2820 = vpop.f32.mrf.mxu0
  %v2821 = vadd.f32 %v2732, %v2820
  %v2822 = vpop.f32.mrf.mxu0
  %v2823 = vadd.f32 %v2734, %v2822
  %2824 = vmatmul.bf16.gmra.mxu0 %v1664
  %v2825 = vpop.f32.mrf.mxu0
  %v2826 = vadd.f32 %v2737, %v2825
  %v2827 = vpop.f32.mrf.mxu0
  %v2828 = vadd.f32 %v2739, %v2827
  %2829 = vmatmul.bf16.gmra.mxu0 %v1673
  %v2830 = vpop.f32.mrf.mxu0
  %v2831 = vadd.f32 %v2742, %v2830
  %v2832 = vpop.f32.mrf.mxu0
  %v2833 = vadd.f32 %v2744, %v2832
  %2834 = vmatmul.bf16.gmra.mxu0 %v1682
  %v2835 = vpop.f32.mrf.mxu0
  %v2836 = vadd.f32 %v2747, %v2835
  %v2837 = vpop.f32.mrf.mxu0
  %v2838 = vadd.f32 %v2749, %v2837
  %2839 = vmatmul.bf16.gmra.mxu0 %v1691
  %v2840 = vpop.f32.mrf.mxu0
  %v2841 = vadd.f32 %v2752, %v2840
  %v2842 = vpop.f32.mrf.mxu0
  %v2843 = vadd.f32 %v2754, %v2842
  %2844 = vmatmul.bf16.gmra.mxu0 %v1700
  %v2845 = vpop.f32.mrf.mxu0
  %v2846 = vadd.f32 %v2757, %v2845
  %v2847 = vpop.f32.mrf.mxu0
  %v2848 = vadd.f32 %v2759, %v2847
  %2849 = vmatmul.bf16.gmra.mxu0 %v1709
  %v2850 = vpop.f32.mrf.mxu0
  %v2851 = vadd.f32 %v2762, %v2850
  %v2852 = vpop.f32.mrf.mxu0
  %v2853 = vadd.f32 %v2764, %v2852
  %2854 = vmatmul.bf16.gmra.mxu0 %v1718
  %v2855 = vpop.f32.mrf.mxu0
  %v2856 = vadd.f32 %v2767, %v2855
  %v2857 = vpop.f32.mrf.mxu0
  %v2858 = vadd.f32 %v2769, %v2857
  %2859 = vmatmul.bf16.gmra.mxu0 %v1727
  %v2860 = vpop.f32.mrf.mxu0
  %v2861 = vadd.f32 %v2772, %v2860
  %v2862 = vpop.f32.mrf.mxu0
  %v2863 = vadd.f32 %v2774, %v2862
  %2864 = vmatmul.bf16.gmra.mxu0 %v1736
  %v2865 = vpop.f32.mrf.mxu0
  %v2866 = vadd.f32 %v2777, %v2865
  %v2867 = vpop.f32.mrf.mxu0
  %v2868 = vadd.f32 %v2779, %v2867
  %2869 = vmatmul.bf16.gmra.mxu0 %v1745
  %v2870 = vpop.f32.mrf.mxu0
  %v2871 = vadd.f32 %v2782, %v2870
  %v2872 = vpop.f32.mrf.mxu0
  %v2873 = vadd.f32 %v2784, %v2872
  %2874 = vmatmul.bf16.gmra.mxu0 %v1754
  %v2875 = vpop.f32.mrf.mxu0
  %v2876 = vadd.f32 %v2787, %v2875
  %v2877 = vpop.f32.mrf.mxu0
  %v2878 = vadd.f32 %v2789, %v2877
  %2879 = vmatmul.bf16.gmra.mxu0 %v1763
  %v2880 = vpop.f32.mrf.mxu0
  %v2881 = vadd.f32 %v2792, %v2880
  %v2882 = vpop.f32.mrf.mxu0
  %v2883 = vadd.f32 %v2794, %v2882
  %2884 = vmatmul.bf16.gmra.mxu0 %v1772
  %v2885 = vpop.f32.mrf.mxu0
  %v2886 = vadd.f32 %v2797, %v2885
  %v2887 = vpop.f32.mrf.mxu0
  %v2888 = vadd.f32 %v2799, %v2887
  %2889 = vmatmul.bf16.gmra.mxu0 %v1781
  %v2890 = vpop.f32.mrf.mxu0
  %v2891 = vadd.f32 %v2802, %v2890
  %v2892 = vpop.f32.mrf.mxu0
  %v2893 = vadd.f32 %v2804, %v2892
  %2894 = vdwg.mxu0
  %2895 = vmatpush.bf16.msra.mxu0 %v2272
  %2896 = vmatpush.bf16.msra.mxu0 %v2271
  %2897 = vmatpush.bf16.msra.mxu0 %v2270
  %2898 = vmatpush.bf16.msra.mxu0 %v2269
  %2899 = vmatpush.bf16.msra.mxu0 %v2268
  %2900 = vmatpush.bf16.msra.mxu0 %v2267
  %2901 = vmatpush.bf16.msra.mxu0 %v2266
  %2902 = vmatpush.bf16.msra.mxu0 %v2265
  %2903 = vmatmul.bf16.gmra.mxu0 %v1647
  %v2904 = vpop.f32.mrf.mxu0
  %v2905 = vadd.f32 %v2816, %v2904
  %v2906 = vpop.f32.mrf.mxu0
  %v2907 = vadd.f32 %v2818, %v2906
  %2908 = vmatmul.bf16.gmra.mxu0 %v1656
  %v2909 = vpop.f32.mrf.mxu0
  %v2910 = vadd.f32 %v2821, %v2909
  %v2911 = vpop.f32.mrf.mxu0
  %v2912 = vadd.f32 %v2823, %v2911
  %2913 = vmatmul.bf16.gmra.mxu0 %v1665
  %v2914 = vpop.f32.mrf.mxu0
  %v2915 = vadd.f32 %v2826, %v2914
  %v2916 = vpop.f32.mrf.mxu0
  %v2917 = vadd.f32 %v2828, %v2916
  %2918 = vmatmul.bf16.gmra.mxu0 %v1674
  %v2919 = vpop.f32.mrf.mxu0
  %v2920 = vadd.f32 %v2831, %v2919
  %v2921 = vpop.f32.mrf.mxu0
  %v2922 = vadd.f32 %v2833, %v2921
  %2923 = vmatmul.bf16.gmra.mxu0 %v1683
  %v2924 = vpop.f32.mrf.mxu0
  %v2925 = vadd.f32 %v2836, %v2924
  %v2926 = vpop.f32.mrf.mxu0
  %v2927 = vadd.f32 %v2838, %v2926
  %2928 = vmatmul.bf16.gmra.mxu0 %v1692
  %v2929 = vpop.f32.mrf.mxu0
  %v2930 = vadd.f32 %v2841, %v2929
  %v2931 = vpop.f32.mrf.mxu0
  %v2932 = vadd.f32 %v2843, %v2931
  %2933 = vmatmul.bf16.gmra.mxu0 %v1701
  %v2934 = vpop.f32.mrf.mxu0
  %v2935 = vadd.f32 %v2846, %v2934
  %v2936 = vpop.f32.mrf.mxu0
  %v2937 = vadd.f32 %v2848, %v2936
  %2938 = vmatmul.bf16.gmra.mxu0 %v1710
  %v2939 = vpop.f32.mrf.mxu0
  %v2940 = vadd.f32 %v2851, %v2939
  %v2941 = vpop.f32.mrf.mxu0
  %v2942 = vadd.f32 %v2853, %v2941
  %2943 = vmatmul.bf16.gmra.mxu0 %v1719
  %v2944 = vpop.f32.mrf.mxu0
  %v2945 = vadd.f32 %v2856, %v2944
  %v2946 = vpop.f32.mrf.mxu0
  %v2947 = vadd.f32 %v2858, %v2946
  %2948 = vmatmul.bf16.gmra.mxu0 %v1728
  %v2949 = vpop.f32.mrf.mxu0
  %v2950 = vadd.f32 %v2861, %v2949
  %v2951 = vpop.f32.mrf.mxu0
  %v2952 = vadd.f32 %v2863, %v2951
  %2953 = vmatmul.bf16.gmra.mxu0 %v1737
  %v2954 = vpop.f32.mrf.mxu0
  %v2955 = vadd.f32 %v2866, %v2954
  %v2956 = vpop.f32.mrf.mxu0
  %v2957 = vadd.f32 %v2868, %v2956
  %2958 = vmatmul.bf16.gmra.mxu0 %v1746
  %v2959 = vpop.f32.mrf.mxu0
  %v2960 = vadd.f32 %v2871, %v2959
  %v2961 = vpop.f32.mrf.mxu0
  %v2962 = vadd.f32 %v2873, %v2961
  %2963 = vmatmul.bf16.gmra.mxu0 %v1755
  %v2964 = vpop.f32.mrf.mxu0
  %v2965 = vadd.f32 %v2876, %v2964
  %v2966 = vpop.f32.mrf.mxu0
  %v2967 = vadd.f32 %v2878, %v2966
  %2968 = vmatmul.bf16.gmra.mxu0 %v1764
  %v2969 = vpop.f32.mrf.mxu0
  %v2970 = vadd.f32 %v2881, %v2969
  %v2971 = vpop.f32.mrf.mxu0
  %v2972 = vadd.f32 %v2883, %v2971
  %2973 = vmatmul.bf16.gmra.mxu0 %v1773
  %v2974 = vpop.f32.mrf.mxu0
  %v2975 = vadd.f32 %v2886, %v2974
  %v2976 = vpop.f32.mrf.mxu0
  %v2977 = vadd.f32 %v2888, %v2976
  %2978 = vmatmul.bf16.gmra.mxu0 %v1782
  %v2979 = vpop.f32.mrf.mxu0
  %v2980 = vadd.f32 %v2891, %v2979
  %v2981 = vpop.f32.mrf.mxu0
  %v2982 = vadd.f32 %v2893, %v2981
  %2983 = vdwg.mxu0
  %2984 = vmatpush.bf16.msra.mxu0 %v2280
  %2985 = vmatpush.bf16.msra.mxu0 %v2279
  %2986 = vmatpush.bf16.msra.mxu0 %v2278
  %2987 = vmatpush.bf16.msra.mxu0 %v2277
  %2988 = vmatpush.bf16.msra.mxu0 %v2276
  %2989 = vmatpush.bf16.msra.mxu0 %v2275
  %2990 = vmatpush.bf16.msra.mxu0 %v2274
  %2991 = vmatpush.bf16.msra.mxu0 %v2273
  %2992 = vmatmul.bf16.gmra.mxu0 %v1648
  %v2993 = vpop.f32.mrf.mxu0
  %v2994 = vadd.f32 %v2905, %v2993
  %v2995 = vpop.f32.mrf.mxu0
  %v2996 = vadd.f32 %v2907, %v2995
  %2997 = vmatmul.bf16.gmra.mxu0 %v1657
  %v2998 = vpop.f32.mrf.mxu0
  %v2999 = vadd.f32 %v2910, %v2998
  %v3000 = vpop.f32.mrf.mxu0
  %v3001 = vadd.f32 %v2912, %v3000
  %3002 = vmatmul.bf16.gmra.mxu0 %v1666
  %v3003 = vpop.f32.mrf.mxu0
  %v3004 = vadd.f32 %v2915, %v3003
  %v3005 = vpop.f32.mrf.mxu0
  %v3006 = vadd.f32 %v2917, %v3005
  %3007 = vmatmul.bf16.gmra.mxu0 %v1675
  %v3008 = vpop.f32.mrf.mxu0
  %v3009 = vadd.f32 %v2920, %v3008
  %v3010 = vpop.f32.mrf.mxu0
  %v3011 = vadd.f32 %v2922, %v3010
  %3012 = vmatmul.bf16.gmra.mxu0 %v1684
  %v3013 = vpop.f32.mrf.mxu0
  %v3014 = vadd.f32 %v2925, %v3013
  %v3015 = vpop.f32.mrf.mxu0
  %v3016 = vadd.f32 %v2927, %v3015
  %3017 = vmatmul.bf16.gmra.mxu0 %v1693
  %v3018 = vpop.f32.mrf.mxu0
  %v3019 = vadd.f32 %v2930, %v3018
  %v3020 = vpop.f32.mrf.mxu0
  %v3021 = vadd.f32 %v2932, %v3020
  %3022 = vmatmul.bf16.gmra.mxu0 %v1702
  %v3023 = vpop.f32.mrf.mxu0
  %v3024 = vadd.f32 %v2935, %v3023
  %v3025 = vpop.f32.mrf.mxu0
  %v3026 = vadd.f32 %v2937, %v3025
  %3027 = vmatmul.bf16.gmra.mxu0 %v1711
  %v3028 = vpop.f32.mrf.mxu0
  %v3029 = vadd.f32 %v2940, %v3028
  %v3030 = vpop.f32.mrf.mxu0
  %v3031 = vadd.f32 %v2942, %v3030
  %3032 = vmatmul.bf16.gmra.mxu0 %v1720
  %v3033 = vpop.f32.mrf.mxu0
  %v3034 = vadd.f32 %v2945, %v3033
  %v3035 = vpop.f32.mrf.mxu0
  %v3036 = vadd.f32 %v2947, %v3035
  %3037 = vmatmul.bf16.gmra.mxu0 %v1729
  %v3038 = vpop.f32.mrf.mxu0
  %v3039 = vadd.f32 %v2950, %v3038
  %v3040 = vpop.f32.mrf.mxu0
  %v3041 = vadd.f32 %v2952, %v3040
  %3042 = vmatmul.bf16.gmra.mxu0 %v1738
  %v3043 = vpop.f32.mrf.mxu0
  %v3044 = vadd.f32 %v2955, %v3043
  %v3045 = vpop.f32.mrf.mxu0
  %v3046 = vadd.f32 %v2957, %v3045
  %3047 = vmatmul.bf16.gmra.mxu0 %v1747
  %v3048 = vpop.f32.mrf.mxu0
  %v3049 = vadd.f32 %v2960, %v3048
  %v3050 = vpop.f32.mrf.mxu0
  %v3051 = vadd.f32 %v2962, %v3050
  %3052 = vmatmul.bf16.gmra.mxu0 %v1756
  %v3053 = vpop.f32.mrf.mxu0
  %v3054 = vadd.f32 %v2965, %v3053
  %v3055 = vpop.f32.mrf.mxu0
  %v3056 = vadd.f32 %v2967, %v3055
  %3057 = vmatmul.bf16.gmra.mxu0 %v1765
  %v3058 = vpop.f32.mrf.mxu0
  %v3059 = vadd.f32 %v2970, %v3058
  %v3060 = vpop.f32.mrf.mxu0
  %v3061 = vadd.f32 %v2972, %v3060
  %3062 = vmatmul.bf16.gmra.mxu0 %v1774
  %v3063 = vpop.f32.mrf.mxu0
  %v3064 = vadd.f32 %v2975, %v3063
  %v3065 = vpop.f32.mrf.mxu0
  %v3066 = vadd.f32 %v2977, %v3065
  %3067 = vmatmul.bf16.gmra.mxu0 %v1783
  %v3068 = vpop.f32.mrf.mxu0
  %v3069 = vadd.f32 %v2980, %v3068
  %v3070 = vpop.f32.mrf.mxu0
  %v3071 = vadd.f32 %v2982, %v3070
  %3072 = vdwg.mxu0
  %3073 = vmatpush.bf16.msra.mxu0 %v2288
  %3074 = vmatpush.bf16.msra.mxu0 %v2287
  %3075 = vmatpush.bf16.msra.mxu0 %v2286
  %3076 = vmatpush.bf16.msra.mxu0 %v2285
  %3077 = vmatpush.bf16.msra.mxu0 %v2284
  %3078 = vmatpush.bf16.msra.mxu0 %v2283
  %3079 = vmatpush.bf16.msra.mxu0 %v2282
  %3080 = vmatpush.bf16.msra.mxu0 %v2281
  %3081 = vmatmul.bf16.gmra.mxu0 %v1649
  %v3082 = vpop.f32.mrf.mxu0
  %v3083 = vadd.f32 %v2994, %v3082
  %v3084 = vpop.f32.mrf.mxu0
  %v3085 = vadd.f32 %v2996, %v3084
  %3086 = vmatmul.bf16.gmra.mxu0 %v1658
  %v3087 = vpop.f32.mrf.mxu0
  %v3088 = vadd.f32 %v2999, %v3087
  %v3089 = vpop.f32.mrf.mxu0
  %v3090 = vadd.f32 %v3001, %v3089
  %3091 = vmatmul.bf16.gmra.mxu0 %v1667
  %v3092 = vpop.f32.mrf.mxu0
  %v3093 = vadd.f32 %v3004, %v3092
  %v3094 = vpop.f32.mrf.mxu0
  %v3095 = vadd.f32 %v3006, %v3094
  %3096 = vmatmul.bf16.gmra.mxu0 %v1676
  %v3097 = vpop.f32.mrf.mxu0
  %v3098 = vadd.f32 %v3009, %v3097
  %v3099 = vpop.f32.mrf.mxu0
  %v3100 = vadd.f32 %v3011, %v3099
  %3101 = vmatmul.bf16.gmra.mxu0 %v1685
  %v3102 = vpop.f32.mrf.mxu0
  %v3103 = vadd.f32 %v3014, %v3102
  %v3104 = vpop.f32.mrf.mxu0
  %v3105 = vadd.f32 %v3016, %v3104
  %3106 = vmatmul.bf16.gmra.mxu0 %v1694
  %v3107 = vpop.f32.mrf.mxu0
  %v3108 = vadd.f32 %v3019, %v3107
  %v3109 = vpop.f32.mrf.mxu0
  %v3110 = vadd.f32 %v3021, %v3109
  %3111 = vmatmul.bf16.gmra.mxu0 %v1703
  %v3112 = vpop.f32.mrf.mxu0
  %v3113 = vadd.f32 %v3024, %v3112
  %v3114 = vpop.f32.mrf.mxu0
  %v3115 = vadd.f32 %v3026, %v3114
  %3116 = vmatmul.bf16.gmra.mxu0 %v1712
  %v3117 = vpop.f32.mrf.mxu0
  %v3118 = vadd.f32 %v3029, %v3117
  %v3119 = vpop.f32.mrf.mxu0
  %v3120 = vadd.f32 %v3031, %v3119
  %3121 = vmatmul.bf16.gmra.mxu0 %v1721
  %v3122 = vpop.f32.mrf.mxu0
  %v3123 = vadd.f32 %v3034, %v3122
  %v3124 = vpop.f32.mrf.mxu0
  %v3125 = vadd.f32 %v3036, %v3124
  %3126 = vmatmul.bf16.gmra.mxu0 %v1730
  %v3127 = vpop.f32.mrf.mxu0
  %v3128 = vadd.f32 %v3039, %v3127
  %v3129 = vpop.f32.mrf.mxu0
  %v3130 = vadd.f32 %v3041, %v3129
  %3131 = vmatmul.bf16.gmra.mxu0 %v1739
  %v3132 = vpop.f32.mrf.mxu0
  %v3133 = vadd.f32 %v3044, %v3132
  %v3134 = vpop.f32.mrf.mxu0
  %v3135 = vadd.f32 %v3046, %v3134
  %3136 = vmatmul.bf16.gmra.mxu0 %v1748
  %v3137 = vpop.f32.mrf.mxu0
  %v3138 = vadd.f32 %v3049, %v3137
  %v3139 = vpop.f32.mrf.mxu0
  %v3140 = vadd.f32 %v3051, %v3139
  %3141 = vmatmul.bf16.gmra.mxu0 %v1757
  %v3142 = vpop.f32.mrf.mxu0
  %v3143 = vadd.f32 %v3054, %v3142
  %v3144 = vpop.f32.mrf.mxu0
  %v3145 = vadd.f32 %v3056, %v3144
  %3146 = vmatmul.bf16.gmra.mxu0 %v1766
  %v3147 = vpop.f32.mrf.mxu0
  %v3148 = vadd.f32 %v3059, %v3147
  %v3149 = vpop.f32.mrf.mxu0
  %v3150 = vadd.f32 %v3061, %v3149
  %3151 = vmatmul.bf16.gmra.mxu0 %v1775
  %v3152 = vpop.f32.mrf.mxu0
  %v3153 = vadd.f32 %v3064, %v3152
  %v3154 = vpop.f32.mrf.mxu0
  %v3155 = vadd.f32 %v3066, %v3154
  %3156 = vmatmul.bf16.gmra.mxu0 %v1784
  %v3157 = vpop.f32.mrf.mxu0
  %v3158 = vadd.f32 %v3069, %v3157
  %v3159 = vpop.f32.mrf.mxu0
  %v3160 = vadd.f32 %v3071, %v3159
  %3161 = vdwg.mxu0
  %3162 = vxpose.xlu0.b32.start [1/16] %v3083, 128
  %3163 = vxpose.xlu0.b32.cont [2/16] %v3085, 128
  %3164 = vxpose.xlu0.b32.cont [3/16] %v3088, 128
  %3165 = vxpose.xlu0.b32.cont [4/16] %v3090, 128
  %3166 = vxpose.xlu0.b32.cont [5/16] %v3093, 128
  %3167 = vxpose.xlu0.b32.cont [6/16] %v3095, 128
  %3168 = vxpose.xlu0.b32.cont [7/16] %v3098, 128
  %3169 = vxpose.xlu0.b32.cont [8/16] %v3100, 128
  %3170 = vxpose.xlu0.b32.cont [9/16] %v3103, 128
  %3171 = vxpose.xlu0.b32.cont [10/16] %v3105, 128
  %3172 = vxpose.xlu0.b32.cont [11/16] %v3108, 128
  %3173 = vxpose.xlu0.b32.cont [12/16] %v3110, 128
  %3174 = vxpose.xlu0.b32.cont [13/16] %v3113, 128
  %3175 = vxpose.xlu0.b32.cont [14/16] %v3115, 128
  %3176 = vxpose.xlu0.b32.cont [15/16] %v3118, 128
  %3177 = vxpose.xlu0.b32.end [16/16] %v3120, 128
  %v3178 = vpop.trf.xlu0
  %v3179 = vpop.trf.xlu0
  %v3180 = vpop.trf.xlu0
  %v3181 = vpop.trf.xlu0
  %v3182 = vpop.trf.xlu0
  %v3183 = vpop.trf.xlu0
  %v3184 = vpop.trf.xlu0
  %v3185 = vpop.trf.xlu0
  %v3186 = vpop.trf.xlu0
  %v3187 = vpop.trf.xlu0
  %v3188 = vpop.trf.xlu0
  %v3189 = vpop.trf.xlu0
  %v3190 = vpop.trf.xlu0
  %v3191 = vpop.trf.xlu0
  %v3192 = vpop.trf.xlu0
  %v3193 = vpop.trf.xlu0
  %3194 = vxpose.xlu0.b32.start [1/16] %v3123, 128
  %3195 = vxpose.xlu0.b32.cont [2/16] %v3125, 128
  %3196 = vxpose.xlu0.b32.cont [3/16] %v3128, 128
  %3197 = vxpose.xlu0.b32.cont [4/16] %v3130, 128
  %3198 = vxpose.xlu0.b32.cont [5/16] %v3133, 128
  %3199 = vxpose.xlu0.b32.cont [6/16] %v3135, 128
  %3200 = vxpose.xlu0.b32.cont [7/16] %v3138, 128
  %3201 = vxpose.xlu0.b32.cont [8/16] %v3140, 128
  %3202 = vxpose.xlu0.b32.cont [9/16] %v3143, 128
  %3203 = vxpose.xlu0.b32.cont [10/16] %v3145, 128
  %3204 = vxpose.xlu0.b32.cont [11/16] %v3148, 128
  %3205 = vxpose.xlu0.b32.cont [12/16] %v3150, 128
  %3206 = vxpose.xlu0.b32.cont [13/16] %v3153, 128
  %3207 = vxpose.xlu0.b32.cont [14/16] %v3155, 128
  %3208 = vxpose.xlu0.b32.cont [15/16] %v3158, 128
  %3209 = vxpose.xlu0.b32.end [16/16] %v3160, 128
  %v3210 = vpop.trf.xlu0
  %v3211 = vpop.trf.xlu0
  %v3212 = vpop.trf.xlu0
  %v3213 = vpop.trf.xlu0
  %v3214 = vpop.trf.xlu0
  %v3215 = vpop.trf.xlu0
  %v3216 = vpop.trf.xlu0
  %v3217 = vpop.trf.xlu0
  %v3218 = vpop.trf.xlu0
  %v3219 = vpop.trf.xlu0
  %v3220 = vpop.trf.xlu0
  %v3221 = vpop.trf.xlu0
  %v3222 = vpop.trf.xlu0
  %v3223 = vpop.trf.xlu0
  %v3224 = vpop.trf.xlu0
  %v3225 = vpop.trf.xlu0
  %v3226 = vxor.u32 %v3178, 2147483648
  %v3227 = vxor.u32 %v3210, 2147483648
  %v3228 = vxor.u32 %v3179, 2147483648
  %v3229 = vxor.u32 %v3211, 2147483648
  %v3230 = vxor.u32 %v3180, 2147483648
  %v3231 = vxor.u32 %v3212, 2147483648
  %v3232 = vxor.u32 %v3181, 2147483648
  %v3233 = vxor.u32 %v3213, 2147483648
  %v3234 = vmul.f32 %v3226, 1.442695
  %v3235 = vpow.pop %v3234
  %v3236 = vmul.f32 %v3227, 1.442695
  %v3237 = vpow.pop %v3236
  %v3238 = vmul.f32 %v3228, 1.442695
  %v3239 = vpow.pop %v3238
  %v3240 = vmul.f32 %v3229, 1.442695
  %v3241 = vpow.pop %v3240
  %v3242 = vmul.f32 %v3230, 1.442695
  %v3243 = vpow.pop %v3242
  %v3244 = vmul.f32 %v3231, 1.442695
  %v3245 = vpow.pop %v3244
  %v3246 = vmul.f32 %v3232, 1.442695
  %v3247 = vpow.pop %v3246
  %v3248 = vmul.f32 %v3233, 1.442695
  %v3249 = vpow.pop %v3248
  %v3250 = vadd.f32 %v3235, 1.0
  %v3251 = vadd.f32 %v3237, 1.0
  %v3252 = vadd.f32 %v3239, 1.0
  %v3253 = vadd.f32 %v3241, 1.0
  %v3254 = vadd.f32 %v3243, 1.0
  %v3255 = vadd.f32 %v3245, 1.0
  %v3256 = vadd.f32 %v3247, 1.0
  %v3257 = vadd.f32 %v3249, 1.0
  %v3258 = vrcp.pop %v3250
  %v3259 = vmul.f32 %v3250, %v3258
  %v3260 = vsub.f32 1.0, %v3259
  %v3261 = vmul.f32 %v3258, %v3260
  %v3262 = vadd.f32 %v3258, %v3261
  %vm3263 = vweird.f32 %v3250
  %vm3264 = vweird.f32 %v3258
  %vm3265 = vmor %vm3263, %vm3264
  %v3266 = vsel %vm3265, %v3258, %v3262
  %v3267 = vand.u32 2147483647, %v3250
  %vm3268 = vcmp.eq.f32.partialorder %v3267, 8.507059e+37
  %v3269 = vand.u32 %v3250, 2147483648
  %v3270 = vor.u32 1.1754944e-38, %v3269
  %v3271 = vsel %vm3268, %v3270, %v3266
  %v3272 = vmul.f32 1.0, %v3271
  %v3273 = vrcp.pop %v3251
  %v3274 = vmul.f32 %v3251, %v3273
  %v3275 = vsub.f32 1.0, %v3274
  %v3276 = vmul.f32 %v3273, %v3275
  %v3277 = vadd.f32 %v3273, %v3276
  %vm3278 = vweird.f32 %v3251
  %vm3279 = vweird.f32 %v3273
  %vm3280 = vmor %vm3278, %vm3279
  %v3281 = vsel %vm3280, %v3273, %v3277
  %v3282 = vand.u32 2147483647, %v3251
  %vm3283 = vcmp.eq.f32.partialorder %v3282, 8.507059e+37
  %v3284 = vand.u32 %v3251, 2147483648
  %v3285 = vor.u32 1.1754944e-38, %v3284
  %v3286 = vsel %vm3283, %v3285, %v3281
  %v3287 = vmul.f32 1.0, %v3286
  %v3288 = vrcp.pop %v3252
  %v3289 = vmul.f32 %v3252, %v3288
  %v3290 = vsub.f32 1.0, %v3289
  %v3291 = vmul.f32 %v3288, %v3290
  %v3292 = vadd.f32 %v3288, %v3291
  %vm3293 = vweird.f32 %v3252
  %vm3294 = vweird.f32 %v3288
  %vm3295 = vmor %vm3293, %vm3294
  %v3296 = vsel %vm3295, %v3288, %v3292
  %v3297 = vand.u32 2147483647, %v3252
  %vm3298 = vcmp.eq.f32.partialorder %v3297, 8.507059e+37
  %v3299 = vand.u32 %v3252, 2147483648
  %v3300 = vor.u32 1.1754944e-38, %v3299
  %v3301 = vsel %vm3298, %v3300, %v3296
  %v3302 = vmul.f32 1.0, %v3301
  %v3303 = vrcp.pop %v3253
  %v3304 = vmul.f32 %v3253, %v3303
  %v3305 = vsub.f32 1.0, %v3304
  %v3306 = vmul.f32 %v3303, %v3305
  %v3307 = vadd.f32 %v3303, %v3306
  %vm3308 = vweird.f32 %v3253
  %vm3309 = vweird.f32 %v3303
  %vm3310 = vmor %vm3308, %vm3309
  %v3311 = vsel %vm3310, %v3303, %v3307
  %v3312 = vand.u32 2147483647, %v3253
  %vm3313 = vcmp.eq.f32.partialorder %v3312, 8.507059e+37
  %v3314 = vand.u32 %v3253, 2147483648
  %v3315 = vor.u32 1.1754944e-38, %v3314
  %v3316 = vsel %vm3313, %v3315, %v3311
  %v3317 = vmul.f32 1.0, %v3316
  %v3318 = vrcp.pop %v3254
  %v3319 = vmul.f32 %v3254, %v3318
  %v3320 = vsub.f32 1.0, %v3319
  %v3321 = vmul.f32 %v3318, %v3320
  %v3322 = vadd.f32 %v3318, %v3321
  %vm3323 = vweird.f32 %v3254
  %vm3324 = vweird.f32 %v3318
  %vm3325 = vmor %vm3323, %vm3324
  %v3326 = vsel %vm3325, %v3318, %v3322
  %v3327 = vand.u32 2147483647, %v3254
  %vm3328 = vcmp.eq.f32.partialorder %v3327, 8.507059e+37
  %v3329 = vand.u32 %v3254, 2147483648
  %v3330 = vor.u32 1.1754944e-38, %v3329
  %v3331 = vsel %vm3328, %v3330, %v3326
  %v3332 = vmul.f32 1.0, %v3331
  %v3333 = vrcp.pop %v3255
  %v3334 = vmul.f32 %v3255, %v3333
  %v3335 = vsub.f32 1.0, %v3334
  %v3336 = vmul.f32 %v3333, %v3335
  %v3337 = vadd.f32 %v3333, %v3336
  %vm3338 = vweird.f32 %v3255
  %vm3339 = vweird.f32 %v3333
  %vm3340 = vmor %vm3338, %vm3339
  %v3341 = vsel %vm3340, %v3333, %v3337
  %v3342 = vand.u32 2147483647, %v3255
  %vm3343 = vcmp.eq.f32.partialorder %v3342, 8.507059e+37
  %v3344 = vand.u32 %v3255, 2147483648
  %v3345 = vor.u32 1.1754944e-38, %v3344
  %v3346 = vsel %vm3343, %v3345, %v3341
  %v3347 = vmul.f32 1.0, %v3346
  %v3348 = vrcp.pop %v3256
  %v3349 = vmul.f32 %v3256, %v3348
  %v3350 = vsub.f32 1.0, %v3349
  %v3351 = vmul.f32 %v3348, %v3350
  %v3352 = vadd.f32 %v3348, %v3351
  %vm3353 = vweird.f32 %v3256
  %vm3354 = vweird.f32 %v3348
  %vm3355 = vmor %vm3353, %vm3354
  %v3356 = vsel %vm3355, %v3348, %v3352
  %v3357 = vand.u32 2147483647, %v3256
  %vm3358 = vcmp.eq.f32.partialorder %v3357, 8.507059e+37
  %v3359 = vand.u32 %v3256, 2147483648
  %v3360 = vor.u32 1.1754944e-38, %v3359
  %v3361 = vsel %vm3358, %v3360, %v3356
  %v3362 = vmul.f32 1.0, %v3361
  %v3363 = vrcp.pop %v3257
  %v3364 = vmul.f32 %v3257, %v3363
  %v3365 = vsub.f32 1.0, %v3364
  %v3366 = vmul.f32 %v3363, %v3365
  %v3367 = vadd.f32 %v3363, %v3366
  %vm3368 = vweird.f32 %v3257
  %vm3369 = vweird.f32 %v3363
  %vm3370 = vmor %vm3368, %vm3369
  %v3371 = vsel %vm3370, %v3363, %v3367
  %v3372 = vand.u32 2147483647, %v3257
  %vm3373 = vcmp.eq.f32.partialorder %v3372, 8.507059e+37
  %v3374 = vand.u32 %v3257, 2147483648
  %v3375 = vor.u32 1.1754944e-38, %v3374
  %v3376 = vsel %vm3373, %v3375, %v3371
  %v3377 = vmul.f32 1.0, %v3376
  %v3378 = vxor.u32 %v3182, 2147483648
  %v3379 = vxor.u32 %v3214, 2147483648
  %v3380 = vxor.u32 %v3183, 2147483648
  %v3381 = vxor.u32 %v3215, 2147483648
  %v3382 = vxor.u32 %v3184, 2147483648
  %v3383 = vxor.u32 %v3216, 2147483648
  %v3384 = vxor.u32 %v3185, 2147483648
  %v3385 = vxor.u32 %v3217, 2147483648
  %v3386 = vmul.f32 %v3378, 1.442695
  %v3387 = vpow.pop %v3386
  %v3388 = vmul.f32 %v3379, 1.442695
  %v3389 = vpow.pop %v3388
  %v3390 = vmul.f32 %v3380, 1.442695
  %v3391 = vpow.pop %v3390
  %v3392 = vmul.f32 %v3381, 1.442695
  %v3393 = vpow.pop %v3392
  %v3394 = vmul.f32 %v3382, 1.442695
  %v3395 = vpow.pop %v3394
  %v3396 = vmul.f32 %v3383, 1.442695
  %v3397 = vpow.pop %v3396
  %v3398 = vmul.f32 %v3384, 1.442695
  %v3399 = vpow.pop %v3398
  %v3400 = vmul.f32 %v3385, 1.442695
  %v3401 = vpow.pop %v3400
  %v3402 = vadd.f32 %v3387, 1.0
  %v3403 = vadd.f32 %v3389, 1.0
  %v3404 = vadd.f32 %v3391, 1.0
  %v3405 = vadd.f32 %v3393, 1.0
  %v3406 = vadd.f32 %v3395, 1.0
  %v3407 = vadd.f32 %v3397, 1.0
  %v3408 = vadd.f32 %v3399, 1.0
  %v3409 = vadd.f32 %v3401, 1.0
  %v3410 = vrcp.pop %v3402
  %v3411 = vmul.f32 %v3402, %v3410
  %v3412 = vsub.f32 1.0, %v3411
  %v3413 = vmul.f32 %v3410, %v3412
  %v3414 = vadd.f32 %v3410, %v3413
  %vm3415 = vweird.f32 %v3402
  %vm3416 = vweird.f32 %v3410
  %vm3417 = vmor %vm3415, %vm3416
  %v3418 = vsel %vm3417, %v3410, %v3414
  %v3419 = vand.u32 2147483647, %v3402
  %vm3420 = vcmp.eq.f32.partialorder %v3419, 8.507059e+37
  %v3421 = vand.u32 %v3402, 2147483648
  %v3422 = vor.u32 1.1754944e-38, %v3421
  %v3423 = vsel %vm3420, %v3422, %v3418
  %v3424 = vmul.f32 1.0, %v3423
  %v3425 = vrcp.pop %v3403
  %v3426 = vmul.f32 %v3403, %v3425
  %v3427 = vsub.f32 1.0, %v3426
  %v3428 = vmul.f32 %v3425, %v3427
  %v3429 = vadd.f32 %v3425, %v3428
  %vm3430 = vweird.f32 %v3403
  %vm3431 = vweird.f32 %v3425
  %vm3432 = vmor %vm3430, %vm3431
  %v3433 = vsel %vm3432, %v3425, %v3429
  %v3434 = vand.u32 2147483647, %v3403
  %vm3435 = vcmp.eq.f32.partialorder %v3434, 8.507059e+37
  %v3436 = vand.u32 %v3403, 2147483648
  %v3437 = vor.u32 1.1754944e-38, %v3436
  %v3438 = vsel %vm3435, %v3437, %v3433
  %v3439 = vmul.f32 1.0, %v3438
  %v3440 = vrcp.pop %v3404
  %v3441 = vmul.f32 %v3404, %v3440
  %v3442 = vsub.f32 1.0, %v3441
  %v3443 = vmul.f32 %v3440, %v3442
  %v3444 = vadd.f32 %v3440, %v3443
  %vm3445 = vweird.f32 %v3404
  %vm3446 = vweird.f32 %v3440
  %vm3447 = vmor %vm3445, %vm3446
  %v3448 = vsel %vm3447, %v3440, %v3444
  %v3449 = vand.u32 2147483647, %v3404
  %vm3450 = vcmp.eq.f32.partialorder %v3449, 8.507059e+37
  %v3451 = vand.u32 %v3404, 2147483648
  %v3452 = vor.u32 1.1754944e-38, %v3451
  %v3453 = vsel %vm3450, %v3452, %v3448
  %v3454 = vmul.f32 1.0, %v3453
  %v3455 = vrcp.pop %v3405
  %v3456 = vmul.f32 %v3405, %v3455
  %v3457 = vsub.f32 1.0, %v3456
  %v3458 = vmul.f32 %v3455, %v3457
  %v3459 = vadd.f32 %v3455, %v3458
  %vm3460 = vweird.f32 %v3405
  %vm3461 = vweird.f32 %v3455
  %vm3462 = vmor %vm3460, %vm3461
  %v3463 = vsel %vm3462, %v3455, %v3459
  %v3464 = vand.u32 2147483647, %v3405
  %vm3465 = vcmp.eq.f32.partialorder %v3464, 8.507059e+37
  %v3466 = vand.u32 %v3405, 2147483648
  %v3467 = vor.u32 1.1754944e-38, %v3466
  %v3468 = vsel %vm3465, %v3467, %v3463
  %v3469 = vmul.f32 1.0, %v3468
  %v3470 = vrcp.pop %v3406
  %v3471 = vmul.f32 %v3406, %v3470
  %v3472 = vsub.f32 1.0, %v3471
  %v3473 = vmul.f32 %v3470, %v3472
  %v3474 = vadd.f32 %v3470, %v3473
  %vm3475 = vweird.f32 %v3406
  %vm3476 = vweird.f32 %v3470
  %vm3477 = vmor %vm3475, %vm3476
  %v3478 = vsel %vm3477, %v3470, %v3474
  %v3479 = vand.u32 2147483647, %v3406
  %vm3480 = vcmp.eq.f32.partialorder %v3479, 8.507059e+37
  %v3481 = vand.u32 %v3406, 2147483648
  %v3482 = vor.u32 1.1754944e-38, %v3481
  %v3483 = vsel %vm3480, %v3482, %v3478
  %v3484 = vmul.f32 1.0, %v3483
  %v3485 = vrcp.pop %v3407
  %v3486 = vmul.f32 %v3407, %v3485
  %v3487 = vsub.f32 1.0, %v3486
  %v3488 = vmul.f32 %v3485, %v3487
  %v3489 = vadd.f32 %v3485, %v3488
  %vm3490 = vweird.f32 %v3407
  %vm3491 = vweird.f32 %v3485
  %vm3492 = vmor %vm3490, %vm3491
  %v3493 = vsel %vm3492, %v3485, %v3489
  %v3494 = vand.u32 2147483647, %v3407
  %vm3495 = vcmp.eq.f32.partialorder %v3494, 8.507059e+37
  %v3496 = vand.u32 %v3407, 2147483648
  %v3497 = vor.u32 1.1754944e-38, %v3496
  %v3498 = vsel %vm3495, %v3497, %v3493
  %v3499 = vmul.f32 1.0, %v3498
  %v3500 = vrcp.pop %v3408
  %v3501 = vmul.f32 %v3408, %v3500
  %v3502 = vsub.f32 1.0, %v3501
  %v3503 = vmul.f32 %v3500, %v3502
  %v3504 = vadd.f32 %v3500, %v3503
  %vm3505 = vweird.f32 %v3408
  %vm3506 = vweird.f32 %v3500
  %vm3507 = vmor %vm3505, %vm3506
  %v3508 = vsel %vm3507, %v3500, %v3504
  %v3509 = vand.u32 2147483647, %v3408
  %vm3510 = vcmp.eq.f32.partialorder %v3509, 8.507059e+37
  %v3511 = vand.u32 %v3408, 2147483648
  %v3512 = vor.u32 1.1754944e-38, %v3511
  %v3513 = vsel %vm3510, %v3512, %v3508
  %v3514 = vmul.f32 1.0, %v3513
  %v3515 = vrcp.pop %v3409
  %v3516 = vmul.f32 %v3409, %v3515
  %v3517 = vsub.f32 1.0, %v3516
  %v3518 = vmul.f32 %v3515, %v3517
  %v3519 = vadd.f32 %v3515, %v3518
  %vm3520 = vweird.f32 %v3409
  %vm3521 = vweird.f32 %v3515
  %vm3522 = vmor %vm3520, %vm3521
  %v3523 = vsel %vm3522, %v3515, %v3519
  %v3524 = vand.u32 2147483647, %v3409
  %vm3525 = vcmp.eq.f32.partialorder %v3524, 8.507059e+37
  %v3526 = vand.u32 %v3409, 2147483648
  %v3527 = vor.u32 1.1754944e-38, %v3526
  %v3528 = vsel %vm3525, %v3527, %v3523
  %v3529 = vmul.f32 1.0, %v3528
  %v3530 = vxor.u32 %v3186, 2147483648
  %v3531 = vxor.u32 %v3218, 2147483648
  %v3532 = vxor.u32 %v3187, 2147483648
  %v3533 = vxor.u32 %v3219, 2147483648
  %v3534 = vxor.u32 %v3188, 2147483648
  %v3535 = vxor.u32 %v3220, 2147483648
  %v3536 = vxor.u32 %v3189, 2147483648
  %v3537 = vxor.u32 %v3221, 2147483648
  %v3538 = vmul.f32 %v3530, 1.442695
  %v3539 = vpow.pop %v3538
  %v3540 = vmul.f32 %v3531, 1.442695
  %v3541 = vpow.pop %v3540
  %v3542 = vmul.f32 %v3532, 1.442695
  %v3543 = vpow.pop %v3542
  %v3544 = vmul.f32 %v3533, 1.442695
  %v3545 = vpow.pop %v3544
  %v3546 = vmul.f32 %v3534, 1.442695
  %v3547 = vpow.pop %v3546
  %v3548 = vmul.f32 %v3535, 1.442695
  %v3549 = vpow.pop %v3548
  %v3550 = vmul.f32 %v3536, 1.442695
  %v3551 = vpow.pop %v3550
  %v3552 = vmul.f32 %v3537, 1.442695
  %v3553 = vpow.pop %v3552
  %v3554 = vadd.f32 %v3539, 1.0
  %v3555 = vadd.f32 %v3541, 1.0
  %v3556 = vadd.f32 %v3543, 1.0
  %v3557 = vadd.f32 %v3545, 1.0
  %v3558 = vadd.f32 %v3547, 1.0
  %v3559 = vadd.f32 %v3549, 1.0
  %v3560 = vadd.f32 %v3551, 1.0
  %v3561 = vadd.f32 %v3553, 1.0
  %v3562 = vrcp.pop %v3554
  %v3563 = vmul.f32 %v3554, %v3562
  %v3564 = vsub.f32 1.0, %v3563
  %v3565 = vmul.f32 %v3562, %v3564
  %v3566 = vadd.f32 %v3562, %v3565
  %vm3567 = vweird.f32 %v3554
  %vm3568 = vweird.f32 %v3562
  %vm3569 = vmor %vm3567, %vm3568
  %v3570 = vsel %vm3569, %v3562, %v3566
  %v3571 = vand.u32 2147483647, %v3554
  %vm3572 = vcmp.eq.f32.partialorder %v3571, 8.507059e+37
  %v3573 = vand.u32 %v3554, 2147483648
  %v3574 = vor.u32 1.1754944e-38, %v3573
  %v3575 = vsel %vm3572, %v3574, %v3570
  %v3576 = vmul.f32 1.0, %v3575
  %v3577 = vrcp.pop %v3555
  %v3578 = vmul.f32 %v3555, %v3577
  %v3579 = vsub.f32 1.0, %v3578
  %v3580 = vmul.f32 %v3577, %v3579
  %v3581 = vadd.f32 %v3577, %v3580
  %vm3582 = vweird.f32 %v3555
  %vm3583 = vweird.f32 %v3577
  %vm3584 = vmor %vm3582, %vm3583
  %v3585 = vsel %vm3584, %v3577, %v3581
  %v3586 = vand.u32 2147483647, %v3555
  %vm3587 = vcmp.eq.f32.partialorder %v3586, 8.507059e+37
  %v3588 = vand.u32 %v3555, 2147483648
  %v3589 = vor.u32 1.1754944e-38, %v3588
  %v3590 = vsel %vm3587, %v3589, %v3585
  %v3591 = vmul.f32 1.0, %v3590
  %v3592 = vrcp.pop %v3556
  %v3593 = vmul.f32 %v3556, %v3592
  %v3594 = vsub.f32 1.0, %v3593
  %v3595 = vmul.f32 %v3592, %v3594
  %v3596 = vadd.f32 %v3592, %v3595
  %vm3597 = vweird.f32 %v3556
  %vm3598 = vweird.f32 %v3592
  %vm3599 = vmor %vm3597, %vm3598
  %v3600 = vsel %vm3599, %v3592, %v3596
  %v3601 = vand.u32 2147483647, %v3556
  %vm3602 = vcmp.eq.f32.partialorder %v3601, 8.507059e+37
  %v3603 = vand.u32 %v3556, 2147483648
  %v3604 = vor.u32 1.1754944e-38, %v3603
  %v3605 = vsel %vm3602, %v3604, %v3600
  %v3606 = vmul.f32 1.0, %v3605
  %v3607 = vrcp.pop %v3557
  %v3608 = vmul.f32 %v3557, %v3607
  %v3609 = vsub.f32 1.0, %v3608
  %v3610 = vmul.f32 %v3607, %v3609
  %v3611 = vadd.f32 %v3607, %v3610
  %vm3612 = vweird.f32 %v3557
  %vm3613 = vweird.f32 %v3607
  %vm3614 = vmor %vm3612, %vm3613
  %v3615 = vsel %vm3614, %v3607, %v3611
  %v3616 = vand.u32 2147483647, %v3557
  %vm3617 = vcmp.eq.f32.partialorder %v3616, 8.507059e+37
  %v3618 = vand.u32 %v3557, 2147483648
  %v3619 = vor.u32 1.1754944e-38, %v3618
  %v3620 = vsel %vm3617, %v3619, %v3615
  %v3621 = vmul.f32 1.0, %v3620
  %v3622 = vrcp.pop %v3558
  %v3623 = vmul.f32 %v3558, %v3622
  %v3624 = vsub.f32 1.0, %v3623
  %v3625 = vmul.f32 %v3622, %v3624
  %v3626 = vadd.f32 %v3622, %v3625
  %vm3627 = vweird.f32 %v3558
  %vm3628 = vweird.f32 %v3622
  %vm3629 = vmor %vm3627, %vm3628
  %v3630 = vsel %vm3629, %v3622, %v3626
  %v3631 = vand.u32 2147483647, %v3558
  %vm3632 = vcmp.eq.f32.partialorder %v3631, 8.507059e+37
  %v3633 = vand.u32 %v3558, 2147483648
  %v3634 = vor.u32 1.1754944e-38, %v3633
  %v3635 = vsel %vm3632, %v3634, %v3630
  %v3636 = vmul.f32 1.0, %v3635
  %v3637 = vrcp.pop %v3559
  %v3638 = vmul.f32 %v3559, %v3637
  %v3639 = vsub.f32 1.0, %v3638
  %v3640 = vmul.f32 %v3637, %v3639
  %v3641 = vadd.f32 %v3637, %v3640
  %vm3642 = vweird.f32 %v3559
  %vm3643 = vweird.f32 %v3637
  %vm3644 = vmor %vm3642, %vm3643
  %v3645 = vsel %vm3644, %v3637, %v3641
  %v3646 = vand.u32 2147483647, %v3559
  %vm3647 = vcmp.eq.f32.partialorder %v3646, 8.507059e+37
  %v3648 = vand.u32 %v3559, 2147483648
  %v3649 = vor.u32 1.1754944e-38, %v3648
  %v3650 = vsel %vm3647, %v3649, %v3645
  %v3651 = vmul.f32 1.0, %v3650
  %v3652 = vrcp.pop %v3560
  %v3653 = vmul.f32 %v3560, %v3652
  %v3654 = vsub.f32 1.0, %v3653
  %v3655 = vmul.f32 %v3652, %v3654
  %v3656 = vadd.f32 %v3652, %v3655
  %vm3657 = vweird.f32 %v3560
  %vm3658 = vweird.f32 %v3652
  %vm3659 = vmor %vm3657, %vm3658
  %v3660 = vsel %vm3659, %v3652, %v3656
  %v3661 = vand.u32 2147483647, %v3560
  %vm3662 = vcmp.eq.f32.partialorder %v3661, 8.507059e+37
  %v3663 = vand.u32 %v3560, 2147483648
  %v3664 = vor.u32 1.1754944e-38, %v3663
  %v3665 = vsel %vm3662, %v3664, %v3660
  %v3666 = vmul.f32 1.0, %v3665
  %v3667 = vrcp.pop %v3561
  %v3668 = vmul.f32 %v3561, %v3667
  %v3669 = vsub.f32 1.0, %v3668
  %v3670 = vmul.f32 %v3667, %v3669
  %v3671 = vadd.f32 %v3667, %v3670
  %vm3672 = vweird.f32 %v3561
  %vm3673 = vweird.f32 %v3667
  %vm3674 = vmor %vm3672, %vm3673
  %v3675 = vsel %vm3674, %v3667, %v3671
  %v3676 = vand.u32 2147483647, %v3561
  %vm3677 = vcmp.eq.f32.partialorder %v3676, 8.507059e+37
  %v3678 = vand.u32 %v3561, 2147483648
  %v3679 = vor.u32 1.1754944e-38, %v3678
  %v3680 = vsel %vm3677, %v3679, %v3675
  %v3681 = vmul.f32 1.0, %v3680
  %v3682 = vtanh.pop %v3190
  %v3683 = vtanh.pop %v3222
  %v3684 = vtanh.pop %v3191
  %v3685 = vtanh.pop %v3223
  %v3686 = vtanh.pop %v3192
  %v3687 = vtanh.pop %v3224
  %v3688 = vtanh.pop %v3193
  %v3689 = vtanh.pop %v3225
  %v3690 = vld [vmem:[%s3] sm:$0xff]
  %v3691 = vld [vmem:[%s3 + $0x8] sm:$0xff]
  %v3692 = vld [vmem:[%s3 + $0x10] sm:$0xff]
  %v3693 = vld [vmem:[%s3 + $0x18] sm:$0xff]
  %v3694 = vld [vmem:[%s3 + $0x20] sm:$0xff]
  %v3695 = vld [vmem:[%s3 + $0x28] sm:$0xff]
  %v3696 = vld [vmem:[%s3 + $0x30] sm:$0xff]
  %v3697 = vld [vmem:[%s3 + $0x38] sm:$0xff]
  %v3698 = vmul.f32 %v3424, %v3690
  %v3699 = vmul.f32 %v3439, %v3691
  %v3700 = vmul.f32 %v3454, %v3692
  %v3701 = vmul.f32 %v3469, %v3693
  %v3702 = vmul.f32 %v3484, %v3694
  %v3703 = vmul.f32 %v3499, %v3695
  %v3704 = vmul.f32 %v3514, %v3696
  %v3705 = vmul.f32 %v3529, %v3697
  %v3706 = vmul.f32 %v3272, %v3682
  %v3707 = vmul.f32 %v3287, %v3683
  %v3708 = vmul.f32 %v3302, %v3684
  %v3709 = vmul.f32 %v3317, %v3685
  %v3710 = vmul.f32 %v3332, %v3686
  %v3711 = vmul.f32 %v3347, %v3687
  %v3712 = vmul.f32 %v3362, %v3688
  %v3713 = vmul.f32 %v3377, %v3689
  %v3714 = vadd.f32 %v3698, %v3706
  %v3715 = vadd.f32 %v3699, %v3707
  %v3716 = vadd.f32 %v3700, %v3708
  %v3717 = vadd.f32 %v3701, %v3709
  %v3718 = vadd.f32 %v3702, %v3710
  %v3719 = vadd.f32 %v3703, %v3711
  %v3720 = vadd.f32 %v3704, %v3712
  %v3721 = vadd.f32 %v3705, %v3713
  %v3722 = vtanh.pop %v3714
  %v3723 = vtanh.pop %v3715
  %v3724 = vtanh.pop %v3716
  %v3725 = vtanh.pop %v3717
  %v3726 = vtanh.pop %v3718
  %v3727 = vtanh.pop %v3719
  %v3728 = vtanh.pop %v3720
  %v3729 = vtanh.pop %v3721
  %v3730 = vmul.f32 %v3576, %v3722
  %v3731 = vmul.f32 %v3591, %v3723
  %v3732 = vmul.f32 %v3606, %v3724
  %v3733 = vmul.f32 %v3621, %v3725
  %v3734 = vmul.f32 %v3636, %v3726
  %v3735 = vmul.f32 %v3651, %v3727
  %v3736 = vmul.f32 %v3666, %v3728
  %v3737 = vmul.f32 %v3681, %v3729
  %3738 = vst [vmem:[%s4] sm:$0xff] %v3730
  %3739 = vst [vmem:[%s4 + $0x8] sm:$0xff] %v3731
  %3740 = vst [vmem:[%s4 + $0x10] sm:$0xff] %v3732
  %3741 = vst [vmem:[%s4 + $0x18] sm:$0xff] %v3733
  %3742 = vst [vmem:[%s4 + $0x20] sm:$0xff] %v3734
  %3743 = vst [vmem:[%s4 + $0x28] sm:$0xff] %v3735
  %3744 = vst [vmem:[%s4 + $0x30] sm:$0xff] %v3736
  %3745 = vst [vmem:[%s4 + $0x38] sm:$0xff] %v3737
  %3746 = vst [vmem:[%s5] sm:$0xff] %v3714
  %3747 = vst [vmem:[%s5 + $0x8] sm:$0xff] %v3715
  %3748 = vst [vmem:[%s5 + $0x10] sm:$0xff] %v3716
  %3749 = vst [vmem:[%s5 + $0x18] sm:$0xff] %v3717
  %3750 = vst [vmem:[%s5 + $0x20] sm:$0xff] %v3718
  %3751 = vst [vmem:[%s5 + $0x28] sm:$0xff] %v3719
  %3752 = vst [vmem:[%s5 + $0x30] sm:$0xff] %v3720
  %3753 = vst [vmem:[%s5 + $0x38] sm:$0xff] %v3721
  %s3754 = scalar_lea.vmem %s0, 432
  %v3755 = vld [vmem:[%s3754] sm:$0xff]
  %v3756 = vld [vmem:[%s3754 + $0x8] sm:$0xff]
  %v3757 = vld [vmem:[%s3754 + $0x18] sm:$0xff]
  %v3758 = vld [vmem:[%s3754 + $0x20] sm:$0xff]
  %v3759 = vld [vmem:[%s3754 + $0x30] sm:$0xff]
  %v3760 = vld [vmem:[%s3754 + $0x38] sm:$0xff]
  %v3761 = vld [vmem:[%s3754 + $0x48] sm:$0xff]
  %v3762 = vld [vmem:[%s3754 + $0x50] sm:$0xff]
  %v3763 = vld [vmem:[%s3754 + $0x60] sm:$0xff]
  %v3764 = vld [vmem:[%s3754 + $0x68] sm:$0xff]
  %v3765 = vld [vmem:[%s3754 + $0x78] sm:$0xff]
  %v3766 = vld [vmem:[%s3754 + $0x80] sm:$0xff]
  %v3767 = vld [vmem:[%s3754 + $0x90] sm:$0xff]
  %v3768 = vld [vmem:[%s3754 + $0x98] sm:$0xff]
  %v3769 = vld [vmem:[%s3754 + $0xa8] sm:$0xff]
  %v3770 = vld [vmem:[%s3754 + $0xb0] sm:$0xff]
  %v3771 = vld [vmem:[%s3754 + $0xc0] sm:$0xff]
  %v3772 = vld [vmem:[%s3754 + $0xc8] sm:$0xff]
  %v3773 = vld [vmem:[%s3754 + $0xd8] sm:$0xff]
  %v3774 = vld [vmem:[%s3754 + $0xe0] sm:$0xff]
  %v3775 = vld [vmem:[%s3754 + $0xf0] sm:$0xff]
  %v3776 = vld [vmem:[%s3754 + $0xf8] sm:$0xff]
  %v3777 = vld [vmem:[%s3754 + $0x108] sm:$0xff]
  %v3778 = vld [vmem:[%s3754 + $0x110] sm:$0xff]
  %v3779 = vld [vmem:[%s3754 + $0x120] sm:$0xff]
  %v3780 = vld [vmem:[%s3754 + $0x128] sm:$0xff]
  %v3781 = vld [vmem:[%s3754 + $0x138] sm:$0xff]
  %v3782 = vld [vmem:[%s3754 + $0x140] sm:$0xff]
  %v3783 = vld [vmem:[%s3754 + $0x150] sm:$0xff]
  %v3784 = vld [vmem:[%s3754 + $0x158] sm:$0xff]
  %v3785 = vld [vmem:[%s3754 + $0x168] sm:$0xff]
  %v3786 = vld [vmem:[%s3754 + $0x170] sm:$0xff]
  %v3787 = vpack.c.bf16 %v3755, %v3755
  %v3788 = vpack.c.bf16 %v3756, %v3756
  %v3789 = vpack.c.bf16 %v3757, %v3757
  %v3790 = vpack.c.bf16 %v3758, %v3758
  %v3791 = vpack.c.bf16 %v3759, %v3759
  %v3792 = vpack.c.bf16 %v3760, %v3760
  %v3793 = vpack.c.bf16 %v3761, %v3761
  %v3794 = vpack.c.bf16 %v3762, %v3762
  %v3795 = vpack.c.bf16 %v3763, %v3763
  %v3796 = vpack.c.bf16 %v3764, %v3764
  %v3797 = vpack.c.bf16 %v3765, %v3765
  %v3798 = vpack.c.bf16 %v3766, %v3766
  %v3799 = vpack.c.bf16 %v3767, %v3767
  %v3800 = vpack.c.bf16 %v3768, %v3768
  %v3801 = vpack.c.bf16 %v3769, %v3769
  %v3802 = vpack.c.bf16 %v3770, %v3770
  %v3803 = vpack.c.bf16 %v3771, %v3771
  %v3804 = vpack.c.bf16 %v3772, %v3772
  %v3805 = vpack.c.bf16 %v3773, %v3773
  %v3806 = vpack.c.bf16 %v3774, %v3774
  %v3807 = vpack.c.bf16 %v3775, %v3775
  %v3808 = vpack.c.bf16 %v3776, %v3776
  %v3809 = vpack.c.bf16 %v3777, %v3777
  %v3810 = vpack.c.bf16 %v3778, %v3778
  %v3811 = vpack.c.bf16 %v3779, %v3779
  %v3812 = vpack.c.bf16 %v3780, %v3780
  %v3813 = vpack.c.bf16 %v3781, %v3781
  %v3814 = vpack.c.bf16 %v3782, %v3782
  %v3815 = vpack.c.bf16 %v3783, %v3783
  %v3816 = vpack.c.bf16 %v3784, %v3784
  %v3817 = vpack.c.bf16 %v3785, %v3785
  %v3818 = vpack.c.bf16 %v3786, %v3786
  %3819 = vst [vmem:[#allocation2] sm:$0xf] %v3787
  %3820 = vst [vmem:[#allocation2 + $0x24] sm:$0xf] %v3788
  %3821 = vst [vmem:[#allocation2 + $0x48] sm:$0xf] %v3789
  %3822 = vst [vmem:[#allocation2 + $0x6c] sm:$0xf] %v3790
  %3823 = vst [vmem:[#allocation2 + $0x90] sm:$0xf] %v3791
  %3824 = vst [vmem:[#allocation2 + $0xb4] sm:$0xf] %v3792
  %3825 = vst [vmem:[#allocation2 + $0xd8] sm:$0xf] %v3793
  %3826 = vst [vmem:[#allocation2 + $0xfc] sm:$0xf] %v3794
  %3827 = vst [vmem:[#allocation2 + $0x120] sm:$0xf] %v3795
  %3828 = vst [vmem:[#allocation2 + $0x144] sm:$0xf] %v3796
  %3829 = vst [vmem:[#allocation2 + $0x168] sm:$0xf] %v3797
  %3830 = vst [vmem:[#allocation2 + $0x18c] sm:$0xf] %v3798
  %3831 = vst [vmem:[#allocation2 + $0x1b0] sm:$0xf] %v3799
  %3832 = vst [vmem:[#allocation2 + $0x1d4] sm:$0xf] %v3800
  %3833 = vst [vmem:[#allocation2 + $0x1f8] sm:$0xf] %v3801
  %3834 = vst [vmem:[#allocation2 + $0x21c] sm:$0xf] %v3802
  %3835 = vst [vmem:[#allocation2 + $0x240] sm:$0xf] %v3803
  %3836 = vst [vmem:[#allocation2 + $0x264] sm:$0xf] %v3804
  %3837 = vst [vmem:[#allocation2 + $0x288] sm:$0xf] %v3805
  %3838 = vst [vmem:[#allocation2 + $0x2ac] sm:$0xf] %v3806
  %3839 = vst [vmem:[#allocation2 + $0x2d0] sm:$0xf] %v3807
  %3840 = vst [vmem:[#allocation2 + $0x2f4] sm:$0xf] %v3808
  %3841 = vst [vmem:[#allocation2 + $0x318] sm:$0xf] %v3809
  %3842 = vst [vmem:[#allocation2 + $0x33c] sm:$0xf] %v3810
  %3843 = vst [vmem:[#allocation2 + $0x360] sm:$0xf] %v3811
  %3844 = vst [vmem:[#allocation2 + $0x384] sm:$0xf] %v3812
  %3845 = vst [vmem:[#allocation2 + $0x3a8] sm:$0xf] %v3813
  %3846 = vst [vmem:[#allocation2 + $0x3cc] sm:$0xf] %v3814
  %3847 = vst [vmem:[#allocation2 + $0x3f0] sm:$0xf] %v3815
  %3848 = vst [vmem:[#allocation2 + $0x414] sm:$0xf] %v3816
  %3849 = vst [vmem:[#allocation2 + $0x438] sm:$0xf] %v3817
  %3850 = vst [vmem:[#allocation2 + $0x45c] sm:$0xf] %v3818
  %v3851 = vld [vmem:[%s3754 + $0x1] sm:$0xff]
  %v3852 = vld [vmem:[%s3754 + $0x9] sm:$0xff]
  %v3853 = vld [vmem:[%s3754 + $0x19] sm:$0xff]
  %v3854 = vld [vmem:[%s3754 + $0x21] sm:$0xff]
  %v3855 = vld [vmem:[%s3754 + $0x31] sm:$0xff]
  %v3856 = vld [vmem:[%s3754 + $0x39] sm:$0xff]
  %v3857 = vld [vmem:[%s3754 + $0x49] sm:$0xff]
  %v3858 = vld [vmem:[%s3754 + $0x51] sm:$0xff]
  %v3859 = vld [vmem:[%s3754 + $0x61] sm:$0xff]
  %v3860 = vld [vmem:[%s3754 + $0x69] sm:$0xff]
  %v3861 = vld [vmem:[%s3754 + $0x79] sm:$0xff]
  %v3862 = vld [vmem:[%s3754 + $0x81] sm:$0xff]
  %v3863 = vld [vmem:[%s3754 + $0x91] sm:$0xff]
  %v3864 = vld [vmem:[%s3754 + $0x99] sm:$0xff]
  %v3865 = vld [vmem:[%s3754 + $0xa9] sm:$0xff]
  %v3866 = vld [vmem:[%s3754 + $0xb1] sm:$0xff]
  %v3867 = vld [vmem:[%s3754 + $0xc1] sm:$0xff]
  %v3868 = vld [vmem:[%s3754 + $0xc9] sm:$0xff]
  %v3869 = vld [vmem:[%s3754 + $0xd9] sm:$0xff]
  %v3870 = vld [vmem:[%s3754 + $0xe1] sm:$0xff]
  %v3871 = vld [vmem:[%s3754 + $0xf1] sm:$0xff]
  %v3872 = vld [vmem:[%s3754 + $0xf9] sm:$0xff]
  %v3873 = vld [vmem:[%s3754 + $0x109] sm:$0xff]
  %v3874 = vld [vmem:[%s3754 + $0x111] sm:$0xff]
  %v3875 = vld [vmem:[%s3754 + $0x121] sm:$0xff]
  %v3876 = vld [vmem:[%s3754 + $0x129] sm:$0xff]
  %v3877 = vld [vmem:[%s3754 + $0x139] sm:$0xff]
  %v3878 = vld [vmem:[%s3754 + $0x141] sm:$0xff]
  %v3879 = vld [vmem:[%s3754 + $0x151] sm:$0xff]
  %v3880 = vld [vmem:[%s3754 + $0x159] sm:$0xff]
  %v3881 = vld [vmem:[%s3754 + $0x169] sm:$0xff]
  %v3882 = vld [vmem:[%s3754 + $0x171] sm:$0xff]
  %v3883 = vpack.c.bf16 %v3851, %v3851
  %v3884 = vpack.c.bf16 %v3852, %v3852
  %v3885 = vpack.c.bf16 %v3853, %v3853
  %v3886 = vpack.c.bf16 %v3854, %v3854
  %v3887 = vpack.c.bf16 %v3855, %v3855
  %v3888 = vpack.c.bf16 %v3856, %v3856
  %v3889 = vpack.c.bf16 %v3857, %v3857
  %v3890 = vpack.c.bf16 %v3858, %v3858
  %v3891 = vpack.c.bf16 %v3859, %v3859
  %v3892 = vpack.c.bf16 %v3860, %v3860
  %v3893 = vpack.c.bf16 %v3861, %v3861
  %v3894 = vpack.c.bf16 %v3862, %v3862
  %v3895 = vpack.c.bf16 %v3863, %v3863
  %v3896 = vpack.c.bf16 %v3864, %v3864
  %v3897 = vpack.c.bf16 %v3865, %v3865
  %v3898 = vpack.c.bf16 %v3866, %v3866
  %v3899 = vpack.c.bf16 %v3867, %v3867
  %v3900 = vpack.c.bf16 %v3868, %v3868
  %v3901 = vpack.c.bf16 %v3869, %v3869
  %v3902 = vpack.c.bf16 %v3870, %v3870
  %v3903 = vpack.c.bf16 %v3871, %v3871
  %v3904 = vpack.c.bf16 %v3872, %v3872
  %v3905 = vpack.c.bf16 %v3873, %v3873
  %v3906 = vpack.c.bf16 %v3874, %v3874
  %v3907 = vpack.c.bf16 %v3875, %v3875
  %v3908 = vpack.c.bf16 %v3876, %v3876
  %v3909 = vpack.c.bf16 %v3877, %v3877
  %v3910 = vpack.c.bf16 %v3878, %v3878
  %v3911 = vpack.c.bf16 %v3879, %v3879
  %v3912 = vpack.c.bf16 %v3880, %v3880
  %v3913 = vpack.c.bf16 %v3881, %v3881
  %v3914 = vpack.c.bf16 %v3882, %v3882
  %3915 = vst [vmem:[#allocation2 + $0x4] sm:$0xf] %v3883
  %3916 = vst [vmem:[#allocation2 + $0x28] sm:$0xf] %v3884
  %3917 = vst [vmem:[#allocation2 + $0x4c] sm:$0xf] %v3885
  %3918 = vst [vmem:[#allocation2 + $0x70] sm:$0xf] %v3886
  %3919 = vst [vmem:[#allocation2 + $0x94] sm:$0xf] %v3887
  %3920 = vst [vmem:[#allocation2 + $0xb8] sm:$0xf] %v3888
  %3921 = vst [vmem:[#allocation2 + $0xdc] sm:$0xf] %v3889
  %3922 = vst [vmem:[#allocation2 + $0x100] sm:$0xf] %v3890
  %3923 = vst [vmem:[#allocation2 + $0x124] sm:$0xf] %v3891
  %3924 = vst [vmem:[#allocation2 + $0x148] sm:$0xf] %v3892
  %3925 = vst [vmem:[#allocation2 + $0x16c] sm:$0xf] %v3893
  %3926 = vst [vmem:[#allocation2 + $0x190] sm:$0xf] %v3894
  %3927 = vst [vmem:[#allocation2 + $0x1b4] sm:$0xf] %v3895
  %3928 = vst [vmem:[#allocation2 + $0x1d8] sm:$0xf] %v3896
  %3929 = vst [vmem:[#allocation2 + $0x1fc] sm:$0xf] %v3897
  %3930 = vst [vmem:[#allocation2 + $0x220] sm:$0xf] %v3898
  %3931 = vst [vmem:[#allocation2 + $0x244] sm:$0xf] %v3899
  %3932 = vst [vmem:[#allocation2 + $0x268] sm:$0xf] %v3900
  %3933 = vst [vmem:[#allocation2 + $0x28c] sm:$0xf] %v3901
  %3934 = vst [vmem:[#allocation2 + $0x2b0] sm:$0xf] %v3902
  %3935 = vst [vmem:[#allocation2 + $0x2d4] sm:$0xf] %v3903
  %3936 = vst [vmem:[#allocation2 + $0x2f8] sm:$0xf] %v3904
  %3937 = vst [vmem:[#allocation2 + $0x31c] sm:$0xf] %v3905
  %3938 = vst [vmem:[#allocation2 + $0x340] sm:$0xf] %v3906
  %3939 = vst [vmem:[#allocation2 + $0x364] sm:$0xf] %v3907
  %3940 = vst [vmem:[#allocation2 + $0x388] sm:$0xf] %v3908
  %3941 = vst [vmem:[#allocation2 + $0x3ac] sm:$0xf] %v3909
  %3942 = vst [vmem:[#allocation2 + $0x3d0] sm:$0xf] %v3910
  %3943 = vst [vmem:[#allocation2 + $0x3f4] sm:$0xf] %v3911
  %3944 = vst [vmem:[#allocation2 + $0x418] sm:$0xf] %v3912
  %3945 = vst [vmem:[#allocation2 + $0x43c] sm:$0xf] %v3913
  %3946 = vst [vmem:[#allocation2 + $0x460] sm:$0xf] %v3914
  %v3947 = vld [vmem:[%s3754 + $0x2] sm:$0xff]
  %v3948 = vld [vmem:[%s3754 + $0xa] sm:$0xff]
  %v3949 = vld [vmem:[%s3754 + $0x1a] sm:$0xff]
  %v3950 = vld [vmem:[%s3754 + $0x22] sm:$0xff]
  %v3951 = vld [vmem:[%s3754 + $0x32] sm:$0xff]
  %v3952 = vld [vmem:[%s3754 + $0x3a] sm:$0xff]
  %v3953 = vld [vmem:[%s3754 + $0x4a] sm:$0xff]
  %v3954 = vld [vmem:[%s3754 + $0x52] sm:$0xff]
  %v3955 = vld [vmem:[%s3754 + $0x62] sm:$0xff]
  %v3956 = vld [vmem:[%s3754 + $0x6a] sm:$0xff]
  %v3957 = vld [vmem:[%s3754 + $0x7a] sm:$0xff]
  %v3958 = vld [vmem:[%s3754 + $0x82] sm:$0xff]
  %v3959 = vld [vmem:[%s3754 + $0x92] sm:$0xff]
  %v3960 = vld [vmem:[%s3754 + $0x9a] sm:$0xff]
  %v3961 = vld [vmem:[%s3754 + $0xaa] sm:$0xff]
  %v3962 = vld [vmem:[%s3754 + $0xb2] sm:$0xff]
  %v3963 = vld [vmem:[%s3754 + $0xc2] sm:$0xff]
  %v3964 = vld [vmem:[%s3754 + $0xca] sm:$0xff]
  %v3965 = vld [vmem:[%s3754 + $0xda] sm:$0xff]
  %v3966 = vld [vmem:[%s3754 + $0xe2] sm:$0xff]
  %v3967 = vld [vmem:[%s3754 + $0xf2] sm:$0xff]
  %v3968 = vld [vmem:[%s3754 + $0xfa] sm:$0xff]
  %v3969 = vld [vmem:[%s3754 + $0x10a] sm:$0xff]
  %v3970 = vld [vmem:[%s3754 + $0x112] sm:$0xff]
  %v3971 = vld [vmem:[%s3754 + $0x122] sm:$0xff]
  %v3972 = vld [vmem:[%s3754 + $0x12a] sm:$0xff]
  %v3973 = vld [vmem:[%s3754 + $0x13a] sm:$0xff]
  %v3974 = vld [vmem:[%s3754 + $0x142] sm:$0xff]
  %v3975 = vld [vmem:[%s3754 + $0x152] sm:$0xff]
  %v3976 = vld [vmem:[%s3754 + $0x15a] sm:$0xff]
  %v3977 = vld [vmem:[%s3754 + $0x16a] sm:$0xff]
  %v3978 = vld [vmem:[%s3754 + $0x172] sm:$0xff]
  %v3979 = vpack.c.bf16 %v3947, %v3947
  %v3980 = vpack.c.bf16 %v3948, %v3948
  %v3981 = vpack.c.bf16 %v3949, %v3949
  %v3982 = vpack.c.bf16 %v3950, %v3950
  %v3983 = vpack.c.bf16 %v3951, %v3951
  %v3984 = vpack.c.bf16 %v3952, %v3952
  %v3985 = vpack.c.bf16 %v3953, %v3953
  %v3986 = vpack.c.bf16 %v3954, %v3954
  %v3987 = vpack.c.bf16 %v3955, %v3955
  %v3988 = vpack.c.bf16 %v3956, %v3956
  %v3989 = vpack.c.bf16 %v3957, %v3957
  %v3990 = vpack.c.bf16 %v3958, %v3958
  %v3991 = vpack.c.bf16 %v3959, %v3959
  %v3992 = vpack.c.bf16 %v3960, %v3960
  %v3993 = vpack.c.bf16 %v3961, %v3961
  %v3994 = vpack.c.bf16 %v3962, %v3962
  %v3995 = vpack.c.bf16 %v3963, %v3963
  %v3996 = vpack.c.bf16 %v3964, %v3964
  %v3997 = vpack.c.bf16 %v3965, %v3965
  %v3998 = vpack.c.bf16 %v3966, %v3966
  %v3999 = vpack.c.bf16 %v3967, %v3967
  %v4000 = vpack.c.bf16 %v3968, %v3968
  %v4001 = vpack.c.bf16 %v3969, %v3969
  %v4002 = vpack.c.bf16 %v3970, %v3970
  %v4003 = vpack.c.bf16 %v3971, %v3971
  %v4004 = vpack.c.bf16 %v3972, %v3972
  %v4005 = vpack.c.bf16 %v3973, %v3973
  %v4006 = vpack.c.bf16 %v3974, %v3974
  %v4007 = vpack.c.bf16 %v3975, %v3975
  %v4008 = vpack.c.bf16 %v3976, %v3976
  %v4009 = vpack.c.bf16 %v3977, %v3977
  %v4010 = vpack.c.bf16 %v3978, %v3978
  %4011 = vst [vmem:[#allocation2 + $0x8] sm:$0xf] %v3979
  %4012 = vst [vmem:[#allocation2 + $0x2c] sm:$0xf] %v3980
  %4013 = vst [vmem:[#allocation2 + $0x50] sm:$0xf] %v3981
  %4014 = vst [vmem:[#allocation2 + $0x74] sm:$0xf] %v3982
  %4015 = vst [vmem:[#allocation2 + $0x98] sm:$0xf] %v3983
  %4016 = vst [vmem:[#allocation2 + $0xbc] sm:$0xf] %v3984
  %4017 = vst [vmem:[#allocation2 + $0xe0] sm:$0xf] %v3985
  %4018 = vst [vmem:[#allocation2 + $0x104] sm:$0xf] %v3986
  %4019 = vst [vmem:[#allocation2 + $0x128] sm:$0xf] %v3987
  %4020 = vst [vmem:[#allocation2 + $0x14c] sm:$0xf] %v3988
  %4021 = vst [vmem:[#allocation2 + $0x170] sm:$0xf] %v3989
  %4022 = vst [vmem:[#allocation2 + $0x194] sm:$0xf] %v3990
  %4023 = vst [vmem:[#allocation2 + $0x1b8] sm:$0xf] %v3991
  %4024 = vst [vmem:[#allocation2 + $0x1dc] sm:$0xf] %v3992
  %4025 = vst [vmem:[#allocation2 + $0x200] sm:$0xf] %v3993
  %4026 = vst [vmem:[#allocation2 + $0x224] sm:$0xf] %v3994
  %4027 = vst [vmem:[#allocation2 + $0x248] sm:$0xf] %v3995
  %4028 = vst [vmem:[#allocation2 + $0x26c] sm:$0xf] %v3996
  %4029 = vst [vmem:[#allocation2 + $0x290] sm:$0xf] %v3997
  %4030 = vst [vmem:[#allocation2 + $0x2b4] sm:$0xf] %v3998
  %4031 = vst [vmem:[#allocation2 + $0x2d8] sm:$0xf] %v3999
  %4032 = vst [vmem:[#allocation2 + $0x2fc] sm:$0xf] %v4000
  %4033 = vst [vmem:[#allocation2 + $0x320] sm:$0xf] %v4001
  %4034 = vst [vmem:[#allocation2 + $0x344] sm:$0xf] %v4002
  %4035 = vst [vmem:[#allocation2 + $0x368] sm:$0xf] %v4003
  %4036 = vst [vmem:[#allocation2 + $0x38c] sm:$0xf] %v4004
  %4037 = vst [vmem:[#allocation2 + $0x3b0] sm:$0xf] %v4005
  %4038 = vst [vmem:[#allocation2 + $0x3d4] sm:$0xf] %v4006
  %4039 = vst [vmem:[#allocation2 + $0x3f8] sm:$0xf] %v4007
  %4040 = vst [vmem:[#allocation2 + $0x41c] sm:$0xf] %v4008
  %4041 = vst [vmem:[#allocation2 + $0x440] sm:$0xf] %v4009
  %4042 = vst [vmem:[#allocation2 + $0x464] sm:$0xf] %v4010
  %s4043 = scalar_lea.vmem %s0, 456
  %v4044 = vld [vmem:[%s4043] sm:$0xff]
  %v4045 = vld [vmem:[%s4043 + $0x8] sm:$0xff]
  %v4046 = vld [vmem:[%s4043 + $0x18] sm:$0xff]
  %v4047 = vld [vmem:[%s4043 + $0x20] sm:$0xff]
  %v4048 = vld [vmem:[%s4043 + $0x30] sm:$0xff]
  %v4049 = vld [vmem:[%s4043 + $0x38] sm:$0xff]
  %v4050 = vld [vmem:[%s4043 + $0x48] sm:$0xff]
  %v4051 = vld [vmem:[%s4043 + $0x50] sm:$0xff]
  %v4052 = vld [vmem:[%s4043 + $0x60] sm:$0xff]
  %v4053 = vld [vmem:[%s4043 + $0x68] sm:$0xff]
  %v4054 = vld [vmem:[%s4043 + $0x78] sm:$0xff]
  %v4055 = vld [vmem:[%s4043 + $0x80] sm:$0xff]
  %v4056 = vld [vmem:[%s4043 + $0x90] sm:$0xff]
  %v4057 = vld [vmem:[%s4043 + $0x98] sm:$0xff]
  %v4058 = vld [vmem:[%s4043 + $0xa8] sm:$0xff]
  %v4059 = vld [vmem:[%s4043 + $0xb0] sm:$0xff]
  %v4060 = vld [vmem:[%s4043 + $0xc0] sm:$0xff]
  %v4061 = vld [vmem:[%s4043 + $0xc8] sm:$0xff]
  %v4062 = vld [vmem:[%s4043 + $0xd8] sm:$0xff]
  %v4063 = vld [vmem:[%s4043 + $0xe0] sm:$0xff]
  %v4064 = vld [vmem:[%s4043 + $0xf0] sm:$0xff]
  %v4065 = vld [vmem:[%s4043 + $0xf8] sm:$0xff]
  %v4066 = vld [vmem:[%s4043 + $0x108] sm:$0xff]
  %v4067 = vld [vmem:[%s4043 + $0x110] sm:$0xff]
  %v4068 = vld [vmem:[%s4043 + $0x120] sm:$0xff]
  %v4069 = vld [vmem:[%s4043 + $0x128] sm:$0xff]
  %v4070 = vld [vmem:[%s4043 + $0x138] sm:$0xff]
  %v4071 = vld [vmem:[%s4043 + $0x140] sm:$0xff]
  %v4072 = vld [vmem:[%s4043 + $0x150] sm:$0xff]
  %v4073 = vld [vmem:[%s4043 + $0x158] sm:$0xff]
  %v4074 = vld [vmem:[%s4043 + $0x168] sm:$0xff]
  %v4075 = vld [vmem:[%s4043 + $0x170] sm:$0xff]
  %v4076 = vpack.c.bf16 %v4044, %v4044
  %v4077 = vpack.c.bf16 %v4045, %v4045
  %v4078 = vpack.c.bf16 %v4046, %v4046
  %v4079 = vpack.c.bf16 %v4047, %v4047
  %v4080 = vpack.c.bf16 %v4048, %v4048
  %v4081 = vpack.c.bf16 %v4049, %v4049
  %v4082 = vpack.c.bf16 %v4050, %v4050
  %v4083 = vpack.c.bf16 %v4051, %v4051
  %v4084 = vpack.c.bf16 %v4052, %v4052
  %v4085 = vpack.c.bf16 %v4053, %v4053
  %v4086 = vpack.c.bf16 %v4054, %v4054
  %v4087 = vpack.c.bf16 %v4055, %v4055
  %v4088 = vpack.c.bf16 %v4056, %v4056
  %v4089 = vpack.c.bf16 %v4057, %v4057
  %v4090 = vpack.c.bf16 %v4058, %v4058
  %v4091 = vpack.c.bf16 %v4059, %v4059
  %v4092 = vpack.c.bf16 %v4060, %v4060
  %v4093 = vpack.c.bf16 %v4061, %v4061
  %v4094 = vpack.c.bf16 %v4062, %v4062
  %v4095 = vpack.c.bf16 %v4063, %v4063
  %v4096 = vpack.c.bf16 %v4064, %v4064
  %v4097 = vpack.c.bf16 %v4065, %v4065
  %v4098 = vpack.c.bf16 %v4066, %v4066
  %v4099 = vpack.c.bf16 %v4067, %v4067
  %v4100 = vpack.c.bf16 %v4068, %v4068
  %v4101 = vpack.c.bf16 %v4069, %v4069
  %v4102 = vpack.c.bf16 %v4070, %v4070
  %v4103 = vpack.c.bf16 %v4071, %v4071
  %v4104 = vpack.c.bf16 %v4072, %v4072
  %v4105 = vpack.c.bf16 %v4073, %v4073
  %v4106 = vpack.c.bf16 %v4074, %v4074
  %v4107 = vpack.c.bf16 %v4075, %v4075
  %4108 = vst [vmem:[#allocation2 + $0xc] sm:$0xf] %v4076
  %4109 = vst [vmem:[#allocation2 + $0x30] sm:$0xf] %v4077
  %4110 = vst [vmem:[#allocation2 + $0x54] sm:$0xf] %v4078
  %4111 = vst [vmem:[#allocation2 + $0x78] sm:$0xf] %v4079
  %4112 = vst [vmem:[#allocation2 + $0x9c] sm:$0xf] %v4080
  %4113 = vst [vmem:[#allocation2 + $0xc0] sm:$0xf] %v4081
  %4114 = vst [vmem:[#allocation2 + $0xe4] sm:$0xf] %v4082
  %4115 = vst [vmem:[#allocation2 + $0x108] sm:$0xf] %v4083
  %4116 = vst [vmem:[#allocation2 + $0x12c] sm:$0xf] %v4084
  %4117 = vst [vmem:[#allocation2 + $0x150] sm:$0xf] %v4085
  %4118 = vst [vmem:[#allocation2 + $0x174] sm:$0xf] %v4086
  %4119 = vst [vmem:[#allocation2 + $0x198] sm:$0xf] %v4087
  %4120 = vst [vmem:[#allocation2 + $0x1bc] sm:$0xf] %v4088
  %4121 = vst [vmem:[#allocation2 + $0x1e0] sm:$0xf] %v4089
  %4122 = vst [vmem:[#allocation2 + $0x204] sm:$0xf] %v4090
  %4123 = vst [vmem:[#allocation2 + $0x228] sm:$0xf] %v4091
  %4124 = vst [vmem:[#allocation2 + $0x24c] sm:$0xf] %v4092
  %4125 = vst [vmem:[#allocation2 + $0x270] sm:$0xf] %v4093
  %4126 = vst [vmem:[#allocation2 + $0x294] sm:$0xf] %v4094
  %4127 = vst [vmem:[#allocation2 + $0x2b8] sm:$0xf] %v4095
  %4128 = vst [vmem:[#allocation2 + $0x2dc] sm:$0xf] %v4096
  %4129 = vst [vmem:[#allocation2 + $0x300] sm:$0xf] %v4097
  %4130 = vst [vmem:[#allocation2 + $0x324] sm:$0xf] %v4098
  %4131 = vst [vmem:[#allocation2 + $0x348] sm:$0xf] %v4099
  %4132 = vst [vmem:[#allocation2 + $0x36c] sm:$0xf] %v4100
  %4133 = vst [vmem:[#allocation2 + $0x390] sm:$0xf] %v4101
  %4134 = vst [vmem:[#allocation2 + $0x3b4] sm:$0xf] %v4102
  %4135 = vst [vmem:[#allocation2 + $0x3d8] sm:$0xf] %v4103
  %4136 = vst [vmem:[#allocation2 + $0x3fc] sm:$0xf] %v4104
  %4137 = vst [vmem:[#allocation2 + $0x420] sm:$0xf] %v4105
  %4138 = vst [vmem:[#allocation2 + $0x444] sm:$0xf] %v4106
  %4139 = vst [vmem:[#allocation2 + $0x468] sm:$0xf] %v4107
  %v4140 = vld [vmem:[%s4043 + $0x1] sm:$0xff]
  %v4141 = vld [vmem:[%s4043 + $0x9] sm:$0xff]
  %v4142 = vld [vmem:[%s4043 + $0x19] sm:$0xff]
  %v4143 = vld [vmem:[%s4043 + $0x21] sm:$0xff]
  %v4144 = vld [vmem:[%s4043 + $0x31] sm:$0xff]
  %v4145 = vld [vmem:[%s4043 + $0x39] sm:$0xff]
  %v4146 = vld [vmem:[%s4043 + $0x49] sm:$0xff]
  %v4147 = vld [vmem:[%s4043 + $0x51] sm:$0xff]
  %v4148 = vld [vmem:[%s4043 + $0x61] sm:$0xff]
  %v4149 = vld [vmem:[%s4043 + $0x69] sm:$0xff]
  %v4150 = vld [vmem:[%s4043 + $0x79] sm:$0xff]
  %v4151 = vld [vmem:[%s4043 + $0x81] sm:$0xff]
  %v4152 = vld [vmem:[%s4043 + $0x91] sm:$0xff]
  %v4153 = vld [vmem:[%s4043 + $0x99] sm:$0xff]
  %v4154 = vld [vmem:[%s4043 + $0xa9] sm:$0xff]
  %v4155 = vld [vmem:[%s4043 + $0xb1] sm:$0xff]
  %v4156 = vld [vmem:[%s4043 + $0xc1] sm:$0xff]
  %v4157 = vld [vmem:[%s4043 + $0xc9] sm:$0xff]
  %v4158 = vld [vmem:[%s4043 + $0xd9] sm:$0xff]
  %v4159 = vld [vmem:[%s4043 + $0xe1] sm:$0xff]
  %v4160 = vld [vmem:[%s4043 + $0xf1] sm:$0xff]
  %v4161 = vld [vmem:[%s4043 + $0xf9] sm:$0xff]
  %v4162 = vld [vmem:[%s4043 + $0x109] sm:$0xff]
  %v4163 = vld [vmem:[%s4043 + $0x111] sm:$0xff]
  %v4164 = vld [vmem:[%s4043 + $0x121] sm:$0xff]
  %v4165 = vld [vmem:[%s4043 + $0x129] sm:$0xff]
  %v4166 = vld [vmem:[%s4043 + $0x139] sm:$0xff]
  %v4167 = vld [vmem:[%s4043 + $0x141] sm:$0xff]
  %v4168 = vld [vmem:[%s4043 + $0x151] sm:$0xff]
  %v4169 = vld [vmem:[%s4043 + $0x159] sm:$0xff]
  %v4170 = vld [vmem:[%s4043 + $0x169] sm:$0xff]
  %v4171 = vld [vmem:[%s4043 + $0x171] sm:$0xff]
  %v4172 = vpack.c.bf16 %v4140, %v4140
  %v4173 = vpack.c.bf16 %v4141, %v4141
  %v4174 = vpack.c.bf16 %v4142, %v4142
  %v4175 = vpack.c.bf16 %v4143, %v4143
  %v4176 = vpack.c.bf16 %v4144, %v4144
  %v4177 = vpack.c.bf16 %v4145, %v4145
  %v4178 = vpack.c.bf16 %v4146, %v4146
  %v4179 = vpack.c.bf16 %v4147, %v4147
  %v4180 = vpack.c.bf16 %v4148, %v4148
  %v4181 = vpack.c.bf16 %v4149, %v4149
  %v4182 = vpack.c.bf16 %v4150, %v4150
  %v4183 = vpack.c.bf16 %v4151, %v4151
  %v4184 = vpack.c.bf16 %v4152, %v4152
  %v4185 = vpack.c.bf16 %v4153, %v4153
  %v4186 = vpack.c.bf16 %v4154, %v4154
  %v4187 = vpack.c.bf16 %v4155, %v4155
  %v4188 = vpack.c.bf16 %v4156, %v4156
  %v4189 = vpack.c.bf16 %v4157, %v4157
  %v4190 = vpack.c.bf16 %v4158, %v4158
  %v4191 = vpack.c.bf16 %v4159, %v4159
  %v4192 = vpack.c.bf16 %v4160, %v4160
  %v4193 = vpack.c.bf16 %v4161, %v4161
  %v4194 = vpack.c.bf16 %v4162, %v4162
  %v4195 = vpack.c.bf16 %v4163, %v4163
  %v4196 = vpack.c.bf16 %v4164, %v4164
  %v4197 = vpack.c.bf16 %v4165, %v4165
  %v4198 = vpack.c.bf16 %v4166, %v4166
  %v4199 = vpack.c.bf16 %v4167, %v4167
  %v4200 = vpack.c.bf16 %v4168, %v4168
  %v4201 = vpack.c.bf16 %v4169, %v4169
  %v4202 = vpack.c.bf16 %v4170, %v4170
  %v4203 = vpack.c.bf16 %v4171, %v4171
  %4204 = vst [vmem:[#allocation2 + $0x10] sm:$0xf] %v4172
  %4205 = vst [vmem:[#allocation2 + $0x34] sm:$0xf] %v4173
  %4206 = vst [vmem:[#allocation2 + $0x58] sm:$0xf] %v4174
  %4207 = vst [vmem:[#allocation2 + $0x7c] sm:$0xf] %v4175
  %4208 = vst [vmem:[#allocation2 + $0xa0] sm:$0xf] %v4176
  %4209 = vst [vmem:[#allocation2 + $0xc4] sm:$0xf] %v4177
  %4210 = vst [vmem:[#allocation2 + $0xe8] sm:$0xf] %v4178
  %4211 = vst [vmem:[#allocation2 + $0x10c] sm:$0xf] %v4179
  %4212 = vst [vmem:[#allocation2 + $0x130] sm:$0xf] %v4180
  %4213 = vst [vmem:[#allocation2 + $0x154] sm:$0xf] %v4181
  %4214 = vst [vmem:[#allocation2 + $0x178] sm:$0xf] %v4182
  %4215 = vst [vmem:[#allocation2 + $0x19c] sm:$0xf] %v4183
  %4216 = vst [vmem:[#allocation2 + $0x1c0] sm:$0xf] %v4184
  %4217 = vst [vmem:[#allocation2 + $0x1e4] sm:$0xf] %v4185
  %4218 = vst [vmem:[#allocation2 + $0x208] sm:$0xf] %v4186
  %4219 = vst [vmem:[#allocation2 + $0x22c] sm:$0xf] %v4187
  %4220 = vst [vmem:[#allocation2 + $0x250] sm:$0xf] %v4188
  %4221 = vst [vmem:[#allocation2 + $0x274] sm:$0xf] %v4189
  %4222 = vst [vmem:[#allocation2 + $0x298] sm:$0xf] %v4190
  %4223 = vst [vmem:[#allocation2 + $0x2bc] sm:$0xf] %v4191
  %4224 = vst [vmem:[#allocation2 + $0x2e0] sm:$0xf] %v4192
  %4225 = vst [vmem:[#allocation2 + $0x304] sm:$0xf] %v4193
  %4226 = vst [vmem:[#allocation2 + $0x328] sm:$0xf] %v4194
  %4227 = vst [vmem:[#allocation2 + $0x34c] sm:$0xf] %v4195
  %4228 = vst [vmem:[#allocation2 + $0x370] sm:$0xf] %v4196
  %4229 = vst [vmem:[#allocation2 + $0x394] sm:$0xf] %v4197
  %4230 = vst [vmem:[#allocation2 + $0x3b8] sm:$0xf] %v4198
  %4231 = vst [vmem:[#allocation2 + $0x3dc] sm:$0xf] %v4199
  %4232 = vst [vmem:[#allocation2 + $0x400] sm:$0xf] %v4200
  %4233 = vst [vmem:[#allocation2 + $0x424] sm:$0xf] %v4201
  %4234 = vst [vmem:[#allocation2 + $0x448] sm:$0xf] %v4202
  %4235 = vst [vmem:[#allocation2 + $0x46c] sm:$0xf] %v4203
  %v4236 = vld [vmem:[%s4043 + $0x2] sm:$0xff]
  %v4237 = vld [vmem:[%s4043 + $0xa] sm:$0xff]
  %v4238 = vld [vmem:[%s4043 + $0x1a] sm:$0xff]
  %v4239 = vld [vmem:[%s4043 + $0x22] sm:$0xff]
  %v4240 = vld [vmem:[%s4043 + $0x32] sm:$0xff]
  %v4241 = vld [vmem:[%s4043 + $0x3a] sm:$0xff]
  %v4242 = vld [vmem:[%s4043 + $0x4a] sm:$0xff]
  %v4243 = vld [vmem:[%s4043 + $0x52] sm:$0xff]
  %v4244 = vld [vmem:[%s4043 + $0x62] sm:$0xff]
  %v4245 = vld [vmem:[%s4043 + $0x6a] sm:$0xff]
  %v4246 = vld [vmem:[%s4043 + $0x7a] sm:$0xff]
  %v4247 = vld [vmem:[%s4043 + $0x82] sm:$0xff]
  %v4248 = vld [vmem:[%s4043 + $0x92] sm:$0xff]
  %v4249 = vld [vmem:[%s4043 + $0x9a] sm:$0xff]
  %v4250 = vld [vmem:[%s4043 + $0xaa] sm:$0xff]
  %v4251 = vld [vmem:[%s4043 + $0xb2] sm:$0xff]
  %v4252 = vld [vmem:[%s4043 + $0xc2] sm:$0xff]
  %v4253 = vld [vmem:[%s4043 + $0xca] sm:$0xff]
  %v4254 = vld [vmem:[%s4043 + $0xda] sm:$0xff]
  %v4255 = vld [vmem:[%s4043 + $0xe2] sm:$0xff]
  %v4256 = vld [vmem:[%s4043 + $0xf2] sm:$0xff]
  %v4257 = vld [vmem:[%s4043 + $0xfa] sm:$0xff]
  %v4258 = vld [vmem:[%s4043 + $0x10a] sm:$0xff]
  %v4259 = vld [vmem:[%s4043 + $0x112] sm:$0xff]
  %v4260 = vld [vmem:[%s4043 + $0x122] sm:$0xff]
  %v4261 = vld [vmem:[%s4043 + $0x12a] sm:$0xff]
  %v4262 = vld [vmem:[%s4043 + $0x13a] sm:$0xff]
  %v4263 = vld [vmem:[%s4043 + $0x142] sm:$0xff]
  %v4264 = vld [vmem:[%s4043 + $0x152] sm:$0xff]
  %v4265 = vld [vmem:[%s4043 + $0x15a] sm:$0xff]
  %v4266 = vld [vmem:[%s4043 + $0x16a] sm:$0xff]
  %v4267 = vld [vmem:[%s4043 + $0x172] sm:$0xff]
  %v4268 = vpack.c.bf16 %v4236, %v4236
  %v4269 = vpack.c.bf16 %v4237, %v4237
  %v4270 = vpack.c.bf16 %v4238, %v4238
  %v4271 = vpack.c.bf16 %v4239, %v4239
  %v4272 = vpack.c.bf16 %v4240, %v4240
  %v4273 = vpack.c.bf16 %v4241, %v4241
  %v4274 = vpack.c.bf16 %v4242, %v4242
  %v4275 = vpack.c.bf16 %v4243, %v4243
  %v4276 = vpack.c.bf16 %v4244, %v4244
  %v4277 = vpack.c.bf16 %v4245, %v4245
  %v4278 = vpack.c.bf16 %v4246, %v4246
  %v4279 = vpack.c.bf16 %v4247, %v4247
  %v4280 = vpack.c.bf16 %v4248, %v4248
  %v4281 = vpack.c.bf16 %v4249, %v4249
  %v4282 = vpack.c.bf16 %v4250, %v4250
  %v4283 = vpack.c.bf16 %v4251, %v4251
  %v4284 = vpack.c.bf16 %v4252, %v4252
  %v4285 = vpack.c.bf16 %v4253, %v4253
  %v4286 = vpack.c.bf16 %v4254, %v4254
  %v4287 = vpack.c.bf16 %v4255, %v4255
  %v4288 = vpack.c.bf16 %v4256, %v4256
  %v4289 = vpack.c.bf16 %v4257, %v4257
  %v4290 = vpack.c.bf16 %v4258, %v4258
  %v4291 = vpack.c.bf16 %v4259, %v4259
  %v4292 = vpack.c.bf16 %v4260, %v4260
  %v4293 = vpack.c.bf16 %v4261, %v4261
  %v4294 = vpack.c.bf16 %v4262, %v4262
  %v4295 = vpack.c.bf16 %v4263, %v4263
  %v4296 = vpack.c.bf16 %v4264, %v4264
  %v4297 = vpack.c.bf16 %v4265, %v4265
  %v4298 = vpack.c.bf16 %v4266, %v4266
  %v4299 = vpack.c.bf16 %v4267, %v4267
  %4300 = vst [vmem:[#allocation2 + $0x14] sm:$0xf] %v4268
  %4301 = vst [vmem:[#allocation2 + $0x38] sm:$0xf] %v4269
  %4302 = vst [vmem:[#allocation2 + $0x5c] sm:$0xf] %v4270
  %4303 = vst [vmem:[#allocation2 + $0x80] sm:$0xf] %v4271
  %4304 = vst [vmem:[#allocation2 + $0xa4] sm:$0xf] %v4272
  %4305 = vst [vmem:[#allocation2 + $0xc8] sm:$0xf] %v4273
  %4306 = vst [vmem:[#allocation2 + $0xec] sm:$0xf] %v4274
  %4307 = vst [vmem:[#allocation2 + $0x110] sm:$0xf] %v4275
  %4308 = vst [vmem:[#allocation2 + $0x134] sm:$0xf] %v4276
  %4309 = vst [vmem:[#allocation2 + $0x158] sm:$0xf] %v4277
  %4310 = vst [vmem:[#allocation2 + $0x17c] sm:$0xf] %v4278
  %4311 = vst [vmem:[#allocation2 + $0x1a0] sm:$0xf] %v4279
  %4312 = vst [vmem:[#allocation2 + $0x1c4] sm:$0xf] %v4280
  %4313 = vst [vmem:[#allocation2 + $0x1e8] sm:$0xf] %v4281
  %4314 = vst [vmem:[#allocation2 + $0x20c] sm:$0xf] %v4282
  %4315 = vst [vmem:[#allocation2 + $0x230] sm:$0xf] %v4283
  %4316 = vst [vmem:[#allocation2 + $0x254] sm:$0xf] %v4284
  %4317 = vst [vmem:[#allocation2 + $0x278] sm:$0xf] %v4285
  %4318 = vst [vmem:[#allocation2 + $0x29c] sm:$0xf] %v4286
  %4319 = vst [vmem:[#allocation2 + $0x2c0] sm:$0xf] %v4287
  %4320 = vst [vmem:[#allocation2 + $0x2e4] sm:$0xf] %v4288
  %4321 = vst [vmem:[#allocation2 + $0x308] sm:$0xf] %v4289
  %4322 = vst [vmem:[#allocation2 + $0x32c] sm:$0xf] %v4290
  %4323 = vst [vmem:[#allocation2 + $0x350] sm:$0xf] %v4291
  %4324 = vst [vmem:[#allocation2 + $0x374] sm:$0xf] %v4292
  %4325 = vst [vmem:[#allocation2 + $0x398] sm:$0xf] %v4293
  %4326 = vst [vmem:[#allocation2 + $0x3bc] sm:$0xf] %v4294
  %4327 = vst [vmem:[#allocation2 + $0x3e0] sm:$0xf] %v4295
  %4328 = vst [vmem:[#allocation2 + $0x404] sm:$0xf] %v4296
  %4329 = vst [vmem:[#allocation2 + $0x428] sm:$0xf] %v4297
  %4330 = vst [vmem:[#allocation2 + $0x44c] sm:$0xf] %v4298
  %4331 = vst [vmem:[#allocation2 + $0x470] sm:$0xf] %v4299
  %s4332 = scalar_lea.vmem %s0, 480
  %v4333 = vld [vmem:[%s4332] sm:$0xff]
  %v4334 = vld [vmem:[%s4332 + $0x8] sm:$0xff]
  %v4335 = vld [vmem:[%s4332 + $0x18] sm:$0xff]
  %v4336 = vld [vmem:[%s4332 + $0x20] sm:$0xff]
  %v4337 = vld [vmem:[%s4332 + $0x30] sm:$0xff]
  %v4338 = vld [vmem:[%s4332 + $0x38] sm:$0xff]
  %v4339 = vld [vmem:[%s4332 + $0x48] sm:$0xff]
  %v4340 = vld [vmem:[%s4332 + $0x50] sm:$0xff]
  %v4341 = vld [vmem:[%s4332 + $0x60] sm:$0xff]
  %v4342 = vld [vmem:[%s4332 + $0x68] sm:$0xff]
  %v4343 = vld [vmem:[%s4332 + $0x78] sm:$0xff]
  %v4344 = vld [vmem:[%s4332 + $0x80] sm:$0xff]
  %v4345 = vld [vmem:[%s4332 + $0x90] sm:$0xff]
  %v4346 = vld [vmem:[%s4332 + $0x98] sm:$0xff]
  %v4347 = vld [vmem:[%s4332 + $0xa8] sm:$0xff]
  %v4348 = vld [vmem:[%s4332 + $0xb0] sm:$0xff]
  %v4349 = vld [vmem:[%s4332 + $0xc0] sm:$0xff]
  %v4350 = vld [vmem:[%s4332 + $0xc8] sm:$0xff]
  %v4351 = vld [vmem:[%s4332 + $0xd8] sm:$0xff]
  %v4352 = vld [vmem:[%s4332 + $0xe0] sm:$0xff]
  %v4353 = vld [vmem:[%s4332 + $0xf0] sm:$0xff]
  %v4354 = vld [vmem:[%s4332 + $0xf8] sm:$0xff]
  %v4355 = vld [vmem:[%s4332 + $0x108] sm:$0xff]
  %v4356 = vld [vmem:[%s4332 + $0x110] sm:$0xff]
  %v4357 = vld [vmem:[%s4332 + $0x120] sm:$0xff]
  %v4358 = vld [vmem:[%s4332 + $0x128] sm:$0xff]
  %v4359 = vld [vmem:[%s4332 + $0x138] sm:$0xff]
  %v4360 = vld [vmem:[%s4332 + $0x140] sm:$0xff]
  %v4361 = vld [vmem:[%s4332 + $0x150] sm:$0xff]
  %v4362 = vld [vmem:[%s4332 + $0x158] sm:$0xff]
  %v4363 = vld [vmem:[%s4332 + $0x168] sm:$0xff]
  %v4364 = vld [vmem:[%s4332 + $0x170] sm:$0xff]
  %v4365 = vpack.c.bf16 %v4333, %v4333
  %v4366 = vpack.c.bf16 %v4334, %v4334
  %v4367 = vpack.c.bf16 %v4335, %v4335
  %v4368 = vpack.c.bf16 %v4336, %v4336
  %v4369 = vpack.c.bf16 %v4337, %v4337
  %v4370 = vpack.c.bf16 %v4338, %v4338
  %v4371 = vpack.c.bf16 %v4339, %v4339
  %v4372 = vpack.c.bf16 %v4340, %v4340
  %v4373 = vpack.c.bf16 %v4341, %v4341
  %v4374 = vpack.c.bf16 %v4342, %v4342
  %v4375 = vpack.c.bf16 %v4343, %v4343
  %v4376 = vpack.c.bf16 %v4344, %v4344
  %v4377 = vpack.c.bf16 %v4345, %v4345
  %v4378 = vpack.c.bf16 %v4346, %v4346
  %v4379 = vpack.c.bf16 %v4347, %v4347
  %v4380 = vpack.c.bf16 %v4348, %v4348
  %v4381 = vpack.c.bf16 %v4349, %v4349
  %v4382 = vpack.c.bf16 %v4350, %v4350
  %v4383 = vpack.c.bf16 %v4351, %v4351
  %v4384 = vpack.c.bf16 %v4352, %v4352
  %v4385 = vpack.c.bf16 %v4353, %v4353
  %v4386 = vpack.c.bf16 %v4354, %v4354
  %v4387 = vpack.c.bf16 %v4355, %v4355
  %v4388 = vpack.c.bf16 %v4356, %v4356
  %v4389 = vpack.c.bf16 %v4357, %v4357
  %v4390 = vpack.c.bf16 %v4358, %v4358
  %v4391 = vpack.c.bf16 %v4359, %v4359
  %v4392 = vpack.c.bf16 %v4360, %v4360
  %v4393 = vpack.c.bf16 %v4361, %v4361
  %v4394 = vpack.c.bf16 %v4362, %v4362
  %v4395 = vpack.c.bf16 %v4363, %v4363
  %v4396 = vpack.c.bf16 %v4364, %v4364
  %4397 = vst [vmem:[#allocation2 + $0x18] sm:$0xf] %v4365
  %4398 = vst [vmem:[#allocation2 + $0x3c] sm:$0xf] %v4366
  %4399 = vst [vmem:[#allocation2 + $0x60] sm:$0xf] %v4367
  %4400 = vst [vmem:[#allocation2 + $0x84] sm:$0xf] %v4368
  %4401 = vst [vmem:[#allocation2 + $0xa8] sm:$0xf] %v4369
  %4402 = vst [vmem:[#allocation2 + $0xcc] sm:$0xf] %v4370
  %4403 = vst [vmem:[#allocation2 + $0xf0] sm:$0xf] %v4371
  %4404 = vst [vmem:[#allocation2 + $0x114] sm:$0xf] %v4372
  %4405 = vst [vmem:[#allocation2 + $0x138] sm:$0xf] %v4373
  %4406 = vst [vmem:[#allocation2 + $0x15c] sm:$0xf] %v4374
  %4407 = vst [vmem:[#allocation2 + $0x180] sm:$0xf] %v4375
  %4408 = vst [vmem:[#allocation2 + $0x1a4] sm:$0xf] %v4376
  %4409 = vst [vmem:[#allocation2 + $0x1c8] sm:$0xf] %v4377
  %4410 = vst [vmem:[#allocation2 + $0x1ec] sm:$0xf] %v4378
  %4411 = vst [vmem:[#allocation2 + $0x210] sm:$0xf] %v4379
  %4412 = vst [vmem:[#allocation2 + $0x234] sm:$0xf] %v4380
  %4413 = vst [vmem:[#allocation2 + $0x258] sm:$0xf] %v4381
  %4414 = vst [vmem:[#allocation2 + $0x27c] sm:$0xf] %v4382
  %4415 = vst [vmem:[#allocation2 + $0x2a0] sm:$0xf] %v4383
  %4416 = vst [vmem:[#allocation2 + $0x2c4] sm:$0xf] %v4384
  %4417 = vst [vmem:[#allocation2 + $0x2e8] sm:$0xf] %v4385
  %4418 = vst [vmem:[#allocation2 + $0x30c] sm:$0xf] %v4386
  %4419 = vst [vmem:[#allocation2 + $0x330] sm:$0xf] %v4387
  %4420 = vst [vmem:[#allocation2 + $0x354] sm:$0xf] %v4388
  %4421 = vst [vmem:[#allocation2 + $0x378] sm:$0xf] %v4389
  %4422 = vst [vmem:[#allocation2 + $0x39c] sm:$0xf] %v4390
  %4423 = vst [vmem:[#allocation2 + $0x3c0] sm:$0xf] %v4391
  %4424 = vst [vmem:[#allocation2 + $0x3e4] sm:$0xf] %v4392
  %4425 = vst [vmem:[#allocation2 + $0x408] sm:$0xf] %v4393
  %4426 = vst [vmem:[#allocation2 + $0x42c] sm:$0xf] %v4394
  %4427 = vst [vmem:[#allocation2 + $0x450] sm:$0xf] %v4395
  %4428 = vst [vmem:[#allocation2 + $0x474] sm:$0xf] %v4396
  %v4429 = vld [vmem:[%s4332 + $0x1] sm:$0xff]
  %v4430 = vld [vmem:[%s4332 + $0x9] sm:$0xff]
  %v4431 = vld [vmem:[%s4332 + $0x19] sm:$0xff]
  %v4432 = vld [vmem:[%s4332 + $0x21] sm:$0xff]
  %v4433 = vld [vmem:[%s4332 + $0x31] sm:$0xff]
  %v4434 = vld [vmem:[%s4332 + $0x39] sm:$0xff]
  %v4435 = vld [vmem:[%s4332 + $0x49] sm:$0xff]
  %v4436 = vld [vmem:[%s4332 + $0x51] sm:$0xff]
  %v4437 = vld [vmem:[%s4332 + $0x61] sm:$0xff]
  %v4438 = vld [vmem:[%s4332 + $0x69] sm:$0xff]
  %v4439 = vld [vmem:[%s4332 + $0x79] sm:$0xff]
  %v4440 = vld [vmem:[%s4332 + $0x81] sm:$0xff]
  %v4441 = vld [vmem:[%s4332 + $0x91] sm:$0xff]
  %v4442 = vld [vmem:[%s4332 + $0x99] sm:$0xff]
  %v4443 = vld [vmem:[%s4332 + $0xa9] sm:$0xff]
  %v4444 = vld [vmem:[%s4332 + $0xb1] sm:$0xff]
  %v4445 = vld [vmem:[%s4332 + $0xc1] sm:$0xff]
  %v4446 = vld [vmem:[%s4332 + $0xc9] sm:$0xff]
  %v4447 = vld [vmem:[%s4332 + $0xd9] sm:$0xff]
  %v4448 = vld [vmem:[%s4332 + $0xe1] sm:$0xff]
  %v4449 = vld [vmem:[%s4332 + $0xf1] sm:$0xff]
  %v4450 = vld [vmem:[%s4332 + $0xf9] sm:$0xff]
  %v4451 = vld [vmem:[%s4332 + $0x109] sm:$0xff]
  %v4452 = vld [vmem:[%s4332 + $0x111] sm:$0xff]
  %v4453 = vld [vmem:[%s4332 + $0x121] sm:$0xff]
  %v4454 = vld [vmem:[%s4332 + $0x129] sm:$0xff]
  %v4455 = vld [vmem:[%s4332 + $0x139] sm:$0xff]
  %v4456 = vld [vmem:[%s4332 + $0x141] sm:$0xff]
  %v4457 = vld [vmem:[%s4332 + $0x151] sm:$0xff]
  %v4458 = vld [vmem:[%s4332 + $0x159] sm:$0xff]
  %v4459 = vld [vmem:[%s4332 + $0x169] sm:$0xff]
  %v4460 = vld [vmem:[%s4332 + $0x171] sm:$0xff]
  %v4461 = vpack.c.bf16 %v4429, %v4429
  %v4462 = vpack.c.bf16 %v4430, %v4430
  %v4463 = vpack.c.bf16 %v4431, %v4431
  %v4464 = vpack.c.bf16 %v4432, %v4432
  %v4465 = vpack.c.bf16 %v4433, %v4433
  %v4466 = vpack.c.bf16 %v4434, %v4434
  %v4467 = vpack.c.bf16 %v4435, %v4435
  %v4468 = vpack.c.bf16 %v4436, %v4436
  %v4469 = vpack.c.bf16 %v4437, %v4437
  %v4470 = vpack.c.bf16 %v4438, %v4438
  %v4471 = vpack.c.bf16 %v4439, %v4439
  %v4472 = vpack.c.bf16 %v4440, %v4440
  %v4473 = vpack.c.bf16 %v4441, %v4441
  %v4474 = vpack.c.bf16 %v4442, %v4442
  %v4475 = vpack.c.bf16 %v4443, %v4443
  %v4476 = vpack.c.bf16 %v4444, %v4444
  %v4477 = vpack.c.bf16 %v4445, %v4445
  %v4478 = vpack.c.bf16 %v4446, %v4446
  %v4479 = vpack.c.bf16 %v4447, %v4447
  %v4480 = vpack.c.bf16 %v4448, %v4448
  %v4481 = vpack.c.bf16 %v4449, %v4449
  %v4482 = vpack.c.bf16 %v4450, %v4450
  %v4483 = vpack.c.bf16 %v4451, %v4451
  %v4484 = vpack.c.bf16 %v4452, %v4452
  %v4485 = vpack.c.bf16 %v4453, %v4453
  %v4486 = vpack.c.bf16 %v4454, %v4454
  %v4487 = vpack.c.bf16 %v4455, %v4455
  %v4488 = vpack.c.bf16 %v4456, %v4456
  %v4489 = vpack.c.bf16 %v4457, %v4457
  %v4490 = vpack.c.bf16 %v4458, %v4458
  %v4491 = vpack.c.bf16 %v4459, %v4459
  %v4492 = vpack.c.bf16 %v4460, %v4460
  %4493 = vst [vmem:[#allocation2 + $0x1c] sm:$0xf] %v4461
  %4494 = vst [vmem:[#allocation2 + $0x40] sm:$0xf] %v4462
  %4495 = vst [vmem:[#allocation2 + $0x64] sm:$0xf] %v4463
  %4496 = vst [vmem:[#allocation2 + $0x88] sm:$0xf] %v4464
  %4497 = vst [vmem:[#allocation2 + $0xac] sm:$0xf] %v4465
  %4498 = vst [vmem:[#allocation2 + $0xd0] sm:$0xf] %v4466
  %4499 = vst [vmem:[#allocation2 + $0xf4] sm:$0xf] %v4467
  %4500 = vst [vmem:[#allocation2 + $0x118] sm:$0xf] %v4468
  %4501 = vst [vmem:[#allocation2 + $0x13c] sm:$0xf] %v4469
  %4502 = vst [vmem:[#allocation2 + $0x160] sm:$0xf] %v4470
  %4503 = vst [vmem:[#allocation2 + $0x184] sm:$0xf] %v4471
  %4504 = vst [vmem:[#allocation2 + $0x1a8] sm:$0xf] %v4472
  %4505 = vst [vmem:[#allocation2 + $0x1cc] sm:$0xf] %v4473
  %4506 = vst [vmem:[#allocation2 + $0x1f0] sm:$0xf] %v4474
  %4507 = vst [vmem:[#allocation2 + $0x214] sm:$0xf] %v4475
  %4508 = vst [vmem:[#allocation2 + $0x238] sm:$0xf] %v4476
  %4509 = vst [vmem:[#allocation2 + $0x25c] sm:$0xf] %v4477
  %4510 = vst [vmem:[#allocation2 + $0x280] sm:$0xf] %v4478
  %4511 = vst [vmem:[#allocation2 + $0x2a4] sm:$0xf] %v4479
  %4512 = vst [vmem:[#allocation2 + $0x2c8] sm:$0xf] %v4480
  %4513 = vst [vmem:[#allocation2 + $0x2ec] sm:$0xf] %v4481
  %4514 = vst [vmem:[#allocation2 + $0x310] sm:$0xf] %v4482
  %4515 = vst [vmem:[#allocation2 + $0x334] sm:$0xf] %v4483
  %4516 = vst [vmem:[#allocation2 + $0x358] sm:$0xf] %v4484
  %4517 = vst [vmem:[#allocation2 + $0x37c] sm:$0xf] %v4485
  %4518 = vst [vmem:[#allocation2 + $0x3a0] sm:$0xf] %v4486
  %4519 = vst [vmem:[#allocation2 + $0x3c4] sm:$0xf] %v4487
  %4520 = vst [vmem:[#allocation2 + $0x3e8] sm:$0xf] %v4488
  %4521 = vst [vmem:[#allocation2 + $0x40c] sm:$0xf] %v4489
  %4522 = vst [vmem:[#allocation2 + $0x430] sm:$0xf] %v4490
  %4523 = vst [vmem:[#allocation2 + $0x454] sm:$0xf] %v4491
  %4524 = vst [vmem:[#allocation2 + $0x478] sm:$0xf] %v4492
  %v4525 = vld [vmem:[%s4332 + $0x2] sm:$0xff]
  %v4526 = vld [vmem:[%s4332 + $0xa] sm:$0xff]
  %v4527 = vld [vmem:[%s4332 + $0x1a] sm:$0xff]
  %v4528 = vld [vmem:[%s4332 + $0x22] sm:$0xff]
  %v4529 = vld [vmem:[%s4332 + $0x32] sm:$0xff]
  %v4530 = vld [vmem:[%s4332 + $0x3a] sm:$0xff]
  %v4531 = vld [vmem:[%s4332 + $0x4a] sm:$0xff]
  %v4532 = vld [vmem:[%s4332 + $0x52] sm:$0xff]
  %v4533 = vld [vmem:[%s4332 + $0x62] sm:$0xff]
  %v4534 = vld [vmem:[%s4332 + $0x6a] sm:$0xff]
  %v4535 = vld [vmem:[%s4332 + $0x7a] sm:$0xff]
  %v4536 = vld [vmem:[%s4332 + $0x82] sm:$0xff]
  %v4537 = vld [vmem:[%s4332 + $0x92] sm:$0xff]
  %v4538 = vld [vmem:[%s4332 + $0x9a] sm:$0xff]
  %v4539 = vld [vmem:[%s4332 + $0xaa] sm:$0xff]
  %v4540 = vld [vmem:[%s4332 + $0xb2] sm:$0xff]
  %v4541 = vld [vmem:[%s4332 + $0xc2] sm:$0xff]
  %v4542 = vld [vmem:[%s4332 + $0xca] sm:$0xff]
  %v4543 = vld [vmem:[%s4332 + $0xda] sm:$0xff]
  %v4544 = vld [vmem:[%s4332 + $0xe2] sm:$0xff]
  %v4545 = vld [vmem:[%s4332 + $0xf2] sm:$0xff]
  %v4546 = vld [vmem:[%s4332 + $0xfa] sm:$0xff]
  %v4547 = vld [vmem:[%s4332 + $0x10a] sm:$0xff]
  %v4548 = vld [vmem:[%s4332 + $0x112] sm:$0xff]
  %v4549 = vld [vmem:[%s4332 + $0x122] sm:$0xff]
  %v4550 = vld [vmem:[%s4332 + $0x12a] sm:$0xff]
  %v4551 = vld [vmem:[%s4332 + $0x13a] sm:$0xff]
  %v4552 = vld [vmem:[%s4332 + $0x142] sm:$0xff]
  %v4553 = vld [vmem:[%s4332 + $0x152] sm:$0xff]
  %v4554 = vld [vmem:[%s4332 + $0x15a] sm:$0xff]
  %v4555 = vld [vmem:[%s4332 + $0x16a] sm:$0xff]
  %v4556 = vld [vmem:[%s4332 + $0x172] sm:$0xff]
  %v4557 = vpack.c.bf16 %v4525, %v4525
  %v4558 = vpack.c.bf16 %v4526, %v4526
  %v4559 = vpack.c.bf16 %v4527, %v4527
  %v4560 = vpack.c.bf16 %v4528, %v4528
  %v4561 = vpack.c.bf16 %v4529, %v4529
  %v4562 = vpack.c.bf16 %v4530, %v4530
  %v4563 = vpack.c.bf16 %v4531, %v4531
  %v4564 = vpack.c.bf16 %v4532, %v4532
  %v4565 = vpack.c.bf16 %v4533, %v4533
  %v4566 = vpack.c.bf16 %v4534, %v4534
  %v4567 = vpack.c.bf16 %v4535, %v4535
  %v4568 = vpack.c.bf16 %v4536, %v4536
  %v4569 = vpack.c.bf16 %v4537, %v4537
  %v4570 = vpack.c.bf16 %v4538, %v4538
  %v4571 = vpack.c.bf16 %v4539, %v4539
  %v4572 = vpack.c.bf16 %v4540, %v4540
  %v4573 = vpack.c.bf16 %v4541, %v4541
  %v4574 = vpack.c.bf16 %v4542, %v4542
  %v4575 = vpack.c.bf16 %v4543, %v4543
  %v4576 = vpack.c.bf16 %v4544, %v4544
  %v4577 = vpack.c.bf16 %v4545, %v4545
  %v4578 = vpack.c.bf16 %v4546, %v4546
  %v4579 = vpack.c.bf16 %v4547, %v4547
  %v4580 = vpack.c.bf16 %v4548, %v4548
  %v4581 = vpack.c.bf16 %v4549, %v4549
  %v4582 = vpack.c.bf16 %v4550, %v4550
  %v4583 = vpack.c.bf16 %v4551, %v4551
  %v4584 = vpack.c.bf16 %v4552, %v4552
  %v4585 = vpack.c.bf16 %v4553, %v4553
  %v4586 = vpack.c.bf16 %v4554, %v4554
  %v4587 = vpack.c.bf16 %v4555, %v4555
  %v4588 = vpack.c.bf16 %v4556, %v4556
  %4589 = vst [vmem:[#allocation2 + $0x20] sm:$0xf] %v4557
  %4590 = vst [vmem:[#allocation2 + $0x44] sm:$0xf] %v4558
  %4591 = vst [vmem:[#allocation2 + $0x68] sm:$0xf] %v4559
  %4592 = vst [vmem:[#allocation2 + $0x8c] sm:$0xf] %v4560
  %4593 = vst [vmem:[#allocation2 + $0xb0] sm:$0xf] %v4561
  %4594 = vst [vmem:[#allocation2 + $0xd4] sm:$0xf] %v4562
  %4595 = vst [vmem:[#allocation2 + $0xf8] sm:$0xf] %v4563
  %4596 = vst [vmem:[#allocation2 + $0x11c] sm:$0xf] %v4564
  %4597 = vst [vmem:[#allocation2 + $0x140] sm:$0xf] %v4565
  %4598 = vst [vmem:[#allocation2 + $0x164] sm:$0xf] %v4566
  %4599 = vst [vmem:[#allocation2 + $0x188] sm:$0xf] %v4567
  %4600 = vst [vmem:[#allocation2 + $0x1ac] sm:$0xf] %v4568
  %4601 = vst [vmem:[#allocation2 + $0x1d0] sm:$0xf] %v4569
  %4602 = vst [vmem:[#allocation2 + $0x1f4] sm:$0xf] %v4570
  %4603 = vst [vmem:[#allocation2 + $0x218] sm:$0xf] %v4571
  %4604 = vst [vmem:[#allocation2 + $0x23c] sm:$0xf] %v4572
  %4605 = vst [vmem:[#allocation2 + $0x260] sm:$0xf] %v4573
  %4606 = vst [vmem:[#allocation2 + $0x284] sm:$0xf] %v4574
  %4607 = vst [vmem:[#allocation2 + $0x2a8] sm:$0xf] %v4575
  %4608 = vst [vmem:[#allocation2 + $0x2cc] sm:$0xf] %v4576
  %4609 = vst [vmem:[#allocation2 + $0x2f0] sm:$0xf] %v4577
  %4610 = vst [vmem:[#allocation2 + $0x314] sm:$0xf] %v4578
  %4611 = vst [vmem:[#allocation2 + $0x338] sm:$0xf] %v4579
  %4612 = vst [vmem:[#allocation2 + $0x35c] sm:$0xf] %v4580
  %4613 = vst [vmem:[#allocation2 + $0x380] sm:$0xf] %v4581
  %4614 = vst [vmem:[#allocation2 + $0x3a4] sm:$0xf] %v4582
  %4615 = vst [vmem:[#allocation2 + $0x3c8] sm:$0xf] %v4583
  %4616 = vst [vmem:[#allocation2 + $0x3ec] sm:$0xf] %v4584
  %4617 = vst [vmem:[#allocation2 + $0x410] sm:$0xf] %v4585
  %4618 = vst [vmem:[#allocation2 + $0x434] sm:$0xf] %v4586
  %4619 = vst [vmem:[#allocation2 + $0x458] sm:$0xf] %v4587
  %4620 = vst [vmem:[#allocation2 + $0x47c] sm:$0xf] %v4588
  %v4621 = vld [vmem:[#allocation2] sm:$0xff]
  %v4622 = vld [vmem:[#allocation2 + $0x8] sm:$0xff]
  %v4623 = vld [vmem:[#allocation2 + $0x10] sm:$0xff]
  %v4624 = vld [vmem:[#allocation2 + $0x18] sm:$0xff]
  %v4625 = vld [vmem:[#allocation2 + $0x20] sm:$0xf]
  %v4626 = vld [vmem:[#allocation2 + $0x24] sm:$0xff]
  %v4627 = vld [vmem:[#allocation2 + $0x2c] sm:$0xff]
  %v4628 = vld [vmem:[#allocation2 + $0x34] sm:$0xff]
  %v4629 = vld [vmem:[#allocation2 + $0x3c] sm:$0xff]
  %v4630 = vld [vmem:[#allocation2 + $0x44] sm:$0xf]
  %v4631 = vld [vmem:[#allocation2 + $0x48] sm:$0xff]
  %v4632 = vld [vmem:[#allocation2 + $0x50] sm:$0xff]
  %v4633 = vld [vmem:[#allocation2 + $0x58] sm:$0xff]
  %v4634 = vld [vmem:[#allocation2 + $0x60] sm:$0xff]
  %v4635 = vld [vmem:[#allocation2 + $0x68] sm:$0xf]
  %v4636 = vld [vmem:[#allocation2 + $0x6c] sm:$0xff]
  %v4637 = vld [vmem:[#allocation2 + $0x74] sm:$0xff]
  %v4638 = vld [vmem:[#allocation2 + $0x7c] sm:$0xff]
  %v4639 = vld [vmem:[#allocation2 + $0x84] sm:$0xff]
  %v4640 = vld [vmem:[#allocation2 + $0x8c] sm:$0xf]
  %v4641 = vld [vmem:[#allocation2 + $0x90] sm:$0xff]
  %v4642 = vld [vmem:[#allocation2 + $0x98] sm:$0xff]
  %v4643 = vld [vmem:[#allocation2 + $0xa0] sm:$0xff]
  %v4644 = vld [vmem:[#allocation2 + $0xa8] sm:$0xff]
  %v4645 = vld [vmem:[#allocation2 + $0xb0] sm:$0xf]
  %v4646 = vld [vmem:[#allocation2 + $0xb4] sm:$0xff]
  %v4647 = vld [vmem:[#allocation2 + $0xbc] sm:$0xff]
  %v4648 = vld [vmem:[#allocation2 + $0xc4] sm:$0xff]
  %v4649 = vld [vmem:[#allocation2 + $0xcc] sm:$0xff]
  %v4650 = vld [vmem:[#allocation2 + $0xd4] sm:$0xf]
  %v4651 = vld [vmem:[#allocation2 + $0xd8] sm:$0xff]
  %v4652 = vld [vmem:[#allocation2 + $0xe0] sm:$0xff]
  %v4653 = vld [vmem:[#allocation2 + $0xe8] sm:$0xff]
  %v4654 = vld [vmem:[#allocation2 + $0xf0] sm:$0xff]
  %v4655 = vld [vmem:[#allocation2 + $0xf8] sm:$0xf]
  %v4656 = vld [vmem:[#allocation2 + $0xfc] sm:$0xff]
  %v4657 = vld [vmem:[#allocation2 + $0x104] sm:$0xff]
  %v4658 = vld [vmem:[#allocation2 + $0x10c] sm:$0xff]
  %v4659 = vld [vmem:[#allocation2 + $0x114] sm:$0xff]
  %v4660 = vld [vmem:[#allocation2 + $0x11c] sm:$0xf]
  %v4661 = vld [vmem:[#allocation2 + $0x120] sm:$0xff]
  %v4662 = vld [vmem:[#allocation2 + $0x128] sm:$0xff]
  %v4663 = vld [vmem:[#allocation2 + $0x130] sm:$0xff]
  %v4664 = vld [vmem:[#allocation2 + $0x138] sm:$0xff]
  %v4665 = vld [vmem:[#allocation2 + $0x140] sm:$0xf]
  %v4666 = vld [vmem:[#allocation2 + $0x144] sm:$0xff]
  %v4667 = vld [vmem:[#allocation2 + $0x14c] sm:$0xff]
  %v4668 = vld [vmem:[#allocation2 + $0x154] sm:$0xff]
  %v4669 = vld [vmem:[#allocation2 + $0x15c] sm:$0xff]
  %v4670 = vld [vmem:[#allocation2 + $0x164] sm:$0xf]
  %v4671 = vld [vmem:[#allocation2 + $0x168] sm:$0xff]
  %v4672 = vld [vmem:[#allocation2 + $0x170] sm:$0xff]
  %v4673 = vld [vmem:[#allocation2 + $0x178] sm:$0xff]
  %v4674 = vld [vmem:[#allocation2 + $0x180] sm:$0xff]
  %v4675 = vld [vmem:[#allocation2 + $0x188] sm:$0xf]
  %v4676 = vld [vmem:[#allocation2 + $0x18c] sm:$0xff]
  %v4677 = vld [vmem:[#allocation2 + $0x194] sm:$0xff]
  %v4678 = vld [vmem:[#allocation2 + $0x19c] sm:$0xff]
  %v4679 = vld [vmem:[#allocation2 + $0x1a4] sm:$0xff]
  %v4680 = vld [vmem:[#allocation2 + $0x1ac] sm:$0xf]
  %v4681 = vld [vmem:[#allocation2 + $0x1b0] sm:$0xff]
  %v4682 = vld [vmem:[#allocation2 + $0x1b8] sm:$0xff]
  %v4683 = vld [vmem:[#allocation2 + $0x1c0] sm:$0xff]
  %v4684 = vld [vmem:[#allocation2 + $0x1c8] sm:$0xff]
  %v4685 = vld [vmem:[#allocation2 + $0x1d0] sm:$0xf]
  %v4686 = vld [vmem:[#allocation2 + $0x1d4] sm:$0xff]
  %v4687 = vld [vmem:[#allocation2 + $0x1dc] sm:$0xff]
  %v4688 = vld [vmem:[#allocation2 + $0x1e4] sm:$0xff]
  %v4689 = vld [vmem:[#allocation2 + $0x1ec] sm:$0xff]
  %v4690 = vld [vmem:[#allocation2 + $0x1f4] sm:$0xf]
  %v4691 = vld [vmem:[#allocation2 + $0x1f8] sm:$0xff]
  %v4692 = vld [vmem:[#allocation2 + $0x200] sm:$0xff]
  %v4693 = vld [vmem:[#allocation2 + $0x208] sm:$0xff]
  %v4694 = vld [vmem:[#allocation2 + $0x210] sm:$0xff]
  %v4695 = vld [vmem:[#allocation2 + $0x218] sm:$0xf]
  %v4696 = vld [vmem:[#allocation2 + $0x21c] sm:$0xff]
  %v4697 = vld [vmem:[#allocation2 + $0x224] sm:$0xff]
  %v4698 = vld [vmem:[#allocation2 + $0x22c] sm:$0xff]
  %v4699 = vld [vmem:[#allocation2 + $0x234] sm:$0xff]
  %v4700 = vld [vmem:[#allocation2 + $0x23c] sm:$0xf]
  %v4701 = vld [vmem:[#allocation2 + $0x240] sm:$0xff]
  %v4702 = vld [vmem:[#allocation2 + $0x248] sm:$0xff]
  %v4703 = vld [vmem:[#allocation2 + $0x250] sm:$0xff]
  %v4704 = vld [vmem:[#allocation2 + $0x258] sm:$0xff]
  %v4705 = vld [vmem:[#allocation2 + $0x260] sm:$0xf]
  %v4706 = vld [vmem:[#allocation2 + $0x264] sm:$0xff]
  %v4707 = vld [vmem:[#allocation2 + $0x26c] sm:$0xff]
  %v4708 = vld [vmem:[#allocation2 + $0x274] sm:$0xff]
  %v4709 = vld [vmem:[#allocation2 + $0x27c] sm:$0xff]
  %v4710 = vld [vmem:[#allocation2 + $0x284] sm:$0xf]
  %v4711 = vld [vmem:[#allocation2 + $0x288] sm:$0xff]
  %v4712 = vld [vmem:[#allocation2 + $0x290] sm:$0xff]
  %v4713 = vld [vmem:[#allocation2 + $0x298] sm:$0xff]
  %v4714 = vld [vmem:[#allocation2 + $0x2a0] sm:$0xff]
  %v4715 = vld [vmem:[#allocation2 + $0x2a8] sm:$0xf]
  %v4716 = vld [vmem:[#allocation2 + $0x2ac] sm:$0xff]
  %v4717 = vld [vmem:[#allocation2 + $0x2b4] sm:$0xff]
  %v4718 = vld [vmem:[#allocation2 + $0x2bc] sm:$0xff]
  %v4719 = vld [vmem:[#allocation2 + $0x2c4] sm:$0xff]
  %v4720 = vld [vmem:[#allocation2 + $0x2cc] sm:$0xf]
  %v4721 = vld [vmem:[#allocation2 + $0x2d0] sm:$0xff]
  %v4722 = vld [vmem:[#allocation2 + $0x2d8] sm:$0xff]
  %v4723 = vld [vmem:[#allocation2 + $0x2e0] sm:$0xff]
  %v4724 = vld [vmem:[#allocation2 + $0x2e8] sm:$0xff]
  %v4725 = vld [vmem:[#allocation2 + $0x2f0] sm:$0xf]
  %v4726 = vld [vmem:[#allocation2 + $0x2f4] sm:$0xff]
  %v4727 = vld [vmem:[#allocation2 + $0x2fc] sm:$0xff]
  %v4728 = vld [vmem:[#allocation2 + $0x304] sm:$0xff]
  %v4729 = vld [vmem:[#allocation2 + $0x30c] sm:$0xff]
  %v4730 = vld [vmem:[#allocation2 + $0x314] sm:$0xf]
  %v4731 = vld [vmem:[#allocation2 + $0x318] sm:$0xff]
  %v4732 = vld [vmem:[#allocation2 + $0x320] sm:$0xff]
  %v4733 = vld [vmem:[#allocation2 + $0x328] sm:$0xff]
  %v4734 = vld [vmem:[#allocation2 + $0x330] sm:$0xff]
  %v4735 = vld [vmem:[#allocation2 + $0x338] sm:$0xf]
  %v4736 = vld [vmem:[#allocation2 + $0x33c] sm:$0xff]
  %v4737 = vld [vmem:[#allocation2 + $0x344] sm:$0xff]
  %v4738 = vld [vmem:[#allocation2 + $0x34c] sm:$0xff]
  %v4739 = vld [vmem:[#allocation2 + $0x354] sm:$0xff]
  %v4740 = vld [vmem:[#allocation2 + $0x35c] sm:$0xf]
  %v4741 = vld [vmem:[#allocation2 + $0x360] sm:$0xff]
  %v4742 = vld [vmem:[#allocation2 + $0x368] sm:$0xff]
  %v4743 = vld [vmem:[#allocation2 + $0x370] sm:$0xff]
  %v4744 = vld [vmem:[#allocation2 + $0x378] sm:$0xff]
  %v4745 = vld [vmem:[#allocation2 + $0x380] sm:$0xf]
  %v4746 = vld [vmem:[#allocation2 + $0x384] sm:$0xff]
  %v4747 = vld [vmem:[#allocation2 + $0x38c] sm:$0xff]
  %v4748 = vld [vmem:[#allocation2 + $0x394] sm:$0xff]
  %v4749 = vld [vmem:[#allocation2 + $0x39c] sm:$0xff]
  %v4750 = vld [vmem:[#allocation2 + $0x3a4] sm:$0xf]
  %v4751 = vld [vmem:[#allocation2 + $0x3a8] sm:$0xff]
  %v4752 = vld [vmem:[#allocation2 + $0x3b0] sm:$0xff]
  %v4753 = vld [vmem:[#allocation2 + $0x3b8] sm:$0xff]
  %v4754 = vld [vmem:[#allocation2 + $0x3c0] sm:$0xff]
  %v4755 = vld [vmem:[#allocation2 + $0x3c8] sm:$0xf]
  %v4756 = vld [vmem:[#allocation2 + $0x3cc] sm:$0xff]
  %v4757 = vld [vmem:[#allocation2 + $0x3d4] sm:$0xff]
  %v4758 = vld [vmem:[#allocation2 + $0x3dc] sm:$0xff]
  %v4759 = vld [vmem:[#allocation2 + $0x3e4] sm:$0xff]
  %v4760 = vld [vmem:[#allocation2 + $0x3ec] sm:$0xf]
  %v4761 = vld [vmem:[#allocation2 + $0x3f0] sm:$0xff]
  %v4762 = vld [vmem:[#allocation2 + $0x3f8] sm:$0xff]
  %v4763 = vld [vmem:[#allocation2 + $0x400] sm:$0xff]
  %v4764 = vld [vmem:[#allocation2 + $0x408] sm:$0xff]
  %v4765 = vld [vmem:[#allocation2 + $0x410] sm:$0xf]
  %v4766 = vld [vmem:[#allocation2 + $0x414] sm:$0xff]
  %v4767 = vld [vmem:[#allocation2 + $0x41c] sm:$0xff]
  %v4768 = vld [vmem:[#allocation2 + $0x424] sm:$0xff]
  %v4769 = vld [vmem:[#allocation2 + $0x42c] sm:$0xff]
  %v4770 = vld [vmem:[#allocation2 + $0x434] sm:$0xf]
  %v4771 = vld [vmem:[#allocation2 + $0x438] sm:$0xff]
  %v4772 = vld [vmem:[#allocation2 + $0x440] sm:$0xff]
  %v4773 = vld [vmem:[#allocation2 + $0x448] sm:$0xff]
  %v4774 = vld [vmem:[#allocation2 + $0x450] sm:$0xff]
  %v4775 = vld [vmem:[#allocation2 + $0x458] sm:$0xf]
  %v4776 = vld [vmem:[#allocation2 + $0x45c] sm:$0xff]
  %v4777 = vld [vmem:[#allocation2 + $0x464] sm:$0xff]
  %v4778 = vld [vmem:[#allocation2 + $0x46c] sm:$0xff]
  %v4779 = vld [vmem:[#allocation2 + $0x474] sm:$0xff]
  %v4780 = vld [vmem:[#allocation2 + $0x47c] sm:$0xf]
  %v4781 = vld [vmem:[%s1] sm:$0xf]
  %v4782 = vld [vmem:[%s1 + $0x4] sm:$0xf]
  %v4783 = vld [vmem:[%s1 + $0x8] sm:$0xf]
  %v4784 = vld [vmem:[%s1 + $0xc] sm:$0xf]
  %v4785 = vld [vmem:[%s1 + $0x10] sm:$0xf]
  %v4786 = vld [vmem:[%s1 + $0x14] sm:$0xf]
  %v4787 = vld [vmem:[%s1 + $0x18] sm:$0xf]
  %v4788 = vld [vmem:[%s1 + $0x1c] sm:$0xf]
  %v4789 = vld [vmem:[%s1 + $0x20] sm:$0xf]
  %v4790 = vld [vmem:[%s1 + $0x24] sm:$0xf]
  %v4791 = vld [vmem:[%s1 + $0x28] sm:$0xf]
  %v4792 = vld [vmem:[%s1 + $0x2c] sm:$0xf]
  %v4793 = vld [vmem:[%s1 + $0x30] sm:$0xf]
  %v4794 = vld [vmem:[%s1 + $0x34] sm:$0xf]
  %v4795 = vld [vmem:[%s1 + $0x38] sm:$0xf]
  %v4796 = vld [vmem:[%s1 + $0x3c] sm:$0xf]
  %v4797 = vld [vmem:[%s1 + $0x40] sm:$0xf]
  %v4798 = vld [vmem:[%s1 + $0x44] sm:$0xf]
  %v4799 = vld [vmem:[%s1 + $0x48] sm:$0xf]
  %v4800 = vld [vmem:[%s1 + $0x4c] sm:$0xf]
  %v4801 = vld [vmem:[%s1 + $0x50] sm:$0xf]
  %v4802 = vld [vmem:[%s1 + $0x54] sm:$0xf]
  %v4803 = vld [vmem:[%s1 + $0x58] sm:$0xf]
  %v4804 = vld [vmem:[%s1 + $0x5c] sm:$0xf]
  %v4805 = vld [vmem:[%s1 + $0x60] sm:$0xf]
  %v4806 = vld [vmem:[%s1 + $0x64] sm:$0xf]
  %v4807 = vld [vmem:[%s1 + $0x68] sm:$0xf]
  %v4808 = vld [vmem:[%s1 + $0x6c] sm:$0xf]
  %v4809 = vld [vmem:[%s1 + $0x70] sm:$0xf]
  %v4810 = vld [vmem:[%s1 + $0x74] sm:$0xf]
  %v4811 = vld [vmem:[%s1 + $0x78] sm:$0xf]
  %v4812 = vld [vmem:[%s1 + $0x7c] sm:$0xf]
  %v4813 = vld [vmem:[%s1 + $0x80] sm:$0xf]
  %v4814 = vld [vmem:[%s1 + $0x84] sm:$0xf]
  %v4815 = vld [vmem:[%s1 + $0x88] sm:$0xf]
  %v4816 = vld [vmem:[%s1 + $0x8c] sm:$0xf]
  %v4817 = vld [vmem:[%s1 + $0x90] sm:$0xf]
  %v4818 = vld [vmem:[%s1 + $0x94] sm:$0xf]
  %v4819 = vld [vmem:[%s1 + $0x98] sm:$0xf]
  %v4820 = vld [vmem:[%s1 + $0x9c] sm:$0xf]
  %v4821 = vld [vmem:[%s1 + $0xa0] sm:$0xf]
  %v4822 = vld [vmem:[%s1 + $0xa4] sm:$0xf]
  %v4823 = vld [vmem:[%s1 + $0xa8] sm:$0xf]
  %v4824 = vld [vmem:[%s1 + $0xac] sm:$0xf]
  %v4825 = vld [vmem:[%s1 + $0xb0] sm:$0xf]
  %v4826 = vld [vmem:[%s1 + $0xb4] sm:$0xf]
  %v4827 = vld [vmem:[%s1 + $0xb8] sm:$0xf]
  %v4828 = vld [vmem:[%s1 + $0xbc] sm:$0xf]
  %v4829 = vld [vmem:[%s1 + $0xc0] sm:$0xf]
  %v4830 = vld [vmem:[%s1 + $0xc4] sm:$0xf]
  %v4831 = vld [vmem:[%s1 + $0xc8] sm:$0xf]
  %v4832 = vld [vmem:[%s1 + $0xcc] sm:$0xf]
  %v4833 = vld [vmem:[%s1 + $0xd0] sm:$0xf]
  %v4834 = vld [vmem:[%s1 + $0xd4] sm:$0xf]
  %v4835 = vld [vmem:[%s1 + $0xd8] sm:$0xf]
  %v4836 = vld [vmem:[%s1 + $0xdc] sm:$0xf]
  %v4837 = vld [vmem:[%s1 + $0xe0] sm:$0xf]
  %v4838 = vld [vmem:[%s1 + $0xe4] sm:$0xf]
  %v4839 = vld [vmem:[%s1 + $0xe8] sm:$0xf]
  %v4840 = vld [vmem:[%s1 + $0xec] sm:$0xf]
  %v4841 = vld [vmem:[%s1 + $0xf0] sm:$0xf]
  %v4842 = vld [vmem:[%s1 + $0xf4] sm:$0xf]
  %v4843 = vld [vmem:[%s1 + $0xf8] sm:$0xf]
  %v4844 = vld [vmem:[%s1 + $0xfc] sm:$0xf]
  %v4845 = vld [vmem:[%s1 + $0x100] sm:$0xf]
  %v4846 = vld [vmem:[%s1 + $0x104] sm:$0xf]
  %v4847 = vld [vmem:[%s1 + $0x108] sm:$0xf]
  %v4848 = vld [vmem:[%s1 + $0x10c] sm:$0xf]
  %v4849 = vld [vmem:[%s1 + $0x110] sm:$0xf]
  %v4850 = vld [vmem:[%s1 + $0x114] sm:$0xf]
  %v4851 = vld [vmem:[%s1 + $0x118] sm:$0xf]
  %v4852 = vld [vmem:[%s1 + $0x11c] sm:$0xf]
  %v4853 = vld [vmem:[%s1 + $0x120] sm:$0xf]
  %v4854 = vld [vmem:[%s1 + $0x124] sm:$0xf]
  %v4855 = vld [vmem:[%s1 + $0x128] sm:$0xf]
  %v4856 = vld [vmem:[%s1 + $0x12c] sm:$0xf]
  %v4857 = vld [vmem:[%s1 + $0x130] sm:$0xf]
  %v4858 = vld [vmem:[%s1 + $0x134] sm:$0xf]
  %v4859 = vld [vmem:[%s1 + $0x138] sm:$0xf]
  %v4860 = vld [vmem:[%s1 + $0x13c] sm:$0xf]
  %v4861 = vld [vmem:[%s1 + $0x140] sm:$0xf]
  %v4862 = vld [vmem:[%s1 + $0x144] sm:$0xf]
  %v4863 = vld [vmem:[%s1 + $0x148] sm:$0xf]
  %v4864 = vld [vmem:[%s1 + $0x14c] sm:$0xf]
  %v4865 = vld [vmem:[%s1 + $0x150] sm:$0xf]
  %v4866 = vld [vmem:[%s1 + $0x154] sm:$0xf]
  %v4867 = vld [vmem:[%s1 + $0x158] sm:$0xf]
  %v4868 = vld [vmem:[%s1 + $0x15c] sm:$0xf]
  %v4869 = vld [vmem:[%s1 + $0x160] sm:$0xf]
  %v4870 = vld [vmem:[%s1 + $0x164] sm:$0xf]
  %v4871 = vld [vmem:[%s1 + $0x168] sm:$0xf]
  %v4872 = vld [vmem:[%s1 + $0x16c] sm:$0xf]
  %v4873 = vld [vmem:[%s1 + $0x170] sm:$0xf]
  %v4874 = vld [vmem:[%s1 + $0x174] sm:$0xf]
  %v4875 = vld [vmem:[%s1 + $0x178] sm:$0xf]
  %v4876 = vld [vmem:[%s1 + $0x17c] sm:$0xf]
  %v4877 = vld [vmem:[%s1 + $0x180] sm:$0xf]
  %v4878 = vld [vmem:[%s1 + $0x184] sm:$0xf]
  %v4879 = vld [vmem:[%s1 + $0x188] sm:$0xf]
  %v4880 = vld [vmem:[%s1 + $0x18c] sm:$0xf]
  %v4881 = vld [vmem:[%s1 + $0x190] sm:$0xf]
  %v4882 = vld [vmem:[%s1 + $0x194] sm:$0xf]
  %v4883 = vld [vmem:[%s1 + $0x198] sm:$0xf]
  %v4884 = vld [vmem:[%s1 + $0x19c] sm:$0xf]
  %v4885 = vld [vmem:[%s1 + $0x1a0] sm:$0xf]
  %v4886 = vld [vmem:[%s1 + $0x1a4] sm:$0xf]
  %v4887 = vld [vmem:[%s1 + $0x1a8] sm:$0xf]
  %v4888 = vld [vmem:[%s1 + $0x1ac] sm:$0xf]
  %v4889 = vld [vmem:[%s1 + $0x1b0] sm:$0xf]
  %v4890 = vld [vmem:[%s1 + $0x1b4] sm:$0xf]
  %v4891 = vld [vmem:[%s1 + $0x1b8] sm:$0xf]
  %v4892 = vld [vmem:[%s1 + $0x1bc] sm:$0xf]
  %v4893 = vld [vmem:[%s1 + $0x1c0] sm:$0xf]
  %v4894 = vld [vmem:[%s1 + $0x1c4] sm:$0xf]
  %v4895 = vld [vmem:[%s1 + $0x1c8] sm:$0xf]
  %v4896 = vld [vmem:[%s1 + $0x1cc] sm:$0xf]
  %v4897 = vld [vmem:[%s1 + $0x1d0] sm:$0xf]
  %v4898 = vld [vmem:[%s1 + $0x1d4] sm:$0xf]
  %v4899 = vld [vmem:[%s1 + $0x1d8] sm:$0xf]
  %v4900 = vld [vmem:[%s1 + $0x1dc] sm:$0xf]
  %v4901 = vld [vmem:[%s1 + $0x1e0] sm:$0xf]
  %v4902 = vld [vmem:[%s1 + $0x1e4] sm:$0xf]
  %v4903 = vld [vmem:[%s1 + $0x1e8] sm:$0xf]
  %v4904 = vld [vmem:[%s1 + $0x1ec] sm:$0xf]
  %v4905 = vld [vmem:[%s1 + $0x1f0] sm:$0xf]
  %v4906 = vld [vmem:[%s1 + $0x1f4] sm:$0xf]
  %v4907 = vld [vmem:[%s1 + $0x1f8] sm:$0xf]
  %v4908 = vld [vmem:[%s1 + $0x1fc] sm:$0xf]
  %v4909 = vld [vmem:[%s1 + $0x200] sm:$0xf]
  %v4910 = vld [vmem:[%s1 + $0x204] sm:$0xf]
  %v4911 = vld [vmem:[%s1 + $0x208] sm:$0xf]
  %v4912 = vld [vmem:[%s1 + $0x20c] sm:$0xf]
  %v4913 = vld [vmem:[%s1 + $0x210] sm:$0xf]
  %v4914 = vld [vmem:[%s1 + $0x214] sm:$0xf]
  %v4915 = vld [vmem:[%s1 + $0x218] sm:$0xf]
  %v4916 = vld [vmem:[%s1 + $0x21c] sm:$0xf]
  %v4917 = vld [vmem:[%s1 + $0x220] sm:$0xf]
  %v4918 = vld [vmem:[%s1 + $0x224] sm:$0xf]
  %v4919 = vld [vmem:[%s1 + $0x228] sm:$0xf]
  %v4920 = vld [vmem:[%s1 + $0x22c] sm:$0xf]
  %v4921 = vld [vmem:[%s1 + $0x230] sm:$0xf]
  %v4922 = vld [vmem:[%s1 + $0x234] sm:$0xf]
  %v4923 = vld [vmem:[%s1 + $0x238] sm:$0xf]
  %v4924 = vld [vmem:[%s1 + $0x23c] sm:$0xf]
  %v4925 = vld [vmem:[%s2] sm:$0x1]
  %v4927 = vperm.slane %v4925, 0
  %v5089 = vunpack.c.l.b16 %v4621
  %v5090 = vunpack.c.h.b16 %v4621
  %v5091 = vunpack.c.l.b16 %v4622
  %v5092 = vunpack.c.h.b16 %v4622
  %v5093 = vunpack.c.l.b16 %v4623
  %v5094 = vunpack.c.h.b16 %v4623
  %v5095 = vunpack.c.l.b16 %v4624
  %v5096 = vunpack.c.h.b16 %v4624
  %v5097 = vunpack.c.l.b16 %v4625
  %v5098 = vunpack.c.l.b16 %v4626
  %v5099 = vunpack.c.h.b16 %v4626
  %v5100 = vunpack.c.l.b16 %v4627
  %v5101 = vunpack.c.h.b16 %v4627
  %v5102 = vunpack.c.l.b16 %v4628
  %v5103 = vunpack.c.h.b16 %v4628
  %v5104 = vunpack.c.l.b16 %v4629
  %v5105 = vunpack.c.h.b16 %v4629
  %v5106 = vunpack.c.l.b16 %v4630
  %v5107 = vunpack.c.l.b16 %v4631
  %v5108 = vunpack.c.h.b16 %v4631
  %v5109 = vunpack.c.l.b16 %v4632
  %v5110 = vunpack.c.h.b16 %v4632
  %v5111 = vunpack.c.l.b16 %v4633
  %v5112 = vunpack.c.h.b16 %v4633
  %v5113 = vunpack.c.l.b16 %v4634
  %v5114 = vunpack.c.h.b16 %v4634
  %v5115 = vunpack.c.l.b16 %v4635
  %v5116 = vunpack.c.l.b16 %v4636
  %v5117 = vunpack.c.h.b16 %v4636
  %v5118 = vunpack.c.l.b16 %v4637
  %v5119 = vunpack.c.h.b16 %v4637
  %v5120 = vunpack.c.l.b16 %v4638
  %v5121 = vunpack.c.h.b16 %v4638
  %v5122 = vunpack.c.l.b16 %v4639
  %v5123 = vunpack.c.h.b16 %v4639
  %v5124 = vunpack.c.l.b16 %v4640
  %v5125 = vunpack.c.l.b16 %v4641
  %v5126 = vunpack.c.h.b16 %v4641
  %v5127 = vunpack.c.l.b16 %v4642
  %v5128 = vunpack.c.h.b16 %v4642
  %v5129 = vunpack.c.l.b16 %v4643
  %v5130 = vunpack.c.h.b16 %v4643
  %v5131 = vunpack.c.l.b16 %v4644
  %v5132 = vunpack.c.h.b16 %v4644
  %v5133 = vunpack.c.l.b16 %v4645
  %v5134 = vunpack.c.l.b16 %v4646
  %v5135 = vunpack.c.h.b16 %v4646
  %v5136 = vunpack.c.l.b16 %v4647
  %v5137 = vunpack.c.h.b16 %v4647
  %v5138 = vunpack.c.l.b16 %v4648
  %v5139 = vunpack.c.h.b16 %v4648
  %v5140 = vunpack.c.l.b16 %v4649
  %v5141 = vunpack.c.h.b16 %v4649
  %v5142 = vunpack.c.l.b16 %v4650
  %v5143 = vunpack.c.l.b16 %v4651
  %v5144 = vunpack.c.h.b16 %v4651
  %v5145 = vunpack.c.l.b16 %v4652
  %v5146 = vunpack.c.h.b16 %v4652
  %v5147 = vunpack.c.l.b16 %v4653
  %v5148 = vunpack.c.h.b16 %v4653
  %v5149 = vunpack.c.l.b16 %v4654
  %v5150 = vunpack.c.h.b16 %v4654
  %v5151 = vunpack.c.l.b16 %v4655
  %v5152 = vunpack.c.l.b16 %v4656
  %v5153 = vunpack.c.h.b16 %v4656
  %v5154 = vunpack.c.l.b16 %v4657
  %v5155 = vunpack.c.h.b16 %v4657
  %v5156 = vunpack.c.l.b16 %v4658
  %v5157 = vunpack.c.h.b16 %v4658
  %v5158 = vunpack.c.l.b16 %v4659
  %v5159 = vunpack.c.h.b16 %v4659
  %v5160 = vunpack.c.l.b16 %v4660
  %v5161 = vunpack.c.l.b16 %v4661
  %v5162 = vunpack.c.h.b16 %v4661
  %v5163 = vunpack.c.l.b16 %v4662
  %v5164 = vunpack.c.h.b16 %v4662
  %v5165 = vunpack.c.l.b16 %v4663
  %v5166 = vunpack.c.h.b16 %v4663
  %v5167 = vunpack.c.l.b16 %v4664
  %v5168 = vunpack.c.h.b16 %v4664
  %v5169 = vunpack.c.l.b16 %v4665
  %v5170 = vunpack.c.l.b16 %v4666
  %v5171 = vunpack.c.h.b16 %v4666
  %v5172 = vunpack.c.l.b16 %v4667
  %v5173 = vunpack.c.h.b16 %v4667
  %v5174 = vunpack.c.l.b16 %v4668
  %v5175 = vunpack.c.h.b16 %v4668
  %v5176 = vunpack.c.l.b16 %v4669
  %v5177 = vunpack.c.h.b16 %v4669
  %v5178 = vunpack.c.l.b16 %v4670
  %v5179 = vunpack.c.l.b16 %v4671
  %v5180 = vunpack.c.h.b16 %v4671
  %v5181 = vunpack.c.l.b16 %v4672
  %v5182 = vunpack.c.h.b16 %v4672
  %v5183 = vunpack.c.l.b16 %v4673
  %v5184 = vunpack.c.h.b16 %v4673
  %v5185 = vunpack.c.l.b16 %v4674
  %v5186 = vunpack.c.h.b16 %v4674
  %v5187 = vunpack.c.l.b16 %v4675
  %v5188 = vunpack.c.l.b16 %v4676
  %v5189 = vunpack.c.h.b16 %v4676
  %v5190 = vunpack.c.l.b16 %v4677
  %v5191 = vunpack.c.h.b16 %v4677
  %v5192 = vunpack.c.l.b16 %v4678
  %v5193 = vunpack.c.h.b16 %v4678
  %v5194 = vunpack.c.l.b16 %v4679
  %v5195 = vunpack.c.h.b16 %v4679
  %v5196 = vunpack.c.l.b16 %v4680
  %v5197 = vunpack.c.l.b16 %v4681
  %v5198 = vunpack.c.h.b16 %v4681
  %v5199 = vunpack.c.l.b16 %v4682
  %v5200 = vunpack.c.h.b16 %v4682
  %v5201 = vunpack.c.l.b16 %v4683
  %v5202 = vunpack.c.h.b16 %v4683
  %v5203 = vunpack.c.l.b16 %v4684
  %v5204 = vunpack.c.h.b16 %v4684
  %v5205 = vunpack.c.l.b16 %v4685
  %v5206 = vunpack.c.l.b16 %v4686
  %v5207 = vunpack.c.h.b16 %v4686
  %v5208 = vunpack.c.l.b16 %v4687
  %v5209 = vunpack.c.h.b16 %v4687
  %v5210 = vunpack.c.l.b16 %v4688
  %v5211 = vunpack.c.h.b16 %v4688
  %v5212 = vunpack.c.l.b16 %v4689
  %v5213 = vunpack.c.h.b16 %v4689
  %v5214 = vunpack.c.l.b16 %v4690
  %v5215 = vunpack.c.l.b16 %v4691
  %v5216 = vunpack.c.h.b16 %v4691
  %v5217 = vunpack.c.l.b16 %v4692
  %v5218 = vunpack.c.h.b16 %v4692
  %v5219 = vunpack.c.l.b16 %v4693
  %v5220 = vunpack.c.h.b16 %v4693
  %v5221 = vunpack.c.l.b16 %v4694
  %v5222 = vunpack.c.h.b16 %v4694
  %v5223 = vunpack.c.l.b16 %v4695
  %v5224 = vunpack.c.l.b16 %v4696
  %v5225 = vunpack.c.h.b16 %v4696
  %v5226 = vunpack.c.l.b16 %v4697
  %v5227 = vunpack.c.h.b16 %v4697
  %v5228 = vunpack.c.l.b16 %v4698
  %v5229 = vunpack.c.h.b16 %v4698
  %v5230 = vunpack.c.l.b16 %v4699
  %v5231 = vunpack.c.h.b16 %v4699
  %v5232 = vunpack.c.l.b16 %v4700
  %v5233 = vunpack.c.l.b16 %v4701
  %v5234 = vunpack.c.h.b16 %v4701
  %v5235 = vunpack.c.l.b16 %v4702
  %v5236 = vunpack.c.h.b16 %v4702
  %v5237 = vunpack.c.l.b16 %v4703
  %v5238 = vunpack.c.h.b16 %v4703
  %v5239 = vunpack.c.l.b16 %v4704
  %v5240 = vunpack.c.h.b16 %v4704
  %v5241 = vunpack.c.l.b16 %v4705
  %v5242 = vunpack.c.l.b16 %v4706
  %v5243 = vunpack.c.h.b16 %v4706
  %v5244 = vunpack.c.l.b16 %v4707
  %v5245 = vunpack.c.h.b16 %v4707
  %v5246 = vunpack.c.l.b16 %v4708
  %v5247 = vunpack.c.h.b16 %v4708
  %v5248 = vunpack.c.l.b16 %v4709
  %v5249 = vunpack.c.h.b16 %v4709
  %v5250 = vunpack.c.l.b16 %v4710
  %v5251 = vunpack.c.l.b16 %v4711
  %v5252 = vunpack.c.h.b16 %v4711
  %v5253 = vunpack.c.l.b16 %v4712
  %v5254 = vunpack.c.h.b16 %v4712
  %v5255 = vunpack.c.l.b16 %v4713
  %v5256 = vunpack.c.h.b16 %v4713
  %v5257 = vunpack.c.l.b16 %v4714
  %v5258 = vunpack.c.h.b16 %v4714
  %v5259 = vunpack.c.l.b16 %v4715
  %v5260 = vunpack.c.l.b16 %v4716
  %v5261 = vunpack.c.h.b16 %v4716
  %v5262 = vunpack.c.l.b16 %v4717
  %v5263 = vunpack.c.h.b16 %v4717
  %v5264 = vunpack.c.l.b16 %v4718
  %v5265 = vunpack.c.h.b16 %v4718
  %v5266 = vunpack.c.l.b16 %v4719
  %v5267 = vunpack.c.h.b16 %v4719
  %v5268 = vunpack.c.l.b16 %v4720
  %v5269 = vunpack.c.l.b16 %v4721
  %v5270 = vunpack.c.h.b16 %v4721
  %v5271 = vunpack.c.l.b16 %v4722
  %v5272 = vunpack.c.h.b16 %v4722
  %v5273 = vunpack.c.l.b16 %v4723
  %v5274 = vunpack.c.h.b16 %v4723
  %v5275 = vunpack.c.l.b16 %v4724
  %v5276 = vunpack.c.h.b16 %v4724
  %v5277 = vunpack.c.l.b16 %v4725
  %v5278 = vunpack.c.l.b16 %v4726
  %v5279 = vunpack.c.h.b16 %v4726
  %v5280 = vunpack.c.l.b16 %v4727
  %v5281 = vunpack.c.h.b16 %v4727
  %v5282 = vunpack.c.l.b16 %v4728
  %v5283 = vunpack.c.h.b16 %v4728
  %v5284 = vunpack.c.l.b16 %v4729
  %v5285 = vunpack.c.h.b16 %v4729
  %v5286 = vunpack.c.l.b16 %v4730
  %v5287 = vunpack.c.l.b16 %v4731
  %v5288 = vunpack.c.h.b16 %v4731
  %v5289 = vunpack.c.l.b16 %v4732
  %v5290 = vunpack.c.h.b16 %v4732
  %v5291 = vunpack.c.l.b16 %v4733
  %v5292 = vunpack.c.h.b16 %v4733
  %v5293 = vunpack.c.l.b16 %v4734
  %v5294 = vunpack.c.h.b16 %v4734
  %v5295 = vunpack.c.l.b16 %v4735
  %v5296 = vunpack.c.l.b16 %v4736
  %v5297 = vunpack.c.h.b16 %v4736
  %v5298 = vunpack.c.l.b16 %v4737
  %v5299 = vunpack.c.h.b16 %v4737
  %v5300 = vunpack.c.l.b16 %v4738
  %v5301 = vunpack.c.h.b16 %v4738
  %v5302 = vunpack.c.l.b16 %v4739
  %v5303 = vunpack.c.h.b16 %v4739
  %v5304 = vunpack.c.l.b16 %v4740
  %v5305 = vunpack.c.l.b16 %v4741
  %v5306 = vunpack.c.h.b16 %v4741
  %v5307 = vunpack.c.l.b16 %v4742
  %v5308 = vunpack.c.h.b16 %v4742
  %v5309 = vunpack.c.l.b16 %v4743
  %v5310 = vunpack.c.h.b16 %v4743
  %v5311 = vunpack.c.l.b16 %v4744
  %v5312 = vunpack.c.h.b16 %v4744
  %v5313 = vunpack.c.l.b16 %v4745
  %v5314 = vunpack.c.l.b16 %v4746
  %v5315 = vunpack.c.h.b16 %v4746
  %v5316 = vunpack.c.l.b16 %v4747
  %v5317 = vunpack.c.h.b16 %v4747
  %v5318 = vunpack.c.l.b16 %v4748
  %v5319 = vunpack.c.h.b16 %v4748
  %v5320 = vunpack.c.l.b16 %v4749
  %v5321 = vunpack.c.h.b16 %v4749
  %v5322 = vunpack.c.l.b16 %v4750
  %v5323 = vunpack.c.l.b16 %v4751
  %v5324 = vunpack.c.h.b16 %v4751
  %v5325 = vunpack.c.l.b16 %v4752
  %v5326 = vunpack.c.h.b16 %v4752
  %v5327 = vunpack.c.l.b16 %v4753
  %v5328 = vunpack.c.h.b16 %v4753
  %v5329 = vunpack.c.l.b16 %v4754
  %v5330 = vunpack.c.h.b16 %v4754
  %v5331 = vunpack.c.l.b16 %v4755
  %v5332 = vunpack.c.l.b16 %v4756
  %v5333 = vunpack.c.h.b16 %v4756
  %v5334 = vunpack.c.l.b16 %v4757
  %v5335 = vunpack.c.h.b16 %v4757
  %v5336 = vunpack.c.l.b16 %v4758
  %v5337 = vunpack.c.h.b16 %v4758
  %v5338 = vunpack.c.l.b16 %v4759
  %v5339 = vunpack.c.h.b16 %v4759
  %v5340 = vunpack.c.l.b16 %v4760
  %v5341 = vunpack.c.l.b16 %v4761
  %v5342 = vunpack.c.h.b16 %v4761
  %v5343 = vunpack.c.l.b16 %v4762
  %v5344 = vunpack.c.h.b16 %v4762
  %v5345 = vunpack.c.l.b16 %v4763
  %v5346 = vunpack.c.h.b16 %v4763
  %v5347 = vunpack.c.l.b16 %v4764
  %v5348 = vunpack.c.h.b16 %v4764
  %v5349 = vunpack.c.l.b16 %v4765
  %v5350 = vunpack.c.l.b16 %v4766
  %v5351 = vunpack.c.h.b16 %v4766
  %v5352 = vunpack.c.l.b16 %v4767
  %v5353 = vunpack.c.h.b16 %v4767
  %v5354 = vunpack.c.l.b16 %v4768
  %v5355 = vunpack.c.h.b16 %v4768
  %v5356 = vunpack.c.l.b16 %v4769
  %v5357 = vunpack.c.h.b16 %v4769
  %v5358 = vunpack.c.l.b16 %v4770
  %v5359 = vunpack.c.l.b16 %v4771
  %v5360 = vunpack.c.h.b16 %v4771
  %v5361 = vunpack.c.l.b16 %v4772
  %v5362 = vunpack.c.h.b16 %v4772
  %v5363 = vunpack.c.l.b16 %v4773
  %v5364 = vunpack.c.h.b16 %v4773
  %v5365 = vunpack.c.l.b16 %v4774
  %v5366 = vunpack.c.h.b16 %v4774
  %v5367 = vunpack.c.l.b16 %v4775
  %v5368 = vunpack.c.l.b16 %v4776
  %v5369 = vunpack.c.h.b16 %v4776
  %v5370 = vunpack.c.l.b16 %v4777
  %v5371 = vunpack.c.h.b16 %v4777
  %v5372 = vunpack.c.l.b16 %v4778
  %v5373 = vunpack.c.h.b16 %v4778
  %v5374 = vunpack.c.l.b16 %v4779
  %v5375 = vunpack.c.h.b16 %v4779
  %v5376 = vunpack.c.l.b16 %v4780
  %v5377 = vpack.c.b16 %v5098, %v5089
  %v5378 = vpack.c.b16 %v5099, %v5090
  %v5379 = vpack.c.b16 %v5100, %v5091
  %v5380 = vpack.c.b16 %v5101, %v5092
  %v5381 = vpack.c.b16 %v5102, %v5093
  %v5382 = vpack.c.b16 %v5103, %v5094
  %v5383 = vpack.c.b16 %v5104, %v5095
  %v5384 = vpack.c.b16 %v5105, %v5096
  %v5385 = vpack.c.b16 %v5106, %v5097
  %v5386 = vpack.c.b16 %v5116, %v5107
  %v5387 = vpack.c.b16 %v5117, %v5108
  %v5388 = vpack.c.b16 %v5118, %v5109
  %v5389 = vpack.c.b16 %v5119, %v5110
  %v5390 = vpack.c.b16 %v5120, %v5111
  %v5391 = vpack.c.b16 %v5121, %v5112
  %v5392 = vpack.c.b16 %v5122, %v5113
  %v5393 = vpack.c.b16 %v5123, %v5114
  %v5394 = vpack.c.b16 %v5124, %v5115
  %v5395 = vpack.c.b16 %v5134, %v5125
  %v5396 = vpack.c.b16 %v5135, %v5126
  %v5397 = vpack.c.b16 %v5136, %v5127
  %v5398 = vpack.c.b16 %v5137, %v5128
  %v5399 = vpack.c.b16 %v5138, %v5129
  %v5400 = vpack.c.b16 %v5139, %v5130
  %v5401 = vpack.c.b16 %v5140, %v5131
  %v5402 = vpack.c.b16 %v5141, %v5132
  %v5403 = vpack.c.b16 %v5142, %v5133
  %v5404 = vpack.c.b16 %v5152, %v5143
  %v5405 = vpack.c.b16 %v5153, %v5144
  %v5406 = vpack.c.b16 %v5154, %v5145
  %v5407 = vpack.c.b16 %v5155, %v5146
  %v5408 = vpack.c.b16 %v5156, %v5147
  %v5409 = vpack.c.b16 %v5157, %v5148
  %v5410 = vpack.c.b16 %v5158, %v5149
  %v5411 = vpack.c.b16 %v5159, %v5150
  %v5412 = vpack.c.b16 %v5160, %v5151
  %v5413 = vpack.c.b16 %v5170, %v5161
  %v5414 = vpack.c.b16 %v5171, %v5162
  %v5415 = vpack.c.b16 %v5172, %v5163
  %v5416 = vpack.c.b16 %v5173, %v5164
  %v5417 = vpack.c.b16 %v5174, %v5165
  %v5418 = vpack.c.b16 %v5175, %v5166
  %v5419 = vpack.c.b16 %v5176, %v5167
  %v5420 = vpack.c.b16 %v5177, %v5168
  %v5421 = vpack.c.b16 %v5178, %v5169
  %v5422 = vpack.c.b16 %v5188, %v5179
  %v5423 = vpack.c.b16 %v5189, %v5180
  %v5424 = vpack.c.b16 %v5190, %v5181
  %v5425 = vpack.c.b16 %v5191, %v5182
  %v5426 = vpack.c.b16 %v5192, %v5183
  %v5427 = vpack.c.b16 %v5193, %v5184
  %v5428 = vpack.c.b16 %v5194, %v5185
  %v5429 = vpack.c.b16 %v5195, %v5186
  %v5430 = vpack.c.b16 %v5196, %v5187
  %v5431 = vpack.c.b16 %v5206, %v5197
  %v5432 = vpack.c.b16 %v5207, %v5198
  %v5433 = vpack.c.b16 %v5208, %v5199
  %v5434 = vpack.c.b16 %v5209, %v5200
  %v5435 = vpack.c.b16 %v5210, %v5201
  %v5436 = vpack.c.b16 %v5211, %v5202
  %v5437 = vpack.c.b16 %v5212, %v5203
  %v5438 = vpack.c.b16 %v5213, %v5204
  %v5439 = vpack.c.b16 %v5214, %v5205
  %v5440 = vpack.c.b16 %v5224, %v5215
  %v5441 = vpack.c.b16 %v5225, %v5216
  %v5442 = vpack.c.b16 %v5226, %v5217
  %v5443 = vpack.c.b16 %v5227, %v5218
  %v5444 = vpack.c.b16 %v5228, %v5219
  %v5445 = vpack.c.b16 %v5229, %v5220
  %v5446 = vpack.c.b16 %v5230, %v5221
  %v5447 = vpack.c.b16 %v5231, %v5222
  %v5448 = vpack.c.b16 %v5232, %v5223
  %v5449 = vpack.c.b16 %v5242, %v5233
  %v5450 = vpack.c.b16 %v5243, %v5234
  %v5451 = vpack.c.b16 %v5244, %v5235
  %v5452 = vpack.c.b16 %v5245, %v5236
  %v5453 = vpack.c.b16 %v5246, %v5237
  %v5454 = vpack.c.b16 %v5247, %v5238
  %v5455 = vpack.c.b16 %v5248, %v5239
  %v5456 = vpack.c.b16 %v5249, %v5240
  %v5457 = vpack.c.b16 %v5250, %v5241
  %v5458 = vpack.c.b16 %v5260, %v5251
  %v5459 = vpack.c.b16 %v5261, %v5252
  %v5460 = vpack.c.b16 %v5262, %v5253
  %v5461 = vpack.c.b16 %v5263, %v5254
  %v5462 = vpack.c.b16 %v5264, %v5255
  %v5463 = vpack.c.b16 %v5265, %v5256
  %v5464 = vpack.c.b16 %v5266, %v5257
  %v5465 = vpack.c.b16 %v5267, %v5258
  %v5466 = vpack.c.b16 %v5268, %v5259
  %v5467 = vpack.c.b16 %v5278, %v5269
  %v5468 = vpack.c.b16 %v5279, %v5270
  %v5469 = vpack.c.b16 %v5280, %v5271
  %v5470 = vpack.c.b16 %v5281, %v5272
  %v5471 = vpack.c.b16 %v5282, %v5273
  %v5472 = vpack.c.b16 %v5283, %v5274
  %v5473 = vpack.c.b16 %v5284, %v5275
  %v5474 = vpack.c.b16 %v5285, %v5276
  %v5475 = vpack.c.b16 %v5286, %v5277
  %v5476 = vpack.c.b16 %v5296, %v5287
  %v5477 = vpack.c.b16 %v5297, %v5288
  %v5478 = vpack.c.b16 %v5298, %v5289
  %v5479 = vpack.c.b16 %v5299, %v5290
  %v5480 = vpack.c.b16 %v5300, %v5291
  %v5481 = vpack.c.b16 %v5301, %v5292
  %v5482 = vpack.c.b16 %v5302, %v5293
  %v5483 = vpack.c.b16 %v5303, %v5294
  %v5484 = vpack.c.b16 %v5304, %v5295
  %v5485 = vpack.c.b16 %v5314, %v5305
  %v5486 = vpack.c.b16 %v5315, %v5306
  %v5487 = vpack.c.b16 %v5316, %v5307
  %v5488 = vpack.c.b16 %v5317, %v5308
  %v5489 = vpack.c.b16 %v5318, %v5309
  %v5490 = vpack.c.b16 %v5319, %v5310
  %v5491 = vpack.c.b16 %v5320, %v5311
  %v5492 = vpack.c.b16 %v5321, %v5312
  %v5493 = vpack.c.b16 %v5322, %v5313
  %v5494 = vpack.c.b16 %v5332, %v5323
  %v5495 = vpack.c.b16 %v5333, %v5324
  %v5496 = vpack.c.b16 %v5334, %v5325
  %v5497 = vpack.c.b16 %v5335, %v5326
  %v5498 = vpack.c.b16 %v5336, %v5327
  %v5499 = vpack.c.b16 %v5337, %v5328
  %v5500 = vpack.c.b16 %v5338, %v5329
  %v5501 = vpack.c.b16 %v5339, %v5330
  %v5502 = vpack.c.b16 %v5340, %v5331
  %v5503 = vpack.c.b16 %v5350, %v5341
  %v5504 = vpack.c.b16 %v5351, %v5342
  %v5505 = vpack.c.b16 %v5352, %v5343
  %v5506 = vpack.c.b16 %v5353, %v5344
  %v5507 = vpack.c.b16 %v5354, %v5345
  %v5508 = vpack.c.b16 %v5355, %v5346
  %v5509 = vpack.c.b16 %v5356, %v5347
  %v5510 = vpack.c.b16 %v5357, %v5348
  %v5511 = vpack.c.b16 %v5358, %v5349
  %v5512 = vpack.c.b16 %v5368, %v5359
  %v5513 = vpack.c.b16 %v5369, %v5360
  %v5514 = vpack.c.b16 %v5370, %v5361
  %v5515 = vpack.c.b16 %v5371, %v5362
  %v5516 = vpack.c.b16 %v5372, %v5363
  %v5517 = vpack.c.b16 %v5373, %v5364
  %v5518 = vpack.c.b16 %v5374, %v5365
  %v5519 = vpack.c.b16 %v5375, %v5366
  %v5520 = vpack.c.b16 %v5376, %v5367
  %v5809 = vunpack.c.l.b16 %v4781
  %v5810 = vunpack.c.l.b16 %v4782
  %v5811 = vunpack.c.l.b16 %v4783
  %v5812 = vunpack.c.l.b16 %v4784
  %v5813 = vunpack.c.l.b16 %v4785
  %v5814 = vunpack.c.l.b16 %v4786
  %v5815 = vunpack.c.l.b16 %v4787
  %v5816 = vunpack.c.l.b16 %v4788
  %v5817 = vunpack.c.l.b16 %v4789
  %v5818 = vunpack.c.l.b16 %v4790
  %v5819 = vunpack.c.l.b16 %v4791
  %v5820 = vunpack.c.l.b16 %v4792
  %v5821 = vunpack.c.l.b16 %v4793
  %v5822 = vunpack.c.l.b16 %v4794
  %v5823 = vunpack.c.l.b16 %v4795
  %v5824 = vunpack.c.l.b16 %v4796
  %v5825 = vunpack.c.l.b16 %v4797
  %v5826 = vunpack.c.l.b16 %v4798
  %v5827 = vunpack.c.l.b16 %v4799
  %v5828 = vunpack.c.l.b16 %v4800
  %v5829 = vunpack.c.l.b16 %v4801
  %v5830 = vunpack.c.l.b16 %v4802
  %v5831 = vunpack.c.l.b16 %v4803
  %v5832 = vunpack.c.l.b16 %v4804
  %v5833 = vunpack.c.l.b16 %v4805
  %v5834 = vunpack.c.l.b16 %v4806
  %v5835 = vunpack.c.l.b16 %v4807
  %v5836 = vunpack.c.l.b16 %v4808
  %v5837 = vunpack.c.l.b16 %v4809
  %v5838 = vunpack.c.l.b16 %v4810
  %v5839 = vunpack.c.l.b16 %v4811
  %v5840 = vunpack.c.l.b16 %v4812
  %v5841 = vunpack.c.l.b16 %v4813
  %v5842 = vunpack.c.l.b16 %v4814
  %v5843 = vunpack.c.l.b16 %v4815
  %v5844 = vunpack.c.l.b16 %v4816
  %v5845 = vunpack.c.l.b16 %v4817
  %v5846 = vunpack.c.l.b16 %v4818
  %v5847 = vunpack.c.l.b16 %v4819
  %v5848 = vunpack.c.l.b16 %v4820
  %v5849 = vunpack.c.l.b16 %v4821
  %v5850 = vunpack.c.l.b16 %v4822
  %v5851 = vunpack.c.l.b16 %v4823
  %v5852 = vunpack.c.l.b16 %v4824
  %v5853 = vunpack.c.l.b16 %v4825
  %v5854 = vunpack.c.l.b16 %v4826
  %v5855 = vunpack.c.l.b16 %v4827
  %v5856 = vunpack.c.l.b16 %v4828
  %v5857 = vunpack.c.l.b16 %v4829
  %v5858 = vunpack.c.l.b16 %v4830
  %v5859 = vunpack.c.l.b16 %v4831
  %v5860 = vunpack.c.l.b16 %v4832
  %v5861 = vunpack.c.l.b16 %v4833
  %v5862 = vunpack.c.l.b16 %v4834
  %v5863 = vunpack.c.l.b16 %v4835
  %v5864 = vunpack.c.l.b16 %v4836
  %v5865 = vunpack.c.l.b16 %v4837
  %v5866 = vunpack.c.l.b16 %v4838
  %v5867 = vunpack.c.l.b16 %v4839
  %v5868 = vunpack.c.l.b16 %v4840
  %v5869 = vunpack.c.l.b16 %v4841
  %v5870 = vunpack.c.l.b16 %v4842
  %v5871 = vunpack.c.l.b16 %v4843
  %v5872 = vunpack.c.l.b16 %v4844
  %v5873 = vunpack.c.l.b16 %v4845
  %v5874 = vunpack.c.l.b16 %v4846
  %v5875 = vunpack.c.l.b16 %v4847
  %v5876 = vunpack.c.l.b16 %v4848
  %v5877 = vunpack.c.l.b16 %v4849
  %v5878 = vunpack.c.l.b16 %v4850
  %v5879 = vunpack.c.l.b16 %v4851
  %v5880 = vunpack.c.l.b16 %v4852
  %v5881 = vunpack.c.l.b16 %v4853
  %v5882 = vunpack.c.l.b16 %v4854
  %v5883 = vunpack.c.l.b16 %v4855
  %v5884 = vunpack.c.l.b16 %v4856
  %v5885 = vunpack.c.l.b16 %v4857
  %v5886 = vunpack.c.l.b16 %v4858
  %v5887 = vunpack.c.l.b16 %v4859
  %v5888 = vunpack.c.l.b16 %v4860
  %v5889 = vunpack.c.l.b16 %v4861
  %v5890 = vunpack.c.l.b16 %v4862
  %v5891 = vunpack.c.l.b16 %v4863
  %v5892 = vunpack.c.l.b16 %v4864
  %v5893 = vunpack.c.l.b16 %v4865
  %v5894 = vunpack.c.l.b16 %v4866
  %v5895 = vunpack.c.l.b16 %v4867
  %v5896 = vunpack.c.l.b16 %v4868
  %v5897 = vunpack.c.l.b16 %v4869
  %v5898 = vunpack.c.l.b16 %v4870
  %v5899 = vunpack.c.l.b16 %v4871
  %v5900 = vunpack.c.l.b16 %v4872
  %v5901 = vunpack.c.l.b16 %v4873
  %v5902 = vunpack.c.l.b16 %v4874
  %v5903 = vunpack.c.l.b16 %v4875
  %v5904 = vunpack.c.l.b16 %v4876
  %v5905 = vunpack.c.l.b16 %v4877
  %v5906 = vunpack.c.l.b16 %v4878
  %v5907 = vunpack.c.l.b16 %v4879
  %v5908 = vunpack.c.l.b16 %v4880
  %v5909 = vunpack.c.l.b16 %v4881
  %v5910 = vunpack.c.l.b16 %v4882
  %v5911 = vunpack.c.l.b16 %v4883
  %v5912 = vunpack.c.l.b16 %v4884
  %v5913 = vunpack.c.l.b16 %v4885
  %v5914 = vunpack.c.l.b16 %v4886
  %v5915 = vunpack.c.l.b16 %v4887
  %v5916 = vunpack.c.l.b16 %v4888
  %v5917 = vunpack.c.l.b16 %v4889
  %v5918 = vunpack.c.l.b16 %v4890
  %v5919 = vunpack.c.l.b16 %v4891
  %v5920 = vunpack.c.l.b16 %v4892
  %v5921 = vunpack.c.l.b16 %v4893
  %v5922 = vunpack.c.l.b16 %v4894
  %v5923 = vunpack.c.l.b16 %v4895
  %v5924 = vunpack.c.l.b16 %v4896
  %v5925 = vunpack.c.l.b16 %v4897
  %v5926 = vunpack.c.l.b16 %v4898
  %v5927 = vunpack.c.l.b16 %v4899
  %v5928 = vunpack.c.l.b16 %v4900
  %v5929 = vunpack.c.l.b16 %v4901
  %v5930 = vunpack.c.l.b16 %v4902
  %v5931 = vunpack.c.l.b16 %v4903
  %v5932 = vunpack.c.l.b16 %v4904
  %v5933 = vunpack.c.l.b16 %v4905
  %v5934 = vunpack.c.l.b16 %v4906
  %v5935 = vunpack.c.l.b16 %v4907
  %v5936 = vunpack.c.l.b16 %v4908
  %v5937 = vunpack.c.l.b16 %v4909
  %v5938 = vunpack.c.l.b16 %v4910
  %v5939 = vunpack.c.l.b16 %v4911
  %v5940 = vunpack.c.l.b16 %v4912
  %v5941 = vunpack.c.l.b16 %v4913
  %v5942 = vunpack.c.l.b16 %v4914
  %v5943 = vunpack.c.l.b16 %v4915
  %v5944 = vunpack.c.l.b16 %v4916
  %v5945 = vunpack.c.l.b16 %v4917
  %v5946 = vunpack.c.l.b16 %v4918
  %v5947 = vunpack.c.l.b16 %v4919
  %v5948 = vunpack.c.l.b16 %v4920
  %v5949 = vunpack.c.l.b16 %v4921
  %v5950 = vunpack.c.l.b16 %v4922
  %v5951 = vunpack.c.l.b16 %v4923
  %v5952 = vunpack.c.l.b16 %v4924
  %v5953 = vpack.c.b16 %v5810, %v5809
  %v5954 = vpack.c.b16 %v5812, %v5811
  %v5955 = vpack.c.b16 %v5814, %v5813
  %v5956 = vpack.c.b16 %v5816, %v5815
  %v5957 = vpack.c.b16 %v5818, %v5817
  %v5958 = vpack.c.b16 %v5820, %v5819
  %v5959 = vpack.c.b16 %v5822, %v5821
  %v5960 = vpack.c.b16 %v5824, %v5823
  %v5961 = vpack.c.b16 %v5826, %v5825
  %v5962 = vpack.c.b16 %v5828, %v5827
  %v5963 = vpack.c.b16 %v5830, %v5829
  %v5964 = vpack.c.b16 %v5832, %v5831
  %v5965 = vpack.c.b16 %v5834, %v5833
  %v5966 = vpack.c.b16 %v5836, %v5835
  %v5967 = vpack.c.b16 %v5838, %v5837
  %v5968 = vpack.c.b16 %v5840, %v5839
  %v5969 = vpack.c.b16 %v5842, %v5841
  %v5970 = vpack.c.b16 %v5844, %v5843
  %v5971 = vpack.c.b16 %v5846, %v5845
  %v5972 = vpack.c.b16 %v5848, %v5847
  %v5973 = vpack.c.b16 %v5850, %v5849
  %v5974 = vpack.c.b16 %v5852, %v5851
  %v5975 = vpack.c.b16 %v5854, %v5853
  %v5976 = vpack.c.b16 %v5856, %v5855
  %v5977 = vpack.c.b16 %v5858, %v5857
  %v5978 = vpack.c.b16 %v5860, %v5859
  %v5979 = vpack.c.b16 %v5862, %v5861
  %v5980 = vpack.c.b16 %v5864, %v5863
  %v5981 = vpack.c.b16 %v5866, %v5865
  %v5982 = vpack.c.b16 %v5868, %v5867
  %v5983 = vpack.c.b16 %v5870, %v5869
  %v5984 = vpack.c.b16 %v5872, %v5871
  %v5985 = vpack.c.b16 %v5874, %v5873
  %v5986 = vpack.c.b16 %v5876, %v5875
  %v5987 = vpack.c.b16 %v5878, %v5877
  %v5988 = vpack.c.b16 %v5880, %v5879
  %v5989 = vpack.c.b16 %v5882, %v5881
  %v5990 = vpack.c.b16 %v5884, %v5883
  %v5991 = vpack.c.b16 %v5886, %v5885
  %v5992 = vpack.c.b16 %v5888, %v5887
  %v5993 = vpack.c.b16 %v5890, %v5889
  %v5994 = vpack.c.b16 %v5892, %v5891
  %v5995 = vpack.c.b16 %v5894, %v5893
  %v5996 = vpack.c.b16 %v5896, %v5895
  %v5997 = vpack.c.b16 %v5898, %v5897
  %v5998 = vpack.c.b16 %v5900, %v5899
  %v5999 = vpack.c.b16 %v5902, %v5901
  %v6000 = vpack.c.b16 %v5904, %v5903
  %v6001 = vpack.c.b16 %v5906, %v5905
  %v6002 = vpack.c.b16 %v5908, %v5907
  %v6003 = vpack.c.b16 %v5910, %v5909
  %v6004 = vpack.c.b16 %v5912, %v5911
  %v6005 = vpack.c.b16 %v5914, %v5913
  %v6006 = vpack.c.b16 %v5916, %v5915
  %v6007 = vpack.c.b16 %v5918, %v5917
  %v6008 = vpack.c.b16 %v5920, %v5919
  %v6009 = vpack.c.b16 %v5922, %v5921
  %v6010 = vpack.c.b16 %v5924, %v5923
  %v6011 = vpack.c.b16 %v5926, %v5925
  %v6012 = vpack.c.b16 %v5928, %v5927
  %v6013 = vpack.c.b16 %v5930, %v5929
  %v6014 = vpack.c.b16 %v5932, %v5931
  %v6015 = vpack.c.b16 %v5934, %v5933
  %v6016 = vpack.c.b16 %v5936, %v5935
  %v6017 = vpack.c.b16 %v5938, %v5937
  %v6018 = vpack.c.b16 %v5940, %v5939
  %v6019 = vpack.c.b16 %v5942, %v5941
  %v6020 = vpack.c.b16 %v5944, %v5943
  %v6021 = vpack.c.b16 %v5946, %v5945
  %v6022 = vpack.c.b16 %v5948, %v5947
  %v6023 = vpack.c.b16 %v5950, %v5949
  %v6024 = vpack.c.b16 %v5952, %v5951
  %6097 = vmatpush.bf16.msra.mxu0 %v5960
  %6098 = vmatpush.bf16.msra.mxu0 %v5959
  %6099 = vmatpush.bf16.msra.mxu0 %v5958
  %6100 = vmatpush.bf16.msra.mxu0 %v5957
  %6101 = vmatpush.bf16.msra.mxu0 %v5956
  %6102 = vmatpush.bf16.msra.mxu0 %v5955
  %6103 = vmatpush.bf16.msra.mxu0 %v5954
  %6104 = vmatpush.bf16.msra.mxu0 %v5953
  %6105 = vmatmul.bf16.gmra.mxu0 %v5377
  %v6106 = vpop.f32.mrf.mxu0
  %v6107 = vadd.f32 %v4927, %v6106
  %v6108 = vpop.f32.mrf.mxu0
  %v6109 = vadd.f32 %v4927, %v6108
  %6110 = vmatmul.bf16.gmra.mxu0 %v5386
  %v6111 = vpop.f32.mrf.mxu0
  %v6112 = vadd.f32 %v4927, %v6111
  %v6113 = vpop.f32.mrf.mxu0
  %v6114 = vadd.f32 %v4927, %v6113
  %6115 = vmatmul.bf16.gmra.mxu0 %v5395
  %v6116 = vpop.f32.mrf.mxu0
  %v6117 = vadd.f32 %v4927, %v6116
  %v6118 = vpop.f32.mrf.mxu0
  %v6119 = vadd.f32 %v4927, %v6118
  %6120 = vmatmul.bf16.gmra.mxu0 %v5404
  %v6121 = vpop.f32.mrf.mxu0
  %v6122 = vadd.f32 %v4927, %v6121
  %v6123 = vpop.f32.mrf.mxu0
  %v6124 = vadd.f32 %v4927, %v6123
  %6125 = vmatmul.bf16.gmra.mxu0 %v5413
  %v6126 = vpop.f32.mrf.mxu0
  %v6127 = vadd.f32 %v4927, %v6126
  %v6128 = vpop.f32.mrf.mxu0
  %v6129 = vadd.f32 %v4927, %v6128
  %6130 = vmatmul.bf16.gmra.mxu0 %v5422
  %v6131 = vpop.f32.mrf.mxu0
  %v6132 = vadd.f32 %v4927, %v6131
  %v6133 = vpop.f32.mrf.mxu0
  %v6134 = vadd.f32 %v4927, %v6133
  %6135 = vmatmul.bf16.gmra.mxu0 %v5431
  %v6136 = vpop.f32.mrf.mxu0
  %v6137 = vadd.f32 %v4927, %v6136
  %v6138 = vpop.f32.mrf.mxu0
  %v6139 = vadd.f32 %v4927, %v6138
  %6140 = vmatmul.bf16.gmra.mxu0 %v5440
  %v6141 = vpop.f32.mrf.mxu0
  %v6142 = vadd.f32 %v4927, %v6141
  %v6143 = vpop.f32.mrf.mxu0
  %v6144 = vadd.f32 %v4927, %v6143
  %6145 = vmatmul.bf16.gmra.mxu0 %v5449
  %v6146 = vpop.f32.mrf.mxu0
  %v6147 = vadd.f32 %v4927, %v6146
  %v6148 = vpop.f32.mrf.mxu0
  %v6149 = vadd.f32 %v4927, %v6148
  %6150 = vmatmul.bf16.gmra.mxu0 %v5458
  %v6151 = vpop.f32.mrf.mxu0
  %v6152 = vadd.f32 %v4927, %v6151
  %v6153 = vpop.f32.mrf.mxu0
  %v6154 = vadd.f32 %v4927, %v6153
  %6155 = vmatmul.bf16.gmra.mxu0 %v5467
  %v6156 = vpop.f32.mrf.mxu0
  %v6157 = vadd.f32 %v4927, %v6156
  %v6158 = vpop.f32.mrf.mxu0
  %v6159 = vadd.f32 %v4927, %v6158
  %6160 = vmatmul.bf16.gmra.mxu0 %v5476
  %v6161 = vpop.f32.mrf.mxu0
  %v6162 = vadd.f32 %v4927, %v6161
  %v6163 = vpop.f32.mrf.mxu0
  %v6164 = vadd.f32 %v4927, %v6163
  %6165 = vmatmul.bf16.gmra.mxu0 %v5485
  %v6166 = vpop.f32.mrf.mxu0
  %v6167 = vadd.f32 %v4927, %v6166
  %v6168 = vpop.f32.mrf.mxu0
  %v6169 = vadd.f32 %v4927, %v6168
  %6170 = vmatmul.bf16.gmra.mxu0 %v5494
  %v6171 = vpop.f32.mrf.mxu0
  %v6172 = vadd.f32 %v4927, %v6171
  %v6173 = vpop.f32.mrf.mxu0
  %v6174 = vadd.f32 %v4927, %v6173
  %6175 = vmatmul.bf16.gmra.mxu0 %v5503
  %v6176 = vpop.f32.mrf.mxu0
  %v6177 = vadd.f32 %v4927, %v6176
  %v6178 = vpop.f32.mrf.mxu0
  %v6179 = vadd.f32 %v4927, %v6178
  %6180 = vmatmul.bf16.gmra.mxu0 %v5512
  %v6181 = vpop.f32.mrf.mxu0
  %v6182 = vadd.f32 %v4927, %v6181
  %v6183 = vpop.f32.mrf.mxu0
  %v6184 = vadd.f32 %v4927, %v6183
  %6185 = vdwg.mxu0
  %6186 = vmatpush.bf16.msra.mxu0 %v5968
  %6187 = vmatpush.bf16.msra.mxu0 %v5967
  %6188 = vmatpush.bf16.msra.mxu0 %v5966
  %6189 = vmatpush.bf16.msra.mxu0 %v5965
  %6190 = vmatpush.bf16.msra.mxu0 %v5964
  %6191 = vmatpush.bf16.msra.mxu0 %v5963
  %6192 = vmatpush.bf16.msra.mxu0 %v5962
  %6193 = vmatpush.bf16.msra.mxu0 %v5961
  %6194 = vmatmul.bf16.gmra.mxu0 %v5378
  %v6195 = vpop.f32.mrf.mxu0
  %v6196 = vadd.f32 %v6107, %v6195
  %v6197 = vpop.f32.mrf.mxu0
  %v6198 = vadd.f32 %v6109, %v6197
  %6199 = vmatmul.bf16.gmra.mxu0 %v5387
  %v6200 = vpop.f32.mrf.mxu0
  %v6201 = vadd.f32 %v6112, %v6200
  %v6202 = vpop.f32.mrf.mxu0
  %v6203 = vadd.f32 %v6114, %v6202
  %6204 = vmatmul.bf16.gmra.mxu0 %v5396
  %v6205 = vpop.f32.mrf.mxu0
  %v6206 = vadd.f32 %v6117, %v6205
  %v6207 = vpop.f32.mrf.mxu0
  %v6208 = vadd.f32 %v6119, %v6207
  %6209 = vmatmul.bf16.gmra.mxu0 %v5405
  %v6210 = vpop.f32.mrf.mxu0
  %v6211 = vadd.f32 %v6122, %v6210
  %v6212 = vpop.f32.mrf.mxu0
  %v6213 = vadd.f32 %v6124, %v6212
  %6214 = vmatmul.bf16.gmra.mxu0 %v5414
  %v6215 = vpop.f32.mrf.mxu0
  %v6216 = vadd.f32 %v6127, %v6215
  %v6217 = vpop.f32.mrf.mxu0
  %v6218 = vadd.f32 %v6129, %v6217
  %6219 = vmatmul.bf16.gmra.mxu0 %v5423
  %v6220 = vpop.f32.mrf.mxu0
  %v6221 = vadd.f32 %v6132, %v6220
  %v6222 = vpop.f32.mrf.mxu0
  %v6223 = vadd.f32 %v6134, %v6222
  %6224 = vmatmul.bf16.gmra.mxu0 %v5432
  %v6225 = vpop.f32.mrf.mxu0
  %v6226 = vadd.f32 %v6137, %v6225
  %v6227 = vpop.f32.mrf.mxu0
  %v6228 = vadd.f32 %v6139, %v6227
  %6229 = vmatmul.bf16.gmra.mxu0 %v5441
  %v6230 = vpop.f32.mrf.mxu0
  %v6231 = vadd.f32 %v6142, %v6230
  %v6232 = vpop.f32.mrf.mxu0
  %v6233 = vadd.f32 %v6144, %v6232
  %6234 = vmatmul.bf16.gmra.mxu0 %v5450
  %v6235 = vpop.f32.mrf.mxu0
  %v6236 = vadd.f32 %v6147, %v6235
  %v6237 = vpop.f32.mrf.mxu0
  %v6238 = vadd.f32 %v6149, %v6237
  %6239 = vmatmul.bf16.gmra.mxu0 %v5459
  %v6240 = vpop.f32.mrf.mxu0
  %v6241 = vadd.f32 %v6152, %v6240
  %v6242 = vpop.f32.mrf.mxu0
  %v6243 = vadd.f32 %v6154, %v6242
  %6244 = vmatmul.bf16.gmra.mxu0 %v5468
  %v6245 = vpop.f32.mrf.mxu0
  %v6246 = vadd.f32 %v6157, %v6245
  %v6247 = vpop.f32.mrf.mxu0
  %v6248 = vadd.f32 %v6159, %v6247
  %6249 = vmatmul.bf16.gmra.mxu0 %v5477
  %v6250 = vpop.f32.mrf.mxu0
  %v6251 = vadd.f32 %v6162, %v6250
  %v6252 = vpop.f32.mrf.mxu0
  %v6253 = vadd.f32 %v6164, %v6252
  %6254 = vmatmul.bf16.gmra.mxu0 %v5486
  %v6255 = vpop.f32.mrf.mxu0
  %v6256 = vadd.f32 %v6167, %v6255
  %v6257 = vpop.f32.mrf.mxu0
  %v6258 = vadd.f32 %v6169, %v6257
  %6259 = vmatmul.bf16.gmra.mxu0 %v5495
  %v6260 = vpop.f32.mrf.mxu0
  %v6261 = vadd.f32 %v6172, %v6260
  %v6262 = vpop.f32.mrf.mxu0
  %v6263 = vadd.f32 %v6174, %v6262
  %6264 = vmatmul.bf16.gmra.mxu0 %v5504
  %v6265 = vpop.f32.mrf.mxu0
  %v6266 = vadd.f32 %v6177, %v6265
  %v6267 = vpop.f32.mrf.mxu0
  %v6268 = vadd.f32 %v6179, %v6267
  %6269 = vmatmul.bf16.gmra.mxu0 %v5513
  %v6270 = vpop.f32.mrf.mxu0
  %v6271 = vadd.f32 %v6182, %v6270
  %v6272 = vpop.f32.mrf.mxu0
  %v6273 = vadd.f32 %v6184, %v6272
  %6274 = vdwg.mxu0
  %6275 = vmatpush.bf16.msra.mxu0 %v5976
  %6276 = vmatpush.bf16.msra.mxu0 %v5975
  %6277 = vmatpush.bf16.msra.mxu0 %v5974
  %6278 = vmatpush.bf16.msra.mxu0 %v5973
  %6279 = vmatpush.bf16.msra.mxu0 %v5972
  %6280 = vmatpush.bf16.msra.mxu0 %v5971
  %6281 = vmatpush.bf16.msra.mxu0 %v5970
  %6282 = vmatpush.bf16.msra.mxu0 %v5969
  %6283 = vmatmul.bf16.gmra.mxu0 %v5379
  %v6284 = vpop.f32.mrf.mxu0
  %v6285 = vadd.f32 %v6196, %v6284
  %v6286 = vpop.f32.mrf.mxu0
  %v6287 = vadd.f32 %v6198, %v6286
  %6288 = vmatmul.bf16.gmra.mxu0 %v5388
  %v6289 = vpop.f32.mrf.mxu0
  %v6290 = vadd.f32 %v6201, %v6289
  %v6291 = vpop.f32.mrf.mxu0
  %v6292 = vadd.f32 %v6203, %v6291
  %6293 = vmatmul.bf16.gmra.mxu0 %v5397
  %v6294 = vpop.f32.mrf.mxu0
  %v6295 = vadd.f32 %v6206, %v6294
  %v6296 = vpop.f32.mrf.mxu0
  %v6297 = vadd.f32 %v6208, %v6296
  %6298 = vmatmul.bf16.gmra.mxu0 %v5406
  %v6299 = vpop.f32.mrf.mxu0
  %v6300 = vadd.f32 %v6211, %v6299
  %v6301 = vpop.f32.mrf.mxu0
  %v6302 = vadd.f32 %v6213, %v6301
  %6303 = vmatmul.bf16.gmra.mxu0 %v5415
  %v6304 = vpop.f32.mrf.mxu0
  %v6305 = vadd.f32 %v6216, %v6304
  %v6306 = vpop.f32.mrf.mxu0
  %v6307 = vadd.f32 %v6218, %v6306
  %6308 = vmatmul.bf16.gmra.mxu0 %v5424
  %v6309 = vpop.f32.mrf.mxu0
  %v6310 = vadd.f32 %v6221, %v6309
  %v6311 = vpop.f32.mrf.mxu0
  %v6312 = vadd.f32 %v6223, %v6311
  %6313 = vmatmul.bf16.gmra.mxu0 %v5433
  %v6314 = vpop.f32.mrf.mxu0
  %v6315 = vadd.f32 %v6226, %v6314
  %v6316 = vpop.f32.mrf.mxu0
  %v6317 = vadd.f32 %v6228, %v6316
  %6318 = vmatmul.bf16.gmra.mxu0 %v5442
  %v6319 = vpop.f32.mrf.mxu0
  %v6320 = vadd.f32 %v6231, %v6319
  %v6321 = vpop.f32.mrf.mxu0
  %v6322 = vadd.f32 %v6233, %v6321
  %6323 = vmatmul.bf16.gmra.mxu0 %v5451
  %v6324 = vpop.f32.mrf.mxu0
  %v6325 = vadd.f32 %v6236, %v6324
  %v6326 = vpop.f32.mrf.mxu0
  %v6327 = vadd.f32 %v6238, %v6326
  %6328 = vmatmul.bf16.gmra.mxu0 %v5460
  %v6329 = vpop.f32.mrf.mxu0
  %v6330 = vadd.f32 %v6241, %v6329
  %v6331 = vpop.f32.mrf.mxu0
  %v6332 = vadd.f32 %v6243, %v6331
  %6333 = vmatmul.bf16.gmra.mxu0 %v5469
  %v6334 = vpop.f32.mrf.mxu0
  %v6335 = vadd.f32 %v6246, %v6334
  %v6336 = vpop.f32.mrf.mxu0
  %v6337 = vadd.f32 %v6248, %v6336
  %6338 = vmatmul.bf16.gmra.mxu0 %v5478
  %v6339 = vpop.f32.mrf.mxu0
  %v6340 = vadd.f32 %v6251, %v6339
  %v6341 = vpop.f32.mrf.mxu0
  %v6342 = vadd.f32 %v6253, %v6341
  %6343 = vmatmul.bf16.gmra.mxu0 %v5487
  %v6344 = vpop.f32.mrf.mxu0
  %v6345 = vadd.f32 %v6256, %v6344
  %v6346 = vpop.f32.mrf.mxu0
  %v6347 = vadd.f32 %v6258, %v6346
  %6348 = vmatmul.bf16.gmra.mxu0 %v5496
  %v6349 = vpop.f32.mrf.mxu0
  %v6350 = vadd.f32 %v6261, %v6349
  %v6351 = vpop.f32.mrf.mxu0
  %v6352 = vadd.f32 %v6263, %v6351
  %6353 = vmatmul.bf16.gmra.mxu0 %v5505
  %v6354 = vpop.f32.mrf.mxu0
  %v6355 = vadd.f32 %v6266, %v6354
  %v6356 = vpop.f32.mrf.mxu0
  %v6357 = vadd.f32 %v6268, %v6356
  %6358 = vmatmul.bf16.gmra.mxu0 %v5514
  %v6359 = vpop.f32.mrf.mxu0
  %v6360 = vadd.f32 %v6271, %v6359
  %v6361 = vpop.f32.mrf.mxu0
  %v6362 = vadd.f32 %v6273, %v6361
  %6363 = vdwg.mxu0
  %6364 = vmatpush.bf16.msra.mxu0 %v5984
  %6365 = vmatpush.bf16.msra.mxu0 %v5983
  %6366 = vmatpush.bf16.msra.mxu0 %v5982
  %6367 = vmatpush.bf16.msra.mxu0 %v5981
  %6368 = vmatpush.bf16.msra.mxu0 %v5980
  %6369 = vmatpush.bf16.msra.mxu0 %v5979
  %6370 = vmatpush.bf16.msra.mxu0 %v5978
  %6371 = vmatpush.bf16.msra.mxu0 %v5977
  %6372 = vmatmul.bf16.gmra.mxu0 %v5380
  %v6373 = vpop.f32.mrf.mxu0
  %v6374 = vadd.f32 %v6285, %v6373
  %v6375 = vpop.f32.mrf.mxu0
  %v6376 = vadd.f32 %v6287, %v6375
  %6377 = vmatmul.bf16.gmra.mxu0 %v5389
  %v6378 = vpop.f32.mrf.mxu0
  %v6379 = vadd.f32 %v6290, %v6378
  %v6380 = vpop.f32.mrf.mxu0
  %v6381 = vadd.f32 %v6292, %v6380
  %6382 = vmatmul.bf16.gmra.mxu0 %v5398
  %v6383 = vpop.f32.mrf.mxu0
  %v6384 = vadd.f32 %v6295, %v6383
  %v6385 = vpop.f32.mrf.mxu0
  %v6386 = vadd.f32 %v6297, %v6385
  %6387 = vmatmul.bf16.gmra.mxu0 %v5407
  %v6388 = vpop.f32.mrf.mxu0
  %v6389 = vadd.f32 %v6300, %v6388
  %v6390 = vpop.f32.mrf.mxu0
  %v6391 = vadd.f32 %v6302, %v6390
  %6392 = vmatmul.bf16.gmra.mxu0 %v5416
  %v6393 = vpop.f32.mrf.mxu0
  %v6394 = vadd.f32 %v6305, %v6393
  %v6395 = vpop.f32.mrf.mxu0
  %v6396 = vadd.f32 %v6307, %v6395
  %6397 = vmatmul.bf16.gmra.mxu0 %v5425
  %v6398 = vpop.f32.mrf.mxu0
  %v6399 = vadd.f32 %v6310, %v6398
  %v6400 = vpop.f32.mrf.mxu0
  %v6401 = vadd.f32 %v6312, %v6400
  %6402 = vmatmul.bf16.gmra.mxu0 %v5434
  %v6403 = vpop.f32.mrf.mxu0
  %v6404 = vadd.f32 %v6315, %v6403
  %v6405 = vpop.f32.mrf.mxu0
  %v6406 = vadd.f32 %v6317, %v6405
  %6407 = vmatmul.bf16.gmra.mxu0 %v5443
  %v6408 = vpop.f32.mrf.mxu0
  %v6409 = vadd.f32 %v6320, %v6408
  %v6410 = vpop.f32.mrf.mxu0
  %v6411 = vadd.f32 %v6322, %v6410
  %6412 = vmatmul.bf16.gmra.mxu0 %v5452
  %v6413 = vpop.f32.mrf.mxu0
  %v6414 = vadd.f32 %v6325, %v6413
  %v6415 = vpop.f32.mrf.mxu0
  %v6416 = vadd.f32 %v6327, %v6415
  %6417 = vmatmul.bf16.gmra.mxu0 %v5461
  %v6418 = vpop.f32.mrf.mxu0
  %v6419 = vadd.f32 %v6330, %v6418
  %v6420 = vpop.f32.mrf.mxu0
  %v6421 = vadd.f32 %v6332, %v6420
  %6422 = vmatmul.bf16.gmra.mxu0 %v5470
  %v6423 = vpop.f32.mrf.mxu0
  %v6424 = vadd.f32 %v6335, %v6423
  %v6425 = vpop.f32.mrf.mxu0
  %v6426 = vadd.f32 %v6337, %v6425
  %6427 = vmatmul.bf16.gmra.mxu0 %v5479
  %v6428 = vpop.f32.mrf.mxu0
  %v6429 = vadd.f32 %v6340, %v6428
  %v6430 = vpop.f32.mrf.mxu0
  %v6431 = vadd.f32 %v6342, %v6430
  %6432 = vmatmul.bf16.gmra.mxu0 %v5488
  %v6433 = vpop.f32.mrf.mxu0
  %v6434 = vadd.f32 %v6345, %v6433
  %v6435 = vpop.f32.mrf.mxu0
  %v6436 = vadd.f32 %v6347, %v6435
  %6437 = vmatmul.bf16.gmra.mxu0 %v5497
  %v6438 = vpop.f32.mrf.mxu0
  %v6439 = vadd.f32 %v6350, %v6438
  %v6440 = vpop.f32.mrf.mxu0
  %v6441 = vadd.f32 %v6352, %v6440
  %6442 = vmatmul.bf16.gmra.mxu0 %v5506
  %v6443 = vpop.f32.mrf.mxu0
  %v6444 = vadd.f32 %v6355, %v6443
  %v6445 = vpop.f32.mrf.mxu0
  %v6446 = vadd.f32 %v6357, %v6445
  %6447 = vmatmul.bf16.gmra.mxu0 %v5515
  %v6448 = vpop.f32.mrf.mxu0
  %v6449 = vadd.f32 %v6360, %v6448
  %v6450 = vpop.f32.mrf.mxu0
  %v6451 = vadd.f32 %v6362, %v6450
  %6452 = vdwg.mxu0
  %6453 = vmatpush.bf16.msra.mxu0 %v5992
  %6454 = vmatpush.bf16.msra.mxu0 %v5991
  %6455 = vmatpush.bf16.msra.mxu0 %v5990
  %6456 = vmatpush.bf16.msra.mxu0 %v5989
  %6457 = vmatpush.bf16.msra.mxu0 %v5988
  %6458 = vmatpush.bf16.msra.mxu0 %v5987
  %6459 = vmatpush.bf16.msra.mxu0 %v5986
  %6460 = vmatpush.bf16.msra.mxu0 %v5985
  %6461 = vmatmul.bf16.gmra.mxu0 %v5381
  %v6462 = vpop.f32.mrf.mxu0
  %v6463 = vadd.f32 %v6374, %v6462
  %v6464 = vpop.f32.mrf.mxu0
  %v6465 = vadd.f32 %v6376, %v6464
  %6466 = vmatmul.bf16.gmra.mxu0 %v5390
  %v6467 = vpop.f32.mrf.mxu0
  %v6468 = vadd.f32 %v6379, %v6467
  %v6469 = vpop.f32.mrf.mxu0
  %v6470 = vadd.f32 %v6381, %v6469
  %6471 = vmatmul.bf16.gmra.mxu0 %v5399
  %v6472 = vpop.f32.mrf.mxu0
  %v6473 = vadd.f32 %v6384, %v6472
  %v6474 = vpop.f32.mrf.mxu0
  %v6475 = vadd.f32 %v6386, %v6474
  %6476 = vmatmul.bf16.gmra.mxu0 %v5408
  %v6477 = vpop.f32.mrf.mxu0
  %v6478 = vadd.f32 %v6389, %v6477
  %v6479 = vpop.f32.mrf.mxu0
  %v6480 = vadd.f32 %v6391, %v6479
  %6481 = vmatmul.bf16.gmra.mxu0 %v5417
  %v6482 = vpop.f32.mrf.mxu0
  %v6483 = vadd.f32 %v6394, %v6482
  %v6484 = vpop.f32.mrf.mxu0
  %v6485 = vadd.f32 %v6396, %v6484
  %6486 = vmatmul.bf16.gmra.mxu0 %v5426
  %v6487 = vpop.f32.mrf.mxu0
  %v6488 = vadd.f32 %v6399, %v6487
  %v6489 = vpop.f32.mrf.mxu0
  %v6490 = vadd.f32 %v6401, %v6489
  %6491 = vmatmul.bf16.gmra.mxu0 %v5435
  %v6492 = vpop.f32.mrf.mxu0
  %v6493 = vadd.f32 %v6404, %v6492
  %v6494 = vpop.f32.mrf.mxu0
  %v6495 = vadd.f32 %v6406, %v6494
  %6496 = vmatmul.bf16.gmra.mxu0 %v5444
  %v6497 = vpop.f32.mrf.mxu0
  %v6498 = vadd.f32 %v6409, %v6497
  %v6499 = vpop.f32.mrf.mxu0
  %v6500 = vadd.f32 %v6411, %v6499
  %6501 = vmatmul.bf16.gmra.mxu0 %v5453
  %v6502 = vpop.f32.mrf.mxu0
  %v6503 = vadd.f32 %v6414, %v6502
  %v6504 = vpop.f32.mrf.mxu0
  %v6505 = vadd.f32 %v6416, %v6504
  %6506 = vmatmul.bf16.gmra.mxu0 %v5462
  %v6507 = vpop.f32.mrf.mxu0
  %v6508 = vadd.f32 %v6419, %v6507
  %v6509 = vpop.f32.mrf.mxu0
  %v6510 = vadd.f32 %v6421, %v6509
  %6511 = vmatmul.bf16.gmra.mxu0 %v5471
  %v6512 = vpop.f32.mrf.mxu0
  %v6513 = vadd.f32 %v6424, %v6512
  %v6514 = vpop.f32.mrf.mxu0
  %v6515 = vadd.f32 %v6426, %v6514
  %6516 = vmatmul.bf16.gmra.mxu0 %v5480
  %v6517 = vpop.f32.mrf.mxu0
  %v6518 = vadd.f32 %v6429, %v6517
  %v6519 = vpop.f32.mrf.mxu0
  %v6520 = vadd.f32 %v6431, %v6519
  %6521 = vmatmul.bf16.gmra.mxu0 %v5489
  %v6522 = vpop.f32.mrf.mxu0
  %v6523 = vadd.f32 %v6434, %v6522
  %v6524 = vpop.f32.mrf.mxu0
  %v6525 = vadd.f32 %v6436, %v6524
  %6526 = vmatmul.bf16.gmra.mxu0 %v5498
  %v6527 = vpop.f32.mrf.mxu0
  %v6528 = vadd.f32 %v6439, %v6527
  %v6529 = vpop.f32.mrf.mxu0
  %v6530 = vadd.f32 %v6441, %v6529
  %6531 = vmatmul.bf16.gmra.mxu0 %v5507
  %v6532 = vpop.f32.mrf.mxu0
  %v6533 = vadd.f32 %v6444, %v6532
  %v6534 = vpop.f32.mrf.mxu0
  %v6535 = vadd.f32 %v6446, %v6534
  %6536 = vmatmul.bf16.gmra.mxu0 %v5516
  %v6537 = vpop.f32.mrf.mxu0
  %v6538 = vadd.f32 %v6449, %v6537
  %v6539 = vpop.f32.mrf.mxu0
  %v6540 = vadd.f32 %v6451, %v6539
  %6541 = vdwg.mxu0
  %6542 = vmatpush.bf16.msra.mxu0 %v6000
  %6543 = vmatpush.bf16.msra.mxu0 %v5999
  %6544 = vmatpush.bf16.msra.mxu0 %v5998
  %6545 = vmatpush.bf16.msra.mxu0 %v5997
  %6546 = vmatpush.bf16.msra.mxu0 %v5996
  %6547 = vmatpush.bf16.msra.mxu0 %v5995
  %6548 = vmatpush.bf16.msra.mxu0 %v5994
  %6549 = vmatpush.bf16.msra.mxu0 %v5993
  %6550 = vmatmul.bf16.gmra.mxu0 %v5382
  %v6551 = vpop.f32.mrf.mxu0
  %v6552 = vadd.f32 %v6463, %v6551
  %v6553 = vpop.f32.mrf.mxu0
  %v6554 = vadd.f32 %v6465, %v6553
  %6555 = vmatmul.bf16.gmra.mxu0 %v5391
  %v6556 = vpop.f32.mrf.mxu0
  %v6557 = vadd.f32 %v6468, %v6556
  %v6558 = vpop.f32.mrf.mxu0
  %v6559 = vadd.f32 %v6470, %v6558
  %6560 = vmatmul.bf16.gmra.mxu0 %v5400
  %v6561 = vpop.f32.mrf.mxu0
  %v6562 = vadd.f32 %v6473, %v6561
  %v6563 = vpop.f32.mrf.mxu0
  %v6564 = vadd.f32 %v6475, %v6563
  %6565 = vmatmul.bf16.gmra.mxu0 %v5409
  %v6566 = vpop.f32.mrf.mxu0
  %v6567 = vadd.f32 %v6478, %v6566
  %v6568 = vpop.f32.mrf.mxu0
  %v6569 = vadd.f32 %v6480, %v6568
  %6570 = vmatmul.bf16.gmra.mxu0 %v5418
  %v6571 = vpop.f32.mrf.mxu0
  %v6572 = vadd.f32 %v6483, %v6571
  %v6573 = vpop.f32.mrf.mxu0
  %v6574 = vadd.f32 %v6485, %v6573
  %6575 = vmatmul.bf16.gmra.mxu0 %v5427
  %v6576 = vpop.f32.mrf.mxu0
  %v6577 = vadd.f32 %v6488, %v6576
  %v6578 = vpop.f32.mrf.mxu0
  %v6579 = vadd.f32 %v6490, %v6578
  %6580 = vmatmul.bf16.gmra.mxu0 %v5436
  %v6581 = vpop.f32.mrf.mxu0
  %v6582 = vadd.f32 %v6493, %v6581
  %v6583 = vpop.f32.mrf.mxu0
  %v6584 = vadd.f32 %v6495, %v6583
  %6585 = vmatmul.bf16.gmra.mxu0 %v5445
  %v6586 = vpop.f32.mrf.mxu0
  %v6587 = vadd.f32 %v6498, %v6586
  %v6588 = vpop.f32.mrf.mxu0
  %v6589 = vadd.f32 %v6500, %v6588
  %6590 = vmatmul.bf16.gmra.mxu0 %v5454
  %v6591 = vpop.f32.mrf.mxu0
  %v6592 = vadd.f32 %v6503, %v6591
  %v6593 = vpop.f32.mrf.mxu0
  %v6594 = vadd.f32 %v6505, %v6593
  %6595 = vmatmul.bf16.gmra.mxu0 %v5463
  %v6596 = vpop.f32.mrf.mxu0
  %v6597 = vadd.f32 %v6508, %v6596
  %v6598 = vpop.f32.mrf.mxu0
  %v6599 = vadd.f32 %v6510, %v6598
  %6600 = vmatmul.bf16.gmra.mxu0 %v5472
  %v6601 = vpop.f32.mrf.mxu0
  %v6602 = vadd.f32 %v6513, %v6601
  %v6603 = vpop.f32.mrf.mxu0
  %v6604 = vadd.f32 %v6515, %v6603
  %6605 = vmatmul.bf16.gmra.mxu0 %v5481
  %v6606 = vpop.f32.mrf.mxu0
  %v6607 = vadd.f32 %v6518, %v6606
  %v6608 = vpop.f32.mrf.mxu0
  %v6609 = vadd.f32 %v6520, %v6608
  %6610 = vmatmul.bf16.gmra.mxu0 %v5490
  %v6611 = vpop.f32.mrf.mxu0
  %v6612 = vadd.f32 %v6523, %v6611
  %v6613 = vpop.f32.mrf.mxu0
  %v6614 = vadd.f32 %v6525, %v6613
  %6615 = vmatmul.bf16.gmra.mxu0 %v5499
  %v6616 = vpop.f32.mrf.mxu0
  %v6617 = vadd.f32 %v6528, %v6616
  %v6618 = vpop.f32.mrf.mxu0
  %v6619 = vadd.f32 %v6530, %v6618
  %6620 = vmatmul.bf16.gmra.mxu0 %v5508
  %v6621 = vpop.f32.mrf.mxu0
  %v6622 = vadd.f32 %v6533, %v6621
  %v6623 = vpop.f32.mrf.mxu0
  %v6624 = vadd.f32 %v6535, %v6623
  %6625 = vmatmul.bf16.gmra.mxu0 %v5517
  %v6626 = vpop.f32.mrf.mxu0
  %v6627 = vadd.f32 %v6538, %v6626
  %v6628 = vpop.f32.mrf.mxu0
  %v6629 = vadd.f32 %v6540, %v6628
  %6630 = vdwg.mxu0
  %6631 = vmatpush.bf16.msra.mxu0 %v6008
  %6632 = vmatpush.bf16.msra.mxu0 %v6007
  %6633 = vmatpush.bf16.msra.mxu0 %v6006
  %6634 = vmatpush.bf16.msra.mxu0 %v6005
  %6635 = vmatpush.bf16.msra.mxu0 %v6004
  %6636 = vmatpush.bf16.msra.mxu0 %v6003
  %6637 = vmatpush.bf16.msra.mxu0 %v6002
  %6638 = vmatpush.bf16.msra.mxu0 %v6001
  %6639 = vmatmul.bf16.gmra.mxu0 %v5383
  %v6640 = vpop.f32.mrf.mxu0
  %v6641 = vadd.f32 %v6552, %v6640
  %v6642 = vpop.f32.mrf.mxu0
  %v6643 = vadd.f32 %v6554, %v6642
  %6644 = vmatmul.bf16.gmra.mxu0 %v5392
  %v6645 = vpop.f32.mrf.mxu0
  %v6646 = vadd.f32 %v6557, %v6645
  %v6647 = vpop.f32.mrf.mxu0
  %v6648 = vadd.f32 %v6559, %v6647
  %6649 = vmatmul.bf16.gmra.mxu0 %v5401
  %v6650 = vpop.f32.mrf.mxu0
  %v6651 = vadd.f32 %v6562, %v6650
  %v6652 = vpop.f32.mrf.mxu0
  %v6653 = vadd.f32 %v6564, %v6652
  %6654 = vmatmul.bf16.gmra.mxu0 %v5410
  %v6655 = vpop.f32.mrf.mxu0
  %v6656 = vadd.f32 %v6567, %v6655
  %v6657 = vpop.f32.mrf.mxu0
  %v6658 = vadd.f32 %v6569, %v6657
  %6659 = vmatmul.bf16.gmra.mxu0 %v5419
  %v6660 = vpop.f32.mrf.mxu0
  %v6661 = vadd.f32 %v6572, %v6660
  %v6662 = vpop.f32.mrf.mxu0
  %v6663 = vadd.f32 %v6574, %v6662
  %6664 = vmatmul.bf16.gmra.mxu0 %v5428
  %v6665 = vpop.f32.mrf.mxu0
  %v6666 = vadd.f32 %v6577, %v6665
  %v6667 = vpop.f32.mrf.mxu0
  %v6668 = vadd.f32 %v6579, %v6667
  %6669 = vmatmul.bf16.gmra.mxu0 %v5437
  %v6670 = vpop.f32.mrf.mxu0
  %v6671 = vadd.f32 %v6582, %v6670
  %v6672 = vpop.f32.mrf.mxu0
  %v6673 = vadd.f32 %v6584, %v6672
  %6674 = vmatmul.bf16.gmra.mxu0 %v5446
  %v6675 = vpop.f32.mrf.mxu0
  %v6676 = vadd.f32 %v6587, %v6675
  %v6677 = vpop.f32.mrf.mxu0
  %v6678 = vadd.f32 %v6589, %v6677
  %6679 = vmatmul.bf16.gmra.mxu0 %v5455
  %v6680 = vpop.f32.mrf.mxu0
  %v6681 = vadd.f32 %v6592, %v6680
  %v6682 = vpop.f32.mrf.mxu0
  %v6683 = vadd.f32 %v6594, %v6682
  %6684 = vmatmul.bf16.gmra.mxu0 %v5464
  %v6685 = vpop.f32.mrf.mxu0
  %v6686 = vadd.f32 %v6597, %v6685
  %v6687 = vpop.f32.mrf.mxu0
  %v6688 = vadd.f32 %v6599, %v6687
  %6689 = vmatmul.bf16.gmra.mxu0 %v5473
  %v6690 = vpop.f32.mrf.mxu0
  %v6691 = vadd.f32 %v6602, %v6690
  %v6692 = vpop.f32.mrf.mxu0
  %v6693 = vadd.f32 %v6604, %v6692
  %6694 = vmatmul.bf16.gmra.mxu0 %v5482
  %v6695 = vpop.f32.mrf.mxu0
  %v6696 = vadd.f32 %v6607, %v6695
  %v6697 = vpop.f32.mrf.mxu0
  %v6698 = vadd.f32 %v6609, %v6697
  %6699 = vmatmul.bf16.gmra.mxu0 %v5491
  %v6700 = vpop.f32.mrf.mxu0
  %v6701 = vadd.f32 %v6612, %v6700
  %v6702 = vpop.f32.mrf.mxu0
  %v6703 = vadd.f32 %v6614, %v6702
  %6704 = vmatmul.bf16.gmra.mxu0 %v5500
  %v6705 = vpop.f32.mrf.mxu0
  %v6706 = vadd.f32 %v6617, %v6705
  %v6707 = vpop.f32.mrf.mxu0
  %v6708 = vadd.f32 %v6619, %v6707
  %6709 = vmatmul.bf16.gmra.mxu0 %v5509
  %v6710 = vpop.f32.mrf.mxu0
  %v6711 = vadd.f32 %v6622, %v6710
  %v6712 = vpop.f32.mrf.mxu0
  %v6713 = vadd.f32 %v6624, %v6712
  %6714 = vmatmul.bf16.gmra.mxu0 %v5518
  %v6715 = vpop.f32.mrf.mxu0
  %v6716 = vadd.f32 %v6627, %v6715
  %v6717 = vpop.f32.mrf.mxu0
  %v6718 = vadd.f32 %v6629, %v6717
  %6719 = vdwg.mxu0
  %6720 = vmatpush.bf16.msra.mxu0 %v6016
  %6721 = vmatpush.bf16.msra.mxu0 %v6015
  %6722 = vmatpush.bf16.msra.mxu0 %v6014
  %6723 = vmatpush.bf16.msra.mxu0 %v6013
  %6724 = vmatpush.bf16.msra.mxu0 %v6012
  %6725 = vmatpush.bf16.msra.mxu0 %v6011
  %6726 = vmatpush.bf16.msra.mxu0 %v6010
  %6727 = vmatpush.bf16.msra.mxu0 %v6009
  %6728 = vmatmul.bf16.gmra.mxu0 %v5384
  %v6729 = vpop.f32.mrf.mxu0
  %v6730 = vadd.f32 %v6641, %v6729
  %v6731 = vpop.f32.mrf.mxu0
  %v6732 = vadd.f32 %v6643, %v6731
  %6733 = vmatmul.bf16.gmra.mxu0 %v5393
  %v6734 = vpop.f32.mrf.mxu0
  %v6735 = vadd.f32 %v6646, %v6734
  %v6736 = vpop.f32.mrf.mxu0
  %v6737 = vadd.f32 %v6648, %v6736
  %6738 = vmatmul.bf16.gmra.mxu0 %v5402
  %v6739 = vpop.f32.mrf.mxu0
  %v6740 = vadd.f32 %v6651, %v6739
  %v6741 = vpop.f32.mrf.mxu0
  %v6742 = vadd.f32 %v6653, %v6741
  %6743 = vmatmul.bf16.gmra.mxu0 %v5411
  %v6744 = vpop.f32.mrf.mxu0
  %v6745 = vadd.f32 %v6656, %v6744
  %v6746 = vpop.f32.mrf.mxu0
  %v6747 = vadd.f32 %v6658, %v6746
  %6748 = vmatmul.bf16.gmra.mxu0 %v5420
  %v6749 = vpop.f32.mrf.mxu0
  %v6750 = vadd.f32 %v6661, %v6749
  %v6751 = vpop.f32.mrf.mxu0
  %v6752 = vadd.f32 %v6663, %v6751
  %6753 = vmatmul.bf16.gmra.mxu0 %v5429
  %v6754 = vpop.f32.mrf.mxu0
  %v6755 = vadd.f32 %v6666, %v6754
  %v6756 = vpop.f32.mrf.mxu0
  %v6757 = vadd.f32 %v6668, %v6756
  %6758 = vmatmul.bf16.gmra.mxu0 %v5438
  %v6759 = vpop.f32.mrf.mxu0
  %v6760 = vadd.f32 %v6671, %v6759
  %v6761 = vpop.f32.mrf.mxu0
  %v6762 = vadd.f32 %v6673, %v6761
  %6763 = vmatmul.bf16.gmra.mxu0 %v5447
  %v6764 = vpop.f32.mrf.mxu0
  %v6765 = vadd.f32 %v6676, %v6764
  %v6766 = vpop.f32.mrf.mxu0
  %v6767 = vadd.f32 %v6678, %v6766
  %6768 = vmatmul.bf16.gmra.mxu0 %v5456
  %v6769 = vpop.f32.mrf.mxu0
  %v6770 = vadd.f32 %v6681, %v6769
  %v6771 = vpop.f32.mrf.mxu0
  %v6772 = vadd.f32 %v6683, %v6771
  %6773 = vmatmul.bf16.gmra.mxu0 %v5465
  %v6774 = vpop.f32.mrf.mxu0
  %v6775 = vadd.f32 %v6686, %v6774
  %v6776 = vpop.f32.mrf.mxu0
  %v6777 = vadd.f32 %v6688, %v6776
  %6778 = vmatmul.bf16.gmra.mxu0 %v5474
  %v6779 = vpop.f32.mrf.mxu0
  %v6780 = vadd.f32 %v6691, %v6779
  %v6781 = vpop.f32.mrf.mxu0
  %v6782 = vadd.f32 %v6693, %v6781
  %6783 = vmatmul.bf16.gmra.mxu0 %v5483
  %v6784 = vpop.f32.mrf.mxu0
  %v6785 = vadd.f32 %v6696, %v6784
  %v6786 = vpop.f32.mrf.mxu0
  %v6787 = vadd.f32 %v6698, %v6786
  %6788 = vmatmul.bf16.gmra.mxu0 %v5492
  %v6789 = vpop.f32.mrf.mxu0
  %v6790 = vadd.f32 %v6701, %v6789
  %v6791 = vpop.f32.mrf.mxu0
  %v6792 = vadd.f32 %v6703, %v6791
  %6793 = vmatmul.bf16.gmra.mxu0 %v5501
  %v6794 = vpop.f32.mrf.mxu0
  %v6795 = vadd.f32 %v6706, %v6794
  %v6796 = vpop.f32.mrf.mxu0
  %v6797 = vadd.f32 %v6708, %v6796
  %6798 = vmatmul.bf16.gmra.mxu0 %v5510
  %v6799 = vpop.f32.mrf.mxu0
  %v6800 = vadd.f32 %v6711, %v6799
  %v6801 = vpop.f32.mrf.mxu0
  %v6802 = vadd.f32 %v6713, %v6801
  %6803 = vmatmul.bf16.gmra.mxu0 %v5519
  %v6804 = vpop.f32.mrf.mxu0
  %v6805 = vadd.f32 %v6716, %v6804
  %v6806 = vpop.f32.mrf.mxu0
  %v6807 = vadd.f32 %v6718, %v6806
  %6808 = vdwg.mxu0
  %6809 = vmatpush.bf16.msra.mxu0 %v6024
  %6810 = vmatpush.bf16.msra.mxu0 %v6023
  %6811 = vmatpush.bf16.msra.mxu0 %v6022
  %6812 = vmatpush.bf16.msra.mxu0 %v6021
  %6813 = vmatpush.bf16.msra.mxu0 %v6020
  %6814 = vmatpush.bf16.msra.mxu0 %v6019
  %6815 = vmatpush.bf16.msra.mxu0 %v6018
  %6816 = vmatpush.bf16.msra.mxu0 %v6017
  %6817 = vmatmul.bf16.gmra.mxu0 %v5385
  %v6818 = vpop.f32.mrf.mxu0
  %v6819 = vadd.f32 %v6730, %v6818
  %v6820 = vpop.f32.mrf.mxu0
  %v6821 = vadd.f32 %v6732, %v6820
  %6822 = vmatmul.bf16.gmra.mxu0 %v5394
  %v6823 = vpop.f32.mrf.mxu0
  %v6824 = vadd.f32 %v6735, %v6823
  %v6825 = vpop.f32.mrf.mxu0
  %v6826 = vadd.f32 %v6737, %v6825
  %6827 = vmatmul.bf16.gmra.mxu0 %v5403
  %v6828 = vpop.f32.mrf.mxu0
  %v6829 = vadd.f32 %v6740, %v6828
  %v6830 = vpop.f32.mrf.mxu0
  %v6831 = vadd.f32 %v6742, %v6830
  %6832 = vmatmul.bf16.gmra.mxu0 %v5412
  %v6833 = vpop.f32.mrf.mxu0
  %v6834 = vadd.f32 %v6745, %v6833
  %v6835 = vpop.f32.mrf.mxu0
  %v6836 = vadd.f32 %v6747, %v6835
  %6837 = vmatmul.bf16.gmra.mxu0 %v5421
  %v6838 = vpop.f32.mrf.mxu0
  %v6839 = vadd.f32 %v6750, %v6838
  %v6840 = vpop.f32.mrf.mxu0
  %v6841 = vadd.f32 %v6752, %v6840
  %6842 = vmatmul.bf16.gmra.mxu0 %v5430
  %v6843 = vpop.f32.mrf.mxu0
  %v6844 = vadd.f32 %v6755, %v6843
  %v6845 = vpop.f32.mrf.mxu0
  %v6846 = vadd.f32 %v6757, %v6845
  %6847 = vmatmul.bf16.gmra.mxu0 %v5439
  %v6848 = vpop.f32.mrf.mxu0
  %v6849 = vadd.f32 %v6760, %v6848
  %v6850 = vpop.f32.mrf.mxu0
  %v6851 = vadd.f32 %v6762, %v6850
  %6852 = vmatmul.bf16.gmra.mxu0 %v5448
  %v6853 = vpop.f32.mrf.mxu0
  %v6854 = vadd.f32 %v6765, %v6853
  %v6855 = vpop.f32.mrf.mxu0
  %v6856 = vadd.f32 %v6767, %v6855
  %6857 = vmatmul.bf16.gmra.mxu0 %v5457
  %v6858 = vpop.f32.mrf.mxu0
  %v6859 = vadd.f32 %v6770, %v6858
  %v6860 = vpop.f32.mrf.mxu0
  %v6861 = vadd.f32 %v6772, %v6860
  %6862 = vmatmul.bf16.gmra.mxu0 %v5466
  %v6863 = vpop.f32.mrf.mxu0
  %v6864 = vadd.f32 %v6775, %v6863
  %v6865 = vpop.f32.mrf.mxu0
  %v6866 = vadd.f32 %v6777, %v6865
  %6867 = vmatmul.bf16.gmra.mxu0 %v5475
  %v6868 = vpop.f32.mrf.mxu0
  %v6869 = vadd.f32 %v6780, %v6868
  %v6870 = vpop.f32.mrf.mxu0
  %v6871 = vadd.f32 %v6782, %v6870
  %6872 = vmatmul.bf16.gmra.mxu0 %v5484
  %v6873 = vpop.f32.mrf.mxu0
  %v6874 = vadd.f32 %v6785, %v6873
  %v6875 = vpop.f32.mrf.mxu0
  %v6876 = vadd.f32 %v6787, %v6875
  %6877 = vmatmul.bf16.gmra.mxu0 %v5493
  %v6878 = vpop.f32.mrf.mxu0
  %v6879 = vadd.f32 %v6790, %v6878
  %v6880 = vpop.f32.mrf.mxu0
  %v6881 = vadd.f32 %v6792, %v6880
  %6882 = vmatmul.bf16.gmra.mxu0 %v5502
  %v6883 = vpop.f32.mrf.mxu0
  %v6884 = vadd.f32 %v6795, %v6883
  %v6885 = vpop.f32.mrf.mxu0
  %v6886 = vadd.f32 %v6797, %v6885
  %6887 = vmatmul.bf16.gmra.mxu0 %v5511
  %v6888 = vpop.f32.mrf.mxu0
  %v6889 = vadd.f32 %v6800, %v6888
  %v6890 = vpop.f32.mrf.mxu0
  %v6891 = vadd.f32 %v6802, %v6890
  %6892 = vmatmul.bf16.gmra.mxu0 %v5520
  %v6893 = vpop.f32.mrf.mxu0
  %v6894 = vadd.f32 %v6805, %v6893
  %v6895 = vpop.f32.mrf.mxu0
  %v6896 = vadd.f32 %v6807, %v6895
  %6897 = vdwg.mxu0
  %6898 = vxpose.xlu0.b32.start [1/16] %v6819, 128
  %6899 = vxpose.xlu0.b32.cont [2/16] %v6821, 128
  %6900 = vxpose.xlu0.b32.cont [3/16] %v6824, 128
  %6901 = vxpose.xlu0.b32.cont [4/16] %v6826, 128
  %6902 = vxpose.xlu0.b32.cont [5/16] %v6829, 128
  %6903 = vxpose.xlu0.b32.cont [6/16] %v6831, 128
  %6904 = vxpose.xlu0.b32.cont [7/16] %v6834, 128
  %6905 = vxpose.xlu0.b32.cont [8/16] %v6836, 128
  %6906 = vxpose.xlu0.b32.cont [9/16] %v6839, 128
  %6907 = vxpose.xlu0.b32.cont [10/16] %v6841, 128
  %6908 = vxpose.xlu0.b32.cont [11/16] %v6844, 128
  %6909 = vxpose.xlu0.b32.cont [12/16] %v6846, 128
  %6910 = vxpose.xlu0.b32.cont [13/16] %v6849, 128
  %6911 = vxpose.xlu0.b32.cont [14/16] %v6851, 128
  %6912 = vxpose.xlu0.b32.cont [15/16] %v6854, 128
  %6913 = vxpose.xlu0.b32.end [16/16] %v6856, 128
  %v6914 = vpop.trf.xlu0
  %v6915 = vpop.trf.xlu0
  %v6916 = vpop.trf.xlu0
  %v6917 = vpop.trf.xlu0
  %v6918 = vpop.trf.xlu0
  %v6919 = vpop.trf.xlu0
  %v6920 = vpop.trf.xlu0
  %v6921 = vpop.trf.xlu0
  %v6922 = vpop.trf.xlu0
  %v6923 = vpop.trf.xlu0
  %v6924 = vpop.trf.xlu0
  %v6925 = vpop.trf.xlu0
  %v6926 = vpop.trf.xlu0
  %v6927 = vpop.trf.xlu0
  %v6928 = vpop.trf.xlu0
  %v6929 = vpop.trf.xlu0
  %6930 = vxpose.xlu0.b32.start [1/16] %v6859, 128
  %6931 = vxpose.xlu0.b32.cont [2/16] %v6861, 128
  %6932 = vxpose.xlu0.b32.cont [3/16] %v6864, 128
  %6933 = vxpose.xlu0.b32.cont [4/16] %v6866, 128
  %6934 = vxpose.xlu0.b32.cont [5/16] %v6869, 128
  %6935 = vxpose.xlu0.b32.cont [6/16] %v6871, 128
  %6936 = vxpose.xlu0.b32.cont [7/16] %v6874, 128
  %6937 = vxpose.xlu0.b32.cont [8/16] %v6876, 128
  %6938 = vxpose.xlu0.b32.cont [9/16] %v6879, 128
  %6939 = vxpose.xlu0.b32.cont [10/16] %v6881, 128
  %6940 = vxpose.xlu0.b32.cont [11/16] %v6884, 128
  %6941 = vxpose.xlu0.b32.cont [12/16] %v6886, 128
  %6942 = vxpose.xlu0.b32.cont [13/16] %v6889, 128
  %6943 = vxpose.xlu0.b32.cont [14/16] %v6891, 128
  %6944 = vxpose.xlu0.b32.cont [15/16] %v6894, 128
  %6945 = vxpose.xlu0.b32.end [16/16] %v6896, 128
  %v6946 = vpop.trf.xlu0
  %v6947 = vpop.trf.xlu0
  %v6948 = vpop.trf.xlu0
  %v6949 = vpop.trf.xlu0
  %v6950 = vpop.trf.xlu0
  %v6951 = vpop.trf.xlu0
  %v6952 = vpop.trf.xlu0
  %v6953 = vpop.trf.xlu0
  %v6954 = vpop.trf.xlu0
  %v6955 = vpop.trf.xlu0
  %v6956 = vpop.trf.xlu0
  %v6957 = vpop.trf.xlu0
  %v6958 = vpop.trf.xlu0
  %v6959 = vpop.trf.xlu0
  %v6960 = vpop.trf.xlu0
  %v6961 = vpop.trf.xlu0
  %v6962 = vxor.u32 %v6914, 2147483648
  %v6963 = vxor.u32 %v6946, 2147483648
  %v6964 = vxor.u32 %v6915, 2147483648
  %v6965 = vxor.u32 %v6947, 2147483648
  %v6966 = vxor.u32 %v6916, 2147483648
  %v6967 = vxor.u32 %v6948, 2147483648
  %v6968 = vxor.u32 %v6917, 2147483648
  %v6969 = vxor.u32 %v6949, 2147483648
  %v6970 = vmul.f32 %v6962, 1.442695
  %v6971 = vpow.pop %v6970
  %v6972 = vmul.f32 %v6963, 1.442695
  %v6973 = vpow.pop %v6972
  %v6974 = vmul.f32 %v6964, 1.442695
  %v6975 = vpow.pop %v6974
  %v6976 = vmul.f32 %v6965, 1.442695
  %v6977 = vpow.pop %v6976
  %v6978 = vmul.f32 %v6966, 1.442695
  %v6979 = vpow.pop %v6978
  %v6980 = vmul.f32 %v6967, 1.442695
  %v6981 = vpow.pop %v6980
  %v6982 = vmul.f32 %v6968, 1.442695
  %v6983 = vpow.pop %v6982
  %v6984 = vmul.f32 %v6969, 1.442695
  %v6985 = vpow.pop %v6984
  %v6986 = vadd.f32 %v6971, 1.0
  %v6987 = vadd.f32 %v6973, 1.0
  %v6988 = vadd.f32 %v6975, 1.0
  %v6989 = vadd.f32 %v6977, 1.0
  %v6990 = vadd.f32 %v6979, 1.0
  %v6991 = vadd.f32 %v6981, 1.0
  %v6992 = vadd.f32 %v6983, 1.0
  %v6993 = vadd.f32 %v6985, 1.0
  %v6994 = vrcp.pop %v6986
  %v6995 = vmul.f32 %v6986, %v6994
  %v6996 = vsub.f32 1.0, %v6995
  %v6997 = vmul.f32 %v6994, %v6996
  %v6998 = vadd.f32 %v6994, %v6997
  %vm6999 = vweird.f32 %v6986
  %vm7000 = vweird.f32 %v6994
  %vm7001 = vmor %vm6999, %vm7000
  %v7002 = vsel %vm7001, %v6994, %v6998
  %v7003 = vand.u32 2147483647, %v6986
  %vm7004 = vcmp.eq.f32.partialorder %v7003, 8.507059e+37
  %v7005 = vand.u32 %v6986, 2147483648
  %v7006 = vor.u32 1.1754944e-38, %v7005
  %v7007 = vsel %vm7004, %v7006, %v7002
  %v7008 = vmul.f32 1.0, %v7007
  %v7009 = vrcp.pop %v6987
  %v7010 = vmul.f32 %v6987, %v7009
  %v7011 = vsub.f32 1.0, %v7010
  %v7012 = vmul.f32 %v7009, %v7011
  %v7013 = vadd.f32 %v7009, %v7012
  %vm7014 = vweird.f32 %v6987
  %vm7015 = vweird.f32 %v7009
  %vm7016 = vmor %vm7014, %vm7015
  %v7017 = vsel %vm7016, %v7009, %v7013
  %v7018 = vand.u32 2147483647, %v6987
  %vm7019 = vcmp.eq.f32.partialorder %v7018, 8.507059e+37
  %v7020 = vand.u32 %v6987, 2147483648
  %v7021 = vor.u32 1.1754944e-38, %v7020
  %v7022 = vsel %vm7019, %v7021, %v7017
  %v7023 = vmul.f32 1.0, %v7022
  %v7024 = vrcp.pop %v6988
  %v7025 = vmul.f32 %v6988, %v7024
  %v7026 = vsub.f32 1.0, %v7025
  %v7027 = vmul.f32 %v7024, %v7026
  %v7028 = vadd.f32 %v7024, %v7027
  %vm7029 = vweird.f32 %v6988
  %vm7030 = vweird.f32 %v7024
  %vm7031 = vmor %vm7029, %vm7030
  %v7032 = vsel %vm7031, %v7024, %v7028
  %v7033 = vand.u32 2147483647, %v6988
  %vm7034 = vcmp.eq.f32.partialorder %v7033, 8.507059e+37
  %v7035 = vand.u32 %v6988, 2147483648
  %v7036 = vor.u32 1.1754944e-38, %v7035
  %v7037 = vsel %vm7034, %v7036, %v7032
  %v7038 = vmul.f32 1.0, %v7037
  %v7039 = vrcp.pop %v6989
  %v7040 = vmul.f32 %v6989, %v7039
  %v7041 = vsub.f32 1.0, %v7040
  %v7042 = vmul.f32 %v7039, %v7041
  %v7043 = vadd.f32 %v7039, %v7042
  %vm7044 = vweird.f32 %v6989
  %vm7045 = vweird.f32 %v7039
  %vm7046 = vmor %vm7044, %vm7045
  %v7047 = vsel %vm7046, %v7039, %v7043
  %v7048 = vand.u32 2147483647, %v6989
  %vm7049 = vcmp.eq.f32.partialorder %v7048, 8.507059e+37
  %v7050 = vand.u32 %v6989, 2147483648
  %v7051 = vor.u32 1.1754944e-38, %v7050
  %v7052 = vsel %vm7049, %v7051, %v7047
  %v7053 = vmul.f32 1.0, %v7052
  %v7054 = vrcp.pop %v6990
  %v7055 = vmul.f32 %v6990, %v7054
  %v7056 = vsub.f32 1.0, %v7055
  %v7057 = vmul.f32 %v7054, %v7056
  %v7058 = vadd.f32 %v7054, %v7057
  %vm7059 = vweird.f32 %v6990
  %vm7060 = vweird.f32 %v7054
  %vm7061 = vmor %vm7059, %vm7060
  %v7062 = vsel %vm7061, %v7054, %v7058
  %v7063 = vand.u32 2147483647, %v6990
  %vm7064 = vcmp.eq.f32.partialorder %v7063, 8.507059e+37
  %v7065 = vand.u32 %v6990, 2147483648
  %v7066 = vor.u32 1.1754944e-38, %v7065
  %v7067 = vsel %vm7064, %v7066, %v7062
  %v7068 = vmul.f32 1.0, %v7067
  %v7069 = vrcp.pop %v6991
  %v7070 = vmul.f32 %v6991, %v7069
  %v7071 = vsub.f32 1.0, %v7070
  %v7072 = vmul.f32 %v7069, %v7071
  %v7073 = vadd.f32 %v7069, %v7072
  %vm7074 = vweird.f32 %v6991
  %vm7075 = vweird.f32 %v7069
  %vm7076 = vmor %vm7074, %vm7075
  %v7077 = vsel %vm7076, %v7069, %v7073
  %v7078 = vand.u32 2147483647, %v6991
  %vm7079 = vcmp.eq.f32.partialorder %v7078, 8.507059e+37
  %v7080 = vand.u32 %v6991, 2147483648
  %v7081 = vor.u32 1.1754944e-38, %v7080
  %v7082 = vsel %vm7079, %v7081, %v7077
  %v7083 = vmul.f32 1.0, %v7082
  %v7084 = vrcp.pop %v6992
  %v7085 = vmul.f32 %v6992, %v7084
  %v7086 = vsub.f32 1.0, %v7085
  %v7087 = vmul.f32 %v7084, %v7086
  %v7088 = vadd.f32 %v7084, %v7087
  %vm7089 = vweird.f32 %v6992
  %vm7090 = vweird.f32 %v7084
  %vm7091 = vmor %vm7089, %vm7090
  %v7092 = vsel %vm7091, %v7084, %v7088
  %v7093 = vand.u32 2147483647, %v6992
  %vm7094 = vcmp.eq.f32.partialorder %v7093, 8.507059e+37
  %v7095 = vand.u32 %v6992, 2147483648
  %v7096 = vor.u32 1.1754944e-38, %v7095
  %v7097 = vsel %vm7094, %v7096, %v7092
  %v7098 = vmul.f32 1.0, %v7097
  %v7099 = vrcp.pop %v6993
  %v7100 = vmul.f32 %v6993, %v7099
  %v7101 = vsub.f32 1.0, %v7100
  %v7102 = vmul.f32 %v7099, %v7101
  %v7103 = vadd.f32 %v7099, %v7102
  %vm7104 = vweird.f32 %v6993
  %vm7105 = vweird.f32 %v7099
  %vm7106 = vmor %vm7104, %vm7105
  %v7107 = vsel %vm7106, %v7099, %v7103
  %v7108 = vand.u32 2147483647, %v6993
  %vm7109 = vcmp.eq.f32.partialorder %v7108, 8.507059e+37
  %v7110 = vand.u32 %v6993, 2147483648
  %v7111 = vor.u32 1.1754944e-38, %v7110
  %v7112 = vsel %vm7109, %v7111, %v7107
  %v7113 = vmul.f32 1.0, %v7112
  %v7114 = vxor.u32 %v6918, 2147483648
  %v7115 = vxor.u32 %v6950, 2147483648
  %v7116 = vxor.u32 %v6919, 2147483648
  %v7117 = vxor.u32 %v6951, 2147483648
  %v7118 = vxor.u32 %v6920, 2147483648
  %v7119 = vxor.u32 %v6952, 2147483648
  %v7120 = vxor.u32 %v6921, 2147483648
  %v7121 = vxor.u32 %v6953, 2147483648
  %v7122 = vmul.f32 %v7114, 1.442695
  %v7123 = vpow.pop %v7122
  %v7124 = vmul.f32 %v7115, 1.442695
  %v7125 = vpow.pop %v7124
  %v7126 = vmul.f32 %v7116, 1.442695
  %v7127 = vpow.pop %v7126
  %v7128 = vmul.f32 %v7117, 1.442695
  %v7129 = vpow.pop %v7128
  %v7130 = vmul.f32 %v7118, 1.442695
  %v7131 = vpow.pop %v7130
  %v7132 = vmul.f32 %v7119, 1.442695
  %v7133 = vpow.pop %v7132
  %v7134 = vmul.f32 %v7120, 1.442695
  %v7135 = vpow.pop %v7134
  %v7136 = vmul.f32 %v7121, 1.442695
  %v7137 = vpow.pop %v7136
  %v7138 = vadd.f32 %v7123, 1.0
  %v7139 = vadd.f32 %v7125, 1.0
  %v7140 = vadd.f32 %v7127, 1.0
  %v7141 = vadd.f32 %v7129, 1.0
  %v7142 = vadd.f32 %v7131, 1.0
  %v7143 = vadd.f32 %v7133, 1.0
  %v7144 = vadd.f32 %v7135, 1.0
  %v7145 = vadd.f32 %v7137, 1.0
  %v7146 = vrcp.pop %v7138
  %v7147 = vmul.f32 %v7138, %v7146
  %v7148 = vsub.f32 1.0, %v7147
  %v7149 = vmul.f32 %v7146, %v7148
  %v7150 = vadd.f32 %v7146, %v7149
  %vm7151 = vweird.f32 %v7138
  %vm7152 = vweird.f32 %v7146
  %vm7153 = vmor %vm7151, %vm7152
  %v7154 = vsel %vm7153, %v7146, %v7150
  %v7155 = vand.u32 2147483647, %v7138
  %vm7156 = vcmp.eq.f32.partialorder %v7155, 8.507059e+37
  %v7157 = vand.u32 %v7138, 2147483648
  %v7158 = vor.u32 1.1754944e-38, %v7157
  %v7159 = vsel %vm7156, %v7158, %v7154
  %v7160 = vmul.f32 1.0, %v7159
  %v7161 = vrcp.pop %v7139
  %v7162 = vmul.f32 %v7139, %v7161
  %v7163 = vsub.f32 1.0, %v7162
  %v7164 = vmul.f32 %v7161, %v7163
  %v7165 = vadd.f32 %v7161, %v7164
  %vm7166 = vweird.f32 %v7139
  %vm7167 = vweird.f32 %v7161
  %vm7168 = vmor %vm7166, %vm7167
  %v7169 = vsel %vm7168, %v7161, %v7165
  %v7170 = vand.u32 2147483647, %v7139
  %vm7171 = vcmp.eq.f32.partialorder %v7170, 8.507059e+37
  %v7172 = vand.u32 %v7139, 2147483648
  %v7173 = vor.u32 1.1754944e-38, %v7172
  %v7174 = vsel %vm7171, %v7173, %v7169
  %v7175 = vmul.f32 1.0, %v7174
  %v7176 = vrcp.pop %v7140
  %v7177 = vmul.f32 %v7140, %v7176
  %v7178 = vsub.f32 1.0, %v7177
  %v7179 = vmul.f32 %v7176, %v7178
  %v7180 = vadd.f32 %v7176, %v7179
  %vm7181 = vweird.f32 %v7140
  %vm7182 = vweird.f32 %v7176
  %vm7183 = vmor %vm7181, %vm7182
  %v7184 = vsel %vm7183, %v7176, %v7180
  %v7185 = vand.u32 2147483647, %v7140
  %vm7186 = vcmp.eq.f32.partialorder %v7185, 8.507059e+37
  %v7187 = vand.u32 %v7140, 2147483648
  %v7188 = vor.u32 1.1754944e-38, %v7187
  %v7189 = vsel %vm7186, %v7188, %v7184
  %v7190 = vmul.f32 1.0, %v7189
  %v7191 = vrcp.pop %v7141
  %v7192 = vmul.f32 %v7141, %v7191
  %v7193 = vsub.f32 1.0, %v7192
  %v7194 = vmul.f32 %v7191, %v7193
  %v7195 = vadd.f32 %v7191, %v7194
  %vm7196 = vweird.f32 %v7141
  %vm7197 = vweird.f32 %v7191
  %vm7198 = vmor %vm7196, %vm7197
  %v7199 = vsel %vm7198, %v7191, %v7195
  %v7200 = vand.u32 2147483647, %v7141
  %vm7201 = vcmp.eq.f32.partialorder %v7200, 8.507059e+37
  %v7202 = vand.u32 %v7141, 2147483648
  %v7203 = vor.u32 1.1754944e-38, %v7202
  %v7204 = vsel %vm7201, %v7203, %v7199
  %v7205 = vmul.f32 1.0, %v7204
  %v7206 = vrcp.pop %v7142
  %v7207 = vmul.f32 %v7142, %v7206
  %v7208 = vsub.f32 1.0, %v7207
  %v7209 = vmul.f32 %v7206, %v7208
  %v7210 = vadd.f32 %v7206, %v7209
  %vm7211 = vweird.f32 %v7142
  %vm7212 = vweird.f32 %v7206
  %vm7213 = vmor %vm7211, %vm7212
  %v7214 = vsel %vm7213, %v7206, %v7210
  %v7215 = vand.u32 2147483647, %v7142
  %vm7216 = vcmp.eq.f32.partialorder %v7215, 8.507059e+37
  %v7217 = vand.u32 %v7142, 2147483648
  %v7218 = vor.u32 1.1754944e-38, %v7217
  %v7219 = vsel %vm7216, %v7218, %v7214
  %v7220 = vmul.f32 1.0, %v7219
  %v7221 = vrcp.pop %v7143
  %v7222 = vmul.f32 %v7143, %v7221
  %v7223 = vsub.f32 1.0, %v7222
  %v7224 = vmul.f32 %v7221, %v7223
  %v7225 = vadd.f32 %v7221, %v7224
  %vm7226 = vweird.f32 %v7143
  %vm7227 = vweird.f32 %v7221
  %vm7228 = vmor %vm7226, %vm7227
  %v7229 = vsel %vm7228, %v7221, %v7225
  %v7230 = vand.u32 2147483647, %v7143
  %vm7231 = vcmp.eq.f32.partialorder %v7230, 8.507059e+37
  %v7232 = vand.u32 %v7143, 2147483648
  %v7233 = vor.u32 1.1754944e-38, %v7232
  %v7234 = vsel %vm7231, %v7233, %v7229
  %v7235 = vmul.f32 1.0, %v7234
  %v7236 = vrcp.pop %v7144
  %v7237 = vmul.f32 %v7144, %v7236
  %v7238 = vsub.f32 1.0, %v7237
  %v7239 = vmul.f32 %v7236, %v7238
  %v7240 = vadd.f32 %v7236, %v7239
  %vm7241 = vweird.f32 %v7144
  %vm7242 = vweird.f32 %v7236
  %vm7243 = vmor %vm7241, %vm7242
  %v7244 = vsel %vm7243, %v7236, %v7240
  %v7245 = vand.u32 2147483647, %v7144
  %vm7246 = vcmp.eq.f32.partialorder %v7245, 8.507059e+37
  %v7247 = vand.u32 %v7144, 2147483648
  %v7248 = vor.u32 1.1754944e-38, %v7247
  %v7249 = vsel %vm7246, %v7248, %v7244
  %v7250 = vmul.f32 1.0, %v7249
  %v7251 = vrcp.pop %v7145
  %v7252 = vmul.f32 %v7145, %v7251
  %v7253 = vsub.f32 1.0, %v7252
  %v7254 = vmul.f32 %v7251, %v7253
  %v7255 = vadd.f32 %v7251, %v7254
  %vm7256 = vweird.f32 %v7145
  %vm7257 = vweird.f32 %v7251
  %vm7258 = vmor %vm7256, %vm7257
  %v7259 = vsel %vm7258, %v7251, %v7255
  %v7260 = vand.u32 2147483647, %v7145
  %vm7261 = vcmp.eq.f32.partialorder %v7260, 8.507059e+37
  %v7262 = vand.u32 %v7145, 2147483648
  %v7263 = vor.u32 1.1754944e-38, %v7262
  %v7264 = vsel %vm7261, %v7263, %v7259
  %v7265 = vmul.f32 1.0, %v7264
  %v7266 = vxor.u32 %v6922, 2147483648
  %v7267 = vxor.u32 %v6954, 2147483648
  %v7268 = vxor.u32 %v6923, 2147483648
  %v7269 = vxor.u32 %v6955, 2147483648
  %v7270 = vxor.u32 %v6924, 2147483648
  %v7271 = vxor.u32 %v6956, 2147483648
  %v7272 = vxor.u32 %v6925, 2147483648
  %v7273 = vxor.u32 %v6957, 2147483648
  %v7274 = vmul.f32 %v7266, 1.442695
  %v7275 = vpow.pop %v7274
  %v7276 = vmul.f32 %v7267, 1.442695
  %v7277 = vpow.pop %v7276
  %v7278 = vmul.f32 %v7268, 1.442695
  %v7279 = vpow.pop %v7278
  %v7280 = vmul.f32 %v7269, 1.442695
  %v7281 = vpow.pop %v7280
  %v7282 = vmul.f32 %v7270, 1.442695
  %v7283 = vpow.pop %v7282
  %v7284 = vmul.f32 %v7271, 1.442695
  %v7285 = vpow.pop %v7284
  %v7286 = vmul.f32 %v7272, 1.442695
  %v7287 = vpow.pop %v7286
  %v7288 = vmul.f32 %v7273, 1.442695
  %v7289 = vpow.pop %v7288
  %v7290 = vadd.f32 %v7275, 1.0
  %v7291 = vadd.f32 %v7277, 1.0
  %v7292 = vadd.f32 %v7279, 1.0
  %v7293 = vadd.f32 %v7281, 1.0
  %v7294 = vadd.f32 %v7283, 1.0
  %v7295 = vadd.f32 %v7285, 1.0
  %v7296 = vadd.f32 %v7287, 1.0
  %v7297 = vadd.f32 %v7289, 1.0
  %v7298 = vrcp.pop %v7290
  %v7299 = vmul.f32 %v7290, %v7298
  %v7300 = vsub.f32 1.0, %v7299
  %v7301 = vmul.f32 %v7298, %v7300
  %v7302 = vadd.f32 %v7298, %v7301
  %vm7303 = vweird.f32 %v7290
  %vm7304 = vweird.f32 %v7298
  %vm7305 = vmor %vm7303, %vm7304
  %v7306 = vsel %vm7305, %v7298, %v7302
  %v7307 = vand.u32 2147483647, %v7290
  %vm7308 = vcmp.eq.f32.partialorder %v7307, 8.507059e+37
  %v7309 = vand.u32 %v7290, 2147483648
  %v7310 = vor.u32 1.1754944e-38, %v7309
  %v7311 = vsel %vm7308, %v7310, %v7306
  %v7312 = vmul.f32 1.0, %v7311
  %v7313 = vrcp.pop %v7291
  %v7314 = vmul.f32 %v7291, %v7313
  %v7315 = vsub.f32 1.0, %v7314
  %v7316 = vmul.f32 %v7313, %v7315
  %v7317 = vadd.f32 %v7313, %v7316
  %vm7318 = vweird.f32 %v7291
  %vm7319 = vweird.f32 %v7313
  %vm7320 = vmor %vm7318, %vm7319
  %v7321 = vsel %vm7320, %v7313, %v7317
  %v7322 = vand.u32 2147483647, %v7291
  %vm7323 = vcmp.eq.f32.partialorder %v7322, 8.507059e+37
  %v7324 = vand.u32 %v7291, 2147483648
  %v7325 = vor.u32 1.1754944e-38, %v7324
  %v7326 = vsel %vm7323, %v7325, %v7321
  %v7327 = vmul.f32 1.0, %v7326
  %v7328 = vrcp.pop %v7292
  %v7329 = vmul.f32 %v7292, %v7328
  %v7330 = vsub.f32 1.0, %v7329
  %v7331 = vmul.f32 %v7328, %v7330
  %v7332 = vadd.f32 %v7328, %v7331
  %vm7333 = vweird.f32 %v7292
  %vm7334 = vweird.f32 %v7328
  %vm7335 = vmor %vm7333, %vm7334
  %v7336 = vsel %vm7335, %v7328, %v7332
  %v7337 = vand.u32 2147483647, %v7292
  %vm7338 = vcmp.eq.f32.partialorder %v7337, 8.507059e+37
  %v7339 = vand.u32 %v7292, 2147483648
  %v7340 = vor.u32 1.1754944e-38, %v7339
  %v7341 = vsel %vm7338, %v7340, %v7336
  %v7342 = vmul.f32 1.0, %v7341
  %v7343 = vrcp.pop %v7293
  %v7344 = vmul.f32 %v7293, %v7343
  %v7345 = vsub.f32 1.0, %v7344
  %v7346 = vmul.f32 %v7343, %v7345
  %v7347 = vadd.f32 %v7343, %v7346
  %vm7348 = vweird.f32 %v7293
  %vm7349 = vweird.f32 %v7343
  %vm7350 = vmor %vm7348, %vm7349
  %v7351 = vsel %vm7350, %v7343, %v7347
  %v7352 = vand.u32 2147483647, %v7293
  %vm7353 = vcmp.eq.f32.partialorder %v7352, 8.507059e+37
  %v7354 = vand.u32 %v7293, 2147483648
  %v7355 = vor.u32 1.1754944e-38, %v7354
  %v7356 = vsel %vm7353, %v7355, %v7351
  %v7357 = vmul.f32 1.0, %v7356
  %v7358 = vrcp.pop %v7294
  %v7359 = vmul.f32 %v7294, %v7358
  %v7360 = vsub.f32 1.0, %v7359
  %v7361 = vmul.f32 %v7358, %v7360
  %v7362 = vadd.f32 %v7358, %v7361
  %vm7363 = vweird.f32 %v7294
  %vm7364 = vweird.f32 %v7358
  %vm7365 = vmor %vm7363, %vm7364
  %v7366 = vsel %vm7365, %v7358, %v7362
  %v7367 = vand.u32 2147483647, %v7294
  %vm7368 = vcmp.eq.f32.partialorder %v7367, 8.507059e+37
  %v7369 = vand.u32 %v7294, 2147483648
  %v7370 = vor.u32 1.1754944e-38, %v7369
  %v7371 = vsel %vm7368, %v7370, %v7366
  %v7372 = vmul.f32 1.0, %v7371
  %v7373 = vrcp.pop %v7295
  %v7374 = vmul.f32 %v7295, %v7373
  %v7375 = vsub.f32 1.0, %v7374
  %v7376 = vmul.f32 %v7373, %v7375
  %v7377 = vadd.f32 %v7373, %v7376
  %vm7378 = vweird.f32 %v7295
  %vm7379 = vweird.f32 %v7373
  %vm7380 = vmor %vm7378, %vm7379
  %v7381 = vsel %vm7380, %v7373, %v7377
  %v7382 = vand.u32 2147483647, %v7295
  %vm7383 = vcmp.eq.f32.partialorder %v7382, 8.507059e+37
  %v7384 = vand.u32 %v7295, 2147483648
  %v7385 = vor.u32 1.1754944e-38, %v7384
  %v7386 = vsel %vm7383, %v7385, %v7381
  %v7387 = vmul.f32 1.0, %v7386
  %v7388 = vrcp.pop %v7296
  %v7389 = vmul.f32 %v7296, %v7388
  %v7390 = vsub.f32 1.0, %v7389
  %v7391 = vmul.f32 %v7388, %v7390
  %v7392 = vadd.f32 %v7388, %v7391
  %vm7393 = vweird.f32 %v7296
  %vm7394 = vweird.f32 %v7388
  %vm7395 = vmor %vm7393, %vm7394
  %v7396 = vsel %vm7395, %v7388, %v7392
  %v7397 = vand.u32 2147483647, %v7296
  %vm7398 = vcmp.eq.f32.partialorder %v7397, 8.507059e+37
  %v7399 = vand.u32 %v7296, 2147483648
  %v7400 = vor.u32 1.1754944e-38, %v7399
  %v7401 = vsel %vm7398, %v7400, %v7396
  %v7402 = vmul.f32 1.0, %v7401
  %v7403 = vrcp.pop %v7297
  %v7404 = vmul.f32 %v7297, %v7403
  %v7405 = vsub.f32 1.0, %v7404
  %v7406 = vmul.f32 %v7403, %v7405
  %v7407 = vadd.f32 %v7403, %v7406
  %vm7408 = vweird.f32 %v7297
  %vm7409 = vweird.f32 %v7403
  %vm7410 = vmor %vm7408, %vm7409
  %v7411 = vsel %vm7410, %v7403, %v7407
  %v7412 = vand.u32 2147483647, %v7297
  %vm7413 = vcmp.eq.f32.partialorder %v7412, 8.507059e+37
  %v7414 = vand.u32 %v7297, 2147483648
  %v7415 = vor.u32 1.1754944e-38, %v7414
  %v7416 = vsel %vm7413, %v7415, %v7411
  %v7417 = vmul.f32 1.0, %v7416
  %v7418 = vtanh.pop %v6926
  %v7419 = vtanh.pop %v6958
  %v7420 = vtanh.pop %v6927
  %v7421 = vtanh.pop %v6959
  %v7422 = vtanh.pop %v6928
  %v7423 = vtanh.pop %v6960
  %v7424 = vtanh.pop %v6929
  %v7425 = vtanh.pop %v6961
  %s7426 = scalar_lea.vmem %s3, 64
  %v7427 = vld [vmem:[%s7426] sm:$0xff]
  %v7428 = vld [vmem:[%s7426 + $0x8] sm:$0xff]
  %v7429 = vld [vmem:[%s7426 + $0x10] sm:$0xff]
  %v7430 = vld [vmem:[%s7426 + $0x18] sm:$0xff]
  %v7431 = vld [vmem:[%s7426 + $0x20] sm:$0xff]
  %v7432 = vld [vmem:[%s7426 + $0x28] sm:$0xff]
  %v7433 = vld [vmem:[%s7426 + $0x30] sm:$0xff]
  %v7434 = vld [vmem:[%s7426 + $0x38] sm:$0xff]
  %v7435 = vmul.f32 %v7160, %v7427
  %v7436 = vmul.f32 %v7175, %v7428
  %v7437 = vmul.f32 %v7190, %v7429
  %v7438 = vmul.f32 %v7205, %v7430
  %v7439 = vmul.f32 %v7220, %v7431
  %v7440 = vmul.f32 %v7235, %v7432
  %v7441 = vmul.f32 %v7250, %v7433
  %v7442 = vmul.f32 %v7265, %v7434
  %v7443 = vmul.f32 %v7008, %v7418
  %v7444 = vmul.f32 %v7023, %v7419
  %v7445 = vmul.f32 %v7038, %v7420
  %v7446 = vmul.f32 %v7053, %v7421
  %v7447 = vmul.f32 %v7068, %v7422
  %v7448 = vmul.f32 %v7083, %v7423
  %v7449 = vmul.f32 %v7098, %v7424
  %v7450 = vmul.f32 %v7113, %v7425
  %v7451 = vadd.f32 %v7435, %v7443
  %v7452 = vadd.f32 %v7436, %v7444
  %v7453 = vadd.f32 %v7437, %v7445
  %v7454 = vadd.f32 %v7438, %v7446
  %v7455 = vadd.f32 %v7439, %v7447
  %v7456 = vadd.f32 %v7440, %v7448
  %v7457 = vadd.f32 %v7441, %v7449
  %v7458 = vadd.f32 %v7442, %v7450
  %v7459 = vtanh.pop %v7451
  %v7460 = vtanh.pop %v7452
  %v7461 = vtanh.pop %v7453
  %v7462 = vtanh.pop %v7454
  %v7463 = vtanh.pop %v7455
  %v7464 = vtanh.pop %v7456
  %v7465 = vtanh.pop %v7457
  %v7466 = vtanh.pop %v7458
  %v7467 = vmul.f32 %v7312, %v7459
  %v7468 = vmul.f32 %v7327, %v7460
  %v7469 = vmul.f32 %v7342, %v7461
  %v7470 = vmul.f32 %v7357, %v7462
  %v7471 = vmul.f32 %v7372, %v7463
  %v7472 = vmul.f32 %v7387, %v7464
  %v7473 = vmul.f32 %v7402, %v7465
  %v7474 = vmul.f32 %v7417, %v7466
  %s7475 = scalar_lea.vmem %s4, 64
  %7476 = vst [vmem:[%s7475] sm:$0xff] %v7467
  %7477 = vst [vmem:[%s7475 + $0x8] sm:$0xff] %v7468
  %7478 = vst [vmem:[%s7475 + $0x10] sm:$0xff] %v7469
  %7479 = vst [vmem:[%s7475 + $0x18] sm:$0xff] %v7470
  %7480 = vst [vmem:[%s7475 + $0x20] sm:$0xff] %v7471
  %7481 = vst [vmem:[%s7475 + $0x28] sm:$0xff] %v7472
  %7482 = vst [vmem:[%s7475 + $0x30] sm:$0xff] %v7473
  %7483 = vst [vmem:[%s7475 + $0x38] sm:$0xff] %v7474
  %s7484 = scalar_lea.vmem %s5, 64
  %7485 = vst [vmem:[%s7484] sm:$0xff] %v7451
  %7486 = vst [vmem:[%s7484 + $0x8] sm:$0xff] %v7452
  %7487 = vst [vmem:[%s7484 + $0x10] sm:$0xff] %v7453
  %7488 = vst [vmem:[%s7484 + $0x18] sm:$0xff] %v7454
  %7489 = vst [vmem:[%s7484 + $0x20] sm:$0xff] %v7455
  %7490 = vst [vmem:[%s7484 + $0x28] sm:$0xff] %v7456
  %7491 = vst [vmem:[%s7484 + $0x30] sm:$0xff] %v7457
  %7492 = vst [vmem:[%s7484 + $0x38] sm:$0xff] %v7458
  // Predicated region
  $region18: #{conv_lstm_forward.1} parent=0 // pred_check
    _
  $region19: #{conv_lstm_forward.1} parent=0 // pred_check_branch
    %7494 = sbr.rel (0) target = $region21
  $region20: #{conv_lstm_forward.1} parent=0 // pred_region
    _
  $region21: #{conv_lstm_forward.1} parent=0 // pred_fallthru
    _
  // Predicated region
  $region22: #{conv_lstm_forward.1} parent=0 // pred_check
    _
  $region23: #{conv_lstm_forward.1} parent=0 // pred_check_branch
    %7496 = sbr.rel (0) target = $region25
  $region24: #{conv_lstm_forward.1} parent=0 // pred_region
    _
  $region25: #{conv_lstm_forward.1} parent=0 // pred_fallthru
    _
  // Predicated region
  $region26: #{conv_lstm_forward.1} parent=0 // pred_check
    _
  $region27: #{conv_lstm_forward.1} parent=0 // pred_check_branch
    %7498 = sbr.rel (0) target = $region29
  $region28: #{conv_lstm_forward.1} parent=0 // pred_region
    _
  $region29: #{conv_lstm_forward.1} parent=0 // pred_fallthru
    _
  // Predicated region
  $region30: #{conv_lstm_forward.1} parent=0 // pred_check
    _
  $region31: #{conv_lstm_forward.1} parent=0 // pred_check_branch
    %7500 = sbr.rel (0) target = $region33
  $region32: #{conv_lstm_forward.1} parent=0 // pred_region
    _
  $region33: #{conv_lstm_forward.1} parent=0 // pred_fallthru
    _

</llo_original>
